<compile_context>
chip_gen: v6e
topology: v6e:2x2x1
jax: 0.10.0
libtpu: 0.0.40
codegen_flags: <defaults>
</compile_context>

<pallas_src>
import jax
import jax.numpy as jnp
from jax.experimental import pallas as pl
from jax.experimental.pallas import tpu as pltpu


# ----------------------------------------------------------------------------
# Fused Pallas kernel: conv1 + pool1 + conv2 + pool2 + FC for one image
# ----------------------------------------------------------------------------
def cnn_fused_kernel(xp_ref, w1_ref, b1_ref, w2_ref, b2_ref, wa_ref, bfc_ref,
                     out_ref, cols1_ref, z1p_ref, cols2_ref):
    # ---------------- conv1: in-kernel im2col + ONE matmul -------------------
    xrow = xp_ref[0]                                   # (1, 1024) f32, padded 32x32
    for kh in range(5):
        for kw in range(5):
            t = kh * 5 + kw
            s = 32 * kh + kw                           # tap offset in the flat plane
            cols1_ref[t:t + 1, :] = xrow[:, s:s + 892]
    y1 = jnp.dot(w1_ref[...], cols1_ref[...],
                 preferred_element_type=jnp.float32)   # (16, 892)
    y1 = jnp.maximum(y1 + b1_ref[...], 0.0)            # bias + ReLU

    # ---------------- maxpool1 via lane-shifted slices -----------------------
    # valid pooled value at lane 64*i + 2*j  (i, j in [0,14))
    z1 = jnp.maximum(jnp.maximum(y1[:, 0:859], y1[:, 1:860]),
                     jnp.maximum(y1[:, 32:891], y1[:, 33:892]))   # (16, 859)
    z1 = z1.astype(jnp.bfloat16)

    # ---------------- scatter pooled grid into zero-padded 36x36 plane -------
    z1p_ref[...] = jnp.zeros_like(z1p_ref)             # (16, 1296) bf16
    for gi in range(27):                               # grid row 27 is garbage-only
        width = 28 if gi < 26 else 27
        d0 = (4 + gi) * 36 + 4
        z1p_ref[:, d0:d0 + width] = z1[:, 32 * gi:32 * gi + width]

    # ---------------- conv2: in-kernel im2col (25 lane-dense copies) ---------
    for kh in range(5):
        for kw in range(5):
            t = kh * 5 + kw
            s = 72 * kh + 2 * kw
            cols2_ref[16 * t:16 * t + 16, :] = z1p_ref[:, s:s + 1000]
    y2 = jnp.dot(w2_ref[...], cols2_ref[...],
                 preferred_element_type=jnp.float32)   # (32, 1000), bf16 x bf16 -> f32
    y2 = jnp.maximum(y2 + b2_ref[...], 0.0)            # bias + ReLU

    # ---------------- maxpool2 via lane-shifted slices -----------------------
    # valid pooled value at lane 144*i2 + 4*j2  (i2, j2 in [0,7))
    z2 = jnp.maximum(jnp.maximum(y2[:, 0:896], y2[:, 2:898]),
                     jnp.maximum(y2[:, 72:968], y2[:, 74:970]))   # (32, 896)

    # ---------------- FC with pre-expanded (zero-padded) weights -------------
    # p[c', 10*c + o] = sum_e z2[c', e] * WA[e, 10*c + o]; take "diagonal" c'==c.
    p = jnp.dot(z2, wa_ref[...], preferred_element_type=jnp.float32)  # (32, 320)
    acc = bfc_ref[...]                                                # (1, 10)
    for c in range(32):
        acc = acc + p[c:c + 1, 10 * c:10 * (c + 1)]
    out_ref[0] = acc


# ----------------------------------------------------------------------------
# Wrapper: parameter re-layout (load-time, free) + single pallas_call
# ----------------------------------------------------------------------------
def cnn_forward(x_nchw, params):
    n = x_nchw.shape[0]

    # Input prep: NCHW with C=1 -> padded flat plane (no transpose needed).
    x2d = x_nchw[:, 0]                                         # (N, 28, 28)
    xp = jnp.pad(x2d, ((0, 0), (2, 2), (2, 2)))                # (N, 32, 32)
    xpf = xp.reshape(n, 1, 32 * 32).astype(jnp.float32)        # (N, 1, 1024)

    # Conv weights, transposed so channels sit on sublanes (lane-dense outputs).
    w1t = params["w1"].reshape(25, 16).T.astype(jnp.float32)    # (16, 25)
    b1r = params["b1"].reshape(16, 1).astype(jnp.float32)
    w2t = params["w2"].reshape(400, 32).T.astype(jnp.bfloat16)  # (32, 400)
    b2r = params["b2"].reshape(32, 1).astype(jnp.float32)

    # Expanded FC weight: WA[e, 10*c + o] = wf[c*49 + i2*7 + j2, o] at the valid
    # pooled lanes e = 144*i2 + 4*j2, zero elsewhere (torch's C-major flatten).
    e_idx = (144 * jnp.arange(7)[:, None] + 4 * jnp.arange(7)[None, :]).reshape(-1)
    wf3 = params["wf"].reshape(32, 49, 10)                      # [c, p, o]
    wa = jnp.zeros((896, 32, 10), jnp.float32)
    wa = wa.at[e_idx].set(jnp.transpose(wf3, (1, 0, 2)))
    wa = wa.reshape(896, 320)
    bfr = params["bf"].reshape(1, 10).astype(jnp.float32)

    out = pl.pallas_call(
        cnn_fused_kernel,
        out_shape=jax.ShapeDtypeStruct((n, 1, 10), jnp.float32),
        grid=(n,),
        in_specs=[
            pl.BlockSpec((1, 1, 1024), lambda i: (i, 0, 0)),   # padded image
            pl.BlockSpec((16, 25), lambda i: (0, 0)),          # w1^T
            pl.BlockSpec((16, 1), lambda i: (0, 0)),           # b1
            pl.BlockSpec((32, 400), lambda i: (0, 0)),         # w2^T (bf16)
            pl.BlockSpec((32, 1), lambda i: (0, 0)),           # b2
            pl.BlockSpec((896, 320), lambda i: (0, 0)),        # expanded FC weight
            pl.BlockSpec((1, 10), lambda i: (0, 0)),           # FC bias
        ],
        out_specs=pl.BlockSpec((1, 1, 10), lambda i: (i, 0, 0)),
        scratch_shapes=[
            pltpu.VMEM((25, 892), jnp.float32),     # conv1 im2col
            pltpu.VMEM((16, 1296), jnp.bfloat16),   # padded pooled-conv1 plane
            pltpu.VMEM((400, 1000), jnp.bfloat16),  # conv2 im2col
        ],
        compiler_params=pltpu.CompilerParams(
            dimension_semantics=("parallel",),
            vmem_limit_bytes=32 * 1024 * 1024,
        ),
    )(xpf, w1t, b1r, w2t, b2r, wa, bfr)
    return out.reshape(n, 10)


# ----------------------------------------------------------------------------
# Pure-JAX reference (correctness check only)
# ----------------------------------------------------------------------------
def cnn_reference(x_nchw, params):
    hi = jax.lax.Precision.HIGHEST

    def conv(x, w, b):
        y = jax.lax.conv_general_dilated(
            x, w, window_strides=(1, 1),
            padding=((2, 2), (2, 2)),
            dimension_numbers=("NHWC", "HWIO", "NHWC"),
            precision=hi)
        return y + b[None, None, None, :]

    def pool(x):
        return jax.lax.reduce_window(
            x, -jnp.inf, jax.lax.max, (1, 2, 2, 1), (1, 2, 2, 1), "VALID")

    x = jnp.transpose(x_nchw, (0, 2, 3, 1))
    h = pool(jnp.maximum(conv(x, params["w1"], params["b1"]), 0.0))
    h = pool(jnp.maximum(conv(h, params["w2"], params["b2"]), 0.0))
    flat = jnp.transpose(h, (0, 3, 1, 2)).reshape(h.shape[0], -1)
    return jnp.dot(flat, params["wf"], precision=hi) + params["bf"]


# ----------------------------------------------------------------------------
if __name__ == "__main__":
    key = jax.random.PRNGKey(0)
    ks = jax.random.split(key, 7)
    # Deterministic synthetic parameters (shapes from CNNModel.__init__),
    # conv weights in HWIO, fc weight rows in torch's C-major flatten order.
    params = {
        "w1": 0.10 * jax.random.normal(ks[0], (5, 5, 1, 16), jnp.float32),
        "b1": 0.10 * jax.random.normal(ks[1], (16,), jnp.float32),
        "w2": 0.05 * jax.random.normal(ks[2], (5, 5, 16, 32), jnp.float32),
        "b2": 0.10 * jax.random.normal(ks[3], (32,), jnp.float32),
        "wf": 0.02 * jax.random.normal(ks[4], (32 * 7 * 7, 10), jnp.float32),
        "bf": 0.10 * jax.random.normal(ks[5], (10,), jnp.float32),
    }
    # fc1 expects 32*7*7 features, so spatial must be 28x28 (MNIST-like). N=2.
    x = jax.random.normal(ks[6], (2, 1, 28, 28), jnp.float32)     # NCHW

    out = jax.jit(cnn_forward)(x, params)
    out = jax.block_until_ready(out)
    assert out.shape == (2, 10) and out.dtype == jnp.float32

    ref = cnn_reference(x, params)
    assert jnp.allclose(out, ref, atol=3e-2, rtol=3e-2), (
        "max abs err", float(jnp.max(jnp.abs(out - ref))))

    print("KERNEL_OK")
</pallas_src>

<mosaic_0001>
module attributes {stable_mosaic.version = 11 : i64} {
  func.func @cnn_fused_kernel(%arg0: i32, %arg1: memref<1x1x1024xf32, #tpu.memory_space<vmem>>, %arg2: memref<16x25xf32, #tpu.memory_space<vmem>>, %arg3: memref<16x1xf32, #tpu.memory_space<vmem>>, %arg4: memref<32x400xbf16, #tpu.memory_space<vmem>>, %arg5: memref<32x1xf32, #tpu.memory_space<vmem>>, %arg6: memref<896x320xf32, #tpu.memory_space<vmem>>, %arg7: memref<1x10xf32, #tpu.memory_space<vmem>>, %arg8: memref<1x1x10xf32, #tpu.memory_space<vmem>>, %arg9: memref<25x892xf32, #tpu.memory_space<vmem>>, %arg10: memref<16x1296xbf16, #tpu.memory_space<vmem>>, %arg11: memref<400x1000xbf16, #tpu.memory_space<vmem>>) attributes {dimension_semantics = [#tpu.dimension_semantics<parallel>], iteration_bounds = array<i64: 2>, scalar_prefetch = 0 : i64, scratch_operands = 3 : i64, tpu.core_type = #tpu.core_type<tc>, window_params = [{transform_indices = @transform_0, window_bounds = array<i64: 1, 1, 1024>}, {pipeline_mode = #tpu.pipeline_mode<synchronous>, transform_indices = @transform_1, window_bounds = array<i64: 16, 25>}, {pipeline_mode = #tpu.pipeline_mode<synchronous>, transform_indices = @transform_2, window_bounds = array<i64: 16, 1>}, {pipeline_mode = #tpu.pipeline_mode<synchronous>, transform_indices = @transform_3, window_bounds = array<i64: 32, 400>}, {pipeline_mode = #tpu.pipeline_mode<synchronous>, transform_indices = @transform_4, window_bounds = array<i64: 32, 1>}, {pipeline_mode = #tpu.pipeline_mode<synchronous>, transform_indices = @transform_5, window_bounds = array<i64: 896, 320>}, {pipeline_mode = #tpu.pipeline_mode<synchronous>, transform_indices = @transform_6, window_bounds = array<i64: 1, 10>}, {transform_indices = @transform_7, window_bounds = array<i64: 1, 1, 10>}]} {
    %c0 = arith.constant 0 : index
    %c0_0 = arith.constant 0 : index
    %c0_1 = arith.constant 0 : index
    %0 = vector.load %arg1[%c0, %c0_0, %c0_1] : memref<1x1x1024xf32, #tpu.memory_space<vmem>>, vector<1x1x1024xf32>
    %1 = vector.shape_cast %0 : vector<1x1x1024xf32> to vector<1x1024xf32>
    %2 = vector.extract_strided_slice %1 {offsets = [0, 0], sizes = [1, 892], strides = [1, 1]} : vector<1x1024xf32> to vector<1x892xf32>
    %c0_2 = arith.constant 0 : index
    %c0_3 = arith.constant 0 : index
    %3 = vector.load %arg9[%c0_2, %c0_3] : memref<25x892xf32, #tpu.memory_space<vmem>>, vector<1x892xf32>
    tpu.vector_store %arg9[%c0_2, %c0_3], %2 {strides = array<i32>} : memref<25x892xf32, #tpu.memory_space<vmem>>, vector<1x892xf32>,
    %4 = vector.extract_strided_slice %1 {offsets = [0, 1], sizes = [1, 892], strides = [1, 1]} : vector<1x1024xf32> to vector<1x892xf32>
    %c1 = arith.constant 1 : index
    %c0_4 = arith.constant 0 : index
    %5 = vector.load %arg9[%c1, %c0_4] : memref<25x892xf32, #tpu.memory_space<vmem>>, vector<1x892xf32>
    tpu.vector_store %arg9[%c1, %c0_4], %4 {strides = array<i32>} : memref<25x892xf32, #tpu.memory_space<vmem>>, vector<1x892xf32>,
    %6 = vector.extract_strided_slice %1 {offsets = [0, 2], sizes = [1, 892], strides = [1, 1]} : vector<1x1024xf32> to vector<1x892xf32>
    %c2 = arith.constant 2 : index
    %c0_5 = arith.constant 0 : index
    %7 = vector.load %arg9[%c2, %c0_5] : memref<25x892xf32, #tpu.memory_space<vmem>>, vector<1x892xf32>
    tpu.vector_store %arg9[%c2, %c0_5], %6 {strides = array<i32>} : memref<25x892xf32, #tpu.memory_space<vmem>>, vector<1x892xf32>,
    %8 = vector.extract_strided_slice %1 {offsets = [0, 3], sizes = [1, 892], strides = [1, 1]} : vector<1x1024xf32> to vector<1x892xf32>
    %c3 = arith.constant 3 : index
    %c0_6 = arith.constant 0 : index
    %9 = vector.load %arg9[%c3, %c0_6] : memref<25x892xf32, #tpu.memory_space<vmem>>, vector<1x892xf32>
    tpu.vector_store %arg9[%c3, %c0_6], %8 {strides = array<i32>} : memref<25x892xf32, #tpu.memory_space<vmem>>, vector<1x892xf32>,
    %10 = vector.extract_strided_slice %1 {offsets = [0, 4], sizes = [1, 892], strides = [1, 1]} : vector<1x1024xf32> to vector<1x892xf32>
    %c4 = arith.constant 4 : index
    %c0_7 = arith.constant 0 : index
    %11 = vector.load %arg9[%c4, %c0_7] : memref<25x892xf32, #tpu.memory_space<vmem>>, vector<1x892xf32>
    tpu.vector_store %arg9[%c4, %c0_7], %10 {strides = array<i32>} : memref<25x892xf32, #tpu.memory_space<vmem>>, vector<1x892xf32>,
    %12 = vector.extract_strided_slice %1 {offsets = [0, 32], sizes = [1, 892], strides = [1, 1]} : vector<1x1024xf32> to vector<1x892xf32>
    %c5 = arith.constant 5 : index
    %c0_8 = arith.constant 0 : index
    %13 = vector.load %arg9[%c5, %c0_8] : memref<25x892xf32, #tpu.memory_space<vmem>>, vector<1x892xf32>
    tpu.vector_store %arg9[%c5, %c0_8], %12 {strides = array<i32>} : memref<25x892xf32, #tpu.memory_space<vmem>>, vector<1x892xf32>,
    %14 = vector.extract_strided_slice %1 {offsets = [0, 33], sizes = [1, 892], strides = [1, 1]} : vector<1x1024xf32> to vector<1x892xf32>
    %c6 = arith.constant 6 : index
    %c0_9 = arith.constant 0 : index
    %15 = vector.load %arg9[%c6, %c0_9] : memref<25x892xf32, #tpu.memory_space<vmem>>, vector<1x892xf32>
    tpu.vector_store %arg9[%c6, %c0_9], %14 {strides = array<i32>} : memref<25x892xf32, #tpu.memory_space<vmem>>, vector<1x892xf32>,
    %16 = vector.extract_strided_slice %1 {offsets = [0, 34], sizes = [1, 892], strides = [1, 1]} : vector<1x1024xf32> to vector<1x892xf32>
    %c7 = arith.constant 7 : index
    %c0_10 = arith.constant 0 : index
    %17 = vector.load %arg9[%c7, %c0_10] : memref<25x892xf32, #tpu.memory_space<vmem>>, vector<1x892xf32>
    tpu.vector_store %arg9[%c7, %c0_10], %16 {strides = array<i32>} : memref<25x892xf32, #tpu.memory_space<vmem>>, vector<1x892xf32>,
    %18 = vector.extract_strided_slice %1 {offsets = [0, 35], sizes = [1, 892], strides = [1, 1]} : vector<1x1024xf32> to vector<1x892xf32>
    %c8 = arith.constant 8 : index
    %c0_11 = arith.constant 0 : index
    %19 = vector.load %arg9[%c8, %c0_11] : memref<25x892xf32, #tpu.memory_space<vmem>>, vector<1x892xf32>
    tpu.vector_store %arg9[%c8, %c0_11], %18 {strides = array<i32>} : memref<25x892xf32, #tpu.memory_space<vmem>>, vector<1x892xf32>,
    %20 = vector.extract_strided_slice %1 {offsets = [0, 36], sizes = [1, 892], strides = [1, 1]} : vector<1x1024xf32> to vector<1x892xf32>
    %c9 = arith.constant 9 : index
    %c0_12 = arith.constant 0 : index
    %21 = vector.load %arg9[%c9, %c0_12] : memref<25x892xf32, #tpu.memory_space<vmem>>, vector<1x892xf32>
    tpu.vector_store %arg9[%c9, %c0_12], %20 {strides = array<i32>} : memref<25x892xf32, #tpu.memory_space<vmem>>, vector<1x892xf32>,
    %22 = vector.extract_strided_slice %1 {offsets = [0, 64], sizes = [1, 892], strides = [1, 1]} : vector<1x1024xf32> to vector<1x892xf32>
    %c10 = arith.constant 10 : index
    %c0_13 = arith.constant 0 : index
    %23 = vector.load %arg9[%c10, %c0_13] : memref<25x892xf32, #tpu.memory_space<vmem>>, vector<1x892xf32>
    tpu.vector_store %arg9[%c10, %c0_13], %22 {strides = array<i32>} : memref<25x892xf32, #tpu.memory_space<vmem>>, vector<1x892xf32>,
    %24 = vector.extract_strided_slice %1 {offsets = [0, 65], sizes = [1, 892], strides = [1, 1]} : vector<1x1024xf32> to vector<1x892xf32>
    %c11 = arith.constant 11 : index
    %c0_14 = arith.constant 0 : index
    %25 = vector.load %arg9[%c11, %c0_14] : memref<25x892xf32, #tpu.memory_space<vmem>>, vector<1x892xf32>
    tpu.vector_store %arg9[%c11, %c0_14], %24 {strides = array<i32>} : memref<25x892xf32, #tpu.memory_space<vmem>>, vector<1x892xf32>,
    %26 = vector.extract_strided_slice %1 {offsets = [0, 66], sizes = [1, 892], strides = [1, 1]} : vector<1x1024xf32> to vector<1x892xf32>
    %c12 = arith.constant 12 : index
    %c0_15 = arith.constant 0 : index
    %27 = vector.load %arg9[%c12, %c0_15] : memref<25x892xf32, #tpu.memory_space<vmem>>, vector<1x892xf32>
    tpu.vector_store %arg9[%c12, %c0_15], %26 {strides = array<i32>} : memref<25x892xf32, #tpu.memory_space<vmem>>, vector<1x892xf32>,
    %28 = vector.extract_strided_slice %1 {offsets = [0, 67], sizes = [1, 892], strides = [1, 1]} : vector<1x1024xf32> to vector<1x892xf32>
    %c13 = arith.constant 13 : index
    %c0_16 = arith.constant 0 : index
    %29 = vector.load %arg9[%c13, %c0_16] : memref<25x892xf32, #tpu.memory_space<vmem>>, vector<1x892xf32>
    tpu.vector_store %arg9[%c13, %c0_16], %28 {strides = array<i32>} : memref<25x892xf32, #tpu.memory_space<vmem>>, vector<1x892xf32>,
    %30 = vector.extract_strided_slice %1 {offsets = [0, 68], sizes = [1, 892], strides = [1, 1]} : vector<1x1024xf32> to vector<1x892xf32>
    %c14 = arith.constant 14 : index
    %c0_17 = arith.constant 0 : index
    %31 = vector.load %arg9[%c14, %c0_17] : memref<25x892xf32, #tpu.memory_space<vmem>>, vector<1x892xf32>
    tpu.vector_store %arg9[%c14, %c0_17], %30 {strides = array<i32>} : memref<25x892xf32, #tpu.memory_space<vmem>>, vector<1x892xf32>,
    %32 = vector.extract_strided_slice %1 {offsets = [0, 96], sizes = [1, 892], strides = [1, 1]} : vector<1x1024xf32> to vector<1x892xf32>
    %c15 = arith.constant 15 : index
    %c0_18 = arith.constant 0 : index
    %33 = vector.load %arg9[%c15, %c0_18] : memref<25x892xf32, #tpu.memory_space<vmem>>, vector<1x892xf32>
    tpu.vector_store %arg9[%c15, %c0_18], %32 {strides = array<i32>} : memref<25x892xf32, #tpu.memory_space<vmem>>, vector<1x892xf32>,
    %34 = vector.extract_strided_slice %1 {offsets = [0, 97], sizes = [1, 892], strides = [1, 1]} : vector<1x1024xf32> to vector<1x892xf32>
    %c16 = arith.constant 16 : index
    %c0_19 = arith.constant 0 : index
    %35 = vector.load %arg9[%c16, %c0_19] : memref<25x892xf32, #tpu.memory_space<vmem>>, vector<1x892xf32>
    tpu.vector_store %arg9[%c16, %c0_19], %34 {strides = array<i32>} : memref<25x892xf32, #tpu.memory_space<vmem>>, vector<1x892xf32>,
    %36 = vector.extract_strided_slice %1 {offsets = [0, 98], sizes = [1, 892], strides = [1, 1]} : vector<1x1024xf32> to vector<1x892xf32>
    %c17 = arith.constant 17 : index
    %c0_20 = arith.constant 0 : index
    %37 = vector.load %arg9[%c17, %c0_20] : memref<25x892xf32, #tpu.memory_space<vmem>>, vector<1x892xf32>
    tpu.vector_store %arg9[%c17, %c0_20], %36 {strides = array<i32>} : memref<25x892xf32, #tpu.memory_space<vmem>>, vector<1x892xf32>,
    %38 = vector.extract_strided_slice %1 {offsets = [0, 99], sizes = [1, 892], strides = [1, 1]} : vector<1x1024xf32> to vector<1x892xf32>
    %c18 = arith.constant 18 : index
    %c0_21 = arith.constant 0 : index
    %39 = vector.load %arg9[%c18, %c0_21] : memref<25x892xf32, #tpu.memory_space<vmem>>, vector<1x892xf32>
    tpu.vector_store %arg9[%c18, %c0_21], %38 {strides = array<i32>} : memref<25x892xf32, #tpu.memory_space<vmem>>, vector<1x892xf32>,
    %40 = vector.extract_strided_slice %1 {offsets = [0, 100], sizes = [1, 892], strides = [1, 1]} : vector<1x1024xf32> to vector<1x892xf32>
    %c19 = arith.constant 19 : index
    %c0_22 = arith.constant 0 : index
    %41 = vector.load %arg9[%c19, %c0_22] : memref<25x892xf32, #tpu.memory_space<vmem>>, vector<1x892xf32>
    tpu.vector_store %arg9[%c19, %c0_22], %40 {strides = array<i32>} : memref<25x892xf32, #tpu.memory_space<vmem>>, vector<1x892xf32>,
    %42 = vector.extract_strided_slice %1 {offsets = [0, 128], sizes = [1, 892], strides = [1, 1]} : vector<1x1024xf32> to vector<1x892xf32>
    %c20 = arith.constant 20 : index
    %c0_23 = arith.constant 0 : index
    %43 = vector.load %arg9[%c20, %c0_23] : memref<25x892xf32, #tpu.memory_space<vmem>>, vector<1x892xf32>
    tpu.vector_store %arg9[%c20, %c0_23], %42 {strides = array<i32>} : memref<25x892xf32, #tpu.memory_space<vmem>>, vector<1x892xf32>,
    %44 = vector.extract_strided_slice %1 {offsets = [0, 129], sizes = [1, 892], strides = [1, 1]} : vector<1x1024xf32> to vector<1x892xf32>
    %c21 = arith.constant 21 : index
    %c0_24 = arith.constant 0 : index
    %45 = vector.load %arg9[%c21, %c0_24] : memref<25x892xf32, #tpu.memory_space<vmem>>, vector<1x892xf32>
    tpu.vector_store %arg9[%c21, %c0_24], %44 {strides = array<i32>} : memref<25x892xf32, #tpu.memory_space<vmem>>, vector<1x892xf32>,
    %46 = vector.extract_strided_slice %1 {offsets = [0, 130], sizes = [1, 892], strides = [1, 1]} : vector<1x1024xf32> to vector<1x892xf32>
    %c22 = arith.constant 22 : index
    %c0_25 = arith.constant 0 : index
    %47 = vector.load %arg9[%c22, %c0_25] : memref<25x892xf32, #tpu.memory_space<vmem>>, vector<1x892xf32>
    tpu.vector_store %arg9[%c22, %c0_25], %46 {strides = array<i32>} : memref<25x892xf32, #tpu.memory_space<vmem>>, vector<1x892xf32>,
    %48 = vector.extract_strided_slice %1 {offsets = [0, 131], sizes = [1, 892], strides = [1, 1]} : vector<1x1024xf32> to vector<1x892xf32>
    %c23 = arith.constant 23 : index
    %c0_26 = arith.constant 0 : index
    %49 = vector.load %arg9[%c23, %c0_26] : memref<25x892xf32, #tpu.memory_space<vmem>>, vector<1x892xf32>
    tpu.vector_store %arg9[%c23, %c0_26], %48 {strides = array<i32>} : memref<25x892xf32, #tpu.memory_space<vmem>>, vector<1x892xf32>,
    %50 = vector.extract_strided_slice %1 {offsets = [0, 132], sizes = [1, 892], strides = [1, 1]} : vector<1x1024xf32> to vector<1x892xf32>
    %c24 = arith.constant 24 : index
    %c0_27 = arith.constant 0 : index
    %51 = vector.load %arg9[%c24, %c0_27] : memref<25x892xf32, #tpu.memory_space<vmem>>, vector<1x892xf32>
    tpu.vector_store %arg9[%c24, %c0_27], %50 {strides = array<i32>} : memref<25x892xf32, #tpu.memory_space<vmem>>, vector<1x892xf32>,
    %c0_28 = arith.constant 0 : index
    %c0_29 = arith.constant 0 : index
    %52 = vector.load %arg2[%c0_28, %c0_29] : memref<16x25xf32, #tpu.memory_space<vmem>>, vector<16x25xf32>
    %c0_30 = arith.constant 0 : index
    %c0_31 = arith.constant 0 : index
    %53 = vector.load %arg9[%c0_30, %c0_31] : memref<25x892xf32, #tpu.memory_space<vmem>>, vector<25x892xf32>
    %cst = arith.constant dense<0.000000e+00> : vector<16x892xf32>
    %54 = tpu.matmul %52, %53, %cst {dimension_numbers = #tpu.dot_dimension_numbers<[1], [0], [0], [1], [0, 0, 1, 1], [], []>} : vector<16x25xf32>, vector<25x892xf32>, vector<16x892xf32> -> vector<16x892xf32>
    %c0_32 = arith.constant 0 : index
    %c0_33 = arith.constant 0 : index
    %55 = vector.load %arg3[%c0_32, %c0_33] : memref<16x1xf32, #tpu.memory_space<vmem>>, vector<16x1xf32>
    %56 = vector.broadcast %55 : vector<16x1xf32> to vector<16x892xf32>
    %57 = arith.addf %54, %56 : vector<16x892xf32>
    %cst_34 = arith.constant 0.000000e+00 : f32
    %58 = vector.broadcast %cst_34 : f32 to vector<16x892xf32>
    %59 = arith.maximumf %57, %58 : vector<16x892xf32>
    %60 = vector.extract_strided_slice %59 {offsets = [0, 0], sizes = [16, 859], strides = [1, 1]} : vector<16x892xf32> to vector<16x859xf32>
    %61 = vector.extract_strided_slice %59 {offsets = [0, 1], sizes = [16, 859], strides = [1, 1]} : vector<16x892xf32> to vector<16x859xf32>
    %62 = arith.maximumf %60, %61 : vector<16x859xf32>
    %63 = vector.extract_strided_slice %59 {offsets = [0, 32], sizes = [16, 859], strides = [1, 1]} : vector<16x892xf32> to vector<16x859xf32>
    %64 = vector.extract_strided_slice %59 {offsets = [0, 33], sizes = [16, 859], strides = [1, 1]} : vector<16x892xf32> to vector<16x859xf32>
    %65 = arith.maximumf %63, %64 : vector<16x859xf32>
    %66 = arith.maximumf %62, %65 : vector<16x859xf32>
    %67 = arith.truncf %66 : vector<16x859xf32> to vector<16x859xbf16>
    %cst_35 = arith.constant 0.000000e+00 : bf16
    %68 = vector.broadcast %cst_35 : bf16 to vector<16x1296xbf16>
    %c0_36 = arith.constant 0 : index
    %c0_37 = arith.constant 0 : index
    %69 = vector.load %arg10[%c0_36, %c0_37] : memref<16x1296xbf16, #tpu.memory_space<vmem>>, vector<16x1296xbf16>
    tpu.vector_store %arg10[%c0_36, %c0_37], %68 {strides = array<i32>} : memref<16x1296xbf16, #tpu.memory_space<vmem>>, vector<16x1296xbf16>,
    %70 = vector.extract_strided_slice %67 {offsets = [0, 0], sizes = [16, 28], strides = [1, 1]} : vector<16x859xbf16> to vector<16x28xbf16>
    %c0_38 = arith.constant 0 : index
    %c148 = arith.constant 148 : index
    %71 = vector.load %arg10[%c0_38, %c148] : memref<16x1296xbf16, #tpu.memory_space<vmem>>, vector<16x28xbf16>
    tpu.vector_store %arg10[%c0_38, %c148], %70 {strides = array<i32>} : memref<16x1296xbf16, #tpu.memory_space<vmem>>, vector<16x28xbf16>,
    %72 = vector.extract_strided_slice %67 {offsets = [0, 32], sizes = [16, 28], strides = [1, 1]} : vector<16x859xbf16> to vector<16x28xbf16>
    %c0_39 = arith.constant 0 : index
    %c184 = arith.constant 184 : index
    %73 = vector.load %arg10[%c0_39, %c184] : memref<16x1296xbf16, #tpu.memory_space<vmem>>, vector<16x28xbf16>
    tpu.vector_store %arg10[%c0_39, %c184], %72 {strides = array<i32>} : memref<16x1296xbf16, #tpu.memory_space<vmem>>, vector<16x28xbf16>,
    %74 = vector.extract_strided_slice %67 {offsets = [0, 64], sizes = [16, 28], strides = [1, 1]} : vector<16x859xbf16> to vector<16x28xbf16>
    %c0_40 = arith.constant 0 : index
    %c220 = arith.constant 220 : index
    %75 = vector.load %arg10[%c0_40, %c220] : memref<16x1296xbf16, #tpu.memory_space<vmem>>, vector<16x28xbf16>
    tpu.vector_store %arg10[%c0_40, %c220], %74 {strides = array<i32>} : memref<16x1296xbf16, #tpu.memory_space<vmem>>, vector<16x28xbf16>,
    %76 = vector.extract_strided_slice %67 {offsets = [0, 96], sizes = [16, 28], strides = [1, 1]} : vector<16x859xbf16> to vector<16x28xbf16>
    %c0_41 = arith.constant 0 : index
    %c256 = arith.constant 256 : index
    %77 = vector.load %arg10[%c0_41, %c256] : memref<16x1296xbf16, #tpu.memory_space<vmem>>, vector<16x28xbf16>
    tpu.vector_store %arg10[%c0_41, %c256], %76 {strides = array<i32>} : memref<16x1296xbf16, #tpu.memory_space<vmem>>, vector<16x28xbf16>,
    %78 = vector.extract_strided_slice %67 {offsets = [0, 128], sizes = [16, 28], strides = [1, 1]} : vector<16x859xbf16> to vector<16x28xbf16>
    %c0_42 = arith.constant 0 : index
    %c292 = arith.constant 292 : index
    %79 = vector.load %arg10[%c0_42, %c292] : memref<16x1296xbf16, #tpu.memory_space<vmem>>, vector<16x28xbf16>
    tpu.vector_store %arg10[%c0_42, %c292], %78 {strides = array<i32>} : memref<16x1296xbf16, #tpu.memory_space<vmem>>, vector<16x28xbf16>,
    %80 = vector.extract_strided_slice %67 {offsets = [0, 160], sizes = [16, 28], strides = [1, 1]} : vector<16x859xbf16> to vector<16x28xbf16>
    %c0_43 = arith.constant 0 : index
    %c328 = arith.constant 328 : index
    %81 = vector.load %arg10[%c0_43, %c328] : memref<16x1296xbf16, #tpu.memory_space<vmem>>, vector<16x28xbf16>
    tpu.vector_store %arg10[%c0_43, %c328], %80 {strides = array<i32>} : memref<16x1296xbf16, #tpu.memory_space<vmem>>, vector<16x28xbf16>,
    %82 = vector.extract_strided_slice %67 {offsets = [0, 192], sizes = [16, 28], strides = [1, 1]} : vector<16x859xbf16> to vector<16x28xbf16>
    %c0_44 = arith.constant 0 : index
    %c364 = arith.constant 364 : index
    %83 = vector.load %arg10[%c0_44, %c364] : memref<16x1296xbf16, #tpu.memory_space<vmem>>, vector<16x28xbf16>
    tpu.vector_store %arg10[%c0_44, %c364], %82 {strides = array<i32>} : memref<16x1296xbf16, #tpu.memory_space<vmem>>, vector<16x28xbf16>,
    %84 = vector.extract_strided_slice %67 {offsets = [0, 224], sizes = [16, 28], strides = [1, 1]} : vector<16x859xbf16> to vector<16x28xbf16>
    %c0_45 = arith.constant 0 : index
    %c400 = arith.constant 400 : index
    %85 = vector.load %arg10[%c0_45, %c400] : memref<16x1296xbf16, #tpu.memory_space<vmem>>, vector<16x28xbf16>
    tpu.vector_store %arg10[%c0_45, %c400], %84 {strides = array<i32>} : memref<16x1296xbf16, #tpu.memory_space<vmem>>, vector<16x28xbf16>,
    %86 = vector.extract_strided_slice %67 {offsets = [0, 256], sizes = [16, 28], strides = [1, 1]} : vector<16x859xbf16> to vector<16x28xbf16>
    %c0_46 = arith.constant 0 : index
    %c436 = arith.constant 436 : index
    %87 = vector.load %arg10[%c0_46, %c436] : memref<16x1296xbf16, #tpu.memory_space<vmem>>, vector<16x28xbf16>
    tpu.vector_store %arg10[%c0_46, %c436], %86 {strides = array<i32>} : memref<16x1296xbf16, #tpu.memory_space<vmem>>, vector<16x28xbf16>,
    %88 = vector.extract_strided_slice %67 {offsets = [0, 288], sizes = [16, 28], strides = [1, 1]} : vector<16x859xbf16> to vector<16x28xbf16>
    %c0_47 = arith.constant 0 : index
    %c472 = arith.constant 472 : index
    %89 = vector.load %arg10[%c0_47, %c472] : memref<16x1296xbf16, #tpu.memory_space<vmem>>, vector<16x28xbf16>
    tpu.vector_store %arg10[%c0_47, %c472], %88 {strides = array<i32>} : memref<16x1296xbf16, #tpu.memory_space<vmem>>, vector<16x28xbf16>,
    %90 = vector.extract_strided_slice %67 {offsets = [0, 320], sizes = [16, 28], strides = [1, 1]} : vector<16x859xbf16> to vector<16x28xbf16>
    %c0_48 = arith.constant 0 : index
    %c508 = arith.constant 508 : index
    %91 = vector.load %arg10[%c0_48, %c508] : memref<16x1296xbf16, #tpu.memory_space<vmem>>, vector<16x28xbf16>
    tpu.vector_store %arg10[%c0_48, %c508], %90 {strides = array<i32>} : memref<16x1296xbf16, #tpu.memory_space<vmem>>, vector<16x28xbf16>,
    %92 = vector.extract_strided_slice %67 {offsets = [0, 352], sizes = [16, 28], strides = [1, 1]} : vector<16x859xbf16> to vector<16x28xbf16>
    %c0_49 = arith.constant 0 : index
    %c544 = arith.constant 544 : index
    %93 = vector.load %arg10[%c0_49, %c544] : memref<16x1296xbf16, #tpu.memory_space<vmem>>, vector<16x28xbf16>
    tpu.vector_store %arg10[%c0_49, %c544], %92 {strides = array<i32>} : memref<16x1296xbf16, #tpu.memory_space<vmem>>, vector<16x28xbf16>,
    %94 = vector.extract_strided_slice %67 {offsets = [0, 384], sizes = [16, 28], strides = [1, 1]} : vector<16x859xbf16> to vector<16x28xbf16>
    %c0_50 = arith.constant 0 : index
    %c580 = arith.constant 580 : index
    %95 = vector.load %arg10[%c0_50, %c580] : memref<16x1296xbf16, #tpu.memory_space<vmem>>, vector<16x28xbf16>
    tpu.vector_store %arg10[%c0_50, %c580], %94 {strides = array<i32>} : memref<16x1296xbf16, #tpu.memory_space<vmem>>, vector<16x28xbf16>,
    %96 = vector.extract_strided_slice %67 {offsets = [0, 416], sizes = [16, 28], strides = [1, 1]} : vector<16x859xbf16> to vector<16x28xbf16>
    %c0_51 = arith.constant 0 : index
    %c616 = arith.constant 616 : index
    %97 = vector.load %arg10[%c0_51, %c616] : memref<16x1296xbf16, #tpu.memory_space<vmem>>, vector<16x28xbf16>
    tpu.vector_store %arg10[%c0_51, %c616], %96 {strides = array<i32>} : memref<16x1296xbf16, #tpu.memory_space<vmem>>, vector<16x28xbf16>,
    %98 = vector.extract_strided_slice %67 {offsets = [0, 448], sizes = [16, 28], strides = [1, 1]} : vector<16x859xbf16> to vector<16x28xbf16>
    %c0_52 = arith.constant 0 : index
    %c652 = arith.constant 652 : index
    %99 = vector.load %arg10[%c0_52, %c652] : memref<16x1296xbf16, #tpu.memory_space<vmem>>, vector<16x28xbf16>
    tpu.vector_store %arg10[%c0_52, %c652], %98 {strides = array<i32>} : memref<16x1296xbf16, #tpu.memory_space<vmem>>, vector<16x28xbf16>,
    %100 = vector.extract_strided_slice %67 {offsets = [0, 480], sizes = [16, 28], strides = [1, 1]} : vector<16x859xbf16> to vector<16x28xbf16>
    %c0_53 = arith.constant 0 : index
    %c688 = arith.constant 688 : index
    %101 = vector.load %arg10[%c0_53, %c688] : memref<16x1296xbf16, #tpu.memory_space<vmem>>, vector<16x28xbf16>
    tpu.vector_store %arg10[%c0_53, %c688], %100 {strides = array<i32>} : memref<16x1296xbf16, #tpu.memory_space<vmem>>, vector<16x28xbf16>,
    %102 = vector.extract_strided_slice %67 {offsets = [0, 512], sizes = [16, 28], strides = [1, 1]} : vector<16x859xbf16> to vector<16x28xbf16>
    %c0_54 = arith.constant 0 : index
    %c724 = arith.constant 724 : index
    %103 = vector.load %arg10[%c0_54, %c724] : memref<16x1296xbf16, #tpu.memory_space<vmem>>, vector<16x28xbf16>
    tpu.vector_store %arg10[%c0_54, %c724], %102 {strides = array<i32>} : memref<16x1296xbf16, #tpu.memory_space<vmem>>, vector<16x28xbf16>,
    %104 = vector.extract_strided_slice %67 {offsets = [0, 544], sizes = [16, 28], strides = [1, 1]} : vector<16x859xbf16> to vector<16x28xbf16>
    %c0_55 = arith.constant 0 : index
    %c760 = arith.constant 760 : index
    %105 = vector.load %arg10[%c0_55, %c760] : memref<16x1296xbf16, #tpu.memory_space<vmem>>, vector<16x28xbf16>
    tpu.vector_store %arg10[%c0_55, %c760], %104 {strides = array<i32>} : memref<16x1296xbf16, #tpu.memory_space<vmem>>, vector<16x28xbf16>,
    %106 = vector.extract_strided_slice %67 {offsets = [0, 576], sizes = [16, 28], strides = [1, 1]} : vector<16x859xbf16> to vector<16x28xbf16>
    %c0_56 = arith.constant 0 : index
    %c796 = arith.constant 796 : index
    %107 = vector.load %arg10[%c0_56, %c796] : memref<16x1296xbf16, #tpu.memory_space<vmem>>, vector<16x28xbf16>
    tpu.vector_store %arg10[%c0_56, %c796], %106 {strides = array<i32>} : memref<16x1296xbf16, #tpu.memory_space<vmem>>, vector<16x28xbf16>,
    %108 = vector.extract_strided_slice %67 {offsets = [0, 608], sizes = [16, 28], strides = [1, 1]} : vector<16x859xbf16> to vector<16x28xbf16>
    %c0_57 = arith.constant 0 : index
    %c832 = arith.constant 832 : index
    %109 = vector.load %arg10[%c0_57, %c832] : memref<16x1296xbf16, #tpu.memory_space<vmem>>, vector<16x28xbf16>
    tpu.vector_store %arg10[%c0_57, %c832], %108 {strides = array<i32>} : memref<16x1296xbf16, #tpu.memory_space<vmem>>, vector<16x28xbf16>,
    %110 = vector.extract_strided_slice %67 {offsets = [0, 640], sizes = [16, 28], strides = [1, 1]} : vector<16x859xbf16> to vector<16x28xbf16>
    %c0_58 = arith.constant 0 : index
    %c868 = arith.constant 868 : index
    %111 = vector.load %arg10[%c0_58, %c868] : memref<16x1296xbf16, #tpu.memory_space<vmem>>, vector<16x28xbf16>
    tpu.vector_store %arg10[%c0_58, %c868], %110 {strides = array<i32>} : memref<16x1296xbf16, #tpu.memory_space<vmem>>, vector<16x28xbf16>,
    %112 = vector.extract_strided_slice %67 {offsets = [0, 672], sizes = [16, 28], strides = [1, 1]} : vector<16x859xbf16> to vector<16x28xbf16>
    %c0_59 = arith.constant 0 : index
    %c904 = arith.constant 904 : index
    %113 = vector.load %arg10[%c0_59, %c904] : memref<16x1296xbf16, #tpu.memory_space<vmem>>, vector<16x28xbf16>
    tpu.vector_store %arg10[%c0_59, %c904], %112 {strides = array<i32>} : memref<16x1296xbf16, #tpu.memory_space<vmem>>, vector<16x28xbf16>,
    %114 = vector.extract_strided_slice %67 {offsets = [0, 704], sizes = [16, 28], strides = [1, 1]} : vector<16x859xbf16> to vector<16x28xbf16>
    %c0_60 = arith.constant 0 : index
    %c940 = arith.constant 940 : index
    %115 = vector.load %arg10[%c0_60, %c940] : memref<16x1296xbf16, #tpu.memory_space<vmem>>, vector<16x28xbf16>
    tpu.vector_store %arg10[%c0_60, %c940], %114 {strides = array<i32>} : memref<16x1296xbf16, #tpu.memory_space<vmem>>, vector<16x28xbf16>,
    %116 = vector.extract_strided_slice %67 {offsets = [0, 736], sizes = [16, 28], strides = [1, 1]} : vector<16x859xbf16> to vector<16x28xbf16>
    %c0_61 = arith.constant 0 : index
    %c976 = arith.constant 976 : index
    %117 = vector.load %arg10[%c0_61, %c976] : memref<16x1296xbf16, #tpu.memory_space<vmem>>, vector<16x28xbf16>
    tpu.vector_store %arg10[%c0_61, %c976], %116 {strides = array<i32>} : memref<16x1296xbf16, #tpu.memory_space<vmem>>, vector<16x28xbf16>,
    %118 = vector.extract_strided_slice %67 {offsets = [0, 768], sizes = [16, 28], strides = [1, 1]} : vector<16x859xbf16> to vector<16x28xbf16>
    %c0_62 = arith.constant 0 : index
    %c1012 = arith.constant 1012 : index
    %119 = vector.load %arg10[%c0_62, %c1012] : memref<16x1296xbf16, #tpu.memory_space<vmem>>, vector<16x28xbf16>
    tpu.vector_store %arg10[%c0_62, %c1012], %118 {strides = array<i32>} : memref<16x1296xbf16, #tpu.memory_space<vmem>>, vector<16x28xbf16>,
    %120 = vector.extract_strided_slice %67 {offsets = [0, 800], sizes = [16, 28], strides = [1, 1]} : vector<16x859xbf16> to vector<16x28xbf16>
    %c0_63 = arith.constant 0 : index
    %c1048 = arith.constant 1048 : index
    %121 = vector.load %arg10[%c0_63, %c1048] : memref<16x1296xbf16, #tpu.memory_space<vmem>>, vector<16x28xbf16>
    tpu.vector_store %arg10[%c0_63, %c1048], %120 {strides = array<i32>} : memref<16x1296xbf16, #tpu.memory_space<vmem>>, vector<16x28xbf16>,
    %122 = vector.extract_strided_slice %67 {offsets = [0, 832], sizes = [16, 27], strides = [1, 1]} : vector<16x859xbf16> to vector<16x27xbf16>
    %c0_64 = arith.constant 0 : index
    %c1084 = arith.constant 1084 : index
    %123 = vector.load %arg10[%c0_64, %c1084] : memref<16x1296xbf16, #tpu.memory_space<vmem>>, vector<16x27xbf16>
    tpu.vector_store %arg10[%c0_64, %c1084], %122 {strides = array<i32>} : memref<16x1296xbf16, #tpu.memory_space<vmem>>, vector<16x27xbf16>,
    %c0_65 = arith.constant 0 : index
    %c0_66 = arith.constant 0 : index
    %124 = vector.load %arg10[%c0_65, %c0_66] : memref<16x1296xbf16, #tpu.memory_space<vmem>>, vector<16x1000xbf16>
    %c0_67 = arith.constant 0 : index
    %c0_68 = arith.constant 0 : index
    %125 = vector.load %arg11[%c0_67, %c0_68] : memref<400x1000xbf16, #tpu.memory_space<vmem>>, vector<16x1000xbf16>
    tpu.vector_store %arg11[%c0_67, %c0_68], %124 {strides = array<i32>} : memref<400x1000xbf16, #tpu.memory_space<vmem>>, vector<16x1000xbf16>,
    %c0_69 = arith.constant 0 : index
    %c2_70 = arith.constant 2 : index
    %126 = vector.load %arg10[%c0_69, %c2_70] : memref<16x1296xbf16, #tpu.memory_space<vmem>>, vector<16x1000xbf16>
    %c16_71 = arith.constant 16 : index
    %c0_72 = arith.constant 0 : index
    %127 = vector.load %arg11[%c16_71, %c0_72] : memref<400x1000xbf16, #tpu.memory_space<vmem>>, vector<16x1000xbf16>
    tpu.vector_store %arg11[%c16_71, %c0_72], %126 {strides = array<i32>} : memref<400x1000xbf16, #tpu.memory_space<vmem>>, vector<16x1000xbf16>,
    %c0_73 = arith.constant 0 : index
    %c4_74 = arith.constant 4 : index
    %128 = vector.load %arg10[%c0_73, %c4_74] : memref<16x1296xbf16, #tpu.memory_space<vmem>>, vector<16x1000xbf16>
    %c32 = arith.constant 32 : index
    %c0_75 = arith.constant 0 : index
    %129 = vector.load %arg11[%c32, %c0_75] : memref<400x1000xbf16, #tpu.memory_space<vmem>>, vector<16x1000xbf16>
    tpu.vector_store %arg11[%c32, %c0_75], %128 {strides = array<i32>} : memref<400x1000xbf16, #tpu.memory_space<vmem>>, vector<16x1000xbf16>,
    %c0_76 = arith.constant 0 : index
    %c6_77 = arith.constant 6 : index
    %130 = vector.load %arg10[%c0_76, %c6_77] : memref<16x1296xbf16, #tpu.memory_space<vmem>>, vector<16x1000xbf16>
    %c48 = arith.constant 48 : index
    %c0_78 = arith.constant 0 : index
    %131 = vector.load %arg11[%c48, %c0_78] : memref<400x1000xbf16, #tpu.memory_space<vmem>>, vector<16x1000xbf16>
    tpu.vector_store %arg11[%c48, %c0_78], %130 {strides = array<i32>} : memref<400x1000xbf16, #tpu.memory_space<vmem>>, vector<16x1000xbf16>,
    %c0_79 = arith.constant 0 : index
    %c8_80 = arith.constant 8 : index
    %132 = vector.load %arg10[%c0_79, %c8_80] : memref<16x1296xbf16, #tpu.memory_space<vmem>>, vector<16x1000xbf16>
    %c64 = arith.constant 64 : index
    %c0_81 = arith.constant 0 : index
    %133 = vector.load %arg11[%c64, %c0_81] : memref<400x1000xbf16, #tpu.memory_space<vmem>>, vector<16x1000xbf16>
    tpu.vector_store %arg11[%c64, %c0_81], %132 {strides = array<i32>} : memref<400x1000xbf16, #tpu.memory_space<vmem>>, vector<16x1000xbf16>,
    %c0_82 = arith.constant 0 : index
    %c72 = arith.constant 72 : index
    %134 = vector.load %arg10[%c0_82, %c72] : memref<16x1296xbf16, #tpu.memory_space<vmem>>, vector<16x1000xbf16>
    %c80 = arith.constant 80 : index
    %c0_83 = arith.constant 0 : index
    %135 = vector.load %arg11[%c80, %c0_83] : memref<400x1000xbf16, #tpu.memory_space<vmem>>, vector<16x1000xbf16>
    tpu.vector_store %arg11[%c80, %c0_83], %134 {strides = array<i32>} : memref<400x1000xbf16, #tpu.memory_space<vmem>>, vector<16x1000xbf16>,
    %c0_84 = arith.constant 0 : index
    %c74 = arith.constant 74 : index
    %136 = vector.load %arg10[%c0_84, %c74] : memref<16x1296xbf16, #tpu.memory_space<vmem>>, vector<16x1000xbf16>
    %c96 = arith.constant 96 : index
    %c0_85 = arith.constant 0 : index
    %137 = vector.load %arg11[%c96, %c0_85] : memref<400x1000xbf16, #tpu.memory_space<vmem>>, vector<16x1000xbf16>
    tpu.vector_store %arg11[%c96, %c0_85], %136 {strides = array<i32>} : memref<400x1000xbf16, #tpu.memory_space<vmem>>, vector<16x1000xbf16>,
    %c0_86 = arith.constant 0 : index
    %c76 = arith.constant 76 : index
    %138 = vector.load %arg10[%c0_86, %c76] : memref<16x1296xbf16, #tpu.memory_space<vmem>>, vector<16x1000xbf16>
    %c112 = arith.constant 112 : index
    %c0_87 = arith.constant 0 : index
    %139 = vector.load %arg11[%c112, %c0_87] : memref<400x1000xbf16, #tpu.memory_space<vmem>>, vector<16x1000xbf16>
    tpu.vector_store %arg11[%c112, %c0_87], %138 {strides = array<i32>} : memref<400x1000xbf16, #tpu.memory_space<vmem>>, vector<16x1000xbf16>,
    %c0_88 = arith.constant 0 : index
    %c78 = arith.constant 78 : index
    %140 = vector.load %arg10[%c0_88, %c78] : memref<16x1296xbf16, #tpu.memory_space<vmem>>, vector<16x1000xbf16>
    %c128 = arith.constant 128 : index
    %c0_89 = arith.constant 0 : index
    %141 = vector.load %arg11[%c128, %c0_89] : memref<400x1000xbf16, #tpu.memory_space<vmem>>, vector<16x1000xbf16>
    tpu.vector_store %arg11[%c128, %c0_89], %140 {strides = array<i32>} : memref<400x1000xbf16, #tpu.memory_space<vmem>>, vector<16x1000xbf16>,
    %c0_90 = arith.constant 0 : index
    %c80_91 = arith.constant 80 : index
    %142 = vector.load %arg10[%c0_90, %c80_91] : memref<16x1296xbf16, #tpu.memory_space<vmem>>, vector<16x1000xbf16>
    %c144 = arith.constant 144 : index
    %c0_92 = arith.constant 0 : index
    %143 = vector.load %arg11[%c144, %c0_92] : memref<400x1000xbf16, #tpu.memory_space<vmem>>, vector<16x1000xbf16>
    tpu.vector_store %arg11[%c144, %c0_92], %142 {strides = array<i32>} : memref<400x1000xbf16, #tpu.memory_space<vmem>>, vector<16x1000xbf16>,
    %c0_93 = arith.constant 0 : index
    %c144_94 = arith.constant 144 : index
    %144 = vector.load %arg10[%c0_93, %c144_94] : memref<16x1296xbf16, #tpu.memory_space<vmem>>, vector<16x1000xbf16>
    %c160 = arith.constant 160 : index
    %c0_95 = arith.constant 0 : index
    %145 = vector.load %arg11[%c160, %c0_95] : memref<400x1000xbf16, #tpu.memory_space<vmem>>, vector<16x1000xbf16>
    tpu.vector_store %arg11[%c160, %c0_95], %144 {strides = array<i32>} : memref<400x1000xbf16, #tpu.memory_space<vmem>>, vector<16x1000xbf16>,
    %c0_96 = arith.constant 0 : index
    %c146 = arith.constant 146 : index
    %146 = vector.load %arg10[%c0_96, %c146] : memref<16x1296xbf16, #tpu.memory_space<vmem>>, vector<16x1000xbf16>
    %c176 = arith.constant 176 : index
    %c0_97 = arith.constant 0 : index
    %147 = vector.load %arg11[%c176, %c0_97] : memref<400x1000xbf16, #tpu.memory_space<vmem>>, vector<16x1000xbf16>
    tpu.vector_store %arg11[%c176, %c0_97], %146 {strides = array<i32>} : memref<400x1000xbf16, #tpu.memory_space<vmem>>, vector<16x1000xbf16>,
    %c0_98 = arith.constant 0 : index
    %c148_99 = arith.constant 148 : index
    %148 = vector.load %arg10[%c0_98, %c148_99] : memref<16x1296xbf16, #tpu.memory_space<vmem>>, vector<16x1000xbf16>
    %c192 = arith.constant 192 : index
    %c0_100 = arith.constant 0 : index
    %149 = vector.load %arg11[%c192, %c0_100] : memref<400x1000xbf16, #tpu.memory_space<vmem>>, vector<16x1000xbf16>
    tpu.vector_store %arg11[%c192, %c0_100], %148 {strides = array<i32>} : memref<400x1000xbf16, #tpu.memory_space<vmem>>, vector<16x1000xbf16>,
    %c0_101 = arith.constant 0 : index
    %c150 = arith.constant 150 : index
    %150 = vector.load %arg10[%c0_101, %c150] : memref<16x1296xbf16, #tpu.memory_space<vmem>>, vector<16x1000xbf16>
    %c208 = arith.constant 208 : index
    %c0_102 = arith.constant 0 : index
    %151 = vector.load %arg11[%c208, %c0_102] : memref<400x1000xbf16, #tpu.memory_space<vmem>>, vector<16x1000xbf16>
    tpu.vector_store %arg11[%c208, %c0_102], %150 {strides = array<i32>} : memref<400x1000xbf16, #tpu.memory_space<vmem>>, vector<16x1000xbf16>,
    %c0_103 = arith.constant 0 : index
    %c152 = arith.constant 152 : index
    %152 = vector.load %arg10[%c0_103, %c152] : memref<16x1296xbf16, #tpu.memory_space<vmem>>, vector<16x1000xbf16>
    %c224 = arith.constant 224 : index
    %c0_104 = arith.constant 0 : index
    %153 = vector.load %arg11[%c224, %c0_104] : memref<400x1000xbf16, #tpu.memory_space<vmem>>, vector<16x1000xbf16>
    tpu.vector_store %arg11[%c224, %c0_104], %152 {strides = array<i32>} : memref<400x1000xbf16, #tpu.memory_space<vmem>>, vector<16x1000xbf16>,
    %c0_105 = arith.constant 0 : index
    %c216 = arith.constant 216 : index
    %154 = vector.load %arg10[%c0_105, %c216] : memref<16x1296xbf16, #tpu.memory_space<vmem>>, vector<16x1000xbf16>
    %c240 = arith.constant 240 : index
    %c0_106 = arith.constant 0 : index
    %155 = vector.load %arg11[%c240, %c0_106] : memref<400x1000xbf16, #tpu.memory_space<vmem>>, vector<16x1000xbf16>
    tpu.vector_store %arg11[%c240, %c0_106], %154 {strides = array<i32>} : memref<400x1000xbf16, #tpu.memory_space<vmem>>, vector<16x1000xbf16>,
    %c0_107 = arith.constant 0 : index
    %c218 = arith.constant 218 : index
    %156 = vector.load %arg10[%c0_107, %c218] : memref<16x1296xbf16, #tpu.memory_space<vmem>>, vector<16x1000xbf16>
    %c256_108 = arith.constant 256 : index
    %c0_109 = arith.constant 0 : index
    %157 = vector.load %arg11[%c256_108, %c0_109] : memref<400x1000xbf16, #tpu.memory_space<vmem>>, vector<16x1000xbf16>
    tpu.vector_store %arg11[%c256_108, %c0_109], %156 {strides = array<i32>} : memref<400x1000xbf16, #tpu.memory_space<vmem>>, vector<16x1000xbf16>,
    %c0_110 = arith.constant 0 : index
    %c220_111 = arith.constant 220 : index
    %158 = vector.load %arg10[%c0_110, %c220_111] : memref<16x1296xbf16, #tpu.memory_space<vmem>>, vector<16x1000xbf16>
    %c272 = arith.constant 272 : index
    %c0_112 = arith.constant 0 : index
    %159 = vector.load %arg11[%c272, %c0_112] : memref<400x1000xbf16, #tpu.memory_space<vmem>>, vector<16x1000xbf16>
    tpu.vector_store %arg11[%c272, %c0_112], %158 {strides = array<i32>} : memref<400x1000xbf16, #tpu.memory_space<vmem>>, vector<16x1000xbf16>,
    %c0_113 = arith.constant 0 : index
    %c222 = arith.constant 222 : index
    %160 = vector.load %arg10[%c0_113, %c222] : memref<16x1296xbf16, #tpu.memory_space<vmem>>, vector<16x1000xbf16>
    %c288 = arith.constant 288 : index
    %c0_114 = arith.constant 0 : index
    %161 = vector.load %arg11[%c288, %c0_114] : memref<400x1000xbf16, #tpu.memory_space<vmem>>, vector<16x1000xbf16>
    tpu.vector_store %arg11[%c288, %c0_114], %160 {strides = array<i32>} : memref<400x1000xbf16, #tpu.memory_space<vmem>>, vector<16x1000xbf16>,
    %c0_115 = arith.constant 0 : index
    %c224_116 = arith.constant 224 : index
    %162 = vector.load %arg10[%c0_115, %c224_116] : memref<16x1296xbf16, #tpu.memory_space<vmem>>, vector<16x1000xbf16>
    %c304 = arith.constant 304 : index
    %c0_117 = arith.constant 0 : index
    %163 = vector.load %arg11[%c304, %c0_117] : memref<400x1000xbf16, #tpu.memory_space<vmem>>, vector<16x1000xbf16>
    tpu.vector_store %arg11[%c304, %c0_117], %162 {strides = array<i32>} : memref<400x1000xbf16, #tpu.memory_space<vmem>>, vector<16x1000xbf16>,
    %c0_118 = arith.constant 0 : index
    %c288_119 = arith.constant 288 : index
    %164 = vector.load %arg10[%c0_118, %c288_119] : memref<16x1296xbf16, #tpu.memory_space<vmem>>, vector<16x1000xbf16>
    %c320 = arith.constant 320 : index
    %c0_120 = arith.constant 0 : index
    %165 = vector.load %arg11[%c320, %c0_120] : memref<400x1000xbf16, #tpu.memory_space<vmem>>, vector<16x1000xbf16>
    tpu.vector_store %arg11[%c320, %c0_120], %164 {strides = array<i32>} : memref<400x1000xbf16, #tpu.memory_space<vmem>>, vector<16x1000xbf16>,
    %c0_121 = arith.constant 0 : index
    %c290 = arith.constant 290 : index
    %166 = vector.load %arg10[%c0_121, %c290] : memref<16x1296xbf16, #tpu.memory_space<vmem>>, vector<16x1000xbf16>
    %c336 = arith.constant 336 : index
    %c0_122 = arith.constant 0 : index
    %167 = vector.load %arg11[%c336, %c0_122] : memref<400x1000xbf16, #tpu.memory_space<vmem>>, vector<16x1000xbf16>
    tpu.vector_store %arg11[%c336, %c0_122], %166 {strides = array<i32>} : memref<400x1000xbf16, #tpu.memory_space<vmem>>, vector<16x1000xbf16>,
    %c0_123 = arith.constant 0 : index
    %c292_124 = arith.constant 292 : index
    %168 = vector.load %arg10[%c0_123, %c292_124] : memref<16x1296xbf16, #tpu.memory_space<vmem>>, vector<16x1000xbf16>
    %c352 = arith.constant 352 : index
    %c0_125 = arith.constant 0 : index
    %169 = vector.load %arg11[%c352, %c0_125] : memref<400x1000xbf16, #tpu.memory_space<vmem>>, vector<16x1000xbf16>
    tpu.vector_store %arg11[%c352, %c0_125], %168 {strides = array<i32>} : memref<400x1000xbf16, #tpu.memory_space<vmem>>, vector<16x1000xbf16>,
    %c0_126 = arith.constant 0 : index
    %c294 = arith.constant 294 : index
    %170 = vector.load %arg10[%c0_126, %c294] : memref<16x1296xbf16, #tpu.memory_space<vmem>>, vector<16x1000xbf16>
    %c368 = arith.constant 368 : index
    %c0_127 = arith.constant 0 : index
    %171 = vector.load %arg11[%c368, %c0_127] : memref<400x1000xbf16, #tpu.memory_space<vmem>>, vector<16x1000xbf16>
    tpu.vector_store %arg11[%c368, %c0_127], %170 {strides = array<i32>} : memref<400x1000xbf16, #tpu.memory_space<vmem>>, vector<16x1000xbf16>,
    %c0_128 = arith.constant 0 : index
    %c296 = arith.constant 296 : index
    %172 = vector.load %arg10[%c0_128, %c296] : memref<16x1296xbf16, #tpu.memory_space<vmem>>, vector<16x1000xbf16>
    %c384 = arith.constant 384 : index
    %c0_129 = arith.constant 0 : index
    %173 = vector.load %arg11[%c384, %c0_129] : memref<400x1000xbf16, #tpu.memory_space<vmem>>, vector<16x1000xbf16>
    tpu.vector_store %arg11[%c384, %c0_129], %172 {strides = array<i32>} : memref<400x1000xbf16, #tpu.memory_space<vmem>>, vector<16x1000xbf16>,
    %c0_130 = arith.constant 0 : index
    %c0_131 = arith.constant 0 : index
    %174 = vector.load %arg4[%c0_130, %c0_131] : memref<32x400xbf16, #tpu.memory_space<vmem>>, vector<32x400xbf16>
    %c0_132 = arith.constant 0 : index
    %c0_133 = arith.constant 0 : index
    %175 = vector.load %arg11[%c0_132, %c0_133] : memref<400x1000xbf16, #tpu.memory_space<vmem>>, vector<400x1000xbf16>
    %cst_134 = arith.constant dense<0.000000e+00> : vector<32x1000xf32>
    %176 = tpu.matmul %174, %175, %cst_134 {dimension_numbers = #tpu.dot_dimension_numbers<[1], [0], [0], [1], [0, 0, 1, 1], [], []>} : vector<32x400xbf16>, vector<400x1000xbf16>, vector<32x1000xf32> -> vector<32x1000xf32>
    %c0_135 = arith.constant 0 : index
    %c0_136 = arith.constant 0 : index
    %177 = vector.load %arg5[%c0_135, %c0_136] : memref<32x1xf32, #tpu.memory_space<vmem>>, vector<32x1xf32>
    %178 = vector.broadcast %177 : vector<32x1xf32> to vector<32x1000xf32>
    %179 = arith.addf %176, %178 : vector<32x1000xf32>
    %cst_137 = arith.constant 0.000000e+00 : f32
    %180 = vector.broadcast %cst_137 : f32 to vector<32x1000xf32>
    %181 = arith.maximumf %179, %180 : vector<32x1000xf32>
    %182 = vector.extract_strided_slice %181 {offsets = [0, 0], sizes = [32, 896], strides = [1, 1]} : vector<32x1000xf32> to vector<32x896xf32>
    %183 = vector.extract_strided_slice %181 {offsets = [0, 2], sizes = [32, 896], strides = [1, 1]} : vector<32x1000xf32> to vector<32x896xf32>
    %184 = arith.maximumf %182, %183 : vector<32x896xf32>
    %185 = vector.extract_strided_slice %181 {offsets = [0, 72], sizes = [32, 896], strides = [1, 1]} : vector<32x1000xf32> to vector<32x896xf32>
    %186 = vector.extract_strided_slice %181 {offsets = [0, 74], sizes = [32, 896], strides = [1, 1]} : vector<32x1000xf32> to vector<32x896xf32>
    %187 = arith.maximumf %185, %186 : vector<32x896xf32>
    %188 = arith.maximumf %184, %187 : vector<32x896xf32>
    %c0_138 = arith.constant 0 : index
    %c0_139 = arith.constant 0 : index
    %189 = vector.load %arg6[%c0_138, %c0_139] : memref<896x320xf32, #tpu.memory_space<vmem>>, vector<896x320xf32>
    %cst_140 = arith.constant dense<0.000000e+00> : vector<32x320xf32>
    %190 = tpu.matmul %188, %189, %cst_140 {dimension_numbers = #tpu.dot_dimension_numbers<[1], [0], [0], [1], [0, 0, 1, 1], [], []>} : vector<32x896xf32>, vector<896x320xf32>, vector<32x320xf32> -> vector<32x320xf32>
    %c0_141 = arith.constant 0 : index
    %c0_142 = arith.constant 0 : index
    %191 = vector.load %arg7[%c0_141, %c0_142] : memref<1x10xf32, #tpu.memory_space<vmem>>, vector<1x10xf32>
    %192 = vector.extract_strided_slice %190 {offsets = [0, 0], sizes = [1, 10], strides = [1, 1]} : vector<32x320xf32> to vector<1x10xf32>
    %193 = arith.addf %191, %192 : vector<1x10xf32>
    %194 = vector.extract_strided_slice %190 {offsets = [1, 10], sizes = [1, 10], strides = [1, 1]} : vector<32x320xf32> to vector<1x10xf32>
    %195 = arith.addf %193, %194 : vector<1x10xf32>
    %196 = vector.extract_strided_slice %190 {offsets = [2, 20], sizes = [1, 10], strides = [1, 1]} : vector<32x320xf32> to vector<1x10xf32>
    %197 = arith.addf %195, %196 : vector<1x10xf32>
    %198 = vector.extract_strided_slice %190 {offsets = [3, 30], sizes = [1, 10], strides = [1, 1]} : vector<32x320xf32> to vector<1x10xf32>
    %199 = arith.addf %197, %198 : vector<1x10xf32>
    %200 = vector.extract_strided_slice %190 {offsets = [4, 40], sizes = [1, 10], strides = [1, 1]} : vector<32x320xf32> to vector<1x10xf32>
    %201 = arith.addf %199, %200 : vector<1x10xf32>
    %202 = vector.extract_strided_slice %190 {offsets = [5, 50], sizes = [1, 10], strides = [1, 1]} : vector<32x320xf32> to vector<1x10xf32>
    %203 = arith.addf %201, %202 : vector<1x10xf32>
    %204 = vector.extract_strided_slice %190 {offsets = [6, 60], sizes = [1, 10], strides = [1, 1]} : vector<32x320xf32> to vector<1x10xf32>
    %205 = arith.addf %203, %204 : vector<1x10xf32>
    %206 = vector.extract_strided_slice %190 {offsets = [7, 70], sizes = [1, 10], strides = [1, 1]} : vector<32x320xf32> to vector<1x10xf32>
    %207 = arith.addf %205, %206 : vector<1x10xf32>
    %208 = vector.extract_strided_slice %190 {offsets = [8, 80], sizes = [1, 10], strides = [1, 1]} : vector<32x320xf32> to vector<1x10xf32>
    %209 = arith.addf %207, %208 : vector<1x10xf32>
    %210 = vector.extract_strided_slice %190 {offsets = [9, 90], sizes = [1, 10], strides = [1, 1]} : vector<32x320xf32> to vector<1x10xf32>
    %211 = arith.addf %209, %210 : vector<1x10xf32>
    %212 = vector.extract_strided_slice %190 {offsets = [10, 100], sizes = [1, 10], strides = [1, 1]} : vector<32x320xf32> to vector<1x10xf32>
    %213 = arith.addf %211, %212 : vector<1x10xf32>
    %214 = vector.extract_strided_slice %190 {offsets = [11, 110], sizes = [1, 10], strides = [1, 1]} : vector<32x320xf32> to vector<1x10xf32>
    %215 = arith.addf %213, %214 : vector<1x10xf32>
    %216 = vector.extract_strided_slice %190 {offsets = [12, 120], sizes = [1, 10], strides = [1, 1]} : vector<32x320xf32> to vector<1x10xf32>
    %217 = arith.addf %215, %216 : vector<1x10xf32>
    %218 = vector.extract_strided_slice %190 {offsets = [13, 130], sizes = [1, 10], strides = [1, 1]} : vector<32x320xf32> to vector<1x10xf32>
    %219 = arith.addf %217, %218 : vector<1x10xf32>
    %220 = vector.extract_strided_slice %190 {offsets = [14, 140], sizes = [1, 10], strides = [1, 1]} : vector<32x320xf32> to vector<1x10xf32>
    %221 = arith.addf %219, %220 : vector<1x10xf32>
    %222 = vector.extract_strided_slice %190 {offsets = [15, 150], sizes = [1, 10], strides = [1, 1]} : vector<32x320xf32> to vector<1x10xf32>
    %223 = arith.addf %221, %222 : vector<1x10xf32>
    %224 = vector.extract_strided_slice %190 {offsets = [16, 160], sizes = [1, 10], strides = [1, 1]} : vector<32x320xf32> to vector<1x10xf32>
    %225 = arith.addf %223, %224 : vector<1x10xf32>
    %226 = vector.extract_strided_slice %190 {offsets = [17, 170], sizes = [1, 10], strides = [1, 1]} : vector<32x320xf32> to vector<1x10xf32>
    %227 = arith.addf %225, %226 : vector<1x10xf32>
    %228 = vector.extract_strided_slice %190 {offsets = [18, 180], sizes = [1, 10], strides = [1, 1]} : vector<32x320xf32> to vector<1x10xf32>
    %229 = arith.addf %227, %228 : vector<1x10xf32>
    %230 = vector.extract_strided_slice %190 {offsets = [19, 190], sizes = [1, 10], strides = [1, 1]} : vector<32x320xf32> to vector<1x10xf32>
    %231 = arith.addf %229, %230 : vector<1x10xf32>
    %232 = vector.extract_strided_slice %190 {offsets = [20, 200], sizes = [1, 10], strides = [1, 1]} : vector<32x320xf32> to vector<1x10xf32>
    %233 = arith.addf %231, %232 : vector<1x10xf32>
    %234 = vector.extract_strided_slice %190 {offsets = [21, 210], sizes = [1, 10], strides = [1, 1]} : vector<32x320xf32> to vector<1x10xf32>
    %235 = arith.addf %233, %234 : vector<1x10xf32>
    %236 = vector.extract_strided_slice %190 {offsets = [22, 220], sizes = [1, 10], strides = [1, 1]} : vector<32x320xf32> to vector<1x10xf32>
    %237 = arith.addf %235, %236 : vector<1x10xf32>
    %238 = vector.extract_strided_slice %190 {offsets = [23, 230], sizes = [1, 10], strides = [1, 1]} : vector<32x320xf32> to vector<1x10xf32>
    %239 = arith.addf %237, %238 : vector<1x10xf32>
    %240 = vector.extract_strided_slice %190 {offsets = [24, 240], sizes = [1, 10], strides = [1, 1]} : vector<32x320xf32> to vector<1x10xf32>
    %241 = arith.addf %239, %240 : vector<1x10xf32>
    %242 = vector.extract_strided_slice %190 {offsets = [25, 250], sizes = [1, 10], strides = [1, 1]} : vector<32x320xf32> to vector<1x10xf32>
    %243 = arith.addf %241, %242 : vector<1x10xf32>
    %244 = vector.extract_strided_slice %190 {offsets = [26, 260], sizes = [1, 10], strides = [1, 1]} : vector<32x320xf32> to vector<1x10xf32>
    %245 = arith.addf %243, %244 : vector<1x10xf32>
    %246 = vector.extract_strided_slice %190 {offsets = [27, 270], sizes = [1, 10], strides = [1, 1]} : vector<32x320xf32> to vector<1x10xf32>
    %247 = arith.addf %245, %246 : vector<1x10xf32>
    %248 = vector.extract_strided_slice %190 {offsets = [28, 280], sizes = [1, 10], strides = [1, 1]} : vector<32x320xf32> to vector<1x10xf32>
    %249 = arith.addf %247, %248 : vector<1x10xf32>
    %250 = vector.extract_strided_slice %190 {offsets = [29, 290], sizes = [1, 10], strides = [1, 1]} : vector<32x320xf32> to vector<1x10xf32>
    %251 = arith.addf %249, %250 : vector<1x10xf32>
    %252 = vector.extract_strided_slice %190 {offsets = [30, 300], sizes = [1, 10], strides = [1, 1]} : vector<32x320xf32> to vector<1x10xf32>
    %253 = arith.addf %251, %252 : vector<1x10xf32>
    %254 = vector.extract_strided_slice %190 {offsets = [31, 310], sizes = [1, 10], strides = [1, 1]} : vector<32x320xf32> to vector<1x10xf32>
    %255 = arith.addf %253, %254 : vector<1x10xf32>
    %c0_143 = arith.constant 0 : index
    %c0_144 = arith.constant 0 : index
    %c0_145 = arith.constant 0 : index
    %256 = vector.load %arg8[%c0_143, %c0_144, %c0_145] : memref<1x1x10xf32, #tpu.memory_space<vmem>>, vector<1x1x10xf32>
    %257 = vector.shape_cast %256 : vector<1x1x10xf32> to vector<1x10xf32>
    %258 = vector.shape_cast %255 : vector<1x10xf32> to vector<1x1x10xf32>
    tpu.vector_store %arg8[%c0_143, %c0_144, %c0_145], %258 {strides = array<i32>} : memref<1x1x10xf32, #tpu.memory_space<vmem>>, vector<1x1x10xf32>,
    return
  }
  func.func @transform_0(%arg0: i32) -> (i32, i32, i32) {
    %c0_i32 = arith.constant 0 : i32
    %c0_i32_0 = arith.constant 0 : i32
    %c0_i32_1 = arith.constant 0 : i32
    return %arg0, %c0_i32, %c0_i32_0 : i32, i32, i32
  }
  func.func @transform_1(%arg0: i32) -> (i32, i32) {
    %c0_i32 = arith.constant 0 : i32
    %c0_i32_0 = arith.constant 0 : i32
    %c0_i32_1 = arith.constant 0 : i32
    return %c0_i32, %c0_i32_0 : i32, i32
  }
  func.func @transform_2(%arg0: i32) -> (i32, i32) {
    %c0_i32 = arith.constant 0 : i32
    %c0_i32_0 = arith.constant 0 : i32
    %c0_i32_1 = arith.constant 0 : i32
    return %c0_i32, %c0_i32_0 : i32, i32
  }
  func.func @transform_3(%arg0: i32) -> (i32, i32) {
    %c0_i32 = arith.constant 0 : i32
    %c0_i32_0 = arith.constant 0 : i32
    %c0_i32_1 = arith.constant 0 : i32
    return %c0_i32, %c0_i32_0 : i32, i32
  }
  func.func @transform_4(%arg0: i32) -> (i32, i32) {
    %c0_i32 = arith.constant 0 : i32
    %c0_i32_0 = arith.constant 0 : i32
    %c0_i32_1 = arith.constant 0 : i32
    return %c0_i32, %c0_i32_0 : i32, i32
  }
  func.func @transform_5(%arg0: i32) -> (i32, i32) {
    %c0_i32 = arith.constant 0 : i32
    %c0_i32_0 = arith.constant 0 : i32
    %c0_i32_1 = arith.constant 0 : i32
    return %c0_i32, %c0_i32_0 : i32, i32
  }
  func.func @transform_6(%arg0: i32) -> (i32, i32) {
    %c0_i32 = arith.constant 0 : i32
    %c0_i32_0 = arith.constant 0 : i32
    %c0_i32_1 = arith.constant 0 : i32
    return %c0_i32, %c0_i32_0 : i32, i32
  }
  func.func @transform_7(%arg0: i32) -> (i32, i32, i32) {
    %c0_i32 = arith.constant 0 : i32
    %c0_i32_0 = arith.constant 0 : i32
    %c0_i32_1 = arith.constant 0 : i32
    return %arg0, %c0_i32, %c0_i32_0 : i32, i32, i32
  }
}

</mosaic_0001>

<llo_original>
// kernel: cnn_forward.1
$region0: #{cnn_forward.1}
  #allocation0 [shape = 'u32[]', space=smem, size = 0x4, offset = 0x4, fixed_abs, tag = 'smem constant byte address 0x4 - core index']
  #allocation1 [shape = 'u32[144,128]{1,0:T(1,128)}', space=vmem, size = 0x12000, scoped, tag = 'internal scratch']
  #allocation2 [shape = 'f32[25,892]{1,0:T(8,128)}', space=vmem, size = 0x1c000, scoped, tag = 'scratch operand']
  #allocation3 [shape = 'bf16[16,1296]{1,0:T(8,128)(2,1)}', space=vmem, size = 0xb000, scoped, tag = 'scratch operand']
  #allocation4 [shape = 'bf16[400,1000]{1,0:T(8,128)(2,1)}', space=vmem, size = 0xc8000, scoped, tag = 'scratch operand']
  %s0 = inlined_call_operand.vmem [shape: f32[2,1,1024], index: 0, kind: input, shape index: {}]
  %s1 = inlined_call_operand.vmem [shape: f32[16,25], index: 1, kind: input, shape index: {}]
  %s2 = inlined_call_operand.vmem [shape: f32[16,1], index: 2, kind: input, shape index: {}]
  %s3 = inlined_call_operand.vmem [shape: bf16[32,400], index: 3, kind: input, shape index: {}]
  %s4 = inlined_call_operand.vmem [shape: f32[32,1], index: 4, kind: input, shape index: {}]
  %s5 = inlined_call_operand.vmem [shape: f32[896,320], index: 5, kind: input, shape index: {}]
  %s6 = inlined_call_operand.vmem [shape: f32[1,10], index: 6, kind: input, shape index: {}]
  %s7 = inlined_call_operand.hbm [shape: f32[2,1,10], index: 7, kind: output, shape index: {}]
  %s8 = sld [smem:[#allocation0]]
  $region61: #{cnn_forward.1} parent=0
    _
  %s10 = ssub.s32 1, %s8
  %s11 = scalar_select 0, %s10, %s8
  $region1: #{cnn_forward.1} parent=0
    #allocation5 [shape = 'u8[1024]{0}', space=vmem, size = 0x400, scoped, tag = 'output window, operand 0']
    #allocation6 [shape = 's32[2]{0}', space=sflag, size = 0x8, scoped, tag = 'scoped memory for cnn_forward.1']
    %12 = vsyncpa [#allocation6], 0
    %s13 = scalar_lea.sflag [#allocation6], 1
    %14 = vsyncpa %s13, 0
    loop: start=0, step=1, limit=4
    $region2: #{cnn_forward.1} parent=1 // loop_pre_header
      _
    $region3: #{cnn_forward.1} parent=1 // loop_header
      %s16 = sphi 0, %s20
      %p17 = scmp.ge.s32.totalorder %s16, 4
      %s26 = sphi 0, %s28
      %s29 = sphi 0, %s26
      %s30 = sphi 0, %s29
      %s46 = sphi 0, %s30
      %s50 = sphi 0, %s50
      %s52 = sphi 0, %s50
      %s53 = sphi 0, %s52
      %s67 = sphi 0, %s53
      %s71 = sphi 0, %s71
      %s73 = sphi 0, %s71
      %s74 = sphi 0, %s73
      %s88 = sphi 0, %s74
      %s92 = sphi 0, %s92
      %s94 = sphi 0, %s92
      %s95 = sphi 0, %s94
      %s109 = sphi 0, %s95
      %s113 = sphi 0, %s113
      %s115 = sphi 0, %s113
      %s116 = sphi 0, %s115
      %s130 = sphi 0, %s116
      %s134 = sphi 0, %s134
      %s136 = sphi 0, %s134
      %s137 = sphi 0, %s136
      %s151 = sphi 0, %s137
      %s155 = sphi 0, %s155
      %s157 = sphi 0, %s155
      %s158 = sphi 0, %s157
      %s172 = sphi 0, %s158
      %s178 = sphi 0, %s180
      %s181 = sphi 0, %s178
      %s182 = sphi 0, %s181
      %s198 = sphi 0, %s182
    $region4: #{cnn_forward.1} parent=1 // loop_header_branch
      %19 = sbr.rel (%p17) target = $region8
    $region5: #{cnn_forward.1} parent=1 // loop_body
      %s21 = ssub.s32 %s16, 1
      %s22 = ssub.s32 %s16, 2
      %s23 = sadd.s32 %s16, 1
      %s24 = ssub.s32 %s16, %s23
      %p25 = scmp.eq.s32.totalorder %s24, 0
      %s27 = sadd.s32 %s26, 1
      %s28 = scalar_select %p25, %s26, %s27
      %p31 = pneg %p25
      %p32 = scmp.eq.s32.totalorder %s16, 1
      %p33 = por %p31, %p32
      %p34 = scmp.ne.s32.totalorder %s26, %s29
      %p35 = scmp.eq.s32.totalorder %s16, 0
      %p36 = por %p34, %p35
      %p37 = scmp.ne.s32.totalorder %s26, %s29
      %p38 = scmp.eq.s32.totalorder %s21, 1
      %p39 = por %p37, %p38
      %p40 = scmp.ne.s32.totalorder %s29, %s30
      %p41 = scmp.eq.s32.totalorder %s21, 0
      %p42 = por %p40, %p41
      %p43 = scmp.ne.s32.totalorder %s29, %s30
      %p44 = scmp.eq.s32.totalorder %s22, 1
      %p45 = por %p43, %p44
      %p47 = scmp.ne.s32.totalorder %s30, %s46
      %p48 = scmp.eq.s32.totalorder %s22, 0
      %p49 = por %p47, %p48
      %s51 = sadd.s32 %s50, 1
      %p54 = scmp.eq.s32.totalorder %s16, 1
      %p55 = scmp.ne.s32.totalorder %s50, %s52
      %p56 = scmp.eq.s32.totalorder %s16, 0
      %p57 = por %p55, %p56
      %p58 = scmp.ne.s32.totalorder %s50, %s52
      %p59 = scmp.eq.s32.totalorder %s21, 1
      %p60 = por %p58, %p59
      %p61 = scmp.ne.s32.totalorder %s52, %s53
      %p62 = scmp.eq.s32.totalorder %s21, 0
      %p63 = por %p61, %p62
      %p64 = scmp.ne.s32.totalorder %s52, %s53
      %p65 = scmp.eq.s32.totalorder %s22, 1
      %p66 = por %p64, %p65
      %p68 = scmp.ne.s32.totalorder %s53, %s67
      %p69 = scmp.eq.s32.totalorder %s22, 0
      %p70 = por %p68, %p69
      %s72 = sadd.s32 %s71, 1
      %p75 = scmp.eq.s32.totalorder %s16, 1
      %p76 = scmp.ne.s32.totalorder %s71, %s73
      %p77 = scmp.eq.s32.totalorder %s16, 0
      %p78 = por %p76, %p77
      %p79 = scmp.ne.s32.totalorder %s71, %s73
      %p80 = scmp.eq.s32.totalorder %s21, 1
      %p81 = por %p79, %p80
      %p82 = scmp.ne.s32.totalorder %s73, %s74
      %p83 = scmp.eq.s32.totalorder %s21, 0
      %p84 = por %p82, %p83
      %p85 = scmp.ne.s32.totalorder %s73, %s74
      %p86 = scmp.eq.s32.totalorder %s22, 1
      %p87 = por %p85, %p86
      %p89 = scmp.ne.s32.totalorder %s74, %s88
      %p90 = scmp.eq.s32.totalorder %s22, 0
      %p91 = por %p89, %p90
      %s93 = sadd.s32 %s92, 1
      %p96 = scmp.eq.s32.totalorder %s16, 1
      %p97 = scmp.ne.s32.totalorder %s92, %s94
      %p98 = scmp.eq.s32.totalorder %s16, 0
      %p99 = por %p97, %p98
      %p100 = scmp.ne.s32.totalorder %s92, %s94
      %p101 = scmp.eq.s32.totalorder %s21, 1
      %p102 = por %p100, %p101
      %p103 = scmp.ne.s32.totalorder %s94, %s95
      %p104 = scmp.eq.s32.totalorder %s21, 0
      %p105 = por %p103, %p104
      %p106 = scmp.ne.s32.totalorder %s94, %s95
      %p107 = scmp.eq.s32.totalorder %s22, 1
      %p108 = por %p106, %p107
      %p110 = scmp.ne.s32.totalorder %s95, %s109
      %p111 = scmp.eq.s32.totalorder %s22, 0
      %p112 = por %p110, %p111
      %s114 = sadd.s32 %s113, 1
      %p117 = scmp.eq.s32.totalorder %s16, 1
      %p118 = scmp.ne.s32.totalorder %s113, %s115
      %p119 = scmp.eq.s32.totalorder %s16, 0
      %p120 = por %p118, %p119
      %p121 = scmp.ne.s32.totalorder %s113, %s115
      %p122 = scmp.eq.s32.totalorder %s21, 1
      %p123 = por %p121, %p122
      %p124 = scmp.ne.s32.totalorder %s115, %s116
      %p125 = scmp.eq.s32.totalorder %s21, 0
      %p126 = por %p124, %p125
      %p127 = scmp.ne.s32.totalorder %s115, %s116
      %p128 = scmp.eq.s32.totalorder %s22, 1
      %p129 = por %p127, %p128
      %p131 = scmp.ne.s32.totalorder %s116, %s130
      %p132 = scmp.eq.s32.totalorder %s22, 0
      %p133 = por %p131, %p132
      %s135 = sadd.s32 %s134, 1
      %p138 = scmp.eq.s32.totalorder %s16, 1
      %p139 = scmp.ne.s32.totalorder %s134, %s136
      %p140 = scmp.eq.s32.totalorder %s16, 0
      %p141 = por %p139, %p140
      %p142 = scmp.ne.s32.totalorder %s134, %s136
      %p143 = scmp.eq.s32.totalorder %s21, 1
      %p144 = por %p142, %p143
      %p145 = scmp.ne.s32.totalorder %s136, %s137
      %p146 = scmp.eq.s32.totalorder %s21, 0
      %p147 = por %p145, %p146
      %p148 = scmp.ne.s32.totalorder %s136, %s137
      %p149 = scmp.eq.s32.totalorder %s22, 1
      %p150 = por %p148, %p149
      %p152 = scmp.ne.s32.totalorder %s137, %s151
      %p153 = scmp.eq.s32.totalorder %s22, 0
      %p154 = por %p152, %p153
      %s156 = sadd.s32 %s155, 1
      %p159 = scmp.eq.s32.totalorder %s16, 1
      %p160 = scmp.ne.s32.totalorder %s155, %s157
      %p161 = scmp.eq.s32.totalorder %s16, 0
      %p162 = por %p160, %p161
      %p163 = scmp.ne.s32.totalorder %s155, %s157
      %p164 = scmp.eq.s32.totalorder %s21, 1
      %p165 = por %p163, %p164
      %p166 = scmp.ne.s32.totalorder %s157, %s158
      %p167 = scmp.eq.s32.totalorder %s21, 0
      %p168 = por %p166, %p167
      %p169 = scmp.ne.s32.totalorder %s157, %s158
      %p170 = scmp.eq.s32.totalorder %s22, 1
      %p171 = por %p169, %p170
      %p173 = scmp.ne.s32.totalorder %s158, %s172
      %p174 = scmp.eq.s32.totalorder %s22, 0
      %p175 = por %p173, %p174
      %s176 = ssub.s32 %s16, %s23
      %p177 = scmp.eq.s32.totalorder %s176, 0
      %s179 = sadd.s32 %s178, 1
      %s180 = scalar_select %p177, %s178, %s179
      %p183 = pneg %p177
      %p184 = scmp.eq.s32.totalorder %s16, 1
      %p185 = por %p183, %p184
      %p186 = scmp.ne.s32.totalorder %s178, %s181
      %p187 = scmp.eq.s32.totalorder %s16, 0
      %p188 = por %p186, %p187
      %p189 = scmp.ne.s32.totalorder %s178, %s181
      %p190 = scmp.eq.s32.totalorder %s21, 1
      %p191 = por %p189, %p190
      %p192 = scmp.ne.s32.totalorder %s181, %s182
      %p193 = scmp.eq.s32.totalorder %s21, 0
      %p194 = por %p192, %p193
      %p195 = scmp.ne.s32.totalorder %s181, %s182
      %p196 = scmp.eq.s32.totalorder %s22, 1
      %p197 = por %p195, %p196
      %p199 = scmp.ne.s32.totalorder %s182, %s198
      %p200 = scmp.eq.s32.totalorder %s22, 0
      %p201 = por %p199, %p200
      %p202 = scmp.le.s32.totalorder 1, %s16
      %p203 = scmp.lt.s32.totalorder %s16, 3
      %p204 = pnand %p202, %p203
      %p205 = pneg %p204
      // Predicated region
      $region9: #{cnn_forward.1} parent=5 // pred_check
        _
      $region10: #{cnn_forward.1} parent=5 // pred_check_branch
        %207 = sbr.rel (%p204) target = $region12
      $region11: #{cnn_forward.1} parent=5 // pred_region
        %s208 = ssub.s32 %s16, 1
        // Predicated region
        $region13: #{cnn_forward.1} parent=11 // pred_check
          %p209 = pneg %p63
        $region14: #{cnn_forward.1} parent=11 // pred_check_branch
          %211 = sbr.rel (%p209) target = $region16
        $region15: #{cnn_forward.1} parent=11 // pred_region
          _
        $region16: #{cnn_forward.1} parent=11 // pred_fallthru
          _
        // Predicated region
        $region17: #{cnn_forward.1} parent=11 // pred_check
          %p212 = pneg %p84
        $region18: #{cnn_forward.1} parent=11 // pred_check_branch
          %214 = sbr.rel (%p212) target = $region20
        $region19: #{cnn_forward.1} parent=11 // pred_region
          _
        $region20: #{cnn_forward.1} parent=11 // pred_fallthru
          _
        // Predicated region
        $region21: #{cnn_forward.1} parent=11 // pred_check
          %p215 = pneg %p105
        $region22: #{cnn_forward.1} parent=11 // pred_check_branch
          %217 = sbr.rel (%p215) target = $region24
        $region23: #{cnn_forward.1} parent=11 // pred_region
          _
        $region24: #{cnn_forward.1} parent=11 // pred_fallthru
          _
        // Predicated region
        $region25: #{cnn_forward.1} parent=11 // pred_check
          %p218 = pneg %p126
        $region26: #{cnn_forward.1} parent=11 // pred_check_branch
          %220 = sbr.rel (%p218) target = $region28
        $region27: #{cnn_forward.1} parent=11 // pred_region
          _
        $region28: #{cnn_forward.1} parent=11 // pred_fallthru
          _
        // Predicated region
        $region29: #{cnn_forward.1} parent=11 // pred_check
          %p221 = pneg %p147
        $region30: #{cnn_forward.1} parent=11 // pred_check_branch
          %223 = sbr.rel (%p221) target = $region32
        $region31: #{cnn_forward.1} parent=11 // pred_region
          _
        $region32: #{cnn_forward.1} parent=11 // pred_fallthru
          _
        // Predicated region
        $region33: #{cnn_forward.1} parent=11 // pred_check
          %p224 = pneg %p168
        $region34: #{cnn_forward.1} parent=11 // pred_check_branch
          %226 = sbr.rel (%p224) target = $region36
        $region35: #{cnn_forward.1} parent=11 // pred_region
          _
        $region36: #{cnn_forward.1} parent=11 // pred_fallthru
          _
      $region12: #{cnn_forward.1} parent=5 // pred_fallthru
        _
      %p227 = scmp.lt.s32.totalorder %s16, 2
      // Predicated region
      $region37: #{cnn_forward.1} parent=5 // pred_check
        %p228 = pneg %p227
      $region38: #{cnn_forward.1} parent=5 // pred_check_branch
        %230 = sbr.rel (%p228) target = $region40
      $region39: #{cnn_forward.1} parent=5 // pred_region
        // Predicated region
        $region41: #{cnn_forward.1} parent=39 // pred_check
          %p231 = pneg %p36
        $region42: #{cnn_forward.1} parent=39 // pred_check_branch
          %233 = sbr.rel (%p231) target = $region44
        $region43: #{cnn_forward.1} parent=39 // pred_region
          %p234 = scmp.lt.s32.totalorder %s16, 1
          %s235 = scalar_select %p234, %s16, 1
          %s236 = smul.addr %s235, 8
          %s237 = scalar_lea.vmem %s0, %s236
        $region44: #{cnn_forward.1} parent=39 // pred_fallthru
          _
      $region40: #{cnn_forward.1} parent=5 // pred_fallthru
        _
      %p238 = scmp.le.s32.totalorder 1, %s16
      %p239 = scmp.lt.s32.totalorder %s16, 3
      %p240 = pnand %p238, %p239
      %p241 = pneg %p240
      // Predicated region
      $region45: #{cnn_forward.1} parent=5 // pred_check
        _
      $region46: #{cnn_forward.1} parent=5 // pred_check_branch
        %243 = sbr.rel (%p240) target = $region48
      $region47: #{cnn_forward.1} parent=5 // pred_region
        %s244 = ssub.s32 %s16, 1
        %p245 = scmp.lt.s32.totalorder %s21, 1
        %s246 = scalar_select %p245, %s21, 1
        %s247 = smul.addr %s246, 8
        %s248 = scalar_lea.vmem %s0, %s247
        %p249 = pneg %p42
        %p250 = pneg %p39
        %p251 = pneg %p63
        %p252 = pneg %p60
        %p253 = pneg %p84
        %p254 = pneg %p81
        %p255 = pneg %p105
        %p256 = pneg %p102
        %p257 = pneg %p126
        %p258 = pneg %p123
        %p259 = pneg %p147
        %p260 = pneg %p144
        %p261 = pneg %p168
        %p262 = pneg %p165
        %p263 = pneg %p194
        %p264 = pneg %p191
        %s265 = sand.u32 %s181, 1
        %s266 = scalar_lea.sflag [#allocation6], %s265
        %s267 = sand.u32 %s181, 1
        %s268 = scalar_lea.vmem [#allocation5], %s267
        %p269 = scmp.lt.s32.totalorder %s21, 1
        %s270 = scalar_select %p269, %s21, 1
        %s271 = smul.addr %s270, 8
        %s272 = scalar_lea.vmem %s0, %s271
        %v274 = vld [vmem:[%s272] sm:$0xff]
        %v275 = vlaneseq
        %vm276 = vcmp.ge.s32.totalorder %v275, 0
        %vm277 = vcmp.lt.s32.totalorder %v275, 892
        %vm278 = vmand %vm276, %vm277
        %279 = vst.msk [vmem:[#allocation2] ss:$8 sm:$0xf] %vm278, %v274
        %280 = vst.msk [vmem:[#allocation2] ss:$8 sm:$0x70] %vm278, %v274
        %282 = vrot.lane.b32.xlu0 %v274, 127
        %v283 = vpop.permute.xlu0 %282
        %v284 = vrot.slane %v283, 1
        %vm285 = vcmask 1039360
        %v286 = vsel %vm285, %v283, %v284
        %s288 = scalar_lea.vmem [#allocation2], 1
        %289 = vst.msk [vmem:[%s288] ss:$8 sm:$0xf] %vm278, %v286
        %290 = vst.msk [vmem:[%s288] ss:$8 sm:$0x70] %vm278, %v286
        %291 = vrot.lane.b32.xlu0 %v274, 126
        %v292 = vpop.permute.xlu0 %291
        %v293 = vrot.slane %v292, 1
        %vm294 = vcmask 1031168
        %v295 = vsel %vm294, %v292, %v293
        %s297 = scalar_lea.vmem [#allocation2], 2
        %298 = vst.msk [vmem:[%s297] ss:$8 sm:$0xf] %vm278, %v295
        %299 = vst.msk [vmem:[%s297] ss:$8 sm:$0x70] %vm278, %v295
        %300 = vrot.lane.b32.xlu0 %v274, 125
        %v301 = vpop.permute.xlu0 %300
        %v302 = vrot.slane %v301, 1
        %vm303 = vcmask 1022976
        %v304 = vsel %vm303, %v301, %v302
        %s306 = scalar_lea.vmem [#allocation2], 3
        %307 = vst.msk [vmem:[%s306] ss:$8 sm:$0xf] %vm278, %v304
        %308 = vst.msk [vmem:[%s306] ss:$8 sm:$0x70] %vm278, %v304
        %309 = vrot.lane.b32.xlu0 %v274, 124
        %v310 = vpop.permute.xlu0 %309
        %v311 = vrot.slane %v310, 1
        %vm312 = vcmask 1014784
        %v313 = vsel %vm312, %v310, %v311
        %s315 = scalar_lea.vmem [#allocation2], 4
        %316 = vst.msk [vmem:[%s315] ss:$8 sm:$0xf] %vm278, %v313
        %317 = vst.msk [vmem:[%s315] ss:$8 sm:$0x70] %vm278, %v313
        %318 = vrot.lane.b32.xlu0 %v274, 96
        %v319 = vpop.permute.xlu0 %318
        %v320 = vrot.slane %v319, 1
        %vm321 = vcmask 785408
        %v322 = vsel %vm321, %v319, %v320
        %s324 = scalar_lea.vmem [#allocation2], 5
        %325 = vst.msk [vmem:[%s324] ss:$8 sm:$0xf] %vm278, %v322
        %326 = vst.msk [vmem:[%s324] ss:$8 sm:$0x70] %vm278, %v322
        %327 = vrot.lane.b32.xlu0 %v274, 95
        %v328 = vpop.permute.xlu0 %327
        %v329 = vrot.slane %v328, 1
        %vm330 = vcmask 777216
        %v331 = vsel %vm330, %v328, %v329
        %s333 = scalar_lea.vmem [#allocation2], 6
        %334 = vst.msk [vmem:[%s333] ss:$8 sm:$0xf] %vm278, %v331
        %335 = vst.msk [vmem:[%s333] ss:$8 sm:$0x70] %vm278, %v331
        %336 = vrot.lane.b32.xlu0 %v274, 94
        %v337 = vpop.permute.xlu0 %336
        %v338 = vrot.slane %v337, 1
        %vm339 = vcmask 769024
        %v340 = vsel %vm339, %v337, %v338
        %s342 = scalar_lea.vmem [#allocation2], 7
        %343 = vst.msk [vmem:[%s342] ss:$8 sm:$0xf] %vm278, %v340
        %344 = vst.msk [vmem:[%s342] ss:$8 sm:$0x70] %vm278, %v340
        %345 = vrot.lane.b32.xlu0 %v274, 93
        %v346 = vpop.permute.xlu0 %345
        %v347 = vrot.slane %v346, 1
        %vm348 = vcmask 760832
        %v349 = vsel %vm348, %v346, %v347
        %s351 = scalar_lea.vmem [#allocation2], 56
        %352 = vst.msk [vmem:[%s351] ss:$8 sm:$0xf] %vm278, %v349
        %353 = vst.msk [vmem:[%s351] ss:$8 sm:$0x70] %vm278, %v349
        %354 = vrot.lane.b32.xlu0 %v274, 92
        %v355 = vpop.permute.xlu0 %354
        %v356 = vrot.slane %v355, 1
        %vm357 = vcmask 752640
        %v358 = vsel %vm357, %v355, %v356
        %s360 = scalar_lea.vmem [#allocation2], 57
        %361 = vst.msk [vmem:[%s360] ss:$8 sm:$0xf] %vm278, %v358
        %362 = vst.msk [vmem:[%s360] ss:$8 sm:$0x70] %vm278, %v358
        %363 = vrot.lane.b32.xlu0 %v274, 64
        %v364 = vpop.permute.xlu0 %363
        %v365 = vrot.slane %v364, 1
        %vm366 = vcmask 523264
        %v367 = vsel %vm366, %v364, %v365
        %s369 = scalar_lea.vmem [#allocation2], 58
        %370 = vst.msk [vmem:[%s369] ss:$8 sm:$0xf] %vm278, %v367
        %371 = vst.msk [vmem:[%s369] ss:$8 sm:$0x70] %vm278, %v367
        %372 = vrot.lane.b32.xlu0 %v274, 63
        %v373 = vpop.permute.xlu0 %372
        %v374 = vrot.slane %v373, 1
        %vm375 = vcmask 515072
        %v376 = vsel %vm375, %v373, %v374
        %s378 = scalar_lea.vmem [#allocation2], 59
        %379 = vst.msk [vmem:[%s378] ss:$8 sm:$0xf] %vm278, %v376
        %380 = vst.msk [vmem:[%s378] ss:$8 sm:$0x70] %vm278, %v376
        %381 = vrot.lane.b32.xlu0 %v274, 62
        %v382 = vpop.permute.xlu0 %381
        %v383 = vrot.slane %v382, 1
        %vm384 = vcmask 506880
        %v385 = vsel %vm384, %v382, %v383
        %s387 = scalar_lea.vmem [#allocation2], 60
        %388 = vst.msk [vmem:[%s387] ss:$8 sm:$0xf] %vm278, %v385
        %389 = vst.msk [vmem:[%s387] ss:$8 sm:$0x70] %vm278, %v385
        %390 = vrot.lane.b32.xlu0 %v274, 61
        %v391 = vpop.permute.xlu0 %390
        %v392 = vrot.slane %v391, 1
        %vm393 = vcmask 498688
        %v394 = vsel %vm393, %v391, %v392
        %s396 = scalar_lea.vmem [#allocation2], 61
        %397 = vst.msk [vmem:[%s396] ss:$8 sm:$0xf] %vm278, %v394
        %398 = vst.msk [vmem:[%s396] ss:$8 sm:$0x70] %vm278, %v394
        %399 = vrot.lane.b32.xlu0 %v274, 60
        %v400 = vpop.permute.xlu0 %399
        %v401 = vrot.slane %v400, 1
        %vm402 = vcmask 490496
        %v403 = vsel %vm402, %v400, %v401
        %s405 = scalar_lea.vmem [#allocation2], 62
        %406 = vst.msk [vmem:[%s405] ss:$8 sm:$0xf] %vm278, %v403
        %407 = vst.msk [vmem:[%s405] ss:$8 sm:$0x70] %vm278, %v403
        %408 = vrot.lane.b32.xlu0 %v274, 32
        %v409 = vpop.permute.xlu0 %408
        %v410 = vrot.slane %v409, 1
        %vm411 = vcmask 261120
        %v412 = vsel %vm411, %v409, %v410
        %s414 = scalar_lea.vmem [#allocation2], 63
        %415 = vst.msk [vmem:[%s414] ss:$8 sm:$0xf] %vm278, %v412
        %416 = vst.msk [vmem:[%s414] ss:$8 sm:$0x70] %vm278, %v412
        %417 = vrot.lane.b32.xlu0 %v274, 31
        %v418 = vpop.permute.xlu0 %417
        %v419 = vrot.slane %v418, 1
        %vm420 = vcmask 252928
        %v421 = vsel %vm420, %v418, %v419
        %s423 = scalar_lea.vmem [#allocation2], 112
        %424 = vst.msk [vmem:[%s423] ss:$8 sm:$0xf] %vm278, %v421
        %425 = vst.msk [vmem:[%s423] ss:$8 sm:$0x70] %vm278, %v421
        %426 = vrot.lane.b32.xlu0 %v274, 30
        %v427 = vpop.permute.xlu0 %426
        %v428 = vrot.slane %v427, 1
        %vm429 = vcmask 244736
        %v430 = vsel %vm429, %v427, %v428
        %s432 = scalar_lea.vmem [#allocation2], 113
        %433 = vst.msk [vmem:[%s432] ss:$8 sm:$0xf] %vm278, %v430
        %434 = vst.msk [vmem:[%s432] ss:$8 sm:$0x70] %vm278, %v430
        %435 = vrot.lane.b32.xlu0 %v274, 29
        %v436 = vpop.permute.xlu0 %435
        %v437 = vrot.slane %v436, 1
        %vm438 = vcmask 236544
        %v439 = vsel %vm438, %v436, %v437
        %s441 = scalar_lea.vmem [#allocation2], 114
        %442 = vst.msk [vmem:[%s441] ss:$8 sm:$0xf] %vm278, %v439
        %443 = vst.msk [vmem:[%s441] ss:$8 sm:$0x70] %vm278, %v439
        %444 = vrot.lane.b32.xlu0 %v274, 28
        %v445 = vpop.permute.xlu0 %444
        %v446 = vrot.slane %v445, 1
        %vm447 = vcmask 228352
        %v448 = vsel %vm447, %v445, %v446
        %s450 = scalar_lea.vmem [#allocation2], 115
        %451 = vst.msk [vmem:[%s450] ss:$8 sm:$0xf] %vm278, %v448
        %452 = vst.msk [vmem:[%s450] ss:$8 sm:$0x70] %vm278, %v448
        %v453 = vrot.slane %v274, 1
        %s455 = scalar_lea.vmem [#allocation2], 116
        %456 = vst.msk [vmem:[%s455] ss:$8 sm:$0xf] %vm278, %v453
        %457 = vst.msk [vmem:[%s455] ss:$8 sm:$0x70] %vm278, %v453
        %v458 = vrot.slane %v283, 2
        %v459 = vsel %vm285, %v284, %v458
        %s461 = scalar_lea.vmem [#allocation2], 117
        %462 = vst.msk [vmem:[%s461] ss:$8 sm:$0xf] %vm278, %v459
        %463 = vst.msk [vmem:[%s461] ss:$8 sm:$0x70] %vm278, %v459
        %v464 = vrot.slane %v292, 2
        %v465 = vsel %vm294, %v293, %v464
        %s467 = scalar_lea.vmem [#allocation2], 118
        %468 = vst.msk [vmem:[%s467] ss:$8 sm:$0xf] %vm278, %v465
        %469 = vst.msk [vmem:[%s467] ss:$8 sm:$0x70] %vm278, %v465
        %v470 = vrot.slane %v301, 2
        %v471 = vsel %vm303, %v302, %v470
        %s473 = scalar_lea.vmem [#allocation2], 119
        %474 = vst.msk [vmem:[%s473] ss:$8 sm:$0xf] %vm278, %v471
        %475 = vst.msk [vmem:[%s473] ss:$8 sm:$0x70] %vm278, %v471
        %v476 = vrot.slane %v310, 2
        %v477 = vsel %vm312, %v311, %v476
        %s479 = scalar_lea.vmem [#allocation2], 168
        %480 = vst.msk [vmem:[%s479] ss:$8 sm:$0xf] %vm278, %v477
        %481 = vst.msk [vmem:[%s479] ss:$8 sm:$0x70] %vm278, %v477
        %v482 = vld [vmem:[%s1] sm:$0xff]
        %v483 = vld [vmem:[%s1 + $0x8] sm:$0xff]
        %v484 = vld [vmem:[#allocation2] sm:$0xff]
        %v485 = vld [vmem:[#allocation2 + $0x8] sm:$0xff]
        %v486 = vld [vmem:[#allocation2 + $0x10] sm:$0xff]
        %v487 = vld [vmem:[#allocation2 + $0x18] sm:$0xff]
        %v488 = vld [vmem:[#allocation2 + $0x20] sm:$0xff]
        %v489 = vld [vmem:[#allocation2 + $0x28] sm:$0xff]
        %v490 = vld [vmem:[#allocation2 + $0x30] sm:$0xff]
        %v491 = vld [vmem:[#allocation2 + $0x38] sm:$0xff]
        %v492 = vld [vmem:[#allocation2 + $0x40] sm:$0xff]
        %v493 = vld [vmem:[#allocation2 + $0x48] sm:$0xff]
        %v494 = vld [vmem:[#allocation2 + $0x50] sm:$0xff]
        %v495 = vld [vmem:[#allocation2 + $0x58] sm:$0xff]
        %v496 = vld [vmem:[#allocation2 + $0x60] sm:$0xff]
        %v497 = vld [vmem:[#allocation2 + $0x68] sm:$0xff]
        %v498 = vld [vmem:[#allocation2 + $0x70] sm:$0xff]
        %v499 = vld [vmem:[#allocation2 + $0x78] sm:$0xff]
        %v500 = vld [vmem:[#allocation2 + $0x80] sm:$0xff]
        %v501 = vld [vmem:[#allocation2 + $0x88] sm:$0xff]
        %v502 = vld [vmem:[#allocation2 + $0x90] sm:$0xff]
        %v503 = vld [vmem:[#allocation2 + $0x98] sm:$0xff]
        %v504 = vld [vmem:[#allocation2 + $0xa0] sm:$0xff]
        %v505 = vld [vmem:[#allocation2 + $0xa8] sm:$0x1]
        %v506 = vld [vmem:[#allocation2 + $0xb0] sm:$0x1]
        %v507 = vld [vmem:[#allocation2 + $0xb8] sm:$0x1]
        %v508 = vld [vmem:[#allocation2 + $0xc0] sm:$0x1]
        %v509 = vld [vmem:[#allocation2 + $0xc8] sm:$0x1]
        %v510 = vld [vmem:[#allocation2 + $0xd0] sm:$0x1]
        %v511 = vld [vmem:[#allocation2 + $0xd8] sm:$0x1]
        %v512 = vld [vmem:[%s2] sm:$0xff]
        %v513 = vld [vmem:[%s2 + $0x8] sm:$0xff]
        %515 = vset.pattern.permute.xlu0 0
        %516 = vperm.xlu0 %515, %v512
        %v517 = vpop.permute.xlu0 %516
        %520 = vset.pattern.permute.xlu0 0
        %521 = vperm.xlu0 %520, %v513
        %v522 = vpop.permute.xlu0 %521
        %vm524 = vcmask 203776
        %v526 = vsel %vm524, %v482, 0
        %v529 = vsel %vm524, %v483, 0
        %vm531 = vcmask 1040384
        %v533 = vsel %vm531, %v505, 0
        %v536 = vsel %vm531, %v506, 0
        %v539 = vsel %vm531, %v507, 0
        %v542 = vsel %vm531, %v508, 0
        %v545 = vsel %vm531, %v509, 0
        %v548 = vsel %vm531, %v510, 0
        %v551 = vsel %vm531, %v511, 0
        %553 = vmatprep.subr.mxu0 0.0
        %554 = vmatpush1.msra.mxu0 0.0
        %555 = vmatprep.subr.mxu0 0.0
        %556 = vmatpush1.msra.mxu0 0.0
        %557 = vmatprep.subr.mxu0 0.0
        %558 = vmatpush1.msra.mxu0 0.0
        %559 = vmatprep.subr.mxu0 0.0
        %560 = vmatpush1.msra.mxu0 0.0
        %561 = vmatprep.subr.mxu0 0.0
        %562 = vmatpush1.msra.mxu0 0.0
        %563 = vmatprep.subr.mxu0 0.0
        %564 = vmatpush1.msra.mxu0 0.0
        %565 = vmatprep.subr.mxu0 0.0
        %566 = vmatpush1.msra.mxu0 0.0
        %567 = vmatprep.subr.mxu0 0.0
        %568 = vmatpush1.msra.mxu0 0.0
        %569 = vmatprep.subr.mxu0 0.0
        %570 = vmatpush1.msra.mxu0 0.0
        %571 = vmatprep.subr.mxu0 0.0
        %572 = vmatpush1.msra.mxu0 0.0
        %573 = vmatprep.subr.mxu0 0.0
        %574 = vmatpush1.msra.mxu0 0.0
        %575 = vmatprep.subr.mxu0 0.0
        %576 = vmatpush1.msra.mxu0 0.0
        %577 = vmatprep.subr.mxu0 %v536
        %578 = vmatpush1.msra.mxu0 %v533
        %579 = vmatprep.subr.mxu0 %v499
        %580 = vmatpush1.msra.mxu0 %v498
        %581 = vmatprep.subr.mxu0 %v492
        %582 = vmatpush1.msra.mxu0 %v491
        %583 = vmatprep.subr.mxu0 %v485
        %584 = vmatpush1.msra.mxu0 %v484
        %585 = vmatprep.subr.mxu0 0.0
        %586 = vmatpush2.msra.mxu0 0.0
        %587 = vmatprep.subr.mxu0 0.0
        %588 = vmatpush2.msra.mxu0 0.0
        %589 = vmatprep.subr.mxu0 0.0
        %590 = vmatpush2.msra.mxu0 0.0
        %591 = vmatprep.subr.mxu0 0.0
        %592 = vmatpush2.msra.mxu0 0.0
        %593 = vmatprep.subr.mxu0 0.0
        %594 = vmatpush2.msra.mxu0 0.0
        %595 = vmatprep.subr.mxu0 0.0
        %596 = vmatpush2.msra.mxu0 0.0
        %597 = vmatprep.subr.mxu0 0.0
        %598 = vmatpush2.msra.mxu0 0.0
        %599 = vmatprep.subr.mxu0 0.0
        %600 = vmatpush2.msra.mxu0 0.0
        %601 = vmatprep.subr.mxu0 0.0
        %602 = vmatpush2.msra.mxu0 0.0
        %603 = vmatprep.subr.mxu0 0.0
        %604 = vmatpush2.msra.mxu0 0.0
        %605 = vmatprep.subr.mxu0 0.0
        %606 = vmatpush2.msra.mxu0 0.0
        %607 = vmatprep.subr.mxu0 0.0
        %608 = vmatpush2.msra.mxu0 0.0
        %609 = vmatprep.subr.mxu0 0.0
        %610 = vmatpush2.msra.mxu0 0.0
        %611 = vmatprep.subr.mxu0 0.0
        %612 = vmatpush2.msra.mxu0 0.0
        %613 = vmatprep.subr.mxu0 0.0
        %614 = vmatpush2.msra.mxu0 0.0
        %615 = vmatprep.subr.mxu0 0.0
        %616 = vmatpush2.msra.mxu0 0.0
        %617 = vmatprep.mubr.f32.mxu0 0.0
        %618 = vmatmul.mubr.f32.gmra.mxu0 %v526
        %v619 = vpop.f32.mrf.mxu0
        %v620 = vadd.f32 %v517, %v619
        %v621 = vpop.f32.mrf.mxu0
        %v622 = vadd.f32 %v517, %v621
        %623 = vmatprep.mubr.f32.mxu0 0.0
        %624 = vmatmul.mubr.f32.gmra.mxu0 %v529
        %v625 = vpop.f32.mrf.mxu0
        %v626 = vadd.f32 %v522, %v625
        %v627 = vpop.f32.mrf.mxu0
        %v628 = vadd.f32 %v522, %v627
        %629 = vdwg.mxu0
        %630 = vmatprep.subr.mxu0 0.0
        %631 = vmatpush1.msra.mxu0 0.0
        %632 = vmatprep.subr.mxu0 0.0
        %633 = vmatpush1.msra.mxu0 0.0
        %634 = vmatprep.subr.mxu0 0.0
        %635 = vmatpush1.msra.mxu0 0.0
        %636 = vmatprep.subr.mxu0 0.0
        %637 = vmatpush1.msra.mxu0 0.0
        %638 = vmatprep.subr.mxu0 0.0
        %639 = vmatpush1.msra.mxu0 0.0
        %640 = vmatprep.subr.mxu0 0.0
        %641 = vmatpush1.msra.mxu0 0.0
        %642 = vmatprep.subr.mxu0 0.0
        %643 = vmatpush1.msra.mxu0 0.0
        %644 = vmatprep.subr.mxu0 0.0
        %645 = vmatpush1.msra.mxu0 0.0
        %646 = vmatprep.subr.mxu0 0.0
        %647 = vmatpush1.msra.mxu0 0.0
        %648 = vmatprep.subr.mxu0 0.0
        %649 = vmatpush1.msra.mxu0 0.0
        %650 = vmatprep.subr.mxu0 0.0
        %651 = vmatpush1.msra.mxu0 0.0
        %652 = vmatprep.subr.mxu0 0.0
        %653 = vmatpush1.msra.mxu0 0.0
        %654 = vmatprep.subr.mxu0 %v542
        %655 = vmatpush1.msra.mxu0 %v539
        %656 = vmatprep.subr.mxu0 %v501
        %657 = vmatpush1.msra.mxu0 %v500
        %658 = vmatprep.subr.mxu0 %v494
        %659 = vmatpush1.msra.mxu0 %v493
        %660 = vmatprep.subr.mxu0 %v487
        %661 = vmatpush1.msra.mxu0 %v486
        %662 = vmatprep.subr.mxu0 0.0
        %663 = vmatpush2.msra.mxu0 0.0
        %664 = vmatprep.subr.mxu0 0.0
        %665 = vmatpush2.msra.mxu0 0.0
        %666 = vmatprep.subr.mxu0 0.0
        %667 = vmatpush2.msra.mxu0 0.0
        %668 = vmatprep.subr.mxu0 0.0
        %669 = vmatpush2.msra.mxu0 0.0
        %670 = vmatprep.subr.mxu0 0.0
        %671 = vmatpush2.msra.mxu0 0.0
        %672 = vmatprep.subr.mxu0 0.0
        %673 = vmatpush2.msra.mxu0 0.0
        %674 = vmatprep.subr.mxu0 0.0
        %675 = vmatpush2.msra.mxu0 0.0
        %676 = vmatprep.subr.mxu0 0.0
        %677 = vmatpush2.msra.mxu0 0.0
        %678 = vmatprep.subr.mxu0 0.0
        %679 = vmatpush2.msra.mxu0 0.0
        %680 = vmatprep.subr.mxu0 0.0
        %681 = vmatpush2.msra.mxu0 0.0
        %682 = vmatprep.subr.mxu0 0.0
        %683 = vmatpush2.msra.mxu0 0.0
        %684 = vmatprep.subr.mxu0 0.0
        %685 = vmatpush2.msra.mxu0 0.0
        %686 = vmatprep.subr.mxu0 0.0
        %687 = vmatpush2.msra.mxu0 0.0
        %688 = vmatprep.subr.mxu0 0.0
        %689 = vmatpush2.msra.mxu0 0.0
        %690 = vmatprep.subr.mxu0 0.0
        %691 = vmatpush2.msra.mxu0 0.0
        %692 = vmatprep.subr.mxu0 0.0
        %693 = vmatpush2.msra.mxu0 0.0
        %694 = vmatprep.mubr.f32.mxu0 0.0
        %695 = vmatmul.mubr.f32.gmra.mxu0 %v526
        %v696 = vpop.f32.mrf.mxu0
        %v697 = vadd.f32 %v517, %v696
        %v698 = vpop.f32.mrf.mxu0
        %v699 = vadd.f32 %v517, %v698
        %700 = vmatprep.mubr.f32.mxu0 0.0
        %701 = vmatmul.mubr.f32.gmra.mxu0 %v529
        %v702 = vpop.f32.mrf.mxu0
        %v703 = vadd.f32 %v522, %v702
        %v704 = vpop.f32.mrf.mxu0
        %v705 = vadd.f32 %v522, %v704
        %706 = vdwg.mxu0
        %707 = vmatprep.subr.mxu0 0.0
        %708 = vmatpush1.msra.mxu0 0.0
        %709 = vmatprep.subr.mxu0 0.0
        %710 = vmatpush1.msra.mxu0 0.0
        %711 = vmatprep.subr.mxu0 0.0
        %712 = vmatpush1.msra.mxu0 0.0
        %713 = vmatprep.subr.mxu0 0.0
        %714 = vmatpush1.msra.mxu0 0.0
        %715 = vmatprep.subr.mxu0 0.0
        %716 = vmatpush1.msra.mxu0 0.0
        %717 = vmatprep.subr.mxu0 0.0
        %718 = vmatpush1.msra.mxu0 0.0
        %719 = vmatprep.subr.mxu0 0.0
        %720 = vmatpush1.msra.mxu0 0.0
        %721 = vmatprep.subr.mxu0 0.0
        %722 = vmatpush1.msra.mxu0 0.0
        %723 = vmatprep.subr.mxu0 0.0
        %724 = vmatpush1.msra.mxu0 0.0
        %725 = vmatprep.subr.mxu0 0.0
        %726 = vmatpush1.msra.mxu0 0.0
        %727 = vmatprep.subr.mxu0 0.0
        %728 = vmatpush1.msra.mxu0 0.0
        %729 = vmatprep.subr.mxu0 0.0
        %730 = vmatpush1.msra.mxu0 0.0
        %731 = vmatprep.subr.mxu0 %v548
        %732 = vmatpush1.msra.mxu0 %v545
        %733 = vmatprep.subr.mxu0 %v503
        %734 = vmatpush1.msra.mxu0 %v502
        %735 = vmatprep.subr.mxu0 %v496
        %736 = vmatpush1.msra.mxu0 %v495
        %737 = vmatprep.subr.mxu0 %v489
        %738 = vmatpush1.msra.mxu0 %v488
        %739 = vmatprep.subr.mxu0 0.0
        %740 = vmatpush2.msra.mxu0 0.0
        %741 = vmatprep.subr.mxu0 0.0
        %742 = vmatpush2.msra.mxu0 0.0
        %743 = vmatprep.subr.mxu0 0.0
        %744 = vmatpush2.msra.mxu0 0.0
        %745 = vmatprep.subr.mxu0 0.0
        %746 = vmatpush2.msra.mxu0 0.0
        %747 = vmatprep.subr.mxu0 0.0
        %748 = vmatpush2.msra.mxu0 0.0
        %749 = vmatprep.subr.mxu0 0.0
        %750 = vmatpush2.msra.mxu0 0.0
        %751 = vmatprep.subr.mxu0 0.0
        %752 = vmatpush2.msra.mxu0 0.0
        %753 = vmatprep.subr.mxu0 0.0
        %754 = vmatpush2.msra.mxu0 0.0
        %755 = vmatprep.subr.mxu0 0.0
        %756 = vmatpush2.msra.mxu0 0.0
        %757 = vmatprep.subr.mxu0 0.0
        %758 = vmatpush2.msra.mxu0 0.0
        %759 = vmatprep.subr.mxu0 0.0
        %760 = vmatpush2.msra.mxu0 0.0
        %761 = vmatprep.subr.mxu0 0.0
        %762 = vmatpush2.msra.mxu0 0.0
        %763 = vmatprep.subr.mxu0 0.0
        %764 = vmatpush2.msra.mxu0 0.0
        %765 = vmatprep.subr.mxu0 0.0
        %766 = vmatpush2.msra.mxu0 0.0
        %767 = vmatprep.subr.mxu0 0.0
        %768 = vmatpush2.msra.mxu0 0.0
        %769 = vmatprep.subr.mxu0 0.0
        %770 = vmatpush2.msra.mxu0 0.0
        %771 = vmatprep.mubr.f32.mxu0 0.0
        %772 = vmatmul.mubr.f32.gmra.mxu0 %v526
        %v773 = vpop.f32.mrf.mxu0
        %v774 = vadd.f32 %v517, %v773
        %v775 = vpop.f32.mrf.mxu0
        %v776 = vadd.f32 %v517, %v775
        %777 = vmatprep.mubr.f32.mxu0 0.0
        %778 = vmatmul.mubr.f32.gmra.mxu0 %v529
        %v779 = vpop.f32.mrf.mxu0
        %v780 = vadd.f32 %v522, %v779
        %v781 = vpop.f32.mrf.mxu0
        %v782 = vadd.f32 %v522, %v781
        %783 = vdwg.mxu0
        %784 = vmatprep.subr.mxu0 0.0
        %785 = vmatpush1.msra.mxu0 0.0
        %786 = vmatprep.subr.mxu0 0.0
        %787 = vmatpush1.msra.mxu0 0.0
        %788 = vmatprep.subr.mxu0 0.0
        %789 = vmatpush1.msra.mxu0 0.0
        %790 = vmatprep.subr.mxu0 0.0
        %791 = vmatpush1.msra.mxu0 0.0
        %792 = vmatprep.subr.mxu0 0.0
        %793 = vmatpush1.msra.mxu0 0.0
        %794 = vmatprep.subr.mxu0 0.0
        %795 = vmatpush1.msra.mxu0 0.0
        %796 = vmatprep.subr.mxu0 0.0
        %797 = vmatpush1.msra.mxu0 0.0
        %798 = vmatprep.subr.mxu0 0.0
        %799 = vmatpush1.msra.mxu0 0.0
        %800 = vmatprep.subr.mxu0 0.0
        %801 = vmatpush1.msra.mxu0 0.0
        %802 = vmatprep.subr.mxu0 0.0
        %803 = vmatpush1.msra.mxu0 0.0
        %804 = vmatprep.subr.mxu0 0.0
        %805 = vmatpush1.msra.mxu0 0.0
        %806 = vmatprep.subr.mxu0 0.0
        %807 = vmatpush1.msra.mxu0 0.0
        %808 = vmatprep.subr.mxu0 0.0
        %809 = vmatpush1.msra.mxu0 %v551
        %810 = vmatprep.subr.mxu0 0.0
        %811 = vmatpush1.msra.mxu0 %v504
        %812 = vmatprep.subr.mxu0 0.0
        %813 = vmatpush1.msra.mxu0 %v497
        %814 = vmatprep.subr.mxu0 0.0
        %815 = vmatpush1.msra.mxu0 %v490
        %816 = vmatprep.subr.mxu0 0.0
        %817 = vmatpush2.msra.mxu0 0.0
        %818 = vmatprep.subr.mxu0 0.0
        %819 = vmatpush2.msra.mxu0 0.0
        %820 = vmatprep.subr.mxu0 0.0
        %821 = vmatpush2.msra.mxu0 0.0
        %822 = vmatprep.subr.mxu0 0.0
        %823 = vmatpush2.msra.mxu0 0.0
        %824 = vmatprep.subr.mxu0 0.0
        %825 = vmatpush2.msra.mxu0 0.0
        %826 = vmatprep.subr.mxu0 0.0
        %827 = vmatpush2.msra.mxu0 0.0
        %828 = vmatprep.subr.mxu0 0.0
        %829 = vmatpush2.msra.mxu0 0.0
        %830 = vmatprep.subr.mxu0 0.0
        %831 = vmatpush2.msra.mxu0 0.0
        %832 = vmatprep.subr.mxu0 0.0
        %833 = vmatpush2.msra.mxu0 0.0
        %834 = vmatprep.subr.mxu0 0.0
        %835 = vmatpush2.msra.mxu0 0.0
        %836 = vmatprep.subr.mxu0 0.0
        %837 = vmatpush2.msra.mxu0 0.0
        %838 = vmatprep.subr.mxu0 0.0
        %839 = vmatpush2.msra.mxu0 0.0
        %840 = vmatprep.subr.mxu0 0.0
        %841 = vmatpush2.msra.mxu0 0.0
        %842 = vmatprep.subr.mxu0 0.0
        %843 = vmatpush2.msra.mxu0 0.0
        %844 = vmatprep.subr.mxu0 0.0
        %845 = vmatpush2.msra.mxu0 0.0
        %846 = vmatprep.subr.mxu0 0.0
        %847 = vmatpush2.msra.mxu0 0.0
        %848 = vmatprep.mubr.f32.mxu0 0.0
        %849 = vmatmul.mubr.f32.gmra.mxu0 %v526
        %v850 = vpop.f32.mrf.mxu0
        %v851 = vadd.f32 %v517, %v850
        %v852 = vpop.f32.mrf.mxu0
        %853 = vmatprep.mubr.f32.mxu0 0.0
        %854 = vmatmul.mubr.f32.gmra.mxu0 %v529
        %v855 = vpop.f32.mrf.mxu0
        %v856 = vadd.f32 %v522, %v855
        %v857 = vpop.f32.mrf.mxu0
        %858 = vdwg.mxu0
        %v859 = vmax.f32 %v620, 0.0
        %v860 = vmax.f32 %v622, 0.0
        %v861 = vmax.f32 %v697, 0.0
        %v862 = vmax.f32 %v699, 0.0
        %v863 = vmax.f32 %v774, 0.0
        %v864 = vmax.f32 %v776, 0.0
        %v865 = vmax.f32 %v851, 0.0
        %v866 = vmax.f32 %v626, 0.0
        %v867 = vmax.f32 %v628, 0.0
        %v868 = vmax.f32 %v703, 0.0
        %v869 = vmax.f32 %v705, 0.0
        %v870 = vmax.f32 %v780, 0.0
        %v871 = vmax.f32 %v782, 0.0
        %v872 = vmax.f32 %v856, 0.0
        %887 = vrot.lane.b32.xlu0 %v859, 127
        %v888 = vpop.permute.xlu0 %887
        %889 = vrot.lane.b32.xlu0 %v860, 127
        %v890 = vpop.permute.xlu0 %889
        %891 = vrot.lane.b32.xlu0 %v861, 127
        %v892 = vpop.permute.xlu0 %891
        %893 = vrot.lane.b32.xlu0 %v862, 127
        %v894 = vpop.permute.xlu0 %893
        %895 = vrot.lane.b32.xlu0 %v863, 127
        %v896 = vpop.permute.xlu0 %895
        %897 = vrot.lane.b32.xlu0 %v864, 127
        %v898 = vpop.permute.xlu0 %897
        %899 = vrot.lane.b32.xlu0 %v865, 127
        %v900 = vpop.permute.xlu0 %899
        %901 = vrot.lane.b32.xlu0 %v866, 127
        %v902 = vpop.permute.xlu0 %901
        %903 = vrot.lane.b32.xlu0 %v867, 127
        %v904 = vpop.permute.xlu0 %903
        %905 = vrot.lane.b32.xlu0 %v868, 127
        %v906 = vpop.permute.xlu0 %905
        %907 = vrot.lane.b32.xlu0 %v869, 127
        %v908 = vpop.permute.xlu0 %907
        %909 = vrot.lane.b32.xlu0 %v870, 127
        %v910 = vpop.permute.xlu0 %909
        %911 = vrot.lane.b32.xlu0 %v871, 127
        %v912 = vpop.permute.xlu0 %911
        %913 = vrot.lane.b32.xlu0 %v872, 127
        %v914 = vpop.permute.xlu0 %913
        %v915 = vsel %vm285, %v888, %v890
        %v916 = vsel %vm285, %v890, %v892
        %v917 = vsel %vm285, %v892, %v894
        %v918 = vsel %vm285, %v894, %v896
        %v919 = vsel %vm285, %v896, %v898
        %v920 = vsel %vm285, %v898, %v900
        %v921 = vsel %vm285, %v902, %v904
        %v922 = vsel %vm285, %v904, %v906
        %v923 = vsel %vm285, %v906, %v908
        %v924 = vsel %vm285, %v908, %v910
        %v925 = vsel %vm285, %v910, %v912
        %v926 = vsel %vm285, %v912, %v914
        %v941 = vmax.f32 %v859, %v915
        %v942 = vmax.f32 %v860, %v916
        %v943 = vmax.f32 %v861, %v917
        %v944 = vmax.f32 %v862, %v918
        %v945 = vmax.f32 %v863, %v919
        %v946 = vmax.f32 %v864, %v920
        %v947 = vmax.f32 %v865, %v900
        %v948 = vmax.f32 %v866, %v921
        %v949 = vmax.f32 %v867, %v922
        %v950 = vmax.f32 %v868, %v923
        %v951 = vmax.f32 %v869, %v924
        %v952 = vmax.f32 %v870, %v925
        %v953 = vmax.f32 %v871, %v926
        %v954 = vmax.f32 %v872, %v914
        %969 = vrot.lane.b32.xlu0 %v941, 96
        %v970 = vpop.permute.xlu0 %969
        %971 = vrot.lane.b32.xlu0 %v942, 96
        %v972 = vpop.permute.xlu0 %971
        %973 = vrot.lane.b32.xlu0 %v943, 96
        %v974 = vpop.permute.xlu0 %973
        %975 = vrot.lane.b32.xlu0 %v944, 96
        %v976 = vpop.permute.xlu0 %975
        %977 = vrot.lane.b32.xlu0 %v945, 96
        %v978 = vpop.permute.xlu0 %977
        %979 = vrot.lane.b32.xlu0 %v946, 96
        %v980 = vpop.permute.xlu0 %979
        %981 = vrot.lane.b32.xlu0 %v947, 96
        %v982 = vpop.permute.xlu0 %981
        %983 = vrot.lane.b32.xlu0 %v948, 96
        %v984 = vpop.permute.xlu0 %983
        %985 = vrot.lane.b32.xlu0 %v949, 96
        %v986 = vpop.permute.xlu0 %985
        %987 = vrot.lane.b32.xlu0 %v950, 96
        %v988 = vpop.permute.xlu0 %987
        %989 = vrot.lane.b32.xlu0 %v951, 96
        %v990 = vpop.permute.xlu0 %989
        %991 = vrot.lane.b32.xlu0 %v952, 96
        %v992 = vpop.permute.xlu0 %991
        %993 = vrot.lane.b32.xlu0 %v953, 96
        %v994 = vpop.permute.xlu0 %993
        %995 = vrot.lane.b32.xlu0 %v954, 96
        %v996 = vpop.permute.xlu0 %995
        %v997 = vsel %vm321, %v970, %v972
        %v998 = vsel %vm321, %v972, %v974
        %v999 = vsel %vm321, %v974, %v976
        %v1000 = vsel %vm321, %v976, %v978
        %v1001 = vsel %vm321, %v978, %v980
        %v1002 = vsel %vm321, %v980, %v982
        %v1003 = vsel %vm321, %v984, %v986
        %v1004 = vsel %vm321, %v986, %v988
        %v1005 = vsel %vm321, %v988, %v990
        %v1006 = vsel %vm321, %v990, %v992
        %v1007 = vsel %vm321, %v992, %v994
        %v1008 = vsel %vm321, %v994, %v996
        %v1023 = vmax.f32 %v941, %v997
        %v1024 = vmax.f32 %v942, %v998
        %v1025 = vmax.f32 %v943, %v999
        %v1026 = vmax.f32 %v944, %v1000
        %v1027 = vmax.f32 %v945, %v1001
        %v1028 = vmax.f32 %v946, %v1002
        %v1029 = vmax.f32 %v947, %v982
        %v1030 = vmax.f32 %v948, %v1003
        %v1031 = vmax.f32 %v949, %v1004
        %v1032 = vmax.f32 %v950, %v1005
        %v1033 = vmax.f32 %v951, %v1006
        %v1034 = vmax.f32 %v952, %v1007
        %v1035 = vmax.f32 %v953, %v1008
        %v1036 = vmax.f32 %v954, %v996
        %v1037 = vpack.c.bf16 %v1030, %v1023
        %v1038 = vpack.c.bf16 %v1031, %v1024
        %v1039 = vpack.c.bf16 %v1032, %v1025
        %v1040 = vpack.c.bf16 %v1033, %v1026
        %v1041 = vpack.c.bf16 %v1034, %v1027
        %v1042 = vpack.c.bf16 %v1035, %v1028
        %v1043 = vpack.c.bf16 %v1036, %v1029
        %1044 = vst [vmem:[#allocation3] sm:$0xff] 0
        %1045 = vst [vmem:[#allocation3 + $0x8] sm:$0xff] 0
        %1046 = vst [vmem:[#allocation3 + $0x10] sm:$0xff] 0
        %1047 = vst [vmem:[#allocation3 + $0x18] sm:$0xff] 0
        %1048 = vst [vmem:[#allocation3 + $0x20] sm:$0xff] 0
        %vm1049 = vcmask 125952
        %1050 = vst.msk [vmem:[#allocation3 + $0x28] sm:$0xf] %vm1049, 0
        %1051 = vst [vmem:[#allocation3 + $0x2c] sm:$0xff] 0
        %1052 = vst [vmem:[#allocation3 + $0x34] sm:$0xff] 0
        %1053 = vst [vmem:[#allocation3 + $0x3c] sm:$0xff] 0
        %1054 = vst [vmem:[#allocation3 + $0x44] sm:$0xff] 0
        %1055 = vst [vmem:[#allocation3 + $0x4c] sm:$0xff] 0
        %1056 = vst.msk [vmem:[#allocation3 + $0x54] sm:$0xf] %vm1049, 0
        %v1058 = vunpack.c.l.b16 %v1037
        %v1059 = vunpack.c.h.b16 %v1037
        %v1060 = vpack.c.b16 %v1058, %v1058
        %v1061 = vpack.c.b16 %v1059, %v1059
        %1062 = vrot.lane.b32.xlu0 %v1060, 20
        %v1063 = vpop.permute.xlu0 %1062
        %1064 = vrot.lane.b32.xlu0 %v1061, 20
        %v1065 = vpop.permute.xlu0 %1064
        %vm1068 = vcmask 388256
        %1069 = vst.msk [vmem:[#allocation3 + $0x4] sm:$0xf] %vm1068, %v1063
        %1070 = vst.msk [vmem:[#allocation3 + $0x30] sm:$0xf] %vm1068, %v1065
        %1071 = vrot.lane.b32.xlu0 %v1060, 24
        %v1072 = vpop.permute.xlu0 %1071
        %1073 = vrot.lane.b32.xlu0 %v1061, 24
        %v1074 = vpop.permute.xlu0 %1073
        %vm1077 = vcmask 683456
        %1078 = vst.msk [vmem:[#allocation3 + $0x4] sm:$0xf] %vm1077, %v1072
        %1079 = vst.msk [vmem:[#allocation3 + $0x30] sm:$0xf] %vm1077, %v1074
        %1080 = vrot.lane.b32.xlu0 %v1060, 28
        %v1081 = vpop.permute.xlu0 %1080
        %1082 = vrot.lane.b32.xlu0 %v1061, 28
        %v1083 = vpop.permute.xlu0 %1082
        %vm1086 = vcmask 978656
        %1087 = vst.msk [vmem:[#allocation3 + $0x4] sm:$0xf] %vm1086, %v1081
        %1088 = vst.msk [vmem:[#allocation3 + $0x30] sm:$0xf] %vm1086, %v1083
        %1089 = vrot.lane.b32.xlu0 %v1060, 32
        %v1090 = vpop.permute.xlu0 %1089
        %1091 = vrot.lane.b32.xlu0 %v1061, 32
        %v1092 = vpop.permute.xlu0 %1091
        %vm1095 = vcmask 224256
        %1096 = vst.msk [vmem:[#allocation3 + $0x8] sm:$0xf] %vm1095, %v1090
        %1097 = vst.msk [vmem:[#allocation3 + $0x34] sm:$0xf] %vm1095, %v1092
        %v1099 = vunpack.c.l.b16 %v1038
        %v1100 = vunpack.c.h.b16 %v1038
        %v1101 = vpack.c.b16 %v1099, %v1099
        %v1102 = vpack.c.b16 %v1100, %v1100
        %1103 = vrot.lane.b32.xlu0 %v1101, 36
        %v1104 = vpop.permute.xlu0 %1103
        %1105 = vrot.lane.b32.xlu0 %v1102, 36
        %v1106 = vpop.permute.xlu0 %1105
        %vm1109 = vcmask 519456
        %1110 = vst.msk [vmem:[#allocation3 + $0x8] sm:$0xf] %vm1109, %v1104
        %1111 = vst.msk [vmem:[#allocation3 + $0x34] sm:$0xf] %vm1109, %v1106
        %1112 = vrot.lane.b32.xlu0 %v1101, 40
        %v1113 = vpop.permute.xlu0 %1112
        %1114 = vrot.lane.b32.xlu0 %v1102, 40
        %v1115 = vpop.permute.xlu0 %1114
        %vm1118 = vcmask 814656
        %1119 = vst.msk [vmem:[#allocation3 + $0x8] sm:$0xf] %vm1118, %v1113
        %1120 = vst.msk [vmem:[#allocation3 + $0x34] sm:$0xf] %vm1118, %v1115
        %1121 = vrot.lane.b32.xlu0 %v1101, 44
        %v1122 = vpop.permute.xlu0 %1121
        %1123 = vrot.lane.b32.xlu0 %v1102, 44
        %v1124 = vpop.permute.xlu0 %1123
        %v1125 = vrot.slane %v1122, 4
        %v1126 = vrot.slane %v1124, 4
        %vm1127 = vcmask 359424
        %v1128 = vsel %vm1127, %v1125, %v1122
        %v1129 = vsel %vm1127, %v1126, %v1124
        %vm1132 = vcmask 1044320
        %vm1133 = vcmask 64516
        %vm1134 = vmor %vm1133, %vm1132
        %1135 = vst.msk [vmem:[#allocation3 + $0x8] sm:$0xff] %vm1134, %v1128
        %1136 = vst.msk [vmem:[#allocation3 + $0x34] sm:$0xff] %vm1134, %v1129
        %1137 = vrot.lane.b32.xlu0 %v1101, 48
        %v1138 = vpop.permute.xlu0 %1137
        %1139 = vrot.lane.b32.xlu0 %v1102, 48
        %v1140 = vpop.permute.xlu0 %1139
        %vm1143 = vcmask 355456
        %1144 = vst.msk [vmem:[#allocation3 + $0xc] sm:$0xf] %vm1143, %v1138
        %1145 = vst.msk [vmem:[#allocation3 + $0x38] sm:$0xf] %vm1143, %v1140
        %v1147 = vunpack.c.l.b16 %v1039
        %v1148 = vunpack.c.h.b16 %v1039
        %v1149 = vpack.c.b16 %v1147, %v1147
        %v1150 = vpack.c.b16 %v1148, %v1148
        %1151 = vrot.lane.b32.xlu0 %v1149, 52
        %v1152 = vpop.permute.xlu0 %1151
        %1153 = vrot.lane.b32.xlu0 %v1150, 52
        %v1154 = vpop.permute.xlu0 %1153
        %vm1157 = vcmask 650656
        %1158 = vst.msk [vmem:[#allocation3 + $0xc] sm:$0xf] %vm1157, %v1152
        %1159 = vst.msk [vmem:[#allocation3 + $0x38] sm:$0xf] %vm1157, %v1154
        %1160 = vrot.lane.b32.xlu0 %v1149, 56
        %v1161 = vpop.permute.xlu0 %1160
        %1162 = vrot.lane.b32.xlu0 %v1150, 56
        %v1163 = vpop.permute.xlu0 %1162
        %vm1166 = vcmask 945856
        %1167 = vst.msk [vmem:[#allocation3 + $0xc] sm:$0xf] %vm1166, %v1161
        %1168 = vst.msk [vmem:[#allocation3 + $0x38] sm:$0xf] %vm1166, %v1163
        %1169 = vrot.lane.b32.xlu0 %v1149, 60
        %v1170 = vpop.permute.xlu0 %1169
        %1171 = vrot.lane.b32.xlu0 %v1150, 60
        %v1172 = vpop.permute.xlu0 %1171
        %v1173 = vrot.slane %v1170, 4
        %v1174 = vrot.slane %v1172, 4
        %vm1175 = vcmask 490496
        %v1176 = vsel %vm1175, %v1173, %v1170
        %v1177 = vsel %vm1175, %v1174, %v1172
        %vm1180 = vcmask 1044448
        %vm1181 = vcmask 195588
        %vm1182 = vmor %vm1181, %vm1180
        %1183 = vst.msk [vmem:[#allocation3 + $0xc] sm:$0xff] %vm1182, %v1176
        %1184 = vst.msk [vmem:[#allocation3 + $0x38] sm:$0xff] %vm1182, %v1177
        %1185 = vrot.lane.b32.xlu0 %v1149, 64
        %v1186 = vpop.permute.xlu0 %1185
        %1187 = vrot.lane.b32.xlu0 %v1150, 64
        %v1188 = vpop.permute.xlu0 %1187
        %vm1191 = vcmask 486656
        %1192 = vst.msk [vmem:[#allocation3 + $0x10] sm:$0xf] %vm1191, %v1186
        %1193 = vst.msk [vmem:[#allocation3 + $0x3c] sm:$0xf] %vm1191, %v1188
        %v1195 = vunpack.c.l.b16 %v1040
        %v1196 = vunpack.c.h.b16 %v1040
        %v1197 = vpack.c.b16 %v1195, %v1195
        %v1198 = vpack.c.b16 %v1196, %v1196
        %1199 = vrot.lane.b32.xlu0 %v1197, 68
        %v1200 = vpop.permute.xlu0 %1199
        %1201 = vrot.lane.b32.xlu0 %v1198, 68
        %v1202 = vpop.permute.xlu0 %1201
        %vm1205 = vcmask 781856
        %1206 = vst.msk [vmem:[#allocation3 + $0x10] sm:$0xf] %vm1205, %v1200
        %1207 = vst.msk [vmem:[#allocation3 + $0x3c] sm:$0xf] %vm1205, %v1202
        %1208 = vrot.lane.b32.xlu0 %v1197, 72
        %v1209 = vpop.permute.xlu0 %1208
        %1210 = vrot.lane.b32.xlu0 %v1198, 72
        %v1211 = vpop.permute.xlu0 %1210
        %v1212 = vrot.slane %v1209, 4
        %v1213 = vrot.slane %v1211, 4
        %vm1214 = vcmask 588800
        %v1215 = vsel %vm1214, %v1212, %v1209
        %v1216 = vsel %vm1214, %v1213, %v1211
        %vm1219 = vcmask 1044288
        %vm1220 = vcmask 31748
        %vm1221 = vmor %vm1220, %vm1219
        %1222 = vst.msk [vmem:[#allocation3 + $0x10] sm:$0xff] %vm1221, %v1215
        %1223 = vst.msk [vmem:[#allocation3 + $0x3c] sm:$0xff] %vm1221, %v1216
        %1224 = vrot.lane.b32.xlu0 %v1197, 76
        %v1225 = vpop.permute.xlu0 %1224
        %1226 = vrot.lane.b32.xlu0 %v1198, 76
        %v1227 = vpop.permute.xlu0 %1226
        %vm1230 = vcmask 322656
        %1231 = vst.msk [vmem:[#allocation3 + $0x14] sm:$0xf] %vm1230, %v1225
        %1232 = vst.msk [vmem:[#allocation3 + $0x40] sm:$0xf] %vm1230, %v1227
        %1233 = vrot.lane.b32.xlu0 %v1197, 80
        %v1234 = vpop.permute.xlu0 %1233
        %1235 = vrot.lane.b32.xlu0 %v1198, 80
        %v1236 = vpop.permute.xlu0 %1235
        %vm1239 = vcmask 617856
        %1240 = vst.msk [vmem:[#allocation3 + $0x14] sm:$0xf] %vm1239, %v1234
        %1241 = vst.msk [vmem:[#allocation3 + $0x40] sm:$0xf] %vm1239, %v1236
        %v1243 = vunpack.c.l.b16 %v1041
        %v1244 = vunpack.c.h.b16 %v1041
        %v1245 = vpack.c.b16 %v1243, %v1243
        %v1246 = vpack.c.b16 %v1244, %v1244
        %1247 = vrot.lane.b32.xlu0 %v1245, 84
        %v1248 = vpop.permute.xlu0 %1247
        %1249 = vrot.lane.b32.xlu0 %v1246, 84
        %v1250 = vpop.permute.xlu0 %1249
        %vm1253 = vcmask 913056
        %1254 = vst.msk [vmem:[#allocation3 + $0x14] sm:$0xf] %vm1253, %v1248
        %1255 = vst.msk [vmem:[#allocation3 + $0x40] sm:$0xf] %vm1253, %v1250
        %1256 = vrot.lane.b32.xlu0 %v1245, 88
        %v1257 = vpop.permute.xlu0 %1256
        %1258 = vrot.lane.b32.xlu0 %v1246, 88
        %v1259 = vpop.permute.xlu0 %1258
        %v1260 = vrot.slane %v1257, 4
        %v1261 = vrot.slane %v1259, 4
        %vm1262 = vcmask 719872
        %v1263 = vsel %vm1262, %v1260, %v1257
        %v1264 = vsel %vm1262, %v1261, %v1259
        %vm1267 = vcmask 1044416
        %vm1268 = vcmask 162820
        %vm1269 = vmor %vm1268, %vm1267
        %1270 = vst.msk [vmem:[#allocation3 + $0x14] sm:$0xff] %vm1269, %v1263
        %1271 = vst.msk [vmem:[#allocation3 + $0x40] sm:$0xff] %vm1269, %v1264
        %1272 = vrot.lane.b32.xlu0 %v1245, 92
        %v1273 = vpop.permute.xlu0 %1272
        %1274 = vrot.lane.b32.xlu0 %v1246, 92
        %v1275 = vpop.permute.xlu0 %1274
        %vm1278 = vcmask 453856
        %1279 = vst.msk [vmem:[#allocation3 + $0x18] sm:$0xf] %vm1278, %v1273
        %1280 = vst.msk [vmem:[#allocation3 + $0x44] sm:$0xf] %vm1278, %v1275
        %1281 = vrot.lane.b32.xlu0 %v1245, 96
        %v1282 = vpop.permute.xlu0 %1281
        %1283 = vrot.lane.b32.xlu0 %v1246, 96
        %v1284 = vpop.permute.xlu0 %1283
        %vm1287 = vcmask 749056
        %1288 = vst.msk [vmem:[#allocation3 + $0x18] sm:$0xf] %vm1287, %v1282
        %1289 = vst.msk [vmem:[#allocation3 + $0x44] sm:$0xf] %vm1287, %v1284
        %v1291 = vunpack.c.l.b16 %v1042
        %v1292 = vunpack.c.h.b16 %v1042
        %v1293 = vpack.c.b16 %v1291, %v1291
        %v1294 = vpack.c.b16 %v1292, %v1292
        %1295 = vrot.lane.b32.xlu0 %v1293, 100
        %v1296 = vpop.permute.xlu0 %1295
        %1297 = vrot.lane.b32.xlu0 %v1294, 100
        %v1298 = vpop.permute.xlu0 %1297
        %vm1301 = vcmask 1044256
        %1302 = vst.msk [vmem:[#allocation3 + $0x18] sm:$0xf] %vm1301, %v1296
        %1303 = vst.msk [vmem:[#allocation3 + $0x44] sm:$0xf] %vm1301, %v1298
        %1304 = vrot.lane.b32.xlu0 %v1293, 104
        %v1305 = vpop.permute.xlu0 %1304
        %1306 = vrot.lane.b32.xlu0 %v1294, 104
        %v1307 = vpop.permute.xlu0 %1306
        %vm1310 = vcmask 289856
        %1311 = vst.msk [vmem:[#allocation3 + $0x1c] sm:$0xf] %vm1310, %v1305
        %1312 = vst.msk [vmem:[#allocation3 + $0x48] sm:$0xf] %vm1310, %v1307
        %1313 = vrot.lane.b32.xlu0 %v1293, 108
        %v1314 = vpop.permute.xlu0 %1313
        %1315 = vrot.lane.b32.xlu0 %v1294, 108
        %v1316 = vpop.permute.xlu0 %1315
        %vm1319 = vcmask 585056
        %1320 = vst.msk [vmem:[#allocation3 + $0x1c] sm:$0xf] %vm1319, %v1314
        %1321 = vst.msk [vmem:[#allocation3 + $0x48] sm:$0xf] %vm1319, %v1316
        %1322 = vrot.lane.b32.xlu0 %v1293, 112
        %v1323 = vpop.permute.xlu0 %1322
        %1324 = vrot.lane.b32.xlu0 %v1294, 112
        %v1325 = vpop.permute.xlu0 %1324
        %vm1328 = vcmask 880256
        %1329 = vst.msk [vmem:[#allocation3 + $0x1c] sm:$0xf] %vm1328, %v1323
        %1330 = vst.msk [vmem:[#allocation3 + $0x48] sm:$0xf] %vm1328, %v1325
        %v1332 = vunpack.c.l.b16 %v1043
        %v1333 = vunpack.c.h.b16 %v1043
        %v1334 = vpack.c.b16 %v1332, %v1332
        %v1335 = vpack.c.b16 %v1333, %v1333
        %1336 = vrot.lane.b32.xlu0 %v1334, 116
        %v1337 = vpop.permute.xlu0 %1336
        %1338 = vrot.lane.b32.xlu0 %v1335, 116
        %v1339 = vpop.permute.xlu0 %1338
        %v1340 = vrot.slane %v1337, 4
        %v1341 = vrot.slane %v1339, 4
        %vm1342 = vcmask 949248
        %v1343 = vsel %vm1342, %v1340, %v1337
        %v1344 = vsel %vm1342, %v1341, %v1339
        %vm1347 = vcmask 1044384
        %vm1348 = vcmask 130052
        %vm1349 = vmor %vm1348, %vm1347
        %1350 = vst.msk [vmem:[#allocation3 + $0x1c] sm:$0xff] %vm1349, %v1343
        %1351 = vst.msk [vmem:[#allocation3 + $0x48] sm:$0xff] %vm1349, %v1344
        %1352 = vrot.lane.b32.xlu0 %v1334, 120
        %v1353 = vpop.permute.xlu0 %1352
        %1354 = vrot.lane.b32.xlu0 %v1335, 120
        %v1355 = vpop.permute.xlu0 %1354
        %vm1358 = vcmask 421056
        %1359 = vst.msk [vmem:[#allocation3 + $0x20] sm:$0xf] %vm1358, %v1353
        %1360 = vst.msk [vmem:[#allocation3 + $0x4c] sm:$0xf] %vm1358, %v1355
        %1361 = vrot.lane.b32.xlu0 %v1334, 124
        %v1362 = vpop.permute.xlu0 %1361
        %1363 = vrot.lane.b32.xlu0 %v1335, 124
        %v1364 = vpop.permute.xlu0 %1363
        %vm1367 = vcmask 708064
        %1368 = vst.msk [vmem:[#allocation3 + $0x20] sm:$0xf] %vm1367, %v1362
        %1369 = vst.msk [vmem:[#allocation3 + $0x4c] sm:$0xf] %vm1367, %v1364
        %v1370 = vld [vmem:[#allocation3] sm:$0xff]
        %v1371 = vld [vmem:[#allocation3 + $0x8] sm:$0xff]
        %v1372 = vld [vmem:[#allocation3 + $0x10] sm:$0xff]
        %v1373 = vld [vmem:[#allocation3 + $0x18] sm:$0xff]
        %v1374 = vld [vmem:[#allocation3 + $0x2c] sm:$0xff]
        %v1375 = vld [vmem:[#allocation3 + $0x34] sm:$0xff]
        %v1376 = vld [vmem:[#allocation3 + $0x3c] sm:$0xff]
        %v1377 = vld [vmem:[#allocation3 + $0x44] sm:$0xff]
        %1378 = vst [vmem:[#allocation4] sm:$0xff] %v1370
        %1379 = vst [vmem:[#allocation4 + $0x8] sm:$0xff] %v1371
        %1380 = vst [vmem:[#allocation4 + $0x10] sm:$0xff] %v1372
        %vm1381 = vcmask 1043456
        %vm1382 = vcmask 850948
        %vm1383 = vmor %vm1382, %vm1381
        %1384 = vst.msk [vmem:[#allocation4 + $0x18] sm:$0xff] %vm1383, %v1373
        %1385 = vst [vmem:[#allocation4 + $0x20] sm:$0xff] %v1374
        %1386 = vst [vmem:[#allocation4 + $0x28] sm:$0xff] %v1375
        %1387 = vst [vmem:[#allocation4 + $0x30] sm:$0xff] %v1376
        %1388 = vst.msk [vmem:[#allocation4 + $0x38] sm:$0xff] %vm1383, %v1377
        %v1389 = vld [vmem:[#allocation3] sm:$0xff]
        %v1390 = vld [vmem:[#allocation3 + $0x8] sm:$0xff]
        %v1391 = vld [vmem:[#allocation3 + $0x10] sm:$0xff]
        %v1392 = vld [vmem:[#allocation3 + $0x18] sm:$0xff]
        %v1393 = vld [vmem:[#allocation3 + $0x2c] sm:$0xff]
        %v1394 = vld [vmem:[#allocation3 + $0x34] sm:$0xff]
        %v1395 = vld [vmem:[#allocation3 + $0x3c] sm:$0xff]
        %v1396 = vld [vmem:[#allocation3 + $0x44] sm:$0xff]
        %1405 = vrot.lane.b32.xlu0 %v1389, 126
        %v1406 = vpop.permute.xlu0 %1405
        %1407 = vrot.lane.b32.xlu0 %v1390, 126
        %v1408 = vpop.permute.xlu0 %1407
        %1409 = vrot.lane.b32.xlu0 %v1391, 126
        %v1410 = vpop.permute.xlu0 %1409
        %1411 = vrot.lane.b32.xlu0 %v1392, 126
        %v1412 = vpop.permute.xlu0 %1411
        %1413 = vrot.lane.b32.xlu0 %v1393, 126
        %v1414 = vpop.permute.xlu0 %1413
        %1415 = vrot.lane.b32.xlu0 %v1394, 126
        %v1416 = vpop.permute.xlu0 %1415
        %1417 = vrot.lane.b32.xlu0 %v1395, 126
        %v1418 = vpop.permute.xlu0 %1417
        %1419 = vrot.lane.b32.xlu0 %v1396, 126
        %v1420 = vpop.permute.xlu0 %1419
        %v1421 = vrot.slane %v1406, 4
        %v1422 = vrot.slane %v1408, 4
        %v1423 = vrot.slane %v1410, 4
        %v1424 = vrot.slane %v1412, 4
        %v1425 = vrot.slane %v1414, 4
        %v1426 = vrot.slane %v1416, 4
        %v1427 = vrot.slane %v1418, 4
        %v1428 = vrot.slane %v1420, 4
        %vm1429 = vcmask 1043456
        %v1430 = vsel %vm1429, %v1421, %v1422
        %vm1431 = vcmask 1031168
        %v1432 = vsel %vm1431, %v1406, %v1430
        %v1433 = vsel %vm1429, %v1422, %v1423
        %v1434 = vsel %vm1431, %v1408, %v1433
        %v1435 = vsel %vm1429, %v1423, %v1424
        %v1436 = vsel %vm1431, %v1410, %v1435
        %v1437 = vsel %vm1431, %v1412, %v1424
        %v1438 = vsel %vm1429, %v1425, %v1426
        %v1439 = vsel %vm1431, %v1414, %v1438
        %v1440 = vsel %vm1429, %v1426, %v1427
        %v1441 = vsel %vm1431, %v1416, %v1440
        %v1442 = vsel %vm1429, %v1427, %v1428
        %v1443 = vsel %vm1431, %v1418, %v1442
        %v1444 = vsel %vm1431, %v1420, %v1428
        %1453 = vst [vmem:[#allocation4 + $0x40] sm:$0xff] %v1432
        %1454 = vst [vmem:[#allocation4 + $0x48] sm:$0xff] %v1434
        %1455 = vst [vmem:[#allocation4 + $0x50] sm:$0xff] %v1436
        %1456 = vst.msk [vmem:[#allocation4 + $0x58] sm:$0xff] %vm1383, %v1437
        %1457 = vst [vmem:[#allocation4 + $0x60] sm:$0xff] %v1439
        %1458 = vst [vmem:[#allocation4 + $0x68] sm:$0xff] %v1441
        %1459 = vst [vmem:[#allocation4 + $0x70] sm:$0xff] %v1443
        %1460 = vst.msk [vmem:[#allocation4 + $0x78] sm:$0xff] %vm1383, %v1444
        %v1461 = vld [vmem:[#allocation3] sm:$0xff]
        %v1462 = vld [vmem:[#allocation3 + $0x8] sm:$0xff]
        %v1463 = vld [vmem:[#allocation3 + $0x10] sm:$0xff]
        %v1464 = vld [vmem:[#allocation3 + $0x18] sm:$0xff]
        %v1465 = vld [vmem:[#allocation3 + $0x2c] sm:$0xff]
        %v1466 = vld [vmem:[#allocation3 + $0x34] sm:$0xff]
        %v1467 = vld [vmem:[#allocation3 + $0x3c] sm:$0xff]
        %v1468 = vld [vmem:[#allocation3 + $0x44] sm:$0xff]
        %1477 = vrot.lane.b32.xlu0 %v1461, 124
        %v1478 = vpop.permute.xlu0 %1477
        %1479 = vrot.lane.b32.xlu0 %v1462, 124
        %v1480 = vpop.permute.xlu0 %1479
        %1481 = vrot.lane.b32.xlu0 %v1463, 124
        %v1482 = vpop.permute.xlu0 %1481
        %1483 = vrot.lane.b32.xlu0 %v1464, 124
        %v1484 = vpop.permute.xlu0 %1483
        %1485 = vrot.lane.b32.xlu0 %v1465, 124
        %v1486 = vpop.permute.xlu0 %1485
        %1487 = vrot.lane.b32.xlu0 %v1466, 124
        %v1488 = vpop.permute.xlu0 %1487
        %1489 = vrot.lane.b32.xlu0 %v1467, 124
        %v1490 = vpop.permute.xlu0 %1489
        %1491 = vrot.lane.b32.xlu0 %v1468, 124
        %v1492 = vpop.permute.xlu0 %1491
        %v1493 = vrot.slane %v1478, 4
        %v1494 = vrot.slane %v1480, 4
        %v1495 = vrot.slane %v1482, 4
        %v1496 = vrot.slane %v1484, 4
        %v1497 = vrot.slane %v1486, 4
        %v1498 = vrot.slane %v1488, 4
        %v1499 = vrot.slane %v1490, 4
        %v1500 = vrot.slane %v1492, 4
        %v1501 = vsel %vm1429, %v1493, %v1494
        %vm1502 = vcmask 1014784
        %v1503 = vsel %vm1502, %v1478, %v1501
        %v1504 = vsel %vm1429, %v1494, %v1495
        %v1505 = vsel %vm1502, %v1480, %v1504
        %v1506 = vsel %vm1429, %v1495, %v1496
        %v1507 = vsel %vm1502, %v1482, %v1506
        %v1508 = vsel %vm1502, %v1484, %v1496
        %v1509 = vsel %vm1429, %v1497, %v1498
        %v1510 = vsel %vm1502, %v1486, %v1509
        %v1511 = vsel %vm1429, %v1498, %v1499
        %v1512 = vsel %vm1502, %v1488, %v1511
        %v1513 = vsel %vm1429, %v1499, %v1500
        %v1514 = vsel %vm1502, %v1490, %v1513
        %v1515 = vsel %vm1502, %v1492, %v1500
        %1524 = vst [vmem:[#allocation4 + $0x80] sm:$0xff] %v1503
        %1525 = vst [vmem:[#allocation4 + $0x88] sm:$0xff] %v1505
        %1526 = vst [vmem:[#allocation4 + $0x90] sm:$0xff] %v1507
        %1527 = vst.msk [vmem:[#allocation4 + $0x98] sm:$0xff] %vm1383, %v1508
        %1528 = vst [vmem:[#allocation4 + $0xa0] sm:$0xff] %v1510
        %1529 = vst [vmem:[#allocation4 + $0xa8] sm:$0xff] %v1512
        %1530 = vst [vmem:[#allocation4 + $0xb0] sm:$0xff] %v1514
        %1531 = vst.msk [vmem:[#allocation4 + $0xb8] sm:$0xff] %vm1383, %v1515
        %v1532 = vld [vmem:[#allocation3] sm:$0xff]
        %v1533 = vld [vmem:[#allocation3 + $0x8] sm:$0xff]
        %v1534 = vld [vmem:[#allocation3 + $0x10] sm:$0xff]
        %v1535 = vld [vmem:[#allocation3 + $0x18] sm:$0xff]
        %v1536 = vld [vmem:[#allocation3 + $0x2c] sm:$0xff]
        %v1537 = vld [vmem:[#allocation3 + $0x34] sm:$0xff]
        %v1538 = vld [vmem:[#allocation3 + $0x3c] sm:$0xff]
        %v1539 = vld [vmem:[#allocation3 + $0x44] sm:$0xff]
        %1548 = vrot.lane.b32.xlu0 %v1532, 122
        %v1549 = vpop.permute.xlu0 %1548
        %1550 = vrot.lane.b32.xlu0 %v1533, 122
        %v1551 = vpop.permute.xlu0 %1550
        %1552 = vrot.lane.b32.xlu0 %v1534, 122
        %v1553 = vpop.permute.xlu0 %1552
        %1554 = vrot.lane.b32.xlu0 %v1535, 122
        %v1555 = vpop.permute.xlu0 %1554
        %1556 = vrot.lane.b32.xlu0 %v1536, 122
        %v1557 = vpop.permute.xlu0 %1556
        %1558 = vrot.lane.b32.xlu0 %v1537, 122
        %v1559 = vpop.permute.xlu0 %1558
        %1560 = vrot.lane.b32.xlu0 %v1538, 122
        %v1561 = vpop.permute.xlu0 %1560
        %1562 = vrot.lane.b32.xlu0 %v1539, 122
        %v1563 = vpop.permute.xlu0 %1562
        %v1564 = vrot.slane %v1549, 4
        %v1565 = vrot.slane %v1551, 4
        %v1566 = vrot.slane %v1553, 4
        %v1567 = vrot.slane %v1555, 4
        %v1568 = vrot.slane %v1557, 4
        %v1569 = vrot.slane %v1559, 4
        %v1570 = vrot.slane %v1561, 4
        %v1571 = vrot.slane %v1563, 4
        %v1572 = vsel %vm1429, %v1564, %v1565
        %vm1573 = vcmask 998400
        %v1574 = vsel %vm1573, %v1549, %v1572
        %v1575 = vsel %vm1429, %v1565, %v1566
        %v1576 = vsel %vm1573, %v1551, %v1575
        %v1577 = vsel %vm1429, %v1566, %v1567
        %v1578 = vsel %vm1573, %v1553, %v1577
        %v1579 = vsel %vm1573, %v1555, %v1567
        %v1580 = vsel %vm1429, %v1568, %v1569
        %v1581 = vsel %vm1573, %v1557, %v1580
        %v1582 = vsel %vm1429, %v1569, %v1570
        %v1583 = vsel %vm1573, %v1559, %v1582
        %v1584 = vsel %vm1429, %v1570, %v1571
        %v1585 = vsel %vm1573, %v1561, %v1584
        %v1586 = vsel %vm1573, %v1563, %v1571
        %1595 = vst [vmem:[#allocation4 + $0xc0] sm:$0xff] %v1574
        %1596 = vst [vmem:[#allocation4 + $0xc8] sm:$0xff] %v1576
        %1597 = vst [vmem:[#allocation4 + $0xd0] sm:$0xff] %v1578
        %1598 = vst.msk [vmem:[#allocation4 + $0xd8] sm:$0xff] %vm1383, %v1579
        %1599 = vst [vmem:[#allocation4 + $0xe0] sm:$0xff] %v1581
        %1600 = vst [vmem:[#allocation4 + $0xe8] sm:$0xff] %v1583
        %1601 = vst [vmem:[#allocation4 + $0xf0] sm:$0xff] %v1585
        %1602 = vst.msk [vmem:[#allocation4 + $0xf8] sm:$0xff] %vm1383, %v1586
        %v1603 = vld [vmem:[#allocation3] sm:$0xff]
        %v1604 = vld [vmem:[#allocation3 + $0x8] sm:$0xff]
        %v1605 = vld [vmem:[#allocation3 + $0x10] sm:$0xff]
        %v1606 = vld [vmem:[#allocation3 + $0x18] sm:$0xff]
        %v1607 = vld [vmem:[#allocation3 + $0x2c] sm:$0xff]
        %v1608 = vld [vmem:[#allocation3 + $0x34] sm:$0xff]
        %v1609 = vld [vmem:[#allocation3 + $0x3c] sm:$0xff]
        %v1610 = vld [vmem:[#allocation3 + $0x44] sm:$0xff]
        %1619 = vrot.lane.b32.xlu0 %v1603, 120
        %v1620 = vpop.permute.xlu0 %1619
        %1621 = vrot.lane.b32.xlu0 %v1604, 120
        %v1622 = vpop.permute.xlu0 %1621
        %1623 = vrot.lane.b32.xlu0 %v1605, 120
        %v1624 = vpop.permute.xlu0 %1623
        %1625 = vrot.lane.b32.xlu0 %v1606, 120
        %v1626 = vpop.permute.xlu0 %1625
        %1627 = vrot.lane.b32.xlu0 %v1607, 120
        %v1628 = vpop.permute.xlu0 %1627
        %1629 = vrot.lane.b32.xlu0 %v1608, 120
        %v1630 = vpop.permute.xlu0 %1629
        %1631 = vrot.lane.b32.xlu0 %v1609, 120
        %v1632 = vpop.permute.xlu0 %1631
        %1633 = vrot.lane.b32.xlu0 %v1610, 120
        %v1634 = vpop.permute.xlu0 %1633
        %v1635 = vrot.slane %v1620, 4
        %v1636 = vrot.slane %v1622, 4
        %v1637 = vrot.slane %v1624, 4
        %v1638 = vrot.slane %v1626, 4
        %v1639 = vrot.slane %v1628, 4
        %v1640 = vrot.slane %v1630, 4
        %v1641 = vrot.slane %v1632, 4
        %v1642 = vrot.slane %v1634, 4
        %v1643 = vsel %vm1429, %v1635, %v1636
        %vm1644 = vcmask 982016
        %v1645 = vsel %vm1644, %v1620, %v1643
        %v1646 = vsel %vm1429, %v1636, %v1637
        %v1647 = vsel %vm1644, %v1622, %v1646
        %v1648 = vsel %vm1429, %v1637, %v1638
        %v1649 = vsel %vm1644, %v1624, %v1648
        %v1650 = vsel %vm1644, %v1626, %v1638
        %v1651 = vsel %vm1429, %v1639, %v1640
        %v1652 = vsel %vm1644, %v1628, %v1651
        %v1653 = vsel %vm1429, %v1640, %v1641
        %v1654 = vsel %vm1644, %v1630, %v1653
        %v1655 = vsel %vm1429, %v1641, %v1642
        %v1656 = vsel %vm1644, %v1632, %v1655
        %v1657 = vsel %vm1644, %v1634, %v1642
        %1666 = vst [vmem:[#allocation4 + $0x100] sm:$0xff] %v1645
        %1667 = vst [vmem:[#allocation4 + $0x108] sm:$0xff] %v1647
        %1668 = vst [vmem:[#allocation4 + $0x110] sm:$0xff] %v1649
        %1669 = vst.msk [vmem:[#allocation4 + $0x118] sm:$0xff] %vm1383, %v1650
        %1670 = vst [vmem:[#allocation4 + $0x120] sm:$0xff] %v1652
        %1671 = vst [vmem:[#allocation4 + $0x128] sm:$0xff] %v1654
        %1672 = vst [vmem:[#allocation4 + $0x130] sm:$0xff] %v1656
        %1673 = vst.msk [vmem:[#allocation4 + $0x138] sm:$0xff] %vm1383, %v1657
        %v1674 = vld [vmem:[#allocation3] sm:$0xff]
        %v1675 = vld [vmem:[#allocation3 + $0x8] sm:$0xff]
        %v1676 = vld [vmem:[#allocation3 + $0x10] sm:$0xff]
        %v1677 = vld [vmem:[#allocation3 + $0x18] sm:$0xff]
        %v1678 = vld [vmem:[#allocation3 + $0x20] sm:$0xf]
        %v1679 = vld [vmem:[#allocation3 + $0x2c] sm:$0xff]
        %v1680 = vld [vmem:[#allocation3 + $0x34] sm:$0xff]
        %v1681 = vld [vmem:[#allocation3 + $0x3c] sm:$0xff]
        %v1682 = vld [vmem:[#allocation3 + $0x44] sm:$0xff]
        %v1683 = vld [vmem:[#allocation3 + $0x4c] sm:$0xf]
        %1694 = vrot.lane.b32.xlu0 %v1674, 56
        %v1695 = vpop.permute.xlu0 %1694
        %1696 = vrot.lane.b32.xlu0 %v1675, 56
        %v1697 = vpop.permute.xlu0 %1696
        %1698 = vrot.lane.b32.xlu0 %v1676, 56
        %v1699 = vpop.permute.xlu0 %1698
        %1700 = vrot.lane.b32.xlu0 %v1677, 56
        %v1701 = vpop.permute.xlu0 %1700
        %1702 = vrot.lane.b32.xlu0 %v1678, 56
        %v1703 = vpop.permute.xlu0 %1702
        %1704 = vrot.lane.b32.xlu0 %v1679, 56
        %v1705 = vpop.permute.xlu0 %1704
        %1706 = vrot.lane.b32.xlu0 %v1680, 56
        %v1707 = vpop.permute.xlu0 %1706
        %1708 = vrot.lane.b32.xlu0 %v1681, 56
        %v1709 = vpop.permute.xlu0 %1708
        %1710 = vrot.lane.b32.xlu0 %v1682, 56
        %v1711 = vpop.permute.xlu0 %1710
        %1712 = vrot.lane.b32.xlu0 %v1683, 56
        %v1713 = vpop.permute.xlu0 %1712
        %v1714 = vrot.slane %v1695, 4
        %v1715 = vrot.slane %v1697, 4
        %v1716 = vrot.slane %v1699, 4
        %v1717 = vrot.slane %v1701, 4
        %v1718 = vrot.slane %v1703, 4
        %v1719 = vrot.slane %v1705, 4
        %v1720 = vrot.slane %v1707, 4
        %v1721 = vrot.slane %v1709, 4
        %v1722 = vrot.slane %v1711, 4
        %v1723 = vrot.slane %v1713, 4
        %v1724 = vsel %vm1429, %v1714, %v1715
        %vm1725 = vcmask 457728
        %v1726 = vsel %vm1725, %v1695, %v1724
        %v1727 = vsel %vm1429, %v1715, %v1716
        %v1728 = vsel %vm1725, %v1697, %v1727
        %v1729 = vsel %vm1429, %v1716, %v1717
        %v1730 = vsel %vm1725, %v1699, %v1729
        %v1731 = vsel %vm1429, %v1717, %v1718
        %v1732 = vsel %vm1725, %v1701, %v1731
        %v1733 = vsel %vm1429, %v1719, %v1720
        %v1734 = vsel %vm1725, %v1705, %v1733
        %v1735 = vsel %vm1429, %v1720, %v1721
        %v1736 = vsel %vm1725, %v1707, %v1735
        %v1737 = vsel %vm1429, %v1721, %v1722
        %v1738 = vsel %vm1725, %v1709, %v1737
        %v1739 = vsel %vm1429, %v1722, %v1723
        %v1740 = vsel %vm1725, %v1711, %v1739
        %1749 = vst [vmem:[#allocation4 + $0x140] sm:$0xff] %v1726
        %1750 = vst [vmem:[#allocation4 + $0x148] sm:$0xff] %v1728
        %1751 = vst [vmem:[#allocation4 + $0x150] sm:$0xff] %v1730
        %1752 = vst.msk [vmem:[#allocation4 + $0x158] sm:$0xff] %vm1383, %v1732
        %1753 = vst [vmem:[#allocation4 + $0x160] sm:$0xff] %v1734
        %1754 = vst [vmem:[#allocation4 + $0x168] sm:$0xff] %v1736
        %1755 = vst [vmem:[#allocation4 + $0x170] sm:$0xff] %v1738
        %1756 = vst.msk [vmem:[#allocation4 + $0x178] sm:$0xff] %vm1383, %v1740
        %v1757 = vld [vmem:[#allocation3] sm:$0xff]
        %v1758 = vld [vmem:[#allocation3 + $0x8] sm:$0xff]
        %v1759 = vld [vmem:[#allocation3 + $0x10] sm:$0xff]
        %v1760 = vld [vmem:[#allocation3 + $0x18] sm:$0xff]
        %v1761 = vld [vmem:[#allocation3 + $0x20] sm:$0xf]
        %v1762 = vld [vmem:[#allocation3 + $0x2c] sm:$0xff]
        %v1763 = vld [vmem:[#allocation3 + $0x34] sm:$0xff]
        %v1764 = vld [vmem:[#allocation3 + $0x3c] sm:$0xff]
        %v1765 = vld [vmem:[#allocation3 + $0x44] sm:$0xff]
        %v1766 = vld [vmem:[#allocation3 + $0x4c] sm:$0xf]
        %1777 = vrot.lane.b32.xlu0 %v1757, 54
        %v1778 = vpop.permute.xlu0 %1777
        %1779 = vrot.lane.b32.xlu0 %v1758, 54
        %v1780 = vpop.permute.xlu0 %1779
        %1781 = vrot.lane.b32.xlu0 %v1759, 54
        %v1782 = vpop.permute.xlu0 %1781
        %1783 = vrot.lane.b32.xlu0 %v1760, 54
        %v1784 = vpop.permute.xlu0 %1783
        %1785 = vrot.lane.b32.xlu0 %v1761, 54
        %v1786 = vpop.permute.xlu0 %1785
        %1787 = vrot.lane.b32.xlu0 %v1762, 54
        %v1788 = vpop.permute.xlu0 %1787
        %1789 = vrot.lane.b32.xlu0 %v1763, 54
        %v1790 = vpop.permute.xlu0 %1789
        %1791 = vrot.lane.b32.xlu0 %v1764, 54
        %v1792 = vpop.permute.xlu0 %1791
        %1793 = vrot.lane.b32.xlu0 %v1765, 54
        %v1794 = vpop.permute.xlu0 %1793
        %1795 = vrot.lane.b32.xlu0 %v1766, 54
        %v1796 = vpop.permute.xlu0 %1795
        %v1797 = vrot.slane %v1778, 4
        %v1798 = vrot.slane %v1780, 4
        %v1799 = vrot.slane %v1782, 4
        %v1800 = vrot.slane %v1784, 4
        %v1801 = vrot.slane %v1786, 4
        %v1802 = vrot.slane %v1788, 4
        %v1803 = vrot.slane %v1790, 4
        %v1804 = vrot.slane %v1792, 4
        %v1805 = vrot.slane %v1794, 4
        %v1806 = vrot.slane %v1796, 4
        %v1807 = vsel %vm1429, %v1797, %v1798
        %vm1808 = vcmask 441344
        %v1809 = vsel %vm1808, %v1778, %v1807
        %v1810 = vsel %vm1429, %v1798, %v1799
        %v1811 = vsel %vm1808, %v1780, %v1810
        %v1812 = vsel %vm1429, %v1799, %v1800
        %v1813 = vsel %vm1808, %v1782, %v1812
        %v1814 = vsel %vm1429, %v1800, %v1801
        %v1815 = vsel %vm1808, %v1784, %v1814
        %v1816 = vsel %vm1429, %v1802, %v1803
        %v1817 = vsel %vm1808, %v1788, %v1816
        %v1818 = vsel %vm1429, %v1803, %v1804
        %v1819 = vsel %vm1808, %v1790, %v1818
        %v1820 = vsel %vm1429, %v1804, %v1805
        %v1821 = vsel %vm1808, %v1792, %v1820
        %v1822 = vsel %vm1429, %v1805, %v1806
        %v1823 = vsel %vm1808, %v1794, %v1822
        %1832 = vst [vmem:[#allocation4 + $0x180] sm:$0xff] %v1809
        %1833 = vst [vmem:[#allocation4 + $0x188] sm:$0xff] %v1811
        %1834 = vst [vmem:[#allocation4 + $0x190] sm:$0xff] %v1813
        %1835 = vst.msk [vmem:[#allocation4 + $0x198] sm:$0xff] %vm1383, %v1815
        %1836 = vst [vmem:[#allocation4 + $0x1a0] sm:$0xff] %v1817
        %1837 = vst [vmem:[#allocation4 + $0x1a8] sm:$0xff] %v1819
        %1838 = vst [vmem:[#allocation4 + $0x1b0] sm:$0xff] %v1821
        %1839 = vst.msk [vmem:[#allocation4 + $0x1b8] sm:$0xff] %vm1383, %v1823
        %v1840 = vld [vmem:[#allocation3] sm:$0xff]
        %v1841 = vld [vmem:[#allocation3 + $0x8] sm:$0xff]
        %v1842 = vld [vmem:[#allocation3 + $0x10] sm:$0xff]
        %v1843 = vld [vmem:[#allocation3 + $0x18] sm:$0xff]
        %v1844 = vld [vmem:[#allocation3 + $0x20] sm:$0xf]
        %v1845 = vld [vmem:[#allocation3 + $0x2c] sm:$0xff]
        %v1846 = vld [vmem:[#allocation3 + $0x34] sm:$0xff]
        %v1847 = vld [vmem:[#allocation3 + $0x3c] sm:$0xff]
        %v1848 = vld [vmem:[#allocation3 + $0x44] sm:$0xff]
        %v1849 = vld [vmem:[#allocation3 + $0x4c] sm:$0xf]
        %1860 = vrot.lane.b32.xlu0 %v1840, 52
        %v1861 = vpop.permute.xlu0 %1860
        %1862 = vrot.lane.b32.xlu0 %v1841, 52
        %v1863 = vpop.permute.xlu0 %1862
        %1864 = vrot.lane.b32.xlu0 %v1842, 52
        %v1865 = vpop.permute.xlu0 %1864
        %1866 = vrot.lane.b32.xlu0 %v1843, 52
        %v1867 = vpop.permute.xlu0 %1866
        %1868 = vrot.lane.b32.xlu0 %v1844, 52
        %v1869 = vpop.permute.xlu0 %1868
        %1870 = vrot.lane.b32.xlu0 %v1845, 52
        %v1871 = vpop.permute.xlu0 %1870
        %1872 = vrot.lane.b32.xlu0 %v1846, 52
        %v1873 = vpop.permute.xlu0 %1872
        %1874 = vrot.lane.b32.xlu0 %v1847, 52
        %v1875 = vpop.permute.xlu0 %1874
        %1876 = vrot.lane.b32.xlu0 %v1848, 52
        %v1877 = vpop.permute.xlu0 %1876
        %1878 = vrot.lane.b32.xlu0 %v1849, 52
        %v1879 = vpop.permute.xlu0 %1878
        %v1880 = vrot.slane %v1861, 4
        %v1881 = vrot.slane %v1863, 4
        %v1882 = vrot.slane %v1865, 4
        %v1883 = vrot.slane %v1867, 4
        %v1884 = vrot.slane %v1869, 4
        %v1885 = vrot.slane %v1871, 4
        %v1886 = vrot.slane %v1873, 4
        %v1887 = vrot.slane %v1875, 4
        %v1888 = vrot.slane %v1877, 4
        %v1889 = vrot.slane %v1879, 4
        %v1890 = vsel %vm1429, %v1880, %v1881
        %vm1891 = vcmask 424960
        %v1892 = vsel %vm1891, %v1861, %v1890
        %v1893 = vsel %vm1429, %v1881, %v1882
        %v1894 = vsel %vm1891, %v1863, %v1893
        %v1895 = vsel %vm1429, %v1882, %v1883
        %v1896 = vsel %vm1891, %v1865, %v1895
        %v1897 = vsel %vm1429, %v1883, %v1884
        %v1898 = vsel %vm1891, %v1867, %v1897
        %v1899 = vsel %vm1429, %v1885, %v1886
        %v1900 = vsel %vm1891, %v1871, %v1899
        %v1901 = vsel %vm1429, %v1886, %v1887
        %v1902 = vsel %vm1891, %v1873, %v1901
        %v1903 = vsel %vm1429, %v1887, %v1888
        %v1904 = vsel %vm1891, %v1875, %v1903
        %v1905 = vsel %vm1429, %v1888, %v1889
        %v1906 = vsel %vm1891, %v1877, %v1905
        %1915 = vst [vmem:[#allocation4 + $0x1c0] sm:$0xff] %v1892
        %1916 = vst [vmem:[#allocation4 + $0x1c8] sm:$0xff] %v1894
        %1917 = vst [vmem:[#allocation4 + $0x1d0] sm:$0xff] %v1896
        %1918 = vst.msk [vmem:[#allocation4 + $0x1d8] sm:$0xff] %vm1383, %v1898
        %1919 = vst [vmem:[#allocation4 + $0x1e0] sm:$0xff] %v1900
        %1920 = vst [vmem:[#allocation4 + $0x1e8] sm:$0xff] %v1902
        %1921 = vst [vmem:[#allocation4 + $0x1f0] sm:$0xff] %v1904
        %1922 = vst.msk [vmem:[#allocation4 + $0x1f8] sm:$0xff] %vm1383, %v1906
        %v1923 = vld [vmem:[#allocation3] sm:$0xff]
        %v1924 = vld [vmem:[#allocation3 + $0x8] sm:$0xff]
        %v1925 = vld [vmem:[#allocation3 + $0x10] sm:$0xff]
        %v1926 = vld [vmem:[#allocation3 + $0x18] sm:$0xff]
        %v1927 = vld [vmem:[#allocation3 + $0x20] sm:$0xf]
        %v1928 = vld [vmem:[#allocation3 + $0x2c] sm:$0xff]
        %v1929 = vld [vmem:[#allocation3 + $0x34] sm:$0xff]
        %v1930 = vld [vmem:[#allocation3 + $0x3c] sm:$0xff]
        %v1931 = vld [vmem:[#allocation3 + $0x44] sm:$0xff]
        %v1932 = vld [vmem:[#allocation3 + $0x4c] sm:$0xf]
        %1943 = vrot.lane.b32.xlu0 %v1923, 50
        %v1944 = vpop.permute.xlu0 %1943
        %1945 = vrot.lane.b32.xlu0 %v1924, 50
        %v1946 = vpop.permute.xlu0 %1945
        %1947 = vrot.lane.b32.xlu0 %v1925, 50
        %v1948 = vpop.permute.xlu0 %1947
        %1949 = vrot.lane.b32.xlu0 %v1926, 50
        %v1950 = vpop.permute.xlu0 %1949
        %1951 = vrot.lane.b32.xlu0 %v1927, 50
        %v1952 = vpop.permute.xlu0 %1951
        %1953 = vrot.lane.b32.xlu0 %v1928, 50
        %v1954 = vpop.permute.xlu0 %1953
        %1955 = vrot.lane.b32.xlu0 %v1929, 50
        %v1956 = vpop.permute.xlu0 %1955
        %1957 = vrot.lane.b32.xlu0 %v1930, 50
        %v1958 = vpop.permute.xlu0 %1957
        %1959 = vrot.lane.b32.xlu0 %v1931, 50
        %v1960 = vpop.permute.xlu0 %1959
        %1961 = vrot.lane.b32.xlu0 %v1932, 50
        %v1962 = vpop.permute.xlu0 %1961
        %v1963 = vrot.slane %v1944, 4
        %v1964 = vrot.slane %v1946, 4
        %v1965 = vrot.slane %v1948, 4
        %v1966 = vrot.slane %v1950, 4
        %v1967 = vrot.slane %v1952, 4
        %v1968 = vrot.slane %v1954, 4
        %v1969 = vrot.slane %v1956, 4
        %v1970 = vrot.slane %v1958, 4
        %v1971 = vrot.slane %v1960, 4
        %v1972 = vrot.slane %v1962, 4
        %v1973 = vsel %vm1429, %v1963, %v1964
        %vm1974 = vcmask 408576
        %v1975 = vsel %vm1974, %v1944, %v1973
        %v1976 = vsel %vm1429, %v1964, %v1965
        %v1977 = vsel %vm1974, %v1946, %v1976
        %v1978 = vsel %vm1429, %v1965, %v1966
        %v1979 = vsel %vm1974, %v1948, %v1978
        %v1980 = vsel %vm1429, %v1966, %v1967
        %v1981 = vsel %vm1974, %v1950, %v1980
        %v1982 = vsel %vm1429, %v1968, %v1969
        %v1983 = vsel %vm1974, %v1954, %v1982
        %v1984 = vsel %vm1429, %v1969, %v1970
        %v1985 = vsel %vm1974, %v1956, %v1984
        %v1986 = vsel %vm1429, %v1970, %v1971
        %v1987 = vsel %vm1974, %v1958, %v1986
        %v1988 = vsel %vm1429, %v1971, %v1972
        %v1989 = vsel %vm1974, %v1960, %v1988
        %1998 = vst [vmem:[#allocation4 + $0x200] sm:$0xff] %v1975
        %1999 = vst [vmem:[#allocation4 + $0x208] sm:$0xff] %v1977
        %2000 = vst [vmem:[#allocation4 + $0x210] sm:$0xff] %v1979
        %2001 = vst.msk [vmem:[#allocation4 + $0x218] sm:$0xff] %vm1383, %v1981
        %2002 = vst [vmem:[#allocation4 + $0x220] sm:$0xff] %v1983
        %2003 = vst [vmem:[#allocation4 + $0x228] sm:$0xff] %v1985
        %2004 = vst [vmem:[#allocation4 + $0x230] sm:$0xff] %v1987
        %2005 = vst.msk [vmem:[#allocation4 + $0x238] sm:$0xff] %vm1383, %v1989
        %v2006 = vld [vmem:[#allocation3] sm:$0xff]
        %v2007 = vld [vmem:[#allocation3 + $0x8] sm:$0xff]
        %v2008 = vld [vmem:[#allocation3 + $0x10] sm:$0xff]
        %v2009 = vld [vmem:[#allocation3 + $0x18] sm:$0xff]
        %v2010 = vld [vmem:[#allocation3 + $0x20] sm:$0xf]
        %v2011 = vld [vmem:[#allocation3 + $0x2c] sm:$0xff]
        %v2012 = vld [vmem:[#allocation3 + $0x34] sm:$0xff]
        %v2013 = vld [vmem:[#allocation3 + $0x3c] sm:$0xff]
        %v2014 = vld [vmem:[#allocation3 + $0x44] sm:$0xff]
        %v2015 = vld [vmem:[#allocation3 + $0x4c] sm:$0xf]
        %2026 = vrot.lane.b32.xlu0 %v2006, 48
        %v2027 = vpop.permute.xlu0 %2026
        %2028 = vrot.lane.b32.xlu0 %v2007, 48
        %v2029 = vpop.permute.xlu0 %2028
        %2030 = vrot.lane.b32.xlu0 %v2008, 48
        %v2031 = vpop.permute.xlu0 %2030
        %2032 = vrot.lane.b32.xlu0 %v2009, 48
        %v2033 = vpop.permute.xlu0 %2032
        %2034 = vrot.lane.b32.xlu0 %v2010, 48
        %v2035 = vpop.permute.xlu0 %2034
        %2036 = vrot.lane.b32.xlu0 %v2011, 48
        %v2037 = vpop.permute.xlu0 %2036
        %2038 = vrot.lane.b32.xlu0 %v2012, 48
        %v2039 = vpop.permute.xlu0 %2038
        %2040 = vrot.lane.b32.xlu0 %v2013, 48
        %v2041 = vpop.permute.xlu0 %2040
        %2042 = vrot.lane.b32.xlu0 %v2014, 48
        %v2043 = vpop.permute.xlu0 %2042
        %2044 = vrot.lane.b32.xlu0 %v2015, 48
        %v2045 = vpop.permute.xlu0 %2044
        %v2046 = vrot.slane %v2027, 4
        %v2047 = vrot.slane %v2029, 4
        %v2048 = vrot.slane %v2031, 4
        %v2049 = vrot.slane %v2033, 4
        %v2050 = vrot.slane %v2035, 4
        %v2051 = vrot.slane %v2037, 4
        %v2052 = vrot.slane %v2039, 4
        %v2053 = vrot.slane %v2041, 4
        %v2054 = vrot.slane %v2043, 4
        %v2055 = vrot.slane %v2045, 4
        %v2056 = vsel %vm1429, %v2046, %v2047
        %vm2057 = vcmask 392192
        %v2058 = vsel %vm2057, %v2027, %v2056
        %v2059 = vsel %vm1429, %v2047, %v2048
        %v2060 = vsel %vm2057, %v2029, %v2059
        %v2061 = vsel %vm1429, %v2048, %v2049
        %v2062 = vsel %vm2057, %v2031, %v2061
        %v2063 = vsel %vm1429, %v2049, %v2050
        %v2064 = vsel %vm2057, %v2033, %v2063
        %v2065 = vsel %vm1429, %v2051, %v2052
        %v2066 = vsel %vm2057, %v2037, %v2065
        %v2067 = vsel %vm1429, %v2052, %v2053
        %v2068 = vsel %vm2057, %v2039, %v2067
        %v2069 = vsel %vm1429, %v2053, %v2054
        %v2070 = vsel %vm2057, %v2041, %v2069
        %v2071 = vsel %vm1429, %v2054, %v2055
        %v2072 = vsel %vm2057, %v2043, %v2071
        %2081 = vst [vmem:[#allocation4 + $0x240] sm:$0xff] %v2058
        %2082 = vst [vmem:[#allocation4 + $0x248] sm:$0xff] %v2060
        %2083 = vst [vmem:[#allocation4 + $0x250] sm:$0xff] %v2062
        %2084 = vst.msk [vmem:[#allocation4 + $0x258] sm:$0xff] %vm1383, %v2064
        %2085 = vst [vmem:[#allocation4 + $0x260] sm:$0xff] %v2066
        %2086 = vst [vmem:[#allocation4 + $0x268] sm:$0xff] %v2068
        %2087 = vst [vmem:[#allocation4 + $0x270] sm:$0xff] %v2070
        %2088 = vst.msk [vmem:[#allocation4 + $0x278] sm:$0xff] %vm1383, %v2072
        %v2089 = vld [vmem:[#allocation3 + $0x4] sm:$0xff]
        %v2090 = vld [vmem:[#allocation3 + $0xc] sm:$0xff]
        %v2091 = vld [vmem:[#allocation3 + $0x14] sm:$0xff]
        %v2092 = vld [vmem:[#allocation3 + $0x1c] sm:$0xff]
        %v2093 = vld [vmem:[#allocation3 + $0x30] sm:$0xff]
        %v2094 = vld [vmem:[#allocation3 + $0x38] sm:$0xff]
        %v2095 = vld [vmem:[#allocation3 + $0x40] sm:$0xff]
        %v2096 = vld [vmem:[#allocation3 + $0x48] sm:$0xff]
        %2105 = vrot.lane.b32.xlu0 %v2089, 112
        %v2106 = vpop.permute.xlu0 %2105
        %2107 = vrot.lane.b32.xlu0 %v2090, 112
        %v2108 = vpop.permute.xlu0 %2107
        %2109 = vrot.lane.b32.xlu0 %v2091, 112
        %v2110 = vpop.permute.xlu0 %2109
        %2111 = vrot.lane.b32.xlu0 %v2092, 112
        %v2112 = vpop.permute.xlu0 %2111
        %2113 = vrot.lane.b32.xlu0 %v2093, 112
        %v2114 = vpop.permute.xlu0 %2113
        %2115 = vrot.lane.b32.xlu0 %v2094, 112
        %v2116 = vpop.permute.xlu0 %2115
        %2117 = vrot.lane.b32.xlu0 %v2095, 112
        %v2118 = vpop.permute.xlu0 %2117
        %2119 = vrot.lane.b32.xlu0 %v2096, 112
        %v2120 = vpop.permute.xlu0 %2119
        %v2121 = vrot.slane %v2106, 4
        %v2122 = vrot.slane %v2108, 4
        %v2123 = vrot.slane %v2110, 4
        %v2124 = vrot.slane %v2112, 4
        %v2125 = vrot.slane %v2114, 4
        %v2126 = vrot.slane %v2116, 4
        %v2127 = vrot.slane %v2118, 4
        %v2128 = vrot.slane %v2120, 4
        %v2129 = vsel %vm1429, %v2121, %v2122
        %vm2130 = vcmask 916480
        %v2131 = vsel %vm2130, %v2106, %v2129
        %v2132 = vsel %vm1429, %v2122, %v2123
        %v2133 = vsel %vm2130, %v2108, %v2132
        %v2134 = vsel %vm1429, %v2123, %v2124
        %v2135 = vsel %vm2130, %v2110, %v2134
        %v2136 = vsel %vm2130, %v2112, %v2124
        %v2137 = vsel %vm1429, %v2125, %v2126
        %v2138 = vsel %vm2130, %v2114, %v2137
        %v2139 = vsel %vm1429, %v2126, %v2127
        %v2140 = vsel %vm2130, %v2116, %v2139
        %v2141 = vsel %vm1429, %v2127, %v2128
        %v2142 = vsel %vm2130, %v2118, %v2141
        %v2143 = vsel %vm2130, %v2120, %v2128
        %2152 = vst [vmem:[#allocation4 + $0x280] sm:$0xff] %v2131
        %2153 = vst [vmem:[#allocation4 + $0x288] sm:$0xff] %v2133
        %2154 = vst [vmem:[#allocation4 + $0x290] sm:$0xff] %v2135
        %2155 = vst.msk [vmem:[#allocation4 + $0x298] sm:$0xff] %vm1383, %v2136
        %2156 = vst [vmem:[#allocation4 + $0x2a0] sm:$0xff] %v2138
        %2157 = vst [vmem:[#allocation4 + $0x2a8] sm:$0xff] %v2140
        %2158 = vst [vmem:[#allocation4 + $0x2b0] sm:$0xff] %v2142
        %2159 = vst.msk [vmem:[#allocation4 + $0x2b8] sm:$0xff] %vm1383, %v2143
        %v2160 = vld [vmem:[#allocation3 + $0x4] sm:$0xff]
        %v2161 = vld [vmem:[#allocation3 + $0xc] sm:$0xff]
        %v2162 = vld [vmem:[#allocation3 + $0x14] sm:$0xff]
        %v2163 = vld [vmem:[#allocation3 + $0x1c] sm:$0xff]
        %v2164 = vld [vmem:[#allocation3 + $0x30] sm:$0xff]
        %v2165 = vld [vmem:[#allocation3 + $0x38] sm:$0xff]
        %v2166 = vld [vmem:[#allocation3 + $0x40] sm:$0xff]
        %v2167 = vld [vmem:[#allocation3 + $0x48] sm:$0xff]
        %2176 = vrot.lane.b32.xlu0 %v2160, 110
        %v2177 = vpop.permute.xlu0 %2176
        %2178 = vrot.lane.b32.xlu0 %v2161, 110
        %v2179 = vpop.permute.xlu0 %2178
        %2180 = vrot.lane.b32.xlu0 %v2162, 110
        %v2181 = vpop.permute.xlu0 %2180
        %2182 = vrot.lane.b32.xlu0 %v2163, 110
        %v2183 = vpop.permute.xlu0 %2182
        %2184 = vrot.lane.b32.xlu0 %v2164, 110
        %v2185 = vpop.permute.xlu0 %2184
        %2186 = vrot.lane.b32.xlu0 %v2165, 110
        %v2187 = vpop.permute.xlu0 %2186
        %2188 = vrot.lane.b32.xlu0 %v2166, 110
        %v2189 = vpop.permute.xlu0 %2188
        %2190 = vrot.lane.b32.xlu0 %v2167, 110
        %v2191 = vpop.permute.xlu0 %2190
        %v2192 = vrot.slane %v2177, 4
        %v2193 = vrot.slane %v2179, 4
        %v2194 = vrot.slane %v2181, 4
        %v2195 = vrot.slane %v2183, 4
        %v2196 = vrot.slane %v2185, 4
        %v2197 = vrot.slane %v2187, 4
        %v2198 = vrot.slane %v2189, 4
        %v2199 = vrot.slane %v2191, 4
        %v2200 = vsel %vm1429, %v2192, %v2193
        %vm2201 = vcmask 900096
        %v2202 = vsel %vm2201, %v2177, %v2200
        %v2203 = vsel %vm1429, %v2193, %v2194
        %v2204 = vsel %vm2201, %v2179, %v2203
        %v2205 = vsel %vm1429, %v2194, %v2195
        %v2206 = vsel %vm2201, %v2181, %v2205
        %v2207 = vsel %vm2201, %v2183, %v2195
        %v2208 = vsel %vm1429, %v2196, %v2197
        %v2209 = vsel %vm2201, %v2185, %v2208
        %v2210 = vsel %vm1429, %v2197, %v2198
        %v2211 = vsel %vm2201, %v2187, %v2210
        %v2212 = vsel %vm1429, %v2198, %v2199
        %v2213 = vsel %vm2201, %v2189, %v2212
        %v2214 = vsel %vm2201, %v2191, %v2199
        %2223 = vst [vmem:[#allocation4 + $0x2c0] sm:$0xff] %v2202
        %2224 = vst [vmem:[#allocation4 + $0x2c8] sm:$0xff] %v2204
        %2225 = vst [vmem:[#allocation4 + $0x2d0] sm:$0xff] %v2206
        %2226 = vst.msk [vmem:[#allocation4 + $0x2d8] sm:$0xff] %vm1383, %v2207
        %2227 = vst [vmem:[#allocation4 + $0x2e0] sm:$0xff] %v2209
        %2228 = vst [vmem:[#allocation4 + $0x2e8] sm:$0xff] %v2211
        %2229 = vst [vmem:[#allocation4 + $0x2f0] sm:$0xff] %v2213
        %2230 = vst.msk [vmem:[#allocation4 + $0x2f8] sm:$0xff] %vm1383, %v2214
        %v2231 = vld [vmem:[#allocation3 + $0x4] sm:$0xff]
        %v2232 = vld [vmem:[#allocation3 + $0xc] sm:$0xff]
        %v2233 = vld [vmem:[#allocation3 + $0x14] sm:$0xff]
        %v2234 = vld [vmem:[#allocation3 + $0x1c] sm:$0xff]
        %v2235 = vld [vmem:[#allocation3 + $0x30] sm:$0xff]
        %v2236 = vld [vmem:[#allocation3 + $0x38] sm:$0xff]
        %v2237 = vld [vmem:[#allocation3 + $0x40] sm:$0xff]
        %v2238 = vld [vmem:[#allocation3 + $0x48] sm:$0xff]
        %2247 = vrot.lane.b32.xlu0 %v2231, 108
        %v2248 = vpop.permute.xlu0 %2247
        %2249 = vrot.lane.b32.xlu0 %v2232, 108
        %v2250 = vpop.permute.xlu0 %2249
        %2251 = vrot.lane.b32.xlu0 %v2233, 108
        %v2252 = vpop.permute.xlu0 %2251
        %2253 = vrot.lane.b32.xlu0 %v2234, 108
        %v2254 = vpop.permute.xlu0 %2253
        %2255 = vrot.lane.b32.xlu0 %v2235, 108
        %v2256 = vpop.permute.xlu0 %2255
        %2257 = vrot.lane.b32.xlu0 %v2236, 108
        %v2258 = vpop.permute.xlu0 %2257
        %2259 = vrot.lane.b32.xlu0 %v2237, 108
        %v2260 = vpop.permute.xlu0 %2259
        %2261 = vrot.lane.b32.xlu0 %v2238, 108
        %v2262 = vpop.permute.xlu0 %2261
        %v2263 = vrot.slane %v2248, 4
        %v2264 = vrot.slane %v2250, 4
        %v2265 = vrot.slane %v2252, 4
        %v2266 = vrot.slane %v2254, 4
        %v2267 = vrot.slane %v2256, 4
        %v2268 = vrot.slane %v2258, 4
        %v2269 = vrot.slane %v2260, 4
        %v2270 = vrot.slane %v2262, 4
        %v2271 = vsel %vm1429, %v2263, %v2264
        %vm2272 = vcmask 883712
        %v2273 = vsel %vm2272, %v2248, %v2271
        %v2274 = vsel %vm1429, %v2264, %v2265
        %v2275 = vsel %vm2272, %v2250, %v2274
        %v2276 = vsel %vm1429, %v2265, %v2266
        %v2277 = vsel %vm2272, %v2252, %v2276
        %v2278 = vsel %vm2272, %v2254, %v2266
        %v2279 = vsel %vm1429, %v2267, %v2268
        %v2280 = vsel %vm2272, %v2256, %v2279
        %v2281 = vsel %vm1429, %v2268, %v2269
        %v2282 = vsel %vm2272, %v2258, %v2281
        %v2283 = vsel %vm1429, %v2269, %v2270
        %v2284 = vsel %vm2272, %v2260, %v2283
        %v2285 = vsel %vm2272, %v2262, %v2270
        %2294 = vst [vmem:[#allocation4 + $0x300] sm:$0xff] %v2273
        %2295 = vst [vmem:[#allocation4 + $0x308] sm:$0xff] %v2275
        %2296 = vst [vmem:[#allocation4 + $0x310] sm:$0xff] %v2277
        %2297 = vst.msk [vmem:[#allocation4 + $0x318] sm:$0xff] %vm1383, %v2278
        %2298 = vst [vmem:[#allocation4 + $0x320] sm:$0xff] %v2280
        %2299 = vst [vmem:[#allocation4 + $0x328] sm:$0xff] %v2282
        %2300 = vst [vmem:[#allocation4 + $0x330] sm:$0xff] %v2284
        %2301 = vst.msk [vmem:[#allocation4 + $0x338] sm:$0xff] %vm1383, %v2285
        %v2302 = vld [vmem:[#allocation3 + $0x4] sm:$0xff]
        %v2303 = vld [vmem:[#allocation3 + $0xc] sm:$0xff]
        %v2304 = vld [vmem:[#allocation3 + $0x14] sm:$0xff]
        %v2305 = vld [vmem:[#allocation3 + $0x1c] sm:$0xff]
        %v2306 = vld [vmem:[#allocation3 + $0x30] sm:$0xff]
        %v2307 = vld [vmem:[#allocation3 + $0x38] sm:$0xff]
        %v2308 = vld [vmem:[#allocation3 + $0x40] sm:$0xff]
        %v2309 = vld [vmem:[#allocation3 + $0x48] sm:$0xff]
        %2318 = vrot.lane.b32.xlu0 %v2302, 106
        %v2319 = vpop.permute.xlu0 %2318
        %2320 = vrot.lane.b32.xlu0 %v2303, 106
        %v2321 = vpop.permute.xlu0 %2320
        %2322 = vrot.lane.b32.xlu0 %v2304, 106
        %v2323 = vpop.permute.xlu0 %2322
        %2324 = vrot.lane.b32.xlu0 %v2305, 106
        %v2325 = vpop.permute.xlu0 %2324
        %2326 = vrot.lane.b32.xlu0 %v2306, 106
        %v2327 = vpop.permute.xlu0 %2326
        %2328 = vrot.lane.b32.xlu0 %v2307, 106
        %v2329 = vpop.permute.xlu0 %2328
        %2330 = vrot.lane.b32.xlu0 %v2308, 106
        %v2331 = vpop.permute.xlu0 %2330
        %2332 = vrot.lane.b32.xlu0 %v2309, 106
        %v2333 = vpop.permute.xlu0 %2332
        %v2334 = vrot.slane %v2319, 4
        %v2335 = vrot.slane %v2321, 4
        %v2336 = vrot.slane %v2323, 4
        %v2337 = vrot.slane %v2325, 4
        %v2338 = vrot.slane %v2327, 4
        %v2339 = vrot.slane %v2329, 4
        %v2340 = vrot.slane %v2331, 4
        %v2341 = vrot.slane %v2333, 4
        %v2342 = vsel %vm1429, %v2334, %v2335
        %vm2343 = vcmask 867328
        %v2344 = vsel %vm2343, %v2319, %v2342
        %v2345 = vsel %vm1429, %v2335, %v2336
        %v2346 = vsel %vm2343, %v2321, %v2345
        %v2347 = vsel %vm1429, %v2336, %v2337
        %v2348 = vsel %vm2343, %v2323, %v2347
        %v2349 = vsel %vm2343, %v2325, %v2337
        %v2350 = vsel %vm1429, %v2338, %v2339
        %v2351 = vsel %vm2343, %v2327, %v2350
        %v2352 = vsel %vm1429, %v2339, %v2340
        %v2353 = vsel %vm2343, %v2329, %v2352
        %v2354 = vsel %vm1429, %v2340, %v2341
        %v2355 = vsel %vm2343, %v2331, %v2354
        %v2356 = vsel %vm2343, %v2333, %v2341
        %2365 = vst [vmem:[#allocation4 + $0x340] sm:$0xff] %v2344
        %2366 = vst [vmem:[#allocation4 + $0x348] sm:$0xff] %v2346
        %2367 = vst [vmem:[#allocation4 + $0x350] sm:$0xff] %v2348
        %2368 = vst.msk [vmem:[#allocation4 + $0x358] sm:$0xff] %vm1383, %v2349
        %2369 = vst [vmem:[#allocation4 + $0x360] sm:$0xff] %v2351
        %2370 = vst [vmem:[#allocation4 + $0x368] sm:$0xff] %v2353
        %2371 = vst [vmem:[#allocation4 + $0x370] sm:$0xff] %v2355
        %2372 = vst.msk [vmem:[#allocation4 + $0x378] sm:$0xff] %vm1383, %v2356
        %v2373 = vld [vmem:[#allocation3 + $0x4] sm:$0xff]
        %v2374 = vld [vmem:[#allocation3 + $0xc] sm:$0xff]
        %v2375 = vld [vmem:[#allocation3 + $0x14] sm:$0xff]
        %v2376 = vld [vmem:[#allocation3 + $0x1c] sm:$0xff]
        %v2377 = vld [vmem:[#allocation3 + $0x30] sm:$0xff]
        %v2378 = vld [vmem:[#allocation3 + $0x38] sm:$0xff]
        %v2379 = vld [vmem:[#allocation3 + $0x40] sm:$0xff]
        %v2380 = vld [vmem:[#allocation3 + $0x48] sm:$0xff]
        %2389 = vrot.lane.b32.xlu0 %v2373, 104
        %v2390 = vpop.permute.xlu0 %2389
        %2391 = vrot.lane.b32.xlu0 %v2374, 104
        %v2392 = vpop.permute.xlu0 %2391
        %2393 = vrot.lane.b32.xlu0 %v2375, 104
        %v2394 = vpop.permute.xlu0 %2393
        %2395 = vrot.lane.b32.xlu0 %v2376, 104
        %v2396 = vpop.permute.xlu0 %2395
        %2397 = vrot.lane.b32.xlu0 %v2377, 104
        %v2398 = vpop.permute.xlu0 %2397
        %2399 = vrot.lane.b32.xlu0 %v2378, 104
        %v2400 = vpop.permute.xlu0 %2399
        %2401 = vrot.lane.b32.xlu0 %v2379, 104
        %v2402 = vpop.permute.xlu0 %2401
        %2403 = vrot.lane.b32.xlu0 %v2380, 104
        %v2404 = vpop.permute.xlu0 %2403
        %v2405 = vrot.slane %v2390, 4
        %v2406 = vrot.slane %v2392, 4
        %v2407 = vrot.slane %v2394, 4
        %v2408 = vrot.slane %v2396, 4
        %v2409 = vrot.slane %v2398, 4
        %v2410 = vrot.slane %v2400, 4
        %v2411 = vrot.slane %v2402, 4
        %v2412 = vrot.slane %v2404, 4
        %v2413 = vsel %vm1429, %v2405, %v2406
        %vm2414 = vcmask 850944
        %v2415 = vsel %vm2414, %v2390, %v2413
        %v2416 = vsel %vm1429, %v2406, %v2407
        %v2417 = vsel %vm2414, %v2392, %v2416
        %v2418 = vsel %vm1429, %v2407, %v2408
        %v2419 = vsel %vm2414, %v2394, %v2418
        %v2420 = vsel %vm2414, %v2396, %v2408
        %v2421 = vsel %vm1429, %v2409, %v2410
        %v2422 = vsel %vm2414, %v2398, %v2421
        %v2423 = vsel %vm1429, %v2410, %v2411
        %v2424 = vsel %vm2414, %v2400, %v2423
        %v2425 = vsel %vm1429, %v2411, %v2412
        %v2426 = vsel %vm2414, %v2402, %v2425
        %v2427 = vsel %vm2414, %v2404, %v2412
        %2436 = vst [vmem:[#allocation4 + $0x380] sm:$0xff] %v2415
        %2437 = vst [vmem:[#allocation4 + $0x388] sm:$0xff] %v2417
        %2438 = vst [vmem:[#allocation4 + $0x390] sm:$0xff] %v2419
        %2439 = vst.msk [vmem:[#allocation4 + $0x398] sm:$0xff] %vm1383, %v2420
        %2440 = vst [vmem:[#allocation4 + $0x3a0] sm:$0xff] %v2422
        %2441 = vst [vmem:[#allocation4 + $0x3a8] sm:$0xff] %v2424
        %2442 = vst [vmem:[#allocation4 + $0x3b0] sm:$0xff] %v2426
        %2443 = vst.msk [vmem:[#allocation4 + $0x3b8] sm:$0xff] %vm1383, %v2427
        %v2444 = vld [vmem:[#allocation3 + $0x4] sm:$0xff]
        %v2445 = vld [vmem:[#allocation3 + $0xc] sm:$0xff]
        %v2446 = vld [vmem:[#allocation3 + $0x14] sm:$0xff]
        %v2447 = vld [vmem:[#allocation3 + $0x1c] sm:$0xff]
        %v2448 = vld [vmem:[#allocation3 + $0x24] sm:$0xf]
        %v2449 = vld [vmem:[#allocation3 + $0x30] sm:$0xff]
        %v2450 = vld [vmem:[#allocation3 + $0x38] sm:$0xff]
        %v2451 = vld [vmem:[#allocation3 + $0x40] sm:$0xff]
        %v2452 = vld [vmem:[#allocation3 + $0x48] sm:$0xff]
        %v2453 = vld [vmem:[#allocation3 + $0x50] sm:$0xf]
        %2464 = vrot.lane.b32.xlu0 %v2444, 40
        %v2465 = vpop.permute.xlu0 %2464
        %2466 = vrot.lane.b32.xlu0 %v2445, 40
        %v2467 = vpop.permute.xlu0 %2466
        %2468 = vrot.lane.b32.xlu0 %v2446, 40
        %v2469 = vpop.permute.xlu0 %2468
        %2470 = vrot.lane.b32.xlu0 %v2447, 40
        %v2471 = vpop.permute.xlu0 %2470
        %2472 = vrot.lane.b32.xlu0 %v2448, 40
        %v2473 = vpop.permute.xlu0 %2472
        %2474 = vrot.lane.b32.xlu0 %v2449, 40
        %v2475 = vpop.permute.xlu0 %2474
        %2476 = vrot.lane.b32.xlu0 %v2450, 40
        %v2477 = vpop.permute.xlu0 %2476
        %2478 = vrot.lane.b32.xlu0 %v2451, 40
        %v2479 = vpop.permute.xlu0 %2478
        %2480 = vrot.lane.b32.xlu0 %v2452, 40
        %v2481 = vpop.permute.xlu0 %2480
        %2482 = vrot.lane.b32.xlu0 %v2453, 40
        %v2483 = vpop.permute.xlu0 %2482
        %v2484 = vrot.slane %v2465, 4
        %v2485 = vrot.slane %v2467, 4
        %v2486 = vrot.slane %v2469, 4
        %v2487 = vrot.slane %v2471, 4
        %v2488 = vrot.slane %v2473, 4
        %v2489 = vrot.slane %v2475, 4
        %v2490 = vrot.slane %v2477, 4
        %v2491 = vrot.slane %v2479, 4
        %v2492 = vrot.slane %v2481, 4
        %v2493 = vrot.slane %v2483, 4
        %v2494 = vsel %vm1429, %v2484, %v2485
        %vm2495 = vcmask 326656
        %v2496 = vsel %vm2495, %v2465, %v2494
        %v2497 = vsel %vm1429, %v2485, %v2486
        %v2498 = vsel %vm2495, %v2467, %v2497
        %v2499 = vsel %vm1429, %v2486, %v2487
        %v2500 = vsel %vm2495, %v2469, %v2499
        %v2501 = vsel %vm1429, %v2487, %v2488
        %v2502 = vsel %vm2495, %v2471, %v2501
        %v2503 = vsel %vm1429, %v2489, %v2490
        %v2504 = vsel %vm2495, %v2475, %v2503
        %v2505 = vsel %vm1429, %v2490, %v2491
        %v2506 = vsel %vm2495, %v2477, %v2505
        %v2507 = vsel %vm1429, %v2491, %v2492
        %v2508 = vsel %vm2495, %v2479, %v2507
        %v2509 = vsel %vm1429, %v2492, %v2493
        %v2510 = vsel %vm2495, %v2481, %v2509
        %2519 = vst [vmem:[#allocation4 + $0x3c0] sm:$0xff] %v2496
        %2520 = vst [vmem:[#allocation4 + $0x3c8] sm:$0xff] %v2498
        %2521 = vst [vmem:[#allocation4 + $0x3d0] sm:$0xff] %v2500
        %2522 = vst.msk [vmem:[#allocation4 + $0x3d8] sm:$0xff] %vm1383, %v2502
        %2523 = vst [vmem:[#allocation4 + $0x3e0] sm:$0xff] %v2504
        %2524 = vst [vmem:[#allocation4 + $0x3e8] sm:$0xff] %v2506
        %2525 = vst [vmem:[#allocation4 + $0x3f0] sm:$0xff] %v2508
        %2526 = vst.msk [vmem:[#allocation4 + $0x3f8] sm:$0xff] %vm1383, %v2510
        %v2527 = vld [vmem:[#allocation3 + $0x4] sm:$0xff]
        %v2528 = vld [vmem:[#allocation3 + $0xc] sm:$0xff]
        %v2529 = vld [vmem:[#allocation3 + $0x14] sm:$0xff]
        %v2530 = vld [vmem:[#allocation3 + $0x1c] sm:$0xff]
        %v2531 = vld [vmem:[#allocation3 + $0x24] sm:$0xf]
        %v2532 = vld [vmem:[#allocation3 + $0x30] sm:$0xff]
        %v2533 = vld [vmem:[#allocation3 + $0x38] sm:$0xff]
        %v2534 = vld [vmem:[#allocation3 + $0x40] sm:$0xff]
        %v2535 = vld [vmem:[#allocation3 + $0x48] sm:$0xff]
        %v2536 = vld [vmem:[#allocation3 + $0x50] sm:$0xf]
        %2547 = vrot.lane.b32.xlu0 %v2527, 38
        %v2548 = vpop.permute.xlu0 %2547
        %2549 = vrot.lane.b32.xlu0 %v2528, 38
        %v2550 = vpop.permute.xlu0 %2549
        %2551 = vrot.lane.b32.xlu0 %v2529, 38
        %v2552 = vpop.permute.xlu0 %2551
        %2553 = vrot.lane.b32.xlu0 %v2530, 38
        %v2554 = vpop.permute.xlu0 %2553
        %2555 = vrot.lane.b32.xlu0 %v2531, 38
        %v2556 = vpop.permute.xlu0 %2555
        %2557 = vrot.lane.b32.xlu0 %v2532, 38
        %v2558 = vpop.permute.xlu0 %2557
        %2559 = vrot.lane.b32.xlu0 %v2533, 38
        %v2560 = vpop.permute.xlu0 %2559
        %2561 = vrot.lane.b32.xlu0 %v2534, 38
        %v2562 = vpop.permute.xlu0 %2561
        %2563 = vrot.lane.b32.xlu0 %v2535, 38
        %v2564 = vpop.permute.xlu0 %2563
        %2565 = vrot.lane.b32.xlu0 %v2536, 38
        %v2566 = vpop.permute.xlu0 %2565
        %v2567 = vrot.slane %v2548, 4
        %v2568 = vrot.slane %v2550, 4
        %v2569 = vrot.slane %v2552, 4
        %v2570 = vrot.slane %v2554, 4
        %v2571 = vrot.slane %v2556, 4
        %v2572 = vrot.slane %v2558, 4
        %v2573 = vrot.slane %v2560, 4
        %v2574 = vrot.slane %v2562, 4
        %v2575 = vrot.slane %v2564, 4
        %v2576 = vrot.slane %v2566, 4
        %v2577 = vsel %vm1429, %v2567, %v2568
        %vm2578 = vcmask 310272
        %v2579 = vsel %vm2578, %v2548, %v2577
        %v2580 = vsel %vm1429, %v2568, %v2569
        %v2581 = vsel %vm2578, %v2550, %v2580
        %v2582 = vsel %vm1429, %v2569, %v2570
        %v2583 = vsel %vm2578, %v2552, %v2582
        %v2584 = vsel %vm1429, %v2570, %v2571
        %v2585 = vsel %vm2578, %v2554, %v2584
        %v2586 = vsel %vm1429, %v2572, %v2573
        %v2587 = vsel %vm2578, %v2558, %v2586
        %v2588 = vsel %vm1429, %v2573, %v2574
        %v2589 = vsel %vm2578, %v2560, %v2588
        %v2590 = vsel %vm1429, %v2574, %v2575
        %v2591 = vsel %vm2578, %v2562, %v2590
        %v2592 = vsel %vm1429, %v2575, %v2576
        %v2593 = vsel %vm2578, %v2564, %v2592
        %2602 = vst [vmem:[#allocation4 + $0x400] sm:$0xff] %v2579
        %2603 = vst [vmem:[#allocation4 + $0x408] sm:$0xff] %v2581
        %2604 = vst [vmem:[#allocation4 + $0x410] sm:$0xff] %v2583
        %2605 = vst.msk [vmem:[#allocation4 + $0x418] sm:$0xff] %vm1383, %v2585
        %2606 = vst [vmem:[#allocation4 + $0x420] sm:$0xff] %v2587
        %2607 = vst [vmem:[#allocation4 + $0x428] sm:$0xff] %v2589
        %2608 = vst [vmem:[#allocation4 + $0x430] sm:$0xff] %v2591
        %2609 = vst.msk [vmem:[#allocation4 + $0x438] sm:$0xff] %vm1383, %v2593
        %v2610 = vld [vmem:[#allocation3 + $0x4] sm:$0xff]
        %v2611 = vld [vmem:[#allocation3 + $0xc] sm:$0xff]
        %v2612 = vld [vmem:[#allocation3 + $0x14] sm:$0xff]
        %v2613 = vld [vmem:[#allocation3 + $0x1c] sm:$0xff]
        %v2614 = vld [vmem:[#allocation3 + $0x24] sm:$0xf]
        %v2615 = vld [vmem:[#allocation3 + $0x30] sm:$0xff]
        %v2616 = vld [vmem:[#allocation3 + $0x38] sm:$0xff]
        %v2617 = vld [vmem:[#allocation3 + $0x40] sm:$0xff]
        %v2618 = vld [vmem:[#allocation3 + $0x48] sm:$0xff]
        %v2619 = vld [vmem:[#allocation3 + $0x50] sm:$0xf]
        %2630 = vrot.lane.b32.xlu0 %v2610, 36
        %v2631 = vpop.permute.xlu0 %2630
        %2632 = vrot.lane.b32.xlu0 %v2611, 36
        %v2633 = vpop.permute.xlu0 %2632
        %2634 = vrot.lane.b32.xlu0 %v2612, 36
        %v2635 = vpop.permute.xlu0 %2634
        %2636 = vrot.lane.b32.xlu0 %v2613, 36
        %v2637 = vpop.permute.xlu0 %2636
        %2638 = vrot.lane.b32.xlu0 %v2614, 36
        %v2639 = vpop.permute.xlu0 %2638
        %2640 = vrot.lane.b32.xlu0 %v2615, 36
        %v2641 = vpop.permute.xlu0 %2640
        %2642 = vrot.lane.b32.xlu0 %v2616, 36
        %v2643 = vpop.permute.xlu0 %2642
        %2644 = vrot.lane.b32.xlu0 %v2617, 36
        %v2645 = vpop.permute.xlu0 %2644
        %2646 = vrot.lane.b32.xlu0 %v2618, 36
        %v2647 = vpop.permute.xlu0 %2646
        %2648 = vrot.lane.b32.xlu0 %v2619, 36
        %v2649 = vpop.permute.xlu0 %2648
        %v2650 = vrot.slane %v2631, 4
        %v2651 = vrot.slane %v2633, 4
        %v2652 = vrot.slane %v2635, 4
        %v2653 = vrot.slane %v2637, 4
        %v2654 = vrot.slane %v2639, 4
        %v2655 = vrot.slane %v2641, 4
        %v2656 = vrot.slane %v2643, 4
        %v2657 = vrot.slane %v2645, 4
        %v2658 = vrot.slane %v2647, 4
        %v2659 = vrot.slane %v2649, 4
        %v2660 = vsel %vm1429, %v2650, %v2651
        %vm2661 = vcmask 293888
        %v2662 = vsel %vm2661, %v2631, %v2660
        %v2663 = vsel %vm1429, %v2651, %v2652
        %v2664 = vsel %vm2661, %v2633, %v2663
        %v2665 = vsel %vm1429, %v2652, %v2653
        %v2666 = vsel %vm2661, %v2635, %v2665
        %v2667 = vsel %vm1429, %v2653, %v2654
        %v2668 = vsel %vm2661, %v2637, %v2667
        %v2669 = vsel %vm1429, %v2655, %v2656
        %v2670 = vsel %vm2661, %v2641, %v2669
        %v2671 = vsel %vm1429, %v2656, %v2657
        %v2672 = vsel %vm2661, %v2643, %v2671
        %v2673 = vsel %vm1429, %v2657, %v2658
        %v2674 = vsel %vm2661, %v2645, %v2673
        %v2675 = vsel %vm1429, %v2658, %v2659
        %v2676 = vsel %vm2661, %v2647, %v2675
        %2685 = vst [vmem:[#allocation4 + $0x440] sm:$0xff] %v2662
        %2686 = vst [vmem:[#allocation4 + $0x448] sm:$0xff] %v2664
        %2687 = vst [vmem:[#allocation4 + $0x450] sm:$0xff] %v2666
        %2688 = vst.msk [vmem:[#allocation4 + $0x458] sm:$0xff] %vm1383, %v2668
        %2689 = vst [vmem:[#allocation4 + $0x460] sm:$0xff] %v2670
        %2690 = vst [vmem:[#allocation4 + $0x468] sm:$0xff] %v2672
        %2691 = vst [vmem:[#allocation4 + $0x470] sm:$0xff] %v2674
        %2692 = vst.msk [vmem:[#allocation4 + $0x478] sm:$0xff] %vm1383, %v2676
        %v2693 = vld [vmem:[#allocation3 + $0x4] sm:$0xff]
        %v2694 = vld [vmem:[#allocation3 + $0xc] sm:$0xff]
        %v2695 = vld [vmem:[#allocation3 + $0x14] sm:$0xff]
        %v2696 = vld [vmem:[#allocation3 + $0x1c] sm:$0xff]
        %v2697 = vld [vmem:[#allocation3 + $0x24] sm:$0xf]
        %v2698 = vld [vmem:[#allocation3 + $0x30] sm:$0xff]
        %v2699 = vld [vmem:[#allocation3 + $0x38] sm:$0xff]
        %v2700 = vld [vmem:[#allocation3 + $0x40] sm:$0xff]
        %v2701 = vld [vmem:[#allocation3 + $0x48] sm:$0xff]
        %v2702 = vld [vmem:[#allocation3 + $0x50] sm:$0xf]
        %2713 = vrot.lane.b32.xlu0 %v2693, 34
        %v2714 = vpop.permute.xlu0 %2713
        %2715 = vrot.lane.b32.xlu0 %v2694, 34
        %v2716 = vpop.permute.xlu0 %2715
        %2717 = vrot.lane.b32.xlu0 %v2695, 34
        %v2718 = vpop.permute.xlu0 %2717
        %2719 = vrot.lane.b32.xlu0 %v2696, 34
        %v2720 = vpop.permute.xlu0 %2719
        %2721 = vrot.lane.b32.xlu0 %v2697, 34
        %v2722 = vpop.permute.xlu0 %2721
        %2723 = vrot.lane.b32.xlu0 %v2698, 34
        %v2724 = vpop.permute.xlu0 %2723
        %2725 = vrot.lane.b32.xlu0 %v2699, 34
        %v2726 = vpop.permute.xlu0 %2725
        %2727 = vrot.lane.b32.xlu0 %v2700, 34
        %v2728 = vpop.permute.xlu0 %2727
        %2729 = vrot.lane.b32.xlu0 %v2701, 34
        %v2730 = vpop.permute.xlu0 %2729
        %2731 = vrot.lane.b32.xlu0 %v2702, 34
        %v2732 = vpop.permute.xlu0 %2731
        %v2733 = vrot.slane %v2714, 4
        %v2734 = vrot.slane %v2716, 4
        %v2735 = vrot.slane %v2718, 4
        %v2736 = vrot.slane %v2720, 4
        %v2737 = vrot.slane %v2722, 4
        %v2738 = vrot.slane %v2724, 4
        %v2739 = vrot.slane %v2726, 4
        %v2740 = vrot.slane %v2728, 4
        %v2741 = vrot.slane %v2730, 4
        %v2742 = vrot.slane %v2732, 4
        %v2743 = vsel %vm1429, %v2733, %v2734
        %vm2744 = vcmask 277504
        %v2745 = vsel %vm2744, %v2714, %v2743
        %v2746 = vsel %vm1429, %v2734, %v2735
        %v2747 = vsel %vm2744, %v2716, %v2746
        %v2748 = vsel %vm1429, %v2735, %v2736
        %v2749 = vsel %vm2744, %v2718, %v2748
        %v2750 = vsel %vm1429, %v2736, %v2737
        %v2751 = vsel %vm2744, %v2720, %v2750
        %v2752 = vsel %vm1429, %v2738, %v2739
        %v2753 = vsel %vm2744, %v2724, %v2752
        %v2754 = vsel %vm1429, %v2739, %v2740
        %v2755 = vsel %vm2744, %v2726, %v2754
        %v2756 = vsel %vm1429, %v2740, %v2741
        %v2757 = vsel %vm2744, %v2728, %v2756
        %v2758 = vsel %vm1429, %v2741, %v2742
        %v2759 = vsel %vm2744, %v2730, %v2758
        %2768 = vst [vmem:[#allocation4 + $0x480] sm:$0xff] %v2745
        %2769 = vst [vmem:[#allocation4 + $0x488] sm:$0xff] %v2747
        %2770 = vst [vmem:[#allocation4 + $0x490] sm:$0xff] %v2749
        %2771 = vst.msk [vmem:[#allocation4 + $0x498] sm:$0xff] %vm1383, %v2751
        %2772 = vst [vmem:[#allocation4 + $0x4a0] sm:$0xff] %v2753
        %2773 = vst [vmem:[#allocation4 + $0x4a8] sm:$0xff] %v2755
        %2774 = vst [vmem:[#allocation4 + $0x4b0] sm:$0xff] %v2757
        %2775 = vst.msk [vmem:[#allocation4 + $0x4b8] sm:$0xff] %vm1383, %v2759
        %v2776 = vld [vmem:[#allocation3 + $0x4] sm:$0xff]
        %v2777 = vld [vmem:[#allocation3 + $0xc] sm:$0xff]
        %v2778 = vld [vmem:[#allocation3 + $0x14] sm:$0xff]
        %v2779 = vld [vmem:[#allocation3 + $0x1c] sm:$0xff]
        %v2780 = vld [vmem:[#allocation3 + $0x24] sm:$0xf]
        %v2781 = vld [vmem:[#allocation3 + $0x30] sm:$0xff]
        %v2782 = vld [vmem:[#allocation3 + $0x38] sm:$0xff]
        %v2783 = vld [vmem:[#allocation3 + $0x40] sm:$0xff]
        %v2784 = vld [vmem:[#allocation3 + $0x48] sm:$0xff]
        %v2785 = vld [vmem:[#allocation3 + $0x50] sm:$0xf]
        %2796 = vrot.lane.b32.xlu0 %v2776, 32
        %v2797 = vpop.permute.xlu0 %2796
        %2798 = vrot.lane.b32.xlu0 %v2777, 32
        %v2799 = vpop.permute.xlu0 %2798
        %2800 = vrot.lane.b32.xlu0 %v2778, 32
        %v2801 = vpop.permute.xlu0 %2800
        %2802 = vrot.lane.b32.xlu0 %v2779, 32
        %v2803 = vpop.permute.xlu0 %2802
        %2804 = vrot.lane.b32.xlu0 %v2780, 32
        %v2805 = vpop.permute.xlu0 %2804
        %2806 = vrot.lane.b32.xlu0 %v2781, 32
        %v2807 = vpop.permute.xlu0 %2806
        %2808 = vrot.lane.b32.xlu0 %v2782, 32
        %v2809 = vpop.permute.xlu0 %2808
        %2810 = vrot.lane.b32.xlu0 %v2783, 32
        %v2811 = vpop.permute.xlu0 %2810
        %2812 = vrot.lane.b32.xlu0 %v2784, 32
        %v2813 = vpop.permute.xlu0 %2812
        %2814 = vrot.lane.b32.xlu0 %v2785, 32
        %v2815 = vpop.permute.xlu0 %2814
        %v2816 = vrot.slane %v2797, 4
        %v2817 = vrot.slane %v2799, 4
        %v2818 = vrot.slane %v2801, 4
        %v2819 = vrot.slane %v2803, 4
        %v2820 = vrot.slane %v2805, 4
        %v2821 = vrot.slane %v2807, 4
        %v2822 = vrot.slane %v2809, 4
        %v2823 = vrot.slane %v2811, 4
        %v2824 = vrot.slane %v2813, 4
        %v2825 = vrot.slane %v2815, 4
        %v2826 = vsel %vm1429, %v2816, %v2817
        %vm2827 = vcmask 261120
        %v2828 = vsel %vm2827, %v2797, %v2826
        %v2829 = vsel %vm1429, %v2817, %v2818
        %v2830 = vsel %vm2827, %v2799, %v2829
        %v2831 = vsel %vm1429, %v2818, %v2819
        %v2832 = vsel %vm2827, %v2801, %v2831
        %v2833 = vsel %vm1429, %v2819, %v2820
        %v2834 = vsel %vm2827, %v2803, %v2833
        %v2835 = vsel %vm1429, %v2821, %v2822
        %v2836 = vsel %vm2827, %v2807, %v2835
        %v2837 = vsel %vm1429, %v2822, %v2823
        %v2838 = vsel %vm2827, %v2809, %v2837
        %v2839 = vsel %vm1429, %v2823, %v2824
        %v2840 = vsel %vm2827, %v2811, %v2839
        %v2841 = vsel %vm1429, %v2824, %v2825
        %v2842 = vsel %vm2827, %v2813, %v2841
        %2851 = vst [vmem:[#allocation4 + $0x4c0] sm:$0xff] %v2828
        %2852 = vst [vmem:[#allocation4 + $0x4c8] sm:$0xff] %v2830
        %2853 = vst [vmem:[#allocation4 + $0x4d0] sm:$0xff] %v2832
        %2854 = vst.msk [vmem:[#allocation4 + $0x4d8] sm:$0xff] %vm1383, %v2834
        %2855 = vst [vmem:[#allocation4 + $0x4e0] sm:$0xff] %v2836
        %2856 = vst [vmem:[#allocation4 + $0x4e8] sm:$0xff] %v2838
        %2857 = vst [vmem:[#allocation4 + $0x4f0] sm:$0xff] %v2840
        %2858 = vst.msk [vmem:[#allocation4 + $0x4f8] sm:$0xff] %vm1383, %v2842
        %v2859 = vld [vmem:[#allocation3 + $0x8] sm:$0xff]
        %v2860 = vld [vmem:[#allocation3 + $0x10] sm:$0xff]
        %v2861 = vld [vmem:[#allocation3 + $0x18] sm:$0xff]
        %v2862 = vld [vmem:[#allocation3 + $0x20] sm:$0xff]
        %v2863 = vld [vmem:[#allocation3 + $0x28] sm:$0xf]
        %v2864 = vld [vmem:[#allocation3 + $0x34] sm:$0xff]
        %v2865 = vld [vmem:[#allocation3 + $0x3c] sm:$0xff]
        %v2866 = vld [vmem:[#allocation3 + $0x44] sm:$0xff]
        %v2867 = vld [vmem:[#allocation3 + $0x4c] sm:$0xff]
        %v2868 = vld [vmem:[#allocation3 + $0x54] sm:$0xf]
        %2879 = vrot.lane.b32.xlu0 %v2859, 96
        %v2880 = vpop.permute.xlu0 %2879
        %2881 = vrot.lane.b32.xlu0 %v2860, 96
        %v2882 = vpop.permute.xlu0 %2881
        %2883 = vrot.lane.b32.xlu0 %v2861, 96
        %v2884 = vpop.permute.xlu0 %2883
        %2885 = vrot.lane.b32.xlu0 %v2862, 96
        %v2886 = vpop.permute.xlu0 %2885
        %2887 = vrot.lane.b32.xlu0 %v2863, 96
        %v2888 = vpop.permute.xlu0 %2887
        %2889 = vrot.lane.b32.xlu0 %v2864, 96
        %v2890 = vpop.permute.xlu0 %2889
        %2891 = vrot.lane.b32.xlu0 %v2865, 96
        %v2892 = vpop.permute.xlu0 %2891
        %2893 = vrot.lane.b32.xlu0 %v2866, 96
        %v2894 = vpop.permute.xlu0 %2893
        %2895 = vrot.lane.b32.xlu0 %v2867, 96
        %v2896 = vpop.permute.xlu0 %2895
        %2897 = vrot.lane.b32.xlu0 %v2868, 96
        %v2898 = vpop.permute.xlu0 %2897
        %v2899 = vrot.slane %v2880, 4
        %v2900 = vrot.slane %v2882, 4
        %v2901 = vrot.slane %v2884, 4
        %v2902 = vrot.slane %v2886, 4
        %v2903 = vrot.slane %v2888, 4
        %v2904 = vrot.slane %v2890, 4
        %v2905 = vrot.slane %v2892, 4
        %v2906 = vrot.slane %v2894, 4
        %v2907 = vrot.slane %v2896, 4
        %v2908 = vrot.slane %v2898, 4
        %v2909 = vsel %vm1429, %v2899, %v2900
        %vm2910 = vcmask 785408
        %v2911 = vsel %vm2910, %v2880, %v2909
        %v2912 = vsel %vm1429, %v2900, %v2901
        %v2913 = vsel %vm2910, %v2882, %v2912
        %v2914 = vsel %vm1429, %v2901, %v2902
        %v2915 = vsel %vm2910, %v2884, %v2914
        %v2916 = vsel %vm1429, %v2902, %v2903
        %v2917 = vsel %vm2910, %v2886, %v2916
        %v2918 = vsel %vm1429, %v2904, %v2905
        %v2919 = vsel %vm2910, %v2890, %v2918
        %v2920 = vsel %vm1429, %v2905, %v2906
        %v2921 = vsel %vm2910, %v2892, %v2920
        %v2922 = vsel %vm1429, %v2906, %v2907
        %v2923 = vsel %vm2910, %v2894, %v2922
        %v2924 = vsel %vm1429, %v2907, %v2908
        %v2925 = vsel %vm2910, %v2896, %v2924
        %2934 = vst [vmem:[#allocation4 + $0x500] sm:$0xff] %v2911
        %2935 = vst [vmem:[#allocation4 + $0x508] sm:$0xff] %v2913
        %2936 = vst [vmem:[#allocation4 + $0x510] sm:$0xff] %v2915
        %2937 = vst.msk [vmem:[#allocation4 + $0x518] sm:$0xff] %vm1383, %v2917
        %2938 = vst [vmem:[#allocation4 + $0x520] sm:$0xff] %v2919
        %2939 = vst [vmem:[#allocation4 + $0x528] sm:$0xff] %v2921
        %2940 = vst [vmem:[#allocation4 + $0x530] sm:$0xff] %v2923
        %2941 = vst.msk [vmem:[#allocation4 + $0x538] sm:$0xff] %vm1383, %v2925
        %v2942 = vld [vmem:[#allocation3 + $0x8] sm:$0xff]
        %v2943 = vld [vmem:[#allocation3 + $0x10] sm:$0xff]
        %v2944 = vld [vmem:[#allocation3 + $0x18] sm:$0xff]
        %v2945 = vld [vmem:[#allocation3 + $0x20] sm:$0xff]
        %v2946 = vld [vmem:[#allocation3 + $0x28] sm:$0xf]
        %v2947 = vld [vmem:[#allocation3 + $0x34] sm:$0xff]
        %v2948 = vld [vmem:[#allocation3 + $0x3c] sm:$0xff]
        %v2949 = vld [vmem:[#allocation3 + $0x44] sm:$0xff]
        %v2950 = vld [vmem:[#allocation3 + $0x4c] sm:$0xff]
        %v2951 = vld [vmem:[#allocation3 + $0x54] sm:$0xf]
        %2962 = vrot.lane.b32.xlu0 %v2942, 94
        %v2963 = vpop.permute.xlu0 %2962
        %2964 = vrot.lane.b32.xlu0 %v2943, 94
        %v2965 = vpop.permute.xlu0 %2964
        %2966 = vrot.lane.b32.xlu0 %v2944, 94
        %v2967 = vpop.permute.xlu0 %2966
        %2968 = vrot.lane.b32.xlu0 %v2945, 94
        %v2969 = vpop.permute.xlu0 %2968
        %2970 = vrot.lane.b32.xlu0 %v2946, 94
        %v2971 = vpop.permute.xlu0 %2970
        %2972 = vrot.lane.b32.xlu0 %v2947, 94
        %v2973 = vpop.permute.xlu0 %2972
        %2974 = vrot.lane.b32.xlu0 %v2948, 94
        %v2975 = vpop.permute.xlu0 %2974
        %2976 = vrot.lane.b32.xlu0 %v2949, 94
        %v2977 = vpop.permute.xlu0 %2976
        %2978 = vrot.lane.b32.xlu0 %v2950, 94
        %v2979 = vpop.permute.xlu0 %2978
        %2980 = vrot.lane.b32.xlu0 %v2951, 94
        %v2981 = vpop.permute.xlu0 %2980
        %v2982 = vrot.slane %v2963, 4
        %v2983 = vrot.slane %v2965, 4
        %v2984 = vrot.slane %v2967, 4
        %v2985 = vrot.slane %v2969, 4
        %v2986 = vrot.slane %v2971, 4
        %v2987 = vrot.slane %v2973, 4
        %v2988 = vrot.slane %v2975, 4
        %v2989 = vrot.slane %v2977, 4
        %v2990 = vrot.slane %v2979, 4
        %v2991 = vrot.slane %v2981, 4
        %v2992 = vsel %vm1429, %v2982, %v2983
        %vm2993 = vcmask 769024
        %v2994 = vsel %vm2993, %v2963, %v2992
        %v2995 = vsel %vm1429, %v2983, %v2984
        %v2996 = vsel %vm2993, %v2965, %v2995
        %v2997 = vsel %vm1429, %v2984, %v2985
        %v2998 = vsel %vm2993, %v2967, %v2997
        %v2999 = vsel %vm1429, %v2985, %v2986
        %v3000 = vsel %vm2993, %v2969, %v2999
        %v3001 = vsel %vm1429, %v2987, %v2988
        %v3002 = vsel %vm2993, %v2973, %v3001
        %v3003 = vsel %vm1429, %v2988, %v2989
        %v3004 = vsel %vm2993, %v2975, %v3003
        %v3005 = vsel %vm1429, %v2989, %v2990
        %v3006 = vsel %vm2993, %v2977, %v3005
        %v3007 = vsel %vm1429, %v2990, %v2991
        %v3008 = vsel %vm2993, %v2979, %v3007
        %3017 = vst [vmem:[#allocation4 + $0x540] sm:$0xff] %v2994
        %3018 = vst [vmem:[#allocation4 + $0x548] sm:$0xff] %v2996
        %3019 = vst [vmem:[#allocation4 + $0x550] sm:$0xff] %v2998
        %3020 = vst.msk [vmem:[#allocation4 + $0x558] sm:$0xff] %vm1383, %v3000
        %3021 = vst [vmem:[#allocation4 + $0x560] sm:$0xff] %v3002
        %3022 = vst [vmem:[#allocation4 + $0x568] sm:$0xff] %v3004
        %3023 = vst [vmem:[#allocation4 + $0x570] sm:$0xff] %v3006
        %3024 = vst.msk [vmem:[#allocation4 + $0x578] sm:$0xff] %vm1383, %v3008
        %v3025 = vld [vmem:[#allocation3 + $0x8] sm:$0xff]
        %v3026 = vld [vmem:[#allocation3 + $0x10] sm:$0xff]
        %v3027 = vld [vmem:[#allocation3 + $0x18] sm:$0xff]
        %v3028 = vld [vmem:[#allocation3 + $0x20] sm:$0xff]
        %v3029 = vld [vmem:[#allocation3 + $0x28] sm:$0xf]
        %v3030 = vld [vmem:[#allocation3 + $0x34] sm:$0xff]
        %v3031 = vld [vmem:[#allocation3 + $0x3c] sm:$0xff]
        %v3032 = vld [vmem:[#allocation3 + $0x44] sm:$0xff]
        %v3033 = vld [vmem:[#allocation3 + $0x4c] sm:$0xff]
        %v3034 = vld [vmem:[#allocation3 + $0x54] sm:$0xf]
        %3045 = vrot.lane.b32.xlu0 %v3025, 92
        %v3046 = vpop.permute.xlu0 %3045
        %3047 = vrot.lane.b32.xlu0 %v3026, 92
        %v3048 = vpop.permute.xlu0 %3047
        %3049 = vrot.lane.b32.xlu0 %v3027, 92
        %v3050 = vpop.permute.xlu0 %3049
        %3051 = vrot.lane.b32.xlu0 %v3028, 92
        %v3052 = vpop.permute.xlu0 %3051
        %3053 = vrot.lane.b32.xlu0 %v3029, 92
        %v3054 = vpop.permute.xlu0 %3053
        %3055 = vrot.lane.b32.xlu0 %v3030, 92
        %v3056 = vpop.permute.xlu0 %3055
        %3057 = vrot.lane.b32.xlu0 %v3031, 92
        %v3058 = vpop.permute.xlu0 %3057
        %3059 = vrot.lane.b32.xlu0 %v3032, 92
        %v3060 = vpop.permute.xlu0 %3059
        %3061 = vrot.lane.b32.xlu0 %v3033, 92
        %v3062 = vpop.permute.xlu0 %3061
        %3063 = vrot.lane.b32.xlu0 %v3034, 92
        %v3064 = vpop.permute.xlu0 %3063
        %v3065 = vrot.slane %v3046, 4
        %v3066 = vrot.slane %v3048, 4
        %v3067 = vrot.slane %v3050, 4
        %v3068 = vrot.slane %v3052, 4
        %v3069 = vrot.slane %v3054, 4
        %v3070 = vrot.slane %v3056, 4
        %v3071 = vrot.slane %v3058, 4
        %v3072 = vrot.slane %v3060, 4
        %v3073 = vrot.slane %v3062, 4
        %v3074 = vrot.slane %v3064, 4
        %v3075 = vsel %vm1429, %v3065, %v3066
        %vm3076 = vcmask 752640
        %v3077 = vsel %vm3076, %v3046, %v3075
        %v3078 = vsel %vm1429, %v3066, %v3067
        %v3079 = vsel %vm3076, %v3048, %v3078
        %v3080 = vsel %vm1429, %v3067, %v3068
        %v3081 = vsel %vm3076, %v3050, %v3080
        %v3082 = vsel %vm1429, %v3068, %v3069
        %v3083 = vsel %vm3076, %v3052, %v3082
        %v3084 = vsel %vm1429, %v3070, %v3071
        %v3085 = vsel %vm3076, %v3056, %v3084
        %v3086 = vsel %vm1429, %v3071, %v3072
        %v3087 = vsel %vm3076, %v3058, %v3086
        %v3088 = vsel %vm1429, %v3072, %v3073
        %v3089 = vsel %vm3076, %v3060, %v3088
        %v3090 = vsel %vm1429, %v3073, %v3074
        %v3091 = vsel %vm3076, %v3062, %v3090
        %3100 = vst [vmem:[#allocation4 + $0x580] sm:$0xff] %v3077
        %3101 = vst [vmem:[#allocation4 + $0x588] sm:$0xff] %v3079
        %3102 = vst [vmem:[#allocation4 + $0x590] sm:$0xff] %v3081
        %3103 = vst.msk [vmem:[#allocation4 + $0x598] sm:$0xff] %vm1383, %v3083
        %3104 = vst [vmem:[#allocation4 + $0x5a0] sm:$0xff] %v3085
        %3105 = vst [vmem:[#allocation4 + $0x5a8] sm:$0xff] %v3087
        %3106 = vst [vmem:[#allocation4 + $0x5b0] sm:$0xff] %v3089
        %3107 = vst.msk [vmem:[#allocation4 + $0x5b8] sm:$0xff] %vm1383, %v3091
        %v3108 = vld [vmem:[#allocation3 + $0x8] sm:$0xff]
        %v3109 = vld [vmem:[#allocation3 + $0x10] sm:$0xff]
        %v3110 = vld [vmem:[#allocation3 + $0x18] sm:$0xff]
        %v3111 = vld [vmem:[#allocation3 + $0x20] sm:$0xff]
        %v3112 = vld [vmem:[#allocation3 + $0x28] sm:$0xf]
        %v3113 = vld [vmem:[#allocation3 + $0x34] sm:$0xff]
        %v3114 = vld [vmem:[#allocation3 + $0x3c] sm:$0xff]
        %v3115 = vld [vmem:[#allocation3 + $0x44] sm:$0xff]
        %v3116 = vld [vmem:[#allocation3 + $0x4c] sm:$0xff]
        %v3117 = vld [vmem:[#allocation3 + $0x54] sm:$0xf]
        %3128 = vrot.lane.b32.xlu0 %v3108, 90
        %v3129 = vpop.permute.xlu0 %3128
        %3130 = vrot.lane.b32.xlu0 %v3109, 90
        %v3131 = vpop.permute.xlu0 %3130
        %3132 = vrot.lane.b32.xlu0 %v3110, 90
        %v3133 = vpop.permute.xlu0 %3132
        %3134 = vrot.lane.b32.xlu0 %v3111, 90
        %v3135 = vpop.permute.xlu0 %3134
        %3136 = vrot.lane.b32.xlu0 %v3112, 90
        %v3137 = vpop.permute.xlu0 %3136
        %3138 = vrot.lane.b32.xlu0 %v3113, 90
        %v3139 = vpop.permute.xlu0 %3138
        %3140 = vrot.lane.b32.xlu0 %v3114, 90
        %v3141 = vpop.permute.xlu0 %3140
        %3142 = vrot.lane.b32.xlu0 %v3115, 90
        %v3143 = vpop.permute.xlu0 %3142
        %3144 = vrot.lane.b32.xlu0 %v3116, 90
        %v3145 = vpop.permute.xlu0 %3144
        %3146 = vrot.lane.b32.xlu0 %v3117, 90
        %v3147 = vpop.permute.xlu0 %3146
        %v3148 = vrot.slane %v3129, 4
        %v3149 = vrot.slane %v3131, 4
        %v3150 = vrot.slane %v3133, 4
        %v3151 = vrot.slane %v3135, 4
        %v3152 = vrot.slane %v3137, 4
        %v3153 = vrot.slane %v3139, 4
        %v3154 = vrot.slane %v3141, 4
        %v3155 = vrot.slane %v3143, 4
        %v3156 = vrot.slane %v3145, 4
        %v3157 = vrot.slane %v3147, 4
        %v3158 = vsel %vm1429, %v3148, %v3149
        %vm3159 = vcmask 736256
        %v3160 = vsel %vm3159, %v3129, %v3158
        %v3161 = vsel %vm1429, %v3149, %v3150
        %v3162 = vsel %vm3159, %v3131, %v3161
        %v3163 = vsel %vm1429, %v3150, %v3151
        %v3164 = vsel %vm3159, %v3133, %v3163
        %v3165 = vsel %vm1429, %v3151, %v3152
        %v3166 = vsel %vm3159, %v3135, %v3165
        %v3167 = vsel %vm1429, %v3153, %v3154
        %v3168 = vsel %vm3159, %v3139, %v3167
        %v3169 = vsel %vm1429, %v3154, %v3155
        %v3170 = vsel %vm3159, %v3141, %v3169
        %v3171 = vsel %vm1429, %v3155, %v3156
        %v3172 = vsel %vm3159, %v3143, %v3171
        %v3173 = vsel %vm1429, %v3156, %v3157
        %v3174 = vsel %vm3159, %v3145, %v3173
        %3183 = vst [vmem:[#allocation4 + $0x5c0] sm:$0xff] %v3160
        %3184 = vst [vmem:[#allocation4 + $0x5c8] sm:$0xff] %v3162
        %3185 = vst [vmem:[#allocation4 + $0x5d0] sm:$0xff] %v3164
        %3186 = vst.msk [vmem:[#allocation4 + $0x5d8] sm:$0xff] %vm1383, %v3166
        %3187 = vst [vmem:[#allocation4 + $0x5e0] sm:$0xff] %v3168
        %3188 = vst [vmem:[#allocation4 + $0x5e8] sm:$0xff] %v3170
        %3189 = vst [vmem:[#allocation4 + $0x5f0] sm:$0xff] %v3172
        %3190 = vst.msk [vmem:[#allocation4 + $0x5f8] sm:$0xff] %vm1383, %v3174
        %v3191 = vld [vmem:[#allocation3 + $0x8] sm:$0xff]
        %v3192 = vld [vmem:[#allocation3 + $0x10] sm:$0xff]
        %v3193 = vld [vmem:[#allocation3 + $0x18] sm:$0xff]
        %v3194 = vld [vmem:[#allocation3 + $0x20] sm:$0xff]
        %v3195 = vld [vmem:[#allocation3 + $0x28] sm:$0xf]
        %v3196 = vld [vmem:[#allocation3 + $0x34] sm:$0xff]
        %v3197 = vld [vmem:[#allocation3 + $0x3c] sm:$0xff]
        %v3198 = vld [vmem:[#allocation3 + $0x44] sm:$0xff]
        %v3199 = vld [vmem:[#allocation3 + $0x4c] sm:$0xff]
        %v3200 = vld [vmem:[#allocation3 + $0x54] sm:$0xf]
        %3211 = vrot.lane.b32.xlu0 %v3191, 88
        %v3212 = vpop.permute.xlu0 %3211
        %3213 = vrot.lane.b32.xlu0 %v3192, 88
        %v3214 = vpop.permute.xlu0 %3213
        %3215 = vrot.lane.b32.xlu0 %v3193, 88
        %v3216 = vpop.permute.xlu0 %3215
        %3217 = vrot.lane.b32.xlu0 %v3194, 88
        %v3218 = vpop.permute.xlu0 %3217
        %3219 = vrot.lane.b32.xlu0 %v3195, 88
        %v3220 = vpop.permute.xlu0 %3219
        %3221 = vrot.lane.b32.xlu0 %v3196, 88
        %v3222 = vpop.permute.xlu0 %3221
        %3223 = vrot.lane.b32.xlu0 %v3197, 88
        %v3224 = vpop.permute.xlu0 %3223
        %3225 = vrot.lane.b32.xlu0 %v3198, 88
        %v3226 = vpop.permute.xlu0 %3225
        %3227 = vrot.lane.b32.xlu0 %v3199, 88
        %v3228 = vpop.permute.xlu0 %3227
        %3229 = vrot.lane.b32.xlu0 %v3200, 88
        %v3230 = vpop.permute.xlu0 %3229
        %v3231 = vrot.slane %v3212, 4
        %v3232 = vrot.slane %v3214, 4
        %v3233 = vrot.slane %v3216, 4
        %v3234 = vrot.slane %v3218, 4
        %v3235 = vrot.slane %v3220, 4
        %v3236 = vrot.slane %v3222, 4
        %v3237 = vrot.slane %v3224, 4
        %v3238 = vrot.slane %v3226, 4
        %v3239 = vrot.slane %v3228, 4
        %v3240 = vrot.slane %v3230, 4
        %v3241 = vsel %vm1429, %v3231, %v3232
        %v3242 = vsel %vm1262, %v3212, %v3241
        %v3243 = vsel %vm1429, %v3232, %v3233
        %v3244 = vsel %vm1262, %v3214, %v3243
        %v3245 = vsel %vm1429, %v3233, %v3234
        %v3246 = vsel %vm1262, %v3216, %v3245
        %v3247 = vsel %vm1429, %v3234, %v3235
        %v3248 = vsel %vm1262, %v3218, %v3247
        %v3249 = vsel %vm1429, %v3236, %v3237
        %v3250 = vsel %vm1262, %v3222, %v3249
        %v3251 = vsel %vm1429, %v3237, %v3238
        %v3252 = vsel %vm1262, %v3224, %v3251
        %v3253 = vsel %vm1429, %v3238, %v3239
        %v3254 = vsel %vm1262, %v3226, %v3253
        %v3255 = vsel %vm1429, %v3239, %v3240
        %v3256 = vsel %vm1262, %v3228, %v3255
        %3265 = vst [vmem:[#allocation4 + $0x600] sm:$0xff] %v3242
        %3266 = vst [vmem:[#allocation4 + $0x608] sm:$0xff] %v3244
        %3267 = vst [vmem:[#allocation4 + $0x610] sm:$0xff] %v3246
        %3268 = vst.msk [vmem:[#allocation4 + $0x618] sm:$0xff] %vm1383, %v3248
        %3269 = vst [vmem:[#allocation4 + $0x620] sm:$0xff] %v3250
        %3270 = vst [vmem:[#allocation4 + $0x628] sm:$0xff] %v3252
        %3271 = vst [vmem:[#allocation4 + $0x630] sm:$0xff] %v3254
        %3272 = vst.msk [vmem:[#allocation4 + $0x638] sm:$0xff] %vm1383, %v3256
        %v3273 = vld [vmem:[%s3] sm:$0xff]
        %v3274 = vld [vmem:[%s3 + $0x8] sm:$0xff]
        %v3275 = vld [vmem:[%s3 + $0x10] sm:$0xff]
        %v3276 = vld [vmem:[%s3 + $0x18] sm:$0xff]
        %v3277 = vld [vmem:[%s3 + $0x20] sm:$0xff]
        %v3278 = vld [vmem:[%s3 + $0x28] sm:$0xff]
        %v3279 = vld [vmem:[%s3 + $0x30] sm:$0xff]
        %v3280 = vld [vmem:[%s3 + $0x38] sm:$0xff]
        %v3281 = vld [vmem:[#allocation4] sm:$0xff]
        %v3282 = vld [vmem:[#allocation4 + $0x8] sm:$0xff]
        %v3283 = vld [vmem:[#allocation4 + $0x10] sm:$0xff]
        %v3284 = vld [vmem:[#allocation4 + $0x18] sm:$0xff]
        %v3285 = vld [vmem:[#allocation4 + $0x20] sm:$0xff]
        %v3286 = vld [vmem:[#allocation4 + $0x28] sm:$0xff]
        %v3287 = vld [vmem:[#allocation4 + $0x30] sm:$0xff]
        %v3288 = vld [vmem:[#allocation4 + $0x38] sm:$0xff]
        %v3289 = vld [vmem:[#allocation4 + $0x40] sm:$0xff]
        %v3290 = vld [vmem:[#allocation4 + $0x48] sm:$0xff]
        %v3291 = vld [vmem:[#allocation4 + $0x50] sm:$0xff]
        %v3292 = vld [vmem:[#allocation4 + $0x58] sm:$0xff]
        %v3293 = vld [vmem:[#allocation4 + $0x60] sm:$0xff]
        %v3294 = vld [vmem:[#allocation4 + $0x68] sm:$0xff]
        %v3295 = vld [vmem:[#allocation4 + $0x70] sm:$0xff]
        %v3296 = vld [vmem:[#allocation4 + $0x78] sm:$0xff]
        %v3297 = vld [vmem:[#allocation4 + $0x80] sm:$0xff]
        %v3298 = vld [vmem:[#allocation4 + $0x88] sm:$0xff]
        %v3299 = vld [vmem:[#allocation4 + $0x90] sm:$0xff]
        %v3300 = vld [vmem:[#allocation4 + $0x98] sm:$0xff]
        %v3301 = vld [vmem:[#allocation4 + $0xa0] sm:$0xff]
        %v3302 = vld [vmem:[#allocation4 + $0xa8] sm:$0xff]
        %v3303 = vld [vmem:[#allocation4 + $0xb0] sm:$0xff]
        %v3304 = vld [vmem:[#allocation4 + $0xb8] sm:$0xff]
        %v3305 = vld [vmem:[#allocation4 + $0xc0] sm:$0xff]
        %v3306 = vld [vmem:[#allocation4 + $0xc8] sm:$0xff]
        %v3307 = vld [vmem:[#allocation4 + $0xd0] sm:$0xff]
        %v3308 = vld [vmem:[#allocation4 + $0xd8] sm:$0xff]
        %v3309 = vld [vmem:[#allocation4 + $0xe0] sm:$0xff]
        %v3310 = vld [vmem:[#allocation4 + $0xe8] sm:$0xff]
        %v3311 = vld [vmem:[#allocation4 + $0xf0] sm:$0xff]
        %v3312 = vld [vmem:[#allocation4 + $0xf8] sm:$0xff]
        %v3313 = vld [vmem:[#allocation4 + $0x100] sm:$0xff]
        %v3314 = vld [vmem:[#allocation4 + $0x108] sm:$0xff]
        %v3315 = vld [vmem:[#allocation4 + $0x110] sm:$0xff]
        %v3316 = vld [vmem:[#allocation4 + $0x118] sm:$0xff]
        %v3317 = vld [vmem:[#allocation4 + $0x120] sm:$0xff]
        %v3318 = vld [vmem:[#allocation4 + $0x128] sm:$0xff]
        %v3319 = vld [vmem:[#allocation4 + $0x130] sm:$0xff]
        %v3320 = vld [vmem:[#allocation4 + $0x138] sm:$0xff]
        %v3321 = vld [vmem:[#allocation4 + $0x140] sm:$0xff]
        %v3322 = vld [vmem:[#allocation4 + $0x148] sm:$0xff]
        %v3323 = vld [vmem:[#allocation4 + $0x150] sm:$0xff]
        %v3324 = vld [vmem:[#allocation4 + $0x158] sm:$0xff]
        %v3325 = vld [vmem:[#allocation4 + $0x160] sm:$0xff]
        %v3326 = vld [vmem:[#allocation4 + $0x168] sm:$0xff]
        %v3327 = vld [vmem:[#allocation4 + $0x170] sm:$0xff]
        %v3328 = vld [vmem:[#allocation4 + $0x178] sm:$0xff]
        %v3329 = vld [vmem:[#allocation4 + $0x180] sm:$0xff]
        %v3330 = vld [vmem:[#allocation4 + $0x188] sm:$0xff]
        %v3331 = vld [vmem:[#allocation4 + $0x190] sm:$0xff]
        %v3332 = vld [vmem:[#allocation4 + $0x198] sm:$0xff]
        %v3333 = vld [vmem:[#allocation4 + $0x1a0] sm:$0xff]
        %v3334 = vld [vmem:[#allocation4 + $0x1a8] sm:$0xff]
        %v3335 = vld [vmem:[#allocation4 + $0x1b0] sm:$0xff]
        %v3336 = vld [vmem:[#allocation4 + $0x1b8] sm:$0xff]
        %v3337 = vld [vmem:[#allocation4 + $0x1c0] sm:$0xff]
        %v3338 = vld [vmem:[#allocation4 + $0x1c8] sm:$0xff]
        %v3339 = vld [vmem:[#allocation4 + $0x1d0] sm:$0xff]
        %v3340 = vld [vmem:[#allocation4 + $0x1d8] sm:$0xff]
        %v3341 = vld [vmem:[#allocation4 + $0x1e0] sm:$0xff]
        %v3342 = vld [vmem:[#allocation4 + $0x1e8] sm:$0xff]
        %v3343 = vld [vmem:[#allocation4 + $0x1f0] sm:$0xff]
        %v3344 = vld [vmem:[#allocation4 + $0x1f8] sm:$0xff]
        %v3345 = vld [vmem:[#allocation4 + $0x200] sm:$0xff]
        %v3346 = vld [vmem:[#allocation4 + $0x208] sm:$0xff]
        %v3347 = vld [vmem:[#allocation4 + $0x210] sm:$0xff]
        %v3348 = vld [vmem:[#allocation4 + $0x218] sm:$0xff]
        %v3349 = vld [vmem:[#allocation4 + $0x220] sm:$0xff]
        %v3350 = vld [vmem:[#allocation4 + $0x228] sm:$0xff]
        %v3351 = vld [vmem:[#allocation4 + $0x230] sm:$0xff]
        %v3352 = vld [vmem:[#allocation4 + $0x238] sm:$0xff]
        %v3353 = vld [vmem:[#allocation4 + $0x240] sm:$0xff]
        %v3354 = vld [vmem:[#allocation4 + $0x248] sm:$0xff]
        %v3355 = vld [vmem:[#allocation4 + $0x250] sm:$0xff]
        %v3356 = vld [vmem:[#allocation4 + $0x258] sm:$0xff]
        %v3357 = vld [vmem:[#allocation4 + $0x260] sm:$0xff]
        %v3358 = vld [vmem:[#allocation4 + $0x268] sm:$0xff]
        %v3359 = vld [vmem:[#allocation4 + $0x270] sm:$0xff]
        %v3360 = vld [vmem:[#allocation4 + $0x278] sm:$0xff]
        %v3361 = vld [vmem:[#allocation4 + $0x280] sm:$0xff]
        %v3362 = vld [vmem:[#allocation4 + $0x288] sm:$0xff]
        %v3363 = vld [vmem:[#allocation4 + $0x290] sm:$0xff]
        %v3364 = vld [vmem:[#allocation4 + $0x298] sm:$0xff]
        %v3365 = vld [vmem:[#allocation4 + $0x2a0] sm:$0xff]
        %v3366 = vld [vmem:[#allocation4 + $0x2a8] sm:$0xff]
        %v3367 = vld [vmem:[#allocation4 + $0x2b0] sm:$0xff]
        %v3368 = vld [vmem:[#allocation4 + $0x2b8] sm:$0xff]
        %v3369 = vld [vmem:[#allocation4 + $0x2c0] sm:$0xff]
        %v3370 = vld [vmem:[#allocation4 + $0x2c8] sm:$0xff]
        %v3371 = vld [vmem:[#allocation4 + $0x2d0] sm:$0xff]
        %v3372 = vld [vmem:[#allocation4 + $0x2d8] sm:$0xff]
        %v3373 = vld [vmem:[#allocation4 + $0x2e0] sm:$0xff]
        %v3374 = vld [vmem:[#allocation4 + $0x2e8] sm:$0xff]
        %v3375 = vld [vmem:[#allocation4 + $0x2f0] sm:$0xff]
        %v3376 = vld [vmem:[#allocation4 + $0x2f8] sm:$0xff]
        %v3377 = vld [vmem:[#allocation4 + $0x300] sm:$0xff]
        %v3378 = vld [vmem:[#allocation4 + $0x308] sm:$0xff]
        %v3379 = vld [vmem:[#allocation4 + $0x310] sm:$0xff]
        %v3380 = vld [vmem:[#allocation4 + $0x318] sm:$0xff]
        %v3381 = vld [vmem:[#allocation4 + $0x320] sm:$0xff]
        %v3382 = vld [vmem:[#allocation4 + $0x328] sm:$0xff]
        %v3383 = vld [vmem:[#allocation4 + $0x330] sm:$0xff]
        %v3384 = vld [vmem:[#allocation4 + $0x338] sm:$0xff]
        %v3385 = vld [vmem:[#allocation4 + $0x340] sm:$0xff]
        %v3386 = vld [vmem:[#allocation4 + $0x348] sm:$0xff]
        %v3387 = vld [vmem:[#allocation4 + $0x350] sm:$0xff]
        %v3388 = vld [vmem:[#allocation4 + $0x358] sm:$0xff]
        %v3389 = vld [vmem:[#allocation4 + $0x360] sm:$0xff]
        %v3390 = vld [vmem:[#allocation4 + $0x368] sm:$0xff]
        %v3391 = vld [vmem:[#allocation4 + $0x370] sm:$0xff]
        %v3392 = vld [vmem:[#allocation4 + $0x378] sm:$0xff]
        %v3393 = vld [vmem:[#allocation4 + $0x380] sm:$0xff]
        %v3394 = vld [vmem:[#allocation4 + $0x388] sm:$0xff]
        %v3395 = vld [vmem:[#allocation4 + $0x390] sm:$0xff]
        %v3396 = vld [vmem:[#allocation4 + $0x398] sm:$0xff]
        %v3397 = vld [vmem:[#allocation4 + $0x3a0] sm:$0xff]
        %v3398 = vld [vmem:[#allocation4 + $0x3a8] sm:$0xff]
        %v3399 = vld [vmem:[#allocation4 + $0x3b0] sm:$0xff]
        %v3400 = vld [vmem:[#allocation4 + $0x3b8] sm:$0xff]
        %v3401 = vld [vmem:[#allocation4 + $0x3c0] sm:$0xff]
        %v3402 = vld [vmem:[#allocation4 + $0x3c8] sm:$0xff]
        %v3403 = vld [vmem:[#allocation4 + $0x3d0] sm:$0xff]
        %v3404 = vld [vmem:[#allocation4 + $0x3d8] sm:$0xff]
        %v3405 = vld [vmem:[#allocation4 + $0x3e0] sm:$0xff]
        %v3406 = vld [vmem:[#allocation4 + $0x3e8] sm:$0xff]
        %v3407 = vld [vmem:[#allocation4 + $0x3f0] sm:$0xff]
        %v3408 = vld [vmem:[#allocation4 + $0x3f8] sm:$0xff]
        %v3409 = vld [vmem:[#allocation4 + $0x400] sm:$0xff]
        %v3410 = vld [vmem:[#allocation4 + $0x408] sm:$0xff]
        %v3411 = vld [vmem:[#allocation4 + $0x410] sm:$0xff]
        %v3412 = vld [vmem:[#allocation4 + $0x418] sm:$0xff]
        %v3413 = vld [vmem:[#allocation4 + $0x420] sm:$0xff]
        %v3414 = vld [vmem:[#allocation4 + $0x428] sm:$0xff]
        %v3415 = vld [vmem:[#allocation4 + $0x430] sm:$0xff]
        %v3416 = vld [vmem:[#allocation4 + $0x438] sm:$0xff]
        %v3417 = vld [vmem:[#allocation4 + $0x440] sm:$0xff]
        %v3418 = vld [vmem:[#allocation4 + $0x448] sm:$0xff]
        %v3419 = vld [vmem:[#allocation4 + $0x450] sm:$0xff]
        %v3420 = vld [vmem:[#allocation4 + $0x458] sm:$0xff]
        %v3421 = vld [vmem:[#allocation4 + $0x460] sm:$0xff]
        %v3422 = vld [vmem:[#allocation4 + $0x468] sm:$0xff]
        %v3423 = vld [vmem:[#allocation4 + $0x470] sm:$0xff]
        %v3424 = vld [vmem:[#allocation4 + $0x478] sm:$0xff]
        %v3425 = vld [vmem:[#allocation4 + $0x480] sm:$0xff]
        %v3426 = vld [vmem:[#allocation4 + $0x488] sm:$0xff]
        %v3427 = vld [vmem:[#allocation4 + $0x490] sm:$0xff]
        %v3428 = vld [vmem:[#allocation4 + $0x498] sm:$0xff]
        %v3429 = vld [vmem:[#allocation4 + $0x4a0] sm:$0xff]
        %v3430 = vld [vmem:[#allocation4 + $0x4a8] sm:$0xff]
        %v3431 = vld [vmem:[#allocation4 + $0x4b0] sm:$0xff]
        %v3432 = vld [vmem:[#allocation4 + $0x4b8] sm:$0xff]
        %v3433 = vld [vmem:[#allocation4 + $0x4c0] sm:$0xff]
        %v3434 = vld [vmem:[#allocation4 + $0x4c8] sm:$0xff]
        %v3435 = vld [vmem:[#allocation4 + $0x4d0] sm:$0xff]
        %v3436 = vld [vmem:[#allocation4 + $0x4d8] sm:$0xff]
        %v3437 = vld [vmem:[#allocation4 + $0x4e0] sm:$0xff]
        %v3438 = vld [vmem:[#allocation4 + $0x4e8] sm:$0xff]
        %v3439 = vld [vmem:[#allocation4 + $0x4f0] sm:$0xff]
        %v3440 = vld [vmem:[#allocation4 + $0x4f8] sm:$0xff]
        %v3441 = vld [vmem:[#allocation4 + $0x500] sm:$0xff]
        %v3442 = vld [vmem:[#allocation4 + $0x508] sm:$0xff]
        %v3443 = vld [vmem:[#allocation4 + $0x510] sm:$0xff]
        %v3444 = vld [vmem:[#allocation4 + $0x518] sm:$0xff]
        %v3445 = vld [vmem:[#allocation4 + $0x520] sm:$0xff]
        %v3446 = vld [vmem:[#allocation4 + $0x528] sm:$0xff]
        %v3447 = vld [vmem:[#allocation4 + $0x530] sm:$0xff]
        %v3448 = vld [vmem:[#allocation4 + $0x538] sm:$0xff]
        %v3449 = vld [vmem:[#allocation4 + $0x540] sm:$0xff]
        %v3450 = vld [vmem:[#allocation4 + $0x548] sm:$0xff]
        %v3451 = vld [vmem:[#allocation4 + $0x550] sm:$0xff]
        %v3452 = vld [vmem:[#allocation4 + $0x558] sm:$0xff]
        %v3453 = vld [vmem:[#allocation4 + $0x560] sm:$0xff]
        %v3454 = vld [vmem:[#allocation4 + $0x568] sm:$0xff]
        %v3455 = vld [vmem:[#allocation4 + $0x570] sm:$0xff]
        %v3456 = vld [vmem:[#allocation4 + $0x578] sm:$0xff]
        %v3457 = vld [vmem:[#allocation4 + $0x580] sm:$0xff]
        %v3458 = vld [vmem:[#allocation4 + $0x588] sm:$0xff]
        %v3459 = vld [vmem:[#allocation4 + $0x590] sm:$0xff]
        %v3460 = vld [vmem:[#allocation4 + $0x598] sm:$0xff]
        %v3461 = vld [vmem:[#allocation4 + $0x5a0] sm:$0xff]
        %v3462 = vld [vmem:[#allocation4 + $0x5a8] sm:$0xff]
        %v3463 = vld [vmem:[#allocation4 + $0x5b0] sm:$0xff]
        %v3464 = vld [vmem:[#allocation4 + $0x5b8] sm:$0xff]
        %v3465 = vld [vmem:[#allocation4 + $0x5c0] sm:$0xff]
        %v3466 = vld [vmem:[#allocation4 + $0x5c8] sm:$0xff]
        %v3467 = vld [vmem:[#allocation4 + $0x5d0] sm:$0xff]
        %v3468 = vld [vmem:[#allocation4 + $0x5d8] sm:$0xff]
        %v3469 = vld [vmem:[#allocation4 + $0x5e0] sm:$0xff]
        %v3470 = vld [vmem:[#allocation4 + $0x5e8] sm:$0xff]
        %v3471 = vld [vmem:[#allocation4 + $0x5f0] sm:$0xff]
        %v3472 = vld [vmem:[#allocation4 + $0x5f8] sm:$0xff]
        %v3473 = vld [vmem:[#allocation4 + $0x600] sm:$0xff]
        %v3474 = vld [vmem:[#allocation4 + $0x608] sm:$0xff]
        %v3475 = vld [vmem:[#allocation4 + $0x610] sm:$0xff]
        %v3476 = vld [vmem:[#allocation4 + $0x618] sm:$0xff]
        %v3477 = vld [vmem:[#allocation4 + $0x620] sm:$0xff]
        %v3478 = vld [vmem:[#allocation4 + $0x628] sm:$0xff]
        %v3479 = vld [vmem:[#allocation4 + $0x630] sm:$0xff]
        %v3480 = vld [vmem:[#allocation4 + $0x638] sm:$0xff]
        %v3481 = vld [vmem:[%s4] sm:$0xff]
        %v3482 = vld [vmem:[%s4 + $0x8] sm:$0xff]
        %v3483 = vld [vmem:[%s4 + $0x10] sm:$0xff]
        %v3484 = vld [vmem:[%s4 + $0x18] sm:$0xff]
        %3486 = vset.pattern.permute.xlu0 0
        %3487 = vperm.xlu0 %3486, %v3481
        %v3488 = vpop.permute.xlu0 %3487
        %3491 = vset.pattern.permute.xlu0 0
        %3492 = vperm.xlu0 %3491, %v3482
        %v3493 = vpop.permute.xlu0 %3492
        %3496 = vset.pattern.permute.xlu0 0
        %3497 = vperm.xlu0 %3496, %v3483
        %v3498 = vpop.permute.xlu0 %3497
        %3501 = vset.pattern.permute.xlu0 0
        %3502 = vperm.xlu0 %3501, %v3484
        %v3503 = vpop.permute.xlu0 %3502
        %v3513 = vunpack.c.l.b16 %v3273
        %v3514 = vunpack.c.h.b16 %v3273
        %v3515 = vunpack.c.l.b16 %v3274
        %v3516 = vunpack.c.h.b16 %v3274
        %v3517 = vunpack.c.l.b16 %v3275
        %v3518 = vunpack.c.h.b16 %v3275
        %v3519 = vunpack.c.l.b16 %v3276
        %v3520 = vunpack.c.h.b16 %v3276
        %v3521 = vunpack.c.l.b16 %v3277
        %v3522 = vunpack.c.h.b16 %v3277
        %v3523 = vunpack.c.l.b16 %v3278
        %v3524 = vunpack.c.h.b16 %v3278
        %v3525 = vunpack.c.l.b16 %v3279
        %v3526 = vunpack.c.h.b16 %v3279
        %v3527 = vunpack.c.l.b16 %v3280
        %v3528 = vunpack.c.h.b16 %v3280
        %v3529 = vpack.c.b16 %v3517, %v3513
        %v3530 = vpack.c.b16 %v3518, %v3514
        %v3531 = vpack.c.b16 %v3519, %v3515
        %v3532 = vpack.c.b16 %v3520, %v3516
        %v3533 = vpack.c.b16 %v3525, %v3521
        %v3534 = vpack.c.b16 %v3526, %v3522
        %v3535 = vpack.c.b16 %v3527, %v3523
        %v3536 = vpack.c.b16 %v3528, %v3524
        %v3743 = vunpack.c.l.b16 %v3281
        %v3744 = vunpack.c.h.b16 %v3281
        %v3745 = vunpack.c.l.b16 %v3282
        %v3746 = vunpack.c.h.b16 %v3282
        %v3747 = vunpack.c.l.b16 %v3283
        %v3748 = vunpack.c.h.b16 %v3283
        %v3749 = vunpack.c.l.b16 %v3284
        %v3750 = vunpack.c.h.b16 %v3284
        %v3751 = vunpack.c.l.b16 %v3285
        %v3752 = vunpack.c.h.b16 %v3285
        %v3753 = vunpack.c.l.b16 %v3286
        %v3754 = vunpack.c.h.b16 %v3286
        %v3755 = vunpack.c.l.b16 %v3287
        %v3756 = vunpack.c.h.b16 %v3287
        %v3757 = vunpack.c.l.b16 %v3288
        %v3758 = vunpack.c.h.b16 %v3288
        %v3759 = vunpack.c.l.b16 %v3289
        %v3760 = vunpack.c.h.b16 %v3289
        %v3761 = vunpack.c.l.b16 %v3290
        %v3762 = vunpack.c.h.b16 %v3290
        %v3763 = vunpack.c.l.b16 %v3291
        %v3764 = vunpack.c.h.b16 %v3291
        %v3765 = vunpack.c.l.b16 %v3292
        %v3766 = vunpack.c.h.b16 %v3292
        %v3767 = vunpack.c.l.b16 %v3293
        %v3768 = vunpack.c.h.b16 %v3293
        %v3769 = vunpack.c.l.b16 %v3294
        %v3770 = vunpack.c.h.b16 %v3294
        %v3771 = vunpack.c.l.b16 %v3295
        %v3772 = vunpack.c.h.b16 %v3295
        %v3773 = vunpack.c.l.b16 %v3296
        %v3774 = vunpack.c.h.b16 %v3296
        %v3775 = vunpack.c.l.b16 %v3297
        %v3776 = vunpack.c.h.b16 %v3297
        %v3777 = vunpack.c.l.b16 %v3298
        %v3778 = vunpack.c.h.b16 %v3298
        %v3779 = vunpack.c.l.b16 %v3299
        %v3780 = vunpack.c.h.b16 %v3299
        %v3781 = vunpack.c.l.b16 %v3300
        %v3782 = vunpack.c.h.b16 %v3300
        %v3783 = vunpack.c.l.b16 %v3301
        %v3784 = vunpack.c.h.b16 %v3301
        %v3785 = vunpack.c.l.b16 %v3302
        %v3786 = vunpack.c.h.b16 %v3302
        %v3787 = vunpack.c.l.b16 %v3303
        %v3788 = vunpack.c.h.b16 %v3303
        %v3789 = vunpack.c.l.b16 %v3304
        %v3790 = vunpack.c.h.b16 %v3304
        %v3791 = vunpack.c.l.b16 %v3305
        %v3792 = vunpack.c.h.b16 %v3305
        %v3793 = vunpack.c.l.b16 %v3306
        %v3794 = vunpack.c.h.b16 %v3306
        %v3795 = vunpack.c.l.b16 %v3307
        %v3796 = vunpack.c.h.b16 %v3307
        %v3797 = vunpack.c.l.b16 %v3308
        %v3798 = vunpack.c.h.b16 %v3308
        %v3799 = vunpack.c.l.b16 %v3309
        %v3800 = vunpack.c.h.b16 %v3309
        %v3801 = vunpack.c.l.b16 %v3310
        %v3802 = vunpack.c.h.b16 %v3310
        %v3803 = vunpack.c.l.b16 %v3311
        %v3804 = vunpack.c.h.b16 %v3311
        %v3805 = vunpack.c.l.b16 %v3312
        %v3806 = vunpack.c.h.b16 %v3312
        %v3807 = vunpack.c.l.b16 %v3313
        %v3808 = vunpack.c.h.b16 %v3313
        %v3809 = vunpack.c.l.b16 %v3314
        %v3810 = vunpack.c.h.b16 %v3314
        %v3811 = vunpack.c.l.b16 %v3315
        %v3812 = vunpack.c.h.b16 %v3315
        %v3813 = vunpack.c.l.b16 %v3316
        %v3814 = vunpack.c.h.b16 %v3316
        %v3815 = vunpack.c.l.b16 %v3317
        %v3816 = vunpack.c.h.b16 %v3317
        %v3817 = vunpack.c.l.b16 %v3318
        %v3818 = vunpack.c.h.b16 %v3318
        %v3819 = vunpack.c.l.b16 %v3319
        %v3820 = vunpack.c.h.b16 %v3319
        %v3821 = vunpack.c.l.b16 %v3320
        %v3822 = vunpack.c.h.b16 %v3320
        %v3823 = vunpack.c.l.b16 %v3321
        %v3824 = vunpack.c.h.b16 %v3321
        %v3825 = vunpack.c.l.b16 %v3322
        %v3826 = vunpack.c.h.b16 %v3322
        %v3827 = vunpack.c.l.b16 %v3323
        %v3828 = vunpack.c.h.b16 %v3323
        %v3829 = vunpack.c.l.b16 %v3324
        %v3830 = vunpack.c.h.b16 %v3324
        %v3831 = vunpack.c.l.b16 %v3325
        %v3832 = vunpack.c.h.b16 %v3325
        %v3833 = vunpack.c.l.b16 %v3326
        %v3834 = vunpack.c.h.b16 %v3326
        %v3835 = vunpack.c.l.b16 %v3327
        %v3836 = vunpack.c.h.b16 %v3327
        %v3837 = vunpack.c.l.b16 %v3328
        %v3838 = vunpack.c.h.b16 %v3328
        %v3839 = vunpack.c.l.b16 %v3329
        %v3840 = vunpack.c.h.b16 %v3329
        %v3841 = vunpack.c.l.b16 %v3330
        %v3842 = vunpack.c.h.b16 %v3330
        %v3843 = vunpack.c.l.b16 %v3331
        %v3844 = vunpack.c.h.b16 %v3331
        %v3845 = vunpack.c.l.b16 %v3332
        %v3846 = vunpack.c.h.b16 %v3332
        %v3847 = vunpack.c.l.b16 %v3333
        %v3848 = vunpack.c.h.b16 %v3333
        %v3849 = vunpack.c.l.b16 %v3334
        %v3850 = vunpack.c.h.b16 %v3334
        %v3851 = vunpack.c.l.b16 %v3335
        %v3852 = vunpack.c.h.b16 %v3335
        %v3853 = vunpack.c.l.b16 %v3336
        %v3854 = vunpack.c.h.b16 %v3336
        %v3855 = vunpack.c.l.b16 %v3337
        %v3856 = vunpack.c.h.b16 %v3337
        %v3857 = vunpack.c.l.b16 %v3338
        %v3858 = vunpack.c.h.b16 %v3338
        %v3859 = vunpack.c.l.b16 %v3339
        %v3860 = vunpack.c.h.b16 %v3339
        %v3861 = vunpack.c.l.b16 %v3340
        %v3862 = vunpack.c.h.b16 %v3340
        %v3863 = vunpack.c.l.b16 %v3341
        %v3864 = vunpack.c.h.b16 %v3341
        %v3865 = vunpack.c.l.b16 %v3342
        %v3866 = vunpack.c.h.b16 %v3342
        %v3867 = vunpack.c.l.b16 %v3343
        %v3868 = vunpack.c.h.b16 %v3343
        %v3869 = vunpack.c.l.b16 %v3344
        %v3870 = vunpack.c.h.b16 %v3344
        %v3871 = vunpack.c.l.b16 %v3345
        %v3872 = vunpack.c.h.b16 %v3345
        %v3873 = vunpack.c.l.b16 %v3346
        %v3874 = vunpack.c.h.b16 %v3346
        %v3875 = vunpack.c.l.b16 %v3347
        %v3876 = vunpack.c.h.b16 %v3347
        %v3877 = vunpack.c.l.b16 %v3348
        %v3878 = vunpack.c.h.b16 %v3348
        %v3879 = vunpack.c.l.b16 %v3349
        %v3880 = vunpack.c.h.b16 %v3349
        %v3881 = vunpack.c.l.b16 %v3350
        %v3882 = vunpack.c.h.b16 %v3350
        %v3883 = vunpack.c.l.b16 %v3351
        %v3884 = vunpack.c.h.b16 %v3351
        %v3885 = vunpack.c.l.b16 %v3352
        %v3886 = vunpack.c.h.b16 %v3352
        %v3887 = vunpack.c.l.b16 %v3353
        %v3888 = vunpack.c.h.b16 %v3353
        %v3889 = vunpack.c.l.b16 %v3354
        %v3890 = vunpack.c.h.b16 %v3354
        %v3891 = vunpack.c.l.b16 %v3355
        %v3892 = vunpack.c.h.b16 %v3355
        %v3893 = vunpack.c.l.b16 %v3356
        %v3894 = vunpack.c.h.b16 %v3356
        %v3895 = vunpack.c.l.b16 %v3357
        %v3896 = vunpack.c.h.b16 %v3357
        %v3897 = vunpack.c.l.b16 %v3358
        %v3898 = vunpack.c.h.b16 %v3358
        %v3899 = vunpack.c.l.b16 %v3359
        %v3900 = vunpack.c.h.b16 %v3359
        %v3901 = vunpack.c.l.b16 %v3360
        %v3902 = vunpack.c.h.b16 %v3360
        %v3903 = vunpack.c.l.b16 %v3361
        %v3904 = vunpack.c.h.b16 %v3361
        %v3905 = vunpack.c.l.b16 %v3362
        %v3906 = vunpack.c.h.b16 %v3362
        %v3907 = vunpack.c.l.b16 %v3363
        %v3908 = vunpack.c.h.b16 %v3363
        %v3909 = vunpack.c.l.b16 %v3364
        %v3910 = vunpack.c.h.b16 %v3364
        %v3911 = vunpack.c.l.b16 %v3365
        %v3912 = vunpack.c.h.b16 %v3365
        %v3913 = vunpack.c.l.b16 %v3366
        %v3914 = vunpack.c.h.b16 %v3366
        %v3915 = vunpack.c.l.b16 %v3367
        %v3916 = vunpack.c.h.b16 %v3367
        %v3917 = vunpack.c.l.b16 %v3368
        %v3918 = vunpack.c.h.b16 %v3368
        %v3919 = vunpack.c.l.b16 %v3369
        %v3920 = vunpack.c.h.b16 %v3369
        %v3921 = vunpack.c.l.b16 %v3370
        %v3922 = vunpack.c.h.b16 %v3370
        %v3923 = vunpack.c.l.b16 %v3371
        %v3924 = vunpack.c.h.b16 %v3371
        %v3925 = vunpack.c.l.b16 %v3372
        %v3926 = vunpack.c.h.b16 %v3372
        %v3927 = vunpack.c.l.b16 %v3373
        %v3928 = vunpack.c.h.b16 %v3373
        %v3929 = vunpack.c.l.b16 %v3374
        %v3930 = vunpack.c.h.b16 %v3374
        %v3931 = vunpack.c.l.b16 %v3375
        %v3932 = vunpack.c.h.b16 %v3375
        %v3933 = vunpack.c.l.b16 %v3376
        %v3934 = vunpack.c.h.b16 %v3376
        %v3935 = vunpack.c.l.b16 %v3377
        %v3936 = vunpack.c.h.b16 %v3377
        %v3937 = vunpack.c.l.b16 %v3378
        %v3938 = vunpack.c.h.b16 %v3378
        %v3939 = vunpack.c.l.b16 %v3379
        %v3940 = vunpack.c.h.b16 %v3379
        %v3941 = vunpack.c.l.b16 %v3380
        %v3942 = vunpack.c.h.b16 %v3380
        %v3943 = vunpack.c.l.b16 %v3381
        %v3944 = vunpack.c.h.b16 %v3381
        %v3945 = vunpack.c.l.b16 %v3382
        %v3946 = vunpack.c.h.b16 %v3382
        %v3947 = vunpack.c.l.b16 %v3383
        %v3948 = vunpack.c.h.b16 %v3383
        %v3949 = vunpack.c.l.b16 %v3384
        %v3950 = vunpack.c.h.b16 %v3384
        %v3951 = vunpack.c.l.b16 %v3385
        %v3952 = vunpack.c.h.b16 %v3385
        %v3953 = vunpack.c.l.b16 %v3386
        %v3954 = vunpack.c.h.b16 %v3386
        %v3955 = vunpack.c.l.b16 %v3387
        %v3956 = vunpack.c.h.b16 %v3387
        %v3957 = vunpack.c.l.b16 %v3388
        %v3958 = vunpack.c.h.b16 %v3388
        %v3959 = vunpack.c.l.b16 %v3389
        %v3960 = vunpack.c.h.b16 %v3389
        %v3961 = vunpack.c.l.b16 %v3390
        %v3962 = vunpack.c.h.b16 %v3390
        %v3963 = vunpack.c.l.b16 %v3391
        %v3964 = vunpack.c.h.b16 %v3391
        %v3965 = vunpack.c.l.b16 %v3392
        %v3966 = vunpack.c.h.b16 %v3392
        %v3967 = vunpack.c.l.b16 %v3393
        %v3968 = vunpack.c.h.b16 %v3393
        %v3969 = vunpack.c.l.b16 %v3394
        %v3970 = vunpack.c.h.b16 %v3394
        %v3971 = vunpack.c.l.b16 %v3395
        %v3972 = vunpack.c.h.b16 %v3395
        %v3973 = vunpack.c.l.b16 %v3396
        %v3974 = vunpack.c.h.b16 %v3396
        %v3975 = vunpack.c.l.b16 %v3397
        %v3976 = vunpack.c.h.b16 %v3397
        %v3977 = vunpack.c.l.b16 %v3398
        %v3978 = vunpack.c.h.b16 %v3398
        %v3979 = vunpack.c.l.b16 %v3399
        %v3980 = vunpack.c.h.b16 %v3399
        %v3981 = vunpack.c.l.b16 %v3400
        %v3982 = vunpack.c.h.b16 %v3400
        %v3983 = vunpack.c.l.b16 %v3401
        %v3984 = vunpack.c.h.b16 %v3401
        %v3985 = vunpack.c.l.b16 %v3402
        %v3986 = vunpack.c.h.b16 %v3402
        %v3987 = vunpack.c.l.b16 %v3403
        %v3988 = vunpack.c.h.b16 %v3403
        %v3989 = vunpack.c.l.b16 %v3404
        %v3990 = vunpack.c.h.b16 %v3404
        %v3991 = vunpack.c.l.b16 %v3405
        %v3992 = vunpack.c.h.b16 %v3405
        %v3993 = vunpack.c.l.b16 %v3406
        %v3994 = vunpack.c.h.b16 %v3406
        %v3995 = vunpack.c.l.b16 %v3407
        %v3996 = vunpack.c.h.b16 %v3407
        %v3997 = vunpack.c.l.b16 %v3408
        %v3998 = vunpack.c.h.b16 %v3408
        %v3999 = vunpack.c.l.b16 %v3409
        %v4000 = vunpack.c.h.b16 %v3409
        %v4001 = vunpack.c.l.b16 %v3410
        %v4002 = vunpack.c.h.b16 %v3410
        %v4003 = vunpack.c.l.b16 %v3411
        %v4004 = vunpack.c.h.b16 %v3411
        %v4005 = vunpack.c.l.b16 %v3412
        %v4006 = vunpack.c.h.b16 %v3412
        %v4007 = vunpack.c.l.b16 %v3413
        %v4008 = vunpack.c.h.b16 %v3413
        %v4009 = vunpack.c.l.b16 %v3414
        %v4010 = vunpack.c.h.b16 %v3414
        %v4011 = vunpack.c.l.b16 %v3415
        %v4012 = vunpack.c.h.b16 %v3415
        %v4013 = vunpack.c.l.b16 %v3416
        %v4014 = vunpack.c.h.b16 %v3416
        %v4015 = vunpack.c.l.b16 %v3417
        %v4016 = vunpack.c.h.b16 %v3417
        %v4017 = vunpack.c.l.b16 %v3418
        %v4018 = vunpack.c.h.b16 %v3418
        %v4019 = vunpack.c.l.b16 %v3419
        %v4020 = vunpack.c.h.b16 %v3419
        %v4021 = vunpack.c.l.b16 %v3420
        %v4022 = vunpack.c.h.b16 %v3420
        %v4023 = vunpack.c.l.b16 %v3421
        %v4024 = vunpack.c.h.b16 %v3421
        %v4025 = vunpack.c.l.b16 %v3422
        %v4026 = vunpack.c.h.b16 %v3422
        %v4027 = vunpack.c.l.b16 %v3423
        %v4028 = vunpack.c.h.b16 %v3423
        %v4029 = vunpack.c.l.b16 %v3424
        %v4030 = vunpack.c.h.b16 %v3424
        %v4031 = vunpack.c.l.b16 %v3425
        %v4032 = vunpack.c.h.b16 %v3425
        %v4033 = vunpack.c.l.b16 %v3426
        %v4034 = vunpack.c.h.b16 %v3426
        %v4035 = vunpack.c.l.b16 %v3427
        %v4036 = vunpack.c.h.b16 %v3427
        %v4037 = vunpack.c.l.b16 %v3428
        %v4038 = vunpack.c.h.b16 %v3428
        %v4039 = vunpack.c.l.b16 %v3429
        %v4040 = vunpack.c.h.b16 %v3429
        %v4041 = vunpack.c.l.b16 %v3430
        %v4042 = vunpack.c.h.b16 %v3430
        %v4043 = vunpack.c.l.b16 %v3431
        %v4044 = vunpack.c.h.b16 %v3431
        %v4045 = vunpack.c.l.b16 %v3432
        %v4046 = vunpack.c.h.b16 %v3432
        %v4047 = vunpack.c.l.b16 %v3433
        %v4048 = vunpack.c.h.b16 %v3433
        %v4049 = vunpack.c.l.b16 %v3434
        %v4050 = vunpack.c.h.b16 %v3434
        %v4051 = vunpack.c.l.b16 %v3435
        %v4052 = vunpack.c.h.b16 %v3435
        %v4053 = vunpack.c.l.b16 %v3436
        %v4054 = vunpack.c.h.b16 %v3436
        %v4055 = vunpack.c.l.b16 %v3437
        %v4056 = vunpack.c.h.b16 %v3437
        %v4057 = vunpack.c.l.b16 %v3438
        %v4058 = vunpack.c.h.b16 %v3438
        %v4059 = vunpack.c.l.b16 %v3439
        %v4060 = vunpack.c.h.b16 %v3439
        %v4061 = vunpack.c.l.b16 %v3440
        %v4062 = vunpack.c.h.b16 %v3440
        %v4063 = vunpack.c.l.b16 %v3441
        %v4064 = vunpack.c.h.b16 %v3441
        %v4065 = vunpack.c.l.b16 %v3442
        %v4066 = vunpack.c.h.b16 %v3442
        %v4067 = vunpack.c.l.b16 %v3443
        %v4068 = vunpack.c.h.b16 %v3443
        %v4069 = vunpack.c.l.b16 %v3444
        %v4070 = vunpack.c.h.b16 %v3444
        %v4071 = vunpack.c.l.b16 %v3445
        %v4072 = vunpack.c.h.b16 %v3445
        %v4073 = vunpack.c.l.b16 %v3446
        %v4074 = vunpack.c.h.b16 %v3446
        %v4075 = vunpack.c.l.b16 %v3447
        %v4076 = vunpack.c.h.b16 %v3447
        %v4077 = vunpack.c.l.b16 %v3448
        %v4078 = vunpack.c.h.b16 %v3448
        %v4079 = vunpack.c.l.b16 %v3449
        %v4080 = vunpack.c.h.b16 %v3449
        %v4081 = vunpack.c.l.b16 %v3450
        %v4082 = vunpack.c.h.b16 %v3450
        %v4083 = vunpack.c.l.b16 %v3451
        %v4084 = vunpack.c.h.b16 %v3451
        %v4085 = vunpack.c.l.b16 %v3452
        %v4086 = vunpack.c.h.b16 %v3452
        %v4087 = vunpack.c.l.b16 %v3453
        %v4088 = vunpack.c.h.b16 %v3453
        %v4089 = vunpack.c.l.b16 %v3454
        %v4090 = vunpack.c.h.b16 %v3454
        %v4091 = vunpack.c.l.b16 %v3455
        %v4092 = vunpack.c.h.b16 %v3455
        %v4093 = vunpack.c.l.b16 %v3456
        %v4094 = vunpack.c.h.b16 %v3456
        %v4095 = vunpack.c.l.b16 %v3457
        %v4096 = vunpack.c.h.b16 %v3457
        %v4097 = vunpack.c.l.b16 %v3458
        %v4098 = vunpack.c.h.b16 %v3458
        %v4099 = vunpack.c.l.b16 %v3459
        %v4100 = vunpack.c.h.b16 %v3459
        %v4101 = vunpack.c.l.b16 %v3460
        %v4102 = vunpack.c.h.b16 %v3460
        %v4103 = vunpack.c.l.b16 %v3461
        %v4104 = vunpack.c.h.b16 %v3461
        %v4105 = vunpack.c.l.b16 %v3462
        %v4106 = vunpack.c.h.b16 %v3462
        %v4107 = vunpack.c.l.b16 %v3463
        %v4108 = vunpack.c.h.b16 %v3463
        %v4109 = vunpack.c.l.b16 %v3464
        %v4110 = vunpack.c.h.b16 %v3464
        %v4111 = vunpack.c.l.b16 %v3465
        %v4112 = vunpack.c.h.b16 %v3465
        %v4113 = vunpack.c.l.b16 %v3466
        %v4114 = vunpack.c.h.b16 %v3466
        %v4115 = vunpack.c.l.b16 %v3467
        %v4116 = vunpack.c.h.b16 %v3467
        %v4117 = vunpack.c.l.b16 %v3468
        %v4118 = vunpack.c.h.b16 %v3468
        %v4119 = vunpack.c.l.b16 %v3469
        %v4120 = vunpack.c.h.b16 %v3469
        %v4121 = vunpack.c.l.b16 %v3470
        %v4122 = vunpack.c.h.b16 %v3470
        %v4123 = vunpack.c.l.b16 %v3471
        %v4124 = vunpack.c.h.b16 %v3471
        %v4125 = vunpack.c.l.b16 %v3472
        %v4126 = vunpack.c.h.b16 %v3472
        %v4127 = vunpack.c.l.b16 %v3473
        %v4128 = vunpack.c.h.b16 %v3473
        %v4129 = vunpack.c.l.b16 %v3474
        %v4130 = vunpack.c.h.b16 %v3474
        %v4131 = vunpack.c.l.b16 %v3475
        %v4132 = vunpack.c.h.b16 %v3475
        %v4133 = vunpack.c.l.b16 %v3476
        %v4134 = vunpack.c.h.b16 %v3476
        %v4135 = vunpack.c.l.b16 %v3477
        %v4136 = vunpack.c.h.b16 %v3477
        %v4137 = vunpack.c.l.b16 %v3478
        %v4138 = vunpack.c.h.b16 %v3478
        %v4139 = vunpack.c.l.b16 %v3479
        %v4140 = vunpack.c.h.b16 %v3479
        %v4141 = vunpack.c.l.b16 %v3480
        %v4142 = vunpack.c.h.b16 %v3480
        %v4143 = vpack.c.b16 %v3751, %v3743
        %v4144 = vpack.c.b16 %v3752, %v3744
        %v4145 = vpack.c.b16 %v3753, %v3745
        %v4146 = vpack.c.b16 %v3754, %v3746
        %v4147 = vpack.c.b16 %v3755, %v3747
        %v4148 = vpack.c.b16 %v3756, %v3748
        %v4149 = vpack.c.b16 %v3757, %v3749
        %v4150 = vpack.c.b16 %v3758, %v3750
        %v4151 = vpack.c.b16 %v3767, %v3759
        %v4152 = vpack.c.b16 %v3768, %v3760
        %v4153 = vpack.c.b16 %v3769, %v3761
        %v4154 = vpack.c.b16 %v3770, %v3762
        %v4155 = vpack.c.b16 %v3771, %v3763
        %v4156 = vpack.c.b16 %v3772, %v3764
        %v4157 = vpack.c.b16 %v3773, %v3765
        %v4158 = vpack.c.b16 %v3774, %v3766
        %v4159 = vpack.c.b16 %v3783, %v3775
        %v4160 = vpack.c.b16 %v3784, %v3776
        %v4161 = vpack.c.b16 %v3785, %v3777
        %v4162 = vpack.c.b16 %v3786, %v3778
        %v4163 = vpack.c.b16 %v3787, %v3779
        %v4164 = vpack.c.b16 %v3788, %v3780
        %v4165 = vpack.c.b16 %v3789, %v3781
        %v4166 = vpack.c.b16 %v3790, %v3782
        %v4167 = vpack.c.b16 %v3799, %v3791
        %v4168 = vpack.c.b16 %v3800, %v3792
        %v4169 = vpack.c.b16 %v3801, %v3793
        %v4170 = vpack.c.b16 %v3802, %v3794
        %v4171 = vpack.c.b16 %v3803, %v3795
        %v4172 = vpack.c.b16 %v3804, %v3796
        %v4173 = vpack.c.b16 %v3805, %v3797
        %v4174 = vpack.c.b16 %v3806, %v3798
        %v4175 = vpack.c.b16 %v3815, %v3807
        %v4176 = vpack.c.b16 %v3816, %v3808
        %v4177 = vpack.c.b16 %v3817, %v3809
        %v4178 = vpack.c.b16 %v3818, %v3810
        %v4179 = vpack.c.b16 %v3819, %v3811
        %v4180 = vpack.c.b16 %v3820, %v3812
        %v4181 = vpack.c.b16 %v3821, %v3813
        %v4182 = vpack.c.b16 %v3822, %v3814
        %v4183 = vpack.c.b16 %v3831, %v3823
        %v4184 = vpack.c.b16 %v3832, %v3824
        %v4185 = vpack.c.b16 %v3833, %v3825
        %v4186 = vpack.c.b16 %v3834, %v3826
        %v4187 = vpack.c.b16 %v3835, %v3827
        %v4188 = vpack.c.b16 %v3836, %v3828
        %v4189 = vpack.c.b16 %v3837, %v3829
        %v4190 = vpack.c.b16 %v3838, %v3830
        %v4191 = vpack.c.b16 %v3847, %v3839
        %v4192 = vpack.c.b16 %v3848, %v3840
        %v4193 = vpack.c.b16 %v3849, %v3841
        %v4194 = vpack.c.b16 %v3850, %v3842
        %v4195 = vpack.c.b16 %v3851, %v3843
        %v4196 = vpack.c.b16 %v3852, %v3844
        %v4197 = vpack.c.b16 %v3853, %v3845
        %v4198 = vpack.c.b16 %v3854, %v3846
        %v4199 = vpack.c.b16 %v3863, %v3855
        %v4200 = vpack.c.b16 %v3864, %v3856
        %v4201 = vpack.c.b16 %v3865, %v3857
        %v4202 = vpack.c.b16 %v3866, %v3858
        %v4203 = vpack.c.b16 %v3867, %v3859
        %v4204 = vpack.c.b16 %v3868, %v3860
        %v4205 = vpack.c.b16 %v3869, %v3861
        %v4206 = vpack.c.b16 %v3870, %v3862
        %v4207 = vpack.c.b16 %v3879, %v3871
        %v4208 = vpack.c.b16 %v3880, %v3872
        %v4209 = vpack.c.b16 %v3881, %v3873
        %v4210 = vpack.c.b16 %v3882, %v3874
        %v4211 = vpack.c.b16 %v3883, %v3875
        %v4212 = vpack.c.b16 %v3884, %v3876
        %v4213 = vpack.c.b16 %v3885, %v3877
        %v4214 = vpack.c.b16 %v3886, %v3878
        %v4215 = vpack.c.b16 %v3895, %v3887
        %v4216 = vpack.c.b16 %v3896, %v3888
        %v4217 = vpack.c.b16 %v3897, %v3889
        %v4218 = vpack.c.b16 %v3898, %v3890
        %v4219 = vpack.c.b16 %v3899, %v3891
        %v4220 = vpack.c.b16 %v3900, %v3892
        %v4221 = vpack.c.b16 %v3901, %v3893
        %v4222 = vpack.c.b16 %v3902, %v3894
        %v4223 = vpack.c.b16 %v3911, %v3903
        %v4224 = vpack.c.b16 %v3912, %v3904
        %v4225 = vpack.c.b16 %v3913, %v3905
        %v4226 = vpack.c.b16 %v3914, %v3906
        %v4227 = vpack.c.b16 %v3915, %v3907
        %v4228 = vpack.c.b16 %v3916, %v3908
        %v4229 = vpack.c.b16 %v3917, %v3909
        %v4230 = vpack.c.b16 %v3918, %v3910
        %v4231 = vpack.c.b16 %v3927, %v3919
        %v4232 = vpack.c.b16 %v3928, %v3920
        %v4233 = vpack.c.b16 %v3929, %v3921
        %v4234 = vpack.c.b16 %v3930, %v3922
        %v4235 = vpack.c.b16 %v3931, %v3923
        %v4236 = vpack.c.b16 %v3932, %v3924
        %v4237 = vpack.c.b16 %v3933, %v3925
        %v4238 = vpack.c.b16 %v3934, %v3926
        %v4239 = vpack.c.b16 %v3943, %v3935
        %v4240 = vpack.c.b16 %v3944, %v3936
        %v4241 = vpack.c.b16 %v3945, %v3937
        %v4242 = vpack.c.b16 %v3946, %v3938
        %v4243 = vpack.c.b16 %v3947, %v3939
        %v4244 = vpack.c.b16 %v3948, %v3940
        %v4245 = vpack.c.b16 %v3949, %v3941
        %v4246 = vpack.c.b16 %v3950, %v3942
        %v4247 = vpack.c.b16 %v3959, %v3951
        %v4248 = vpack.c.b16 %v3960, %v3952
        %v4249 = vpack.c.b16 %v3961, %v3953
        %v4250 = vpack.c.b16 %v3962, %v3954
        %v4251 = vpack.c.b16 %v3963, %v3955
        %v4252 = vpack.c.b16 %v3964, %v3956
        %v4253 = vpack.c.b16 %v3965, %v3957
        %v4254 = vpack.c.b16 %v3966, %v3958
        %v4255 = vpack.c.b16 %v3975, %v3967
        %v4256 = vpack.c.b16 %v3976, %v3968
        %v4257 = vpack.c.b16 %v3977, %v3969
        %v4258 = vpack.c.b16 %v3978, %v3970
        %v4259 = vpack.c.b16 %v3979, %v3971
        %v4260 = vpack.c.b16 %v3980, %v3972
        %v4261 = vpack.c.b16 %v3981, %v3973
        %v4262 = vpack.c.b16 %v3982, %v3974
        %v4263 = vpack.c.b16 %v3991, %v3983
        %v4264 = vpack.c.b16 %v3992, %v3984
        %v4265 = vpack.c.b16 %v3993, %v3985
        %v4266 = vpack.c.b16 %v3994, %v3986
        %v4267 = vpack.c.b16 %v3995, %v3987
        %v4268 = vpack.c.b16 %v3996, %v3988
        %v4269 = vpack.c.b16 %v3997, %v3989
        %v4270 = vpack.c.b16 %v3998, %v3990
        %v4271 = vpack.c.b16 %v4007, %v3999
        %v4272 = vpack.c.b16 %v4008, %v4000
        %v4273 = vpack.c.b16 %v4009, %v4001
        %v4274 = vpack.c.b16 %v4010, %v4002
        %v4275 = vpack.c.b16 %v4011, %v4003
        %v4276 = vpack.c.b16 %v4012, %v4004
        %v4277 = vpack.c.b16 %v4013, %v4005
        %v4278 = vpack.c.b16 %v4014, %v4006
        %v4279 = vpack.c.b16 %v4023, %v4015
        %v4280 = vpack.c.b16 %v4024, %v4016
        %v4281 = vpack.c.b16 %v4025, %v4017
        %v4282 = vpack.c.b16 %v4026, %v4018
        %v4283 = vpack.c.b16 %v4027, %v4019
        %v4284 = vpack.c.b16 %v4028, %v4020
        %v4285 = vpack.c.b16 %v4029, %v4021
        %v4286 = vpack.c.b16 %v4030, %v4022
        %v4287 = vpack.c.b16 %v4039, %v4031
        %v4288 = vpack.c.b16 %v4040, %v4032
        %v4289 = vpack.c.b16 %v4041, %v4033
        %v4290 = vpack.c.b16 %v4042, %v4034
        %v4291 = vpack.c.b16 %v4043, %v4035
        %v4292 = vpack.c.b16 %v4044, %v4036
        %v4293 = vpack.c.b16 %v4045, %v4037
        %v4294 = vpack.c.b16 %v4046, %v4038
        %v4295 = vpack.c.b16 %v4055, %v4047
        %v4296 = vpack.c.b16 %v4056, %v4048
        %v4297 = vpack.c.b16 %v4057, %v4049
        %v4298 = vpack.c.b16 %v4058, %v4050
        %v4299 = vpack.c.b16 %v4059, %v4051
        %v4300 = vpack.c.b16 %v4060, %v4052
        %v4301 = vpack.c.b16 %v4061, %v4053
        %v4302 = vpack.c.b16 %v4062, %v4054
        %v4303 = vpack.c.b16 %v4071, %v4063
        %v4304 = vpack.c.b16 %v4072, %v4064
        %v4305 = vpack.c.b16 %v4073, %v4065
        %v4306 = vpack.c.b16 %v4074, %v4066
        %v4307 = vpack.c.b16 %v4075, %v4067
        %v4308 = vpack.c.b16 %v4076, %v4068
        %v4309 = vpack.c.b16 %v4077, %v4069
        %v4310 = vpack.c.b16 %v4078, %v4070
        %v4311 = vpack.c.b16 %v4087, %v4079
        %v4312 = vpack.c.b16 %v4088, %v4080
        %v4313 = vpack.c.b16 %v4089, %v4081
        %v4314 = vpack.c.b16 %v4090, %v4082
        %v4315 = vpack.c.b16 %v4091, %v4083
        %v4316 = vpack.c.b16 %v4092, %v4084
        %v4317 = vpack.c.b16 %v4093, %v4085
        %v4318 = vpack.c.b16 %v4094, %v4086
        %v4319 = vpack.c.b16 %v4103, %v4095
        %v4320 = vpack.c.b16 %v4104, %v4096
        %v4321 = vpack.c.b16 %v4105, %v4097
        %v4322 = vpack.c.b16 %v4106, %v4098
        %v4323 = vpack.c.b16 %v4107, %v4099
        %v4324 = vpack.c.b16 %v4108, %v4100
        %v4325 = vpack.c.b16 %v4109, %v4101
        %v4326 = vpack.c.b16 %v4110, %v4102
        %v4327 = vpack.c.b16 %v4119, %v4111
        %v4328 = vpack.c.b16 %v4120, %v4112
        %v4329 = vpack.c.b16 %v4121, %v4113
        %v4330 = vpack.c.b16 %v4122, %v4114
        %v4331 = vpack.c.b16 %v4123, %v4115
        %v4332 = vpack.c.b16 %v4124, %v4116
        %v4333 = vpack.c.b16 %v4125, %v4117
        %v4334 = vpack.c.b16 %v4126, %v4118
        %v4335 = vpack.c.b16 %v4135, %v4127
        %v4336 = vpack.c.b16 %v4136, %v4128
        %v4337 = vpack.c.b16 %v4137, %v4129
        %v4338 = vpack.c.b16 %v4138, %v4130
        %v4339 = vpack.c.b16 %v4139, %v4131
        %v4340 = vpack.c.b16 %v4140, %v4132
        %v4341 = vpack.c.b16 %v4141, %v4133
        %v4342 = vpack.c.b16 %v4142, %v4134
        %vm4543 = vcmask 130048
        %v4545 = vsel %vm4543, %v3532, 0
        %v4548 = vsel %vm4543, %v3536, 0
        %4550 = vmatprep.subr.bf16.mxu0 %v4200
        %4551 = vmatpush1.bf16.msra.mxu0 %v4199
        %4552 = vmatprep.subr.bf16.mxu0 %v4192
        %4553 = vmatpush1.bf16.msra.mxu0 %v4191
        %4554 = vmatprep.subr.bf16.mxu0 %v4184
        %4555 = vmatpush1.bf16.msra.mxu0 %v4183
        %4556 = vmatprep.subr.bf16.mxu0 %v4176
        %4557 = vmatpush1.bf16.msra.mxu0 %v4175
        %4558 = vmatprep.subr.bf16.mxu0 %v4168
        %4559 = vmatpush1.bf16.msra.mxu0 %v4167
        %4560 = vmatprep.subr.bf16.mxu0 %v4160
        %4561 = vmatpush1.bf16.msra.mxu0 %v4159
        %4562 = vmatprep.subr.bf16.mxu0 %v4152
        %4563 = vmatpush1.bf16.msra.mxu0 %v4151
        %4564 = vmatprep.subr.bf16.mxu0 %v4144
        %4565 = vmatpush1.bf16.msra.mxu0 %v4143
        %4566 = vmatprep.subr.bf16.mxu0 %v4264
        %4567 = vmatpush2.bf16.msra.mxu0 %v4263
        %4568 = vmatprep.subr.bf16.mxu0 %v4256
        %4569 = vmatpush2.bf16.msra.mxu0 %v4255
        %4570 = vmatprep.subr.bf16.mxu0 %v4248
        %4571 = vmatpush2.bf16.msra.mxu0 %v4247
        %4572 = vmatprep.subr.bf16.mxu0 %v4240
        %4573 = vmatpush2.bf16.msra.mxu0 %v4239
        %4574 = vmatprep.subr.bf16.mxu0 %v4232
        %4575 = vmatpush2.bf16.msra.mxu0 %v4231
        %4576 = vmatprep.subr.bf16.mxu0 %v4224
        %4577 = vmatpush2.bf16.msra.mxu0 %v4223
        %4578 = vmatprep.subr.bf16.mxu0 %v4216
        %4579 = vmatpush2.bf16.msra.mxu0 %v4215
        %4580 = vmatprep.subr.bf16.mxu0 %v4208
        %4581 = vmatpush2.bf16.msra.mxu0 %v4207
        %4582 = vmatprep.mubr.bf16.mxu0 %v3530
        %4583 = vmatmul.mubr.bf16.gmra.mxu0 %v3529
        %v4584 = vpop.f32.mrf.mxu0
        %v4585 = vadd.f32 %v3488, %v4584
        %v4586 = vpop.f32.mrf.mxu0
        %v4587 = vadd.f32 %v3488, %v4586
        %v4588 = vpop.f32.mrf.mxu0
        %v4589 = vadd.f32 %v3493, %v4588
        %v4590 = vpop.f32.mrf.mxu0
        %v4591 = vadd.f32 %v3493, %v4590
        %4592 = vmatprep.mubr.bf16.mxu0 %v3534
        %4593 = vmatmul.mubr.bf16.gmra.mxu0 %v3533
        %v4594 = vpop.f32.mrf.mxu0
        %v4595 = vadd.f32 %v3498, %v4594
        %v4596 = vpop.f32.mrf.mxu0
        %v4597 = vadd.f32 %v3498, %v4596
        %v4598 = vpop.f32.mrf.mxu0
        %v4599 = vadd.f32 %v3503, %v4598
        %v4600 = vpop.f32.mrf.mxu0
        %v4601 = vadd.f32 %v3503, %v4600
        %4602 = vdwg.mxu0
        %4603 = vmatprep.subr.bf16.mxu0 %v4328
        %4604 = vmatpush1.bf16.msra.mxu0 %v4327
        %4605 = vmatprep.subr.bf16.mxu0 %v4320
        %4606 = vmatpush1.bf16.msra.mxu0 %v4319
        %4607 = vmatprep.subr.bf16.mxu0 %v4312
        %4608 = vmatpush1.bf16.msra.mxu0 %v4311
        %4609 = vmatprep.subr.bf16.mxu0 %v4304
        %4610 = vmatpush1.bf16.msra.mxu0 %v4303
        %4611 = vmatprep.subr.bf16.mxu0 %v4296
        %4612 = vmatpush1.bf16.msra.mxu0 %v4295
        %4613 = vmatprep.subr.bf16.mxu0 %v4288
        %4614 = vmatpush1.bf16.msra.mxu0 %v4287
        %4615 = vmatprep.subr.bf16.mxu0 %v4280
        %4616 = vmatpush1.bf16.msra.mxu0 %v4279
        %4617 = vmatprep.subr.bf16.mxu0 %v4272
        %4618 = vmatpush1.bf16.msra.mxu0 %v4271
        %4619 = vmatprep.subr.bf16.mxu0 0
        %4620 = vmatpush2.bf16.msra.mxu0 0
        %4621 = vmatprep.subr.bf16.mxu0 0
        %4622 = vmatpush2.bf16.msra.mxu0 0
        %4623 = vmatprep.subr.bf16.mxu0 0
        %4624 = vmatpush2.bf16.msra.mxu0 0
        %4625 = vmatprep.subr.bf16.mxu0 0
        %4626 = vmatpush2.bf16.msra.mxu0 0
        %4627 = vmatprep.subr.bf16.mxu0 0
        %4628 = vmatpush2.bf16.msra.mxu0 0
        %4629 = vmatprep.subr.bf16.mxu0 0
        %4630 = vmatpush2.bf16.msra.mxu0 0
        %4631 = vmatprep.subr.bf16.mxu0 0
        %4632 = vmatpush2.bf16.msra.mxu0 0
        %4633 = vmatprep.subr.bf16.mxu0 %v4336
        %4634 = vmatpush2.bf16.msra.mxu0 %v4335
        %4635 = vmatprep.mubr.bf16.mxu0 %v4545
        %4636 = vmatmul.mubr.bf16.gmra.mxu0 %v3531
        %v4637 = vpop.f32.mrf.mxu0
        %v4638 = vadd.f32 %v4585, %v4637
        %v4639 = vpop.f32.mrf.mxu0
        %v4640 = vadd.f32 %v4587, %v4639
        %v4641 = vpop.f32.mrf.mxu0
        %v4642 = vadd.f32 %v4589, %v4641
        %v4643 = vpop.f32.mrf.mxu0
        %v4644 = vadd.f32 %v4591, %v4643
        %4645 = vmatprep.mubr.bf16.mxu0 %v4548
        %4646 = vmatmul.mubr.bf16.gmra.mxu0 %v3535
        %v4647 = vpop.f32.mrf.mxu0
        %v4648 = vadd.f32 %v4595, %v4647
        %v4649 = vpop.f32.mrf.mxu0
        %v4650 = vadd.f32 %v4597, %v4649
        %v4651 = vpop.f32.mrf.mxu0
        %v4652 = vadd.f32 %v4599, %v4651
        %v4653 = vpop.f32.mrf.mxu0
        %v4654 = vadd.f32 %v4601, %v4653
        %4655 = vdwg.mxu0
        %4656 = vmatprep.subr.bf16.mxu0 %v4202
        %4657 = vmatpush1.bf16.msra.mxu0 %v4201
        %4658 = vmatprep.subr.bf16.mxu0 %v4194
        %4659 = vmatpush1.bf16.msra.mxu0 %v4193
        %4660 = vmatprep.subr.bf16.mxu0 %v4186
        %4661 = vmatpush1.bf16.msra.mxu0 %v4185
        %4662 = vmatprep.subr.bf16.mxu0 %v4178
        %4663 = vmatpush1.bf16.msra.mxu0 %v4177
        %4664 = vmatprep.subr.bf16.mxu0 %v4170
        %4665 = vmatpush1.bf16.msra.mxu0 %v4169
        %4666 = vmatprep.subr.bf16.mxu0 %v4162
        %4667 = vmatpush1.bf16.msra.mxu0 %v4161
        %4668 = vmatprep.subr.bf16.mxu0 %v4154
        %4669 = vmatpush1.bf16.msra.mxu0 %v4153
        %4670 = vmatprep.subr.bf16.mxu0 %v4146
        %4671 = vmatpush1.bf16.msra.mxu0 %v4145
        %4672 = vmatprep.subr.bf16.mxu0 %v4266
        %4673 = vmatpush2.bf16.msra.mxu0 %v4265
        %4674 = vmatprep.subr.bf16.mxu0 %v4258
        %4675 = vmatpush2.bf16.msra.mxu0 %v4257
        %4676 = vmatprep.subr.bf16.mxu0 %v4250
        %4677 = vmatpush2.bf16.msra.mxu0 %v4249
        %4678 = vmatprep.subr.bf16.mxu0 %v4242
        %4679 = vmatpush2.bf16.msra.mxu0 %v4241
        %4680 = vmatprep.subr.bf16.mxu0 %v4234
        %4681 = vmatpush2.bf16.msra.mxu0 %v4233
        %4682 = vmatprep.subr.bf16.mxu0 %v4226
        %4683 = vmatpush2.bf16.msra.mxu0 %v4225
        %4684 = vmatprep.subr.bf16.mxu0 %v4218
        %4685 = vmatpush2.bf16.msra.mxu0 %v4217
        %4686 = vmatprep.subr.bf16.mxu0 %v4210
        %4687 = vmatpush2.bf16.msra.mxu0 %v4209
        %4688 = vmatprep.mubr.bf16.mxu0 %v3530
        %4689 = vmatmul.mubr.bf16.gmra.mxu0 %v3529
        %v4690 = vpop.f32.mrf.mxu0
        %v4691 = vadd.f32 %v3488, %v4690
        %v4692 = vpop.f32.mrf.mxu0
        %v4693 = vadd.f32 %v3488, %v4692
        %v4694 = vpop.f32.mrf.mxu0
        %v4695 = vadd.f32 %v3493, %v4694
        %v4696 = vpop.f32.mrf.mxu0
        %v4697 = vadd.f32 %v3493, %v4696
        %4698 = vmatprep.mubr.bf16.mxu0 %v3534
        %4699 = vmatmul.mubr.bf16.gmra.mxu0 %v3533
        %v4700 = vpop.f32.mrf.mxu0
        %v4701 = vadd.f32 %v3498, %v4700
        %v4702 = vpop.f32.mrf.mxu0
        %v4703 = vadd.f32 %v3498, %v4702
        %v4704 = vpop.f32.mrf.mxu0
        %v4705 = vadd.f32 %v3503, %v4704
        %v4706 = vpop.f32.mrf.mxu0
        %v4707 = vadd.f32 %v3503, %v4706
        %4708 = vdwg.mxu0
        %4709 = vmatprep.subr.bf16.mxu0 %v4330
        %4710 = vmatpush1.bf16.msra.mxu0 %v4329
        %4711 = vmatprep.subr.bf16.mxu0 %v4322
        %4712 = vmatpush1.bf16.msra.mxu0 %v4321
        %4713 = vmatprep.subr.bf16.mxu0 %v4314
        %4714 = vmatpush1.bf16.msra.mxu0 %v4313
        %4715 = vmatprep.subr.bf16.mxu0 %v4306
        %4716 = vmatpush1.bf16.msra.mxu0 %v4305
        %4717 = vmatprep.subr.bf16.mxu0 %v4298
        %4718 = vmatpush1.bf16.msra.mxu0 %v4297
        %4719 = vmatprep.subr.bf16.mxu0 %v4290
        %4720 = vmatpush1.bf16.msra.mxu0 %v4289
        %4721 = vmatprep.subr.bf16.mxu0 %v4282
        %4722 = vmatpush1.bf16.msra.mxu0 %v4281
        %4723 = vmatprep.subr.bf16.mxu0 %v4274
        %4724 = vmatpush1.bf16.msra.mxu0 %v4273
        %4725 = vmatprep.subr.bf16.mxu0 0
        %4726 = vmatpush2.bf16.msra.mxu0 0
        %4727 = vmatprep.subr.bf16.mxu0 0
        %4728 = vmatpush2.bf16.msra.mxu0 0
        %4729 = vmatprep.subr.bf16.mxu0 0
        %4730 = vmatpush2.bf16.msra.mxu0 0
        %4731 = vmatprep.subr.bf16.mxu0 0
        %4732 = vmatpush2.bf16.msra.mxu0 0
        %4733 = vmatprep.subr.bf16.mxu0 0
        %4734 = vmatpush2.bf16.msra.mxu0 0
        %4735 = vmatprep.subr.bf16.mxu0 0
        %4736 = vmatpush2.bf16.msra.mxu0 0
        %4737 = vmatprep.subr.bf16.mxu0 0
        %4738 = vmatpush2.bf16.msra.mxu0 0
        %4739 = vmatprep.subr.bf16.mxu0 %v4338
        %4740 = vmatpush2.bf16.msra.mxu0 %v4337
        %4741 = vmatprep.mubr.bf16.mxu0 %v4545
        %4742 = vmatmul.mubr.bf16.gmra.mxu0 %v3531
        %v4743 = vpop.f32.mrf.mxu0
        %v4744 = vadd.f32 %v4691, %v4743
        %v4745 = vpop.f32.mrf.mxu0
        %v4746 = vadd.f32 %v4693, %v4745
        %v4747 = vpop.f32.mrf.mxu0
        %v4748 = vadd.f32 %v4695, %v4747
        %v4749 = vpop.f32.mrf.mxu0
        %v4750 = vadd.f32 %v4697, %v4749
        %4751 = vmatprep.mubr.bf16.mxu0 %v4548
        %4752 = vmatmul.mubr.bf16.gmra.mxu0 %v3535
        %v4753 = vpop.f32.mrf.mxu0
        %v4754 = vadd.f32 %v4701, %v4753
        %v4755 = vpop.f32.mrf.mxu0
        %v4756 = vadd.f32 %v4703, %v4755
        %v4757 = vpop.f32.mrf.mxu0
        %v4758 = vadd.f32 %v4705, %v4757
        %v4759 = vpop.f32.mrf.mxu0
        %v4760 = vadd.f32 %v4707, %v4759
        %4761 = vdwg.mxu0
        %4762 = vmatprep.subr.bf16.mxu0 %v4204
        %4763 = vmatpush1.bf16.msra.mxu0 %v4203
        %4764 = vmatprep.subr.bf16.mxu0 %v4196
        %4765 = vmatpush1.bf16.msra.mxu0 %v4195
        %4766 = vmatprep.subr.bf16.mxu0 %v4188
        %4767 = vmatpush1.bf16.msra.mxu0 %v4187
        %4768 = vmatprep.subr.bf16.mxu0 %v4180
        %4769 = vmatpush1.bf16.msra.mxu0 %v4179
        %4770 = vmatprep.subr.bf16.mxu0 %v4172
        %4771 = vmatpush1.bf16.msra.mxu0 %v4171
        %4772 = vmatprep.subr.bf16.mxu0 %v4164
        %4773 = vmatpush1.bf16.msra.mxu0 %v4163
        %4774 = vmatprep.subr.bf16.mxu0 %v4156
        %4775 = vmatpush1.bf16.msra.mxu0 %v4155
        %4776 = vmatprep.subr.bf16.mxu0 %v4148
        %4777 = vmatpush1.bf16.msra.mxu0 %v4147
        %4778 = vmatprep.subr.bf16.mxu0 %v4268
        %4779 = vmatpush2.bf16.msra.mxu0 %v4267
        %4780 = vmatprep.subr.bf16.mxu0 %v4260
        %4781 = vmatpush2.bf16.msra.mxu0 %v4259
        %4782 = vmatprep.subr.bf16.mxu0 %v4252
        %4783 = vmatpush2.bf16.msra.mxu0 %v4251
        %4784 = vmatprep.subr.bf16.mxu0 %v4244
        %4785 = vmatpush2.bf16.msra.mxu0 %v4243
        %4786 = vmatprep.subr.bf16.mxu0 %v4236
        %4787 = vmatpush2.bf16.msra.mxu0 %v4235
        %4788 = vmatprep.subr.bf16.mxu0 %v4228
        %4789 = vmatpush2.bf16.msra.mxu0 %v4227
        %4790 = vmatprep.subr.bf16.mxu0 %v4220
        %4791 = vmatpush2.bf16.msra.mxu0 %v4219
        %4792 = vmatprep.subr.bf16.mxu0 %v4212
        %4793 = vmatpush2.bf16.msra.mxu0 %v4211
        %4794 = vmatprep.mubr.bf16.mxu0 %v3530
        %4795 = vmatmul.mubr.bf16.gmra.mxu0 %v3529
        %v4796 = vpop.f32.mrf.mxu0
        %v4797 = vadd.f32 %v3488, %v4796
        %v4798 = vpop.f32.mrf.mxu0
        %v4799 = vadd.f32 %v3488, %v4798
        %v4800 = vpop.f32.mrf.mxu0
        %v4801 = vadd.f32 %v3493, %v4800
        %v4802 = vpop.f32.mrf.mxu0
        %v4803 = vadd.f32 %v3493, %v4802
        %4804 = vmatprep.mubr.bf16.mxu0 %v3534
        %4805 = vmatmul.mubr.bf16.gmra.mxu0 %v3533
        %v4806 = vpop.f32.mrf.mxu0
        %v4807 = vadd.f32 %v3498, %v4806
        %v4808 = vpop.f32.mrf.mxu0
        %v4809 = vadd.f32 %v3498, %v4808
        %v4810 = vpop.f32.mrf.mxu0
        %v4811 = vadd.f32 %v3503, %v4810
        %v4812 = vpop.f32.mrf.mxu0
        %v4813 = vadd.f32 %v3503, %v4812
        %4814 = vdwg.mxu0
        %4815 = vmatprep.subr.bf16.mxu0 %v4332
        %4816 = vmatpush1.bf16.msra.mxu0 %v4331
        %4817 = vmatprep.subr.bf16.mxu0 %v4324
        %4818 = vmatpush1.bf16.msra.mxu0 %v4323
        %4819 = vmatprep.subr.bf16.mxu0 %v4316
        %4820 = vmatpush1.bf16.msra.mxu0 %v4315
        %4821 = vmatprep.subr.bf16.mxu0 %v4308
        %4822 = vmatpush1.bf16.msra.mxu0 %v4307
        %4823 = vmatprep.subr.bf16.mxu0 %v4300
        %4824 = vmatpush1.bf16.msra.mxu0 %v4299
        %4825 = vmatprep.subr.bf16.mxu0 %v4292
        %4826 = vmatpush1.bf16.msra.mxu0 %v4291
        %4827 = vmatprep.subr.bf16.mxu0 %v4284
        %4828 = vmatpush1.bf16.msra.mxu0 %v4283
        %4829 = vmatprep.subr.bf16.mxu0 %v4276
        %4830 = vmatpush1.bf16.msra.mxu0 %v4275
        %4831 = vmatprep.subr.bf16.mxu0 0
        %4832 = vmatpush2.bf16.msra.mxu0 0
        %4833 = vmatprep.subr.bf16.mxu0 0
        %4834 = vmatpush2.bf16.msra.mxu0 0
        %4835 = vmatprep.subr.bf16.mxu0 0
        %4836 = vmatpush2.bf16.msra.mxu0 0
        %4837 = vmatprep.subr.bf16.mxu0 0
        %4838 = vmatpush2.bf16.msra.mxu0 0
        %4839 = vmatprep.subr.bf16.mxu0 0
        %4840 = vmatpush2.bf16.msra.mxu0 0
        %4841 = vmatprep.subr.bf16.mxu0 0
        %4842 = vmatpush2.bf16.msra.mxu0 0
        %4843 = vmatprep.subr.bf16.mxu0 0
        %4844 = vmatpush2.bf16.msra.mxu0 0
        %4845 = vmatprep.subr.bf16.mxu0 %v4340
        %4846 = vmatpush2.bf16.msra.mxu0 %v4339
        %4847 = vmatprep.mubr.bf16.mxu0 %v4545
        %4848 = vmatmul.mubr.bf16.gmra.mxu0 %v3531
        %v4849 = vpop.f32.mrf.mxu0
        %v4850 = vadd.f32 %v4797, %v4849
        %v4851 = vpop.f32.mrf.mxu0
        %v4852 = vadd.f32 %v4799, %v4851
        %v4853 = vpop.f32.mrf.mxu0
        %v4854 = vadd.f32 %v4801, %v4853
        %v4855 = vpop.f32.mrf.mxu0
        %v4856 = vadd.f32 %v4803, %v4855
        %4857 = vmatprep.mubr.bf16.mxu0 %v4548
        %4858 = vmatmul.mubr.bf16.gmra.mxu0 %v3535
        %v4859 = vpop.f32.mrf.mxu0
        %v4860 = vadd.f32 %v4807, %v4859
        %v4861 = vpop.f32.mrf.mxu0
        %v4862 = vadd.f32 %v4809, %v4861
        %v4863 = vpop.f32.mrf.mxu0
        %v4864 = vadd.f32 %v4811, %v4863
        %v4865 = vpop.f32.mrf.mxu0
        %v4866 = vadd.f32 %v4813, %v4865
        %4867 = vdwg.mxu0
        %4868 = vmatprep.subr.bf16.mxu0 %v4206
        %4869 = vmatpush1.bf16.msra.mxu0 %v4205
        %4870 = vmatprep.subr.bf16.mxu0 %v4198
        %4871 = vmatpush1.bf16.msra.mxu0 %v4197
        %4872 = vmatprep.subr.bf16.mxu0 %v4190
        %4873 = vmatpush1.bf16.msra.mxu0 %v4189
        %4874 = vmatprep.subr.bf16.mxu0 %v4182
        %4875 = vmatpush1.bf16.msra.mxu0 %v4181
        %4876 = vmatprep.subr.bf16.mxu0 %v4174
        %4877 = vmatpush1.bf16.msra.mxu0 %v4173
        %4878 = vmatprep.subr.bf16.mxu0 %v4166
        %4879 = vmatpush1.bf16.msra.mxu0 %v4165
        %4880 = vmatprep.subr.bf16.mxu0 %v4158
        %4881 = vmatpush1.bf16.msra.mxu0 %v4157
        %4882 = vmatprep.subr.bf16.mxu0 %v4150
        %4883 = vmatpush1.bf16.msra.mxu0 %v4149
        %4884 = vmatprep.subr.bf16.mxu0 %v4270
        %4885 = vmatpush2.bf16.msra.mxu0 %v4269
        %4886 = vmatprep.subr.bf16.mxu0 %v4262
        %4887 = vmatpush2.bf16.msra.mxu0 %v4261
        %4888 = vmatprep.subr.bf16.mxu0 %v4254
        %4889 = vmatpush2.bf16.msra.mxu0 %v4253
        %4890 = vmatprep.subr.bf16.mxu0 %v4246
        %4891 = vmatpush2.bf16.msra.mxu0 %v4245
        %4892 = vmatprep.subr.bf16.mxu0 %v4238
        %4893 = vmatpush2.bf16.msra.mxu0 %v4237
        %4894 = vmatprep.subr.bf16.mxu0 %v4230
        %4895 = vmatpush2.bf16.msra.mxu0 %v4229
        %4896 = vmatprep.subr.bf16.mxu0 %v4222
        %4897 = vmatpush2.bf16.msra.mxu0 %v4221
        %4898 = vmatprep.subr.bf16.mxu0 %v4214
        %4899 = vmatpush2.bf16.msra.mxu0 %v4213
        %4900 = vmatprep.mubr.bf16.mxu0 %v3530
        %4901 = vmatmul.mubr.bf16.gmra.mxu0 %v3529
        %v4902 = vpop.f32.mrf.mxu0
        %v4903 = vadd.f32 %v3488, %v4902
        %v4904 = vpop.f32.mrf.mxu0
        %v4905 = vadd.f32 %v3488, %v4904
        %v4906 = vpop.f32.mrf.mxu0
        %v4907 = vadd.f32 %v3493, %v4906
        %v4908 = vpop.f32.mrf.mxu0
        %v4909 = vadd.f32 %v3493, %v4908
        %4910 = vmatprep.mubr.bf16.mxu0 %v3534
        %4911 = vmatmul.mubr.bf16.gmra.mxu0 %v3533
        %v4912 = vpop.f32.mrf.mxu0
        %v4913 = vadd.f32 %v3498, %v4912
        %v4914 = vpop.f32.mrf.mxu0
        %v4915 = vadd.f32 %v3498, %v4914
        %v4916 = vpop.f32.mrf.mxu0
        %v4917 = vadd.f32 %v3503, %v4916
        %v4918 = vpop.f32.mrf.mxu0
        %v4919 = vadd.f32 %v3503, %v4918
        %4920 = vdwg.mxu0
        %4921 = vmatprep.subr.bf16.mxu0 %v4334
        %4922 = vmatpush1.bf16.msra.mxu0 %v4333
        %4923 = vmatprep.subr.bf16.mxu0 %v4326
        %4924 = vmatpush1.bf16.msra.mxu0 %v4325
        %4925 = vmatprep.subr.bf16.mxu0 %v4318
        %4926 = vmatpush1.bf16.msra.mxu0 %v4317
        %4927 = vmatprep.subr.bf16.mxu0 %v4310
        %4928 = vmatpush1.bf16.msra.mxu0 %v4309
        %4929 = vmatprep.subr.bf16.mxu0 %v4302
        %4930 = vmatpush1.bf16.msra.mxu0 %v4301
        %4931 = vmatprep.subr.bf16.mxu0 %v4294
        %4932 = vmatpush1.bf16.msra.mxu0 %v4293
        %4933 = vmatprep.subr.bf16.mxu0 %v4286
        %4934 = vmatpush1.bf16.msra.mxu0 %v4285
        %4935 = vmatprep.subr.bf16.mxu0 %v4278
        %4936 = vmatpush1.bf16.msra.mxu0 %v4277
        %4937 = vmatprep.subr.bf16.mxu0 0
        %4938 = vmatpush2.bf16.msra.mxu0 0
        %4939 = vmatprep.subr.bf16.mxu0 0
        %4940 = vmatpush2.bf16.msra.mxu0 0
        %4941 = vmatprep.subr.bf16.mxu0 0
        %4942 = vmatpush2.bf16.msra.mxu0 0
        %4943 = vmatprep.subr.bf16.mxu0 0
        %4944 = vmatpush2.bf16.msra.mxu0 0
        %4945 = vmatprep.subr.bf16.mxu0 0
        %4946 = vmatpush2.bf16.msra.mxu0 0
        %4947 = vmatprep.subr.bf16.mxu0 0
        %4948 = vmatpush2.bf16.msra.mxu0 0
        %4949 = vmatprep.subr.bf16.mxu0 0
        %4950 = vmatpush2.bf16.msra.mxu0 0
        %4951 = vmatprep.subr.bf16.mxu0 %v4342
        %4952 = vmatpush2.bf16.msra.mxu0 %v4341
        %4953 = vmatprep.mubr.bf16.mxu0 %v4545
        %4954 = vmatmul.mubr.bf16.gmra.mxu0 %v3531
        %v4955 = vpop.f32.mrf.mxu0
        %v4956 = vadd.f32 %v4903, %v4955
        %v4957 = vpop.f32.mrf.mxu0
        %v4958 = vadd.f32 %v4905, %v4957
        %v4959 = vpop.f32.mrf.mxu0
        %v4960 = vadd.f32 %v4907, %v4959
        %v4961 = vpop.f32.mrf.mxu0
        %v4962 = vadd.f32 %v4909, %v4961
        %4963 = vmatprep.mubr.bf16.mxu0 %v4548
        %4964 = vmatmul.mubr.bf16.gmra.mxu0 %v3535
        %v4965 = vpop.f32.mrf.mxu0
        %v4966 = vadd.f32 %v4913, %v4965
        %v4967 = vpop.f32.mrf.mxu0
        %v4968 = vadd.f32 %v4915, %v4967
        %v4969 = vpop.f32.mrf.mxu0
        %v4970 = vadd.f32 %v4917, %v4969
        %v4971 = vpop.f32.mrf.mxu0
        %v4972 = vadd.f32 %v4919, %v4971
        %4973 = vdwg.mxu0
        %v4974 = vmax.f32 %v4638, 0.0
        %v4975 = vmax.f32 %v4640, 0.0
        %v4976 = vmax.f32 %v4744, 0.0
        %v4977 = vmax.f32 %v4746, 0.0
        %v4978 = vmax.f32 %v4850, 0.0
        %v4979 = vmax.f32 %v4852, 0.0
        %v4980 = vmax.f32 %v4956, 0.0
        %v4981 = vmax.f32 %v4958, 0.0
        %v4982 = vmax.f32 %v4642, 0.0
        %v4983 = vmax.f32 %v4644, 0.0
        %v4984 = vmax.f32 %v4748, 0.0
        %v4985 = vmax.f32 %v4750, 0.0
        %v4986 = vmax.f32 %v4854, 0.0
        %v4987 = vmax.f32 %v4856, 0.0
        %v4988 = vmax.f32 %v4960, 0.0
        %v4989 = vmax.f32 %v4962, 0.0
        %v4990 = vmax.f32 %v4648, 0.0
        %v4991 = vmax.f32 %v4650, 0.0
        %v4992 = vmax.f32 %v4754, 0.0
        %v4993 = vmax.f32 %v4756, 0.0
        %v4994 = vmax.f32 %v4860, 0.0
        %v4995 = vmax.f32 %v4862, 0.0
        %v4996 = vmax.f32 %v4966, 0.0
        %v4997 = vmax.f32 %v4968, 0.0
        %v4998 = vmax.f32 %v4652, 0.0
        %v4999 = vmax.f32 %v4654, 0.0
        %v5000 = vmax.f32 %v4758, 0.0
        %v5001 = vmax.f32 %v4760, 0.0
        %v5002 = vmax.f32 %v4864, 0.0
        %v5003 = vmax.f32 %v4866, 0.0
        %v5004 = vmax.f32 %v4970, 0.0
        %v5005 = vmax.f32 %v4972, 0.0
        %5038 = vrot.lane.b32.xlu0 %v4974, 126
        %v5039 = vpop.permute.xlu0 %5038
        %5040 = vrot.lane.b32.xlu0 %v4975, 126
        %v5041 = vpop.permute.xlu0 %5040
        %5042 = vrot.lane.b32.xlu0 %v4976, 126
        %v5043 = vpop.permute.xlu0 %5042
        %5044 = vrot.lane.b32.xlu0 %v4977, 126
        %v5045 = vpop.permute.xlu0 %5044
        %5046 = vrot.lane.b32.xlu0 %v4978, 126
        %v5047 = vpop.permute.xlu0 %5046
        %5048 = vrot.lane.b32.xlu0 %v4979, 126
        %v5049 = vpop.permute.xlu0 %5048
        %5050 = vrot.lane.b32.xlu0 %v4980, 126
        %v5051 = vpop.permute.xlu0 %5050
        %5052 = vrot.lane.b32.xlu0 %v4981, 126
        %v5053 = vpop.permute.xlu0 %5052
        %5054 = vrot.lane.b32.xlu0 %v4982, 126
        %v5055 = vpop.permute.xlu0 %5054
        %5056 = vrot.lane.b32.xlu0 %v4983, 126
        %v5057 = vpop.permute.xlu0 %5056
        %5058 = vrot.lane.b32.xlu0 %v4984, 126
        %v5059 = vpop.permute.xlu0 %5058
        %5060 = vrot.lane.b32.xlu0 %v4985, 126
        %v5061 = vpop.permute.xlu0 %5060
        %5062 = vrot.lane.b32.xlu0 %v4986, 126
        %v5063 = vpop.permute.xlu0 %5062
        %5064 = vrot.lane.b32.xlu0 %v4987, 126
        %v5065 = vpop.permute.xlu0 %5064
        %5066 = vrot.lane.b32.xlu0 %v4988, 126
        %v5067 = vpop.permute.xlu0 %5066
        %5068 = vrot.lane.b32.xlu0 %v4989, 126
        %v5069 = vpop.permute.xlu0 %5068
        %5070 = vrot.lane.b32.xlu0 %v4990, 126
        %v5071 = vpop.permute.xlu0 %5070
        %5072 = vrot.lane.b32.xlu0 %v4991, 126
        %v5073 = vpop.permute.xlu0 %5072
        %5074 = vrot.lane.b32.xlu0 %v4992, 126
        %v5075 = vpop.permute.xlu0 %5074
        %5076 = vrot.lane.b32.xlu0 %v4993, 126
        %v5077 = vpop.permute.xlu0 %5076
        %5078 = vrot.lane.b32.xlu0 %v4994, 126
        %v5079 = vpop.permute.xlu0 %5078
        %5080 = vrot.lane.b32.xlu0 %v4995, 126
        %v5081 = vpop.permute.xlu0 %5080
        %5082 = vrot.lane.b32.xlu0 %v4996, 126
        %v5083 = vpop.permute.xlu0 %5082
        %5084 = vrot.lane.b32.xlu0 %v4997, 126
        %v5085 = vpop.permute.xlu0 %5084
        %5086 = vrot.lane.b32.xlu0 %v4998, 126
        %v5087 = vpop.permute.xlu0 %5086
        %5088 = vrot.lane.b32.xlu0 %v4999, 126
        %v5089 = vpop.permute.xlu0 %5088
        %5090 = vrot.lane.b32.xlu0 %v5000, 126
        %v5091 = vpop.permute.xlu0 %5090
        %5092 = vrot.lane.b32.xlu0 %v5001, 126
        %v5093 = vpop.permute.xlu0 %5092
        %5094 = vrot.lane.b32.xlu0 %v5002, 126
        %v5095 = vpop.permute.xlu0 %5094
        %5096 = vrot.lane.b32.xlu0 %v5003, 126
        %v5097 = vpop.permute.xlu0 %5096
        %5098 = vrot.lane.b32.xlu0 %v5004, 126
        %v5099 = vpop.permute.xlu0 %5098
        %5100 = vrot.lane.b32.xlu0 %v5005, 126
        %v5101 = vpop.permute.xlu0 %5100
        %v5102 = vsel %vm294, %v5039, %v5041
        %v5103 = vsel %vm294, %v5041, %v5043
        %v5104 = vsel %vm294, %v5043, %v5045
        %v5105 = vsel %vm294, %v5045, %v5047
        %v5106 = vsel %vm294, %v5047, %v5049
        %v5107 = vsel %vm294, %v5049, %v5051
        %v5108 = vsel %vm294, %v5051, %v5053
        %v5109 = vsel %vm294, %v5055, %v5057
        %v5110 = vsel %vm294, %v5057, %v5059
        %v5111 = vsel %vm294, %v5059, %v5061
        %v5112 = vsel %vm294, %v5061, %v5063
        %v5113 = vsel %vm294, %v5063, %v5065
        %v5114 = vsel %vm294, %v5065, %v5067
        %v5115 = vsel %vm294, %v5067, %v5069
        %v5116 = vsel %vm294, %v5071, %v5073
        %v5117 = vsel %vm294, %v5073, %v5075
        %v5118 = vsel %vm294, %v5075, %v5077
        %v5119 = vsel %vm294, %v5077, %v5079
        %v5120 = vsel %vm294, %v5079, %v5081
        %v5121 = vsel %vm294, %v5081, %v5083
        %v5122 = vsel %vm294, %v5083, %v5085
        %v5123 = vsel %vm294, %v5087, %v5089
        %v5124 = vsel %vm294, %v5089, %v5091
        %v5125 = vsel %vm294, %v5091, %v5093
        %v5126 = vsel %vm294, %v5093, %v5095
        %v5127 = vsel %vm294, %v5095, %v5097
        %v5128 = vsel %vm294, %v5097, %v5099
        %v5129 = vsel %vm294, %v5099, %v5101
        %v5158 = vmax.f32 %v4974, %v5102
        %v5159 = vmax.f32 %v4975, %v5103
        %v5160 = vmax.f32 %v4976, %v5104
        %v5161 = vmax.f32 %v4977, %v5105
        %v5162 = vmax.f32 %v4978, %v5106
        %v5163 = vmax.f32 %v4979, %v5107
        %v5164 = vmax.f32 %v4980, %v5108
        %v5165 = vmax.f32 %v4982, %v5109
        %v5166 = vmax.f32 %v4983, %v5110
        %v5167 = vmax.f32 %v4984, %v5111
        %v5168 = vmax.f32 %v4985, %v5112
        %v5169 = vmax.f32 %v4986, %v5113
        %v5170 = vmax.f32 %v4987, %v5114
        %v5171 = vmax.f32 %v4988, %v5115
        %v5172 = vmax.f32 %v4990, %v5116
        %v5173 = vmax.f32 %v4991, %v5117
        %v5174 = vmax.f32 %v4992, %v5118
        %v5175 = vmax.f32 %v4993, %v5119
        %v5176 = vmax.f32 %v4994, %v5120
        %v5177 = vmax.f32 %v4995, %v5121
        %v5178 = vmax.f32 %v4996, %v5122
        %v5179 = vmax.f32 %v4998, %v5123
        %v5180 = vmax.f32 %v4999, %v5124
        %v5181 = vmax.f32 %v5000, %v5125
        %v5182 = vmax.f32 %v5001, %v5126
        %v5183 = vmax.f32 %v5002, %v5127
        %v5184 = vmax.f32 %v5003, %v5128
        %v5185 = vmax.f32 %v5004, %v5129
        %v5190 = vmax.f32 %v4981, %v5053
        %v5191 = vmax.f32 %v4989, %v5069
        %v5192 = vmax.f32 %v4997, %v5085
        %v5193 = vmax.f32 %v5005, %v5101
        %5226 = vrot.lane.b32.xlu0 %v5158, 56
        %v5227 = vpop.permute.xlu0 %5226
        %5228 = vrot.lane.b32.xlu0 %v5159, 56
        %v5229 = vpop.permute.xlu0 %5228
        %5230 = vrot.lane.b32.xlu0 %v5160, 56
        %v5231 = vpop.permute.xlu0 %5230
        %5232 = vrot.lane.b32.xlu0 %v5161, 56
        %v5233 = vpop.permute.xlu0 %5232
        %5234 = vrot.lane.b32.xlu0 %v5162, 56
        %v5235 = vpop.permute.xlu0 %5234
        %5236 = vrot.lane.b32.xlu0 %v5163, 56
        %v5237 = vpop.permute.xlu0 %5236
        %5238 = vrot.lane.b32.xlu0 %v5164, 56
        %v5239 = vpop.permute.xlu0 %5238
        %5240 = vrot.lane.b32.xlu0 %v5190, 56
        %v5241 = vpop.permute.xlu0 %5240
        %5242 = vrot.lane.b32.xlu0 %v5165, 56
        %v5243 = vpop.permute.xlu0 %5242
        %5244 = vrot.lane.b32.xlu0 %v5166, 56
        %v5245 = vpop.permute.xlu0 %5244
        %5246 = vrot.lane.b32.xlu0 %v5167, 56
        %v5247 = vpop.permute.xlu0 %5246
        %5248 = vrot.lane.b32.xlu0 %v5168, 56
        %v5249 = vpop.permute.xlu0 %5248
        %5250 = vrot.lane.b32.xlu0 %v5169, 56
        %v5251 = vpop.permute.xlu0 %5250
        %5252 = vrot.lane.b32.xlu0 %v5170, 56
        %v5253 = vpop.permute.xlu0 %5252
        %5254 = vrot.lane.b32.xlu0 %v5171, 56
        %v5255 = vpop.permute.xlu0 %5254
        %5256 = vrot.lane.b32.xlu0 %v5191, 56
        %v5257 = vpop.permute.xlu0 %5256
        %5258 = vrot.lane.b32.xlu0 %v5172, 56
        %v5259 = vpop.permute.xlu0 %5258
        %5260 = vrot.lane.b32.xlu0 %v5173, 56
        %v5261 = vpop.permute.xlu0 %5260
        %5262 = vrot.lane.b32.xlu0 %v5174, 56
        %v5263 = vpop.permute.xlu0 %5262
        %5264 = vrot.lane.b32.xlu0 %v5175, 56
        %v5265 = vpop.permute.xlu0 %5264
        %5266 = vrot.lane.b32.xlu0 %v5176, 56
        %v5267 = vpop.permute.xlu0 %5266
        %5268 = vrot.lane.b32.xlu0 %v5177, 56
        %v5269 = vpop.permute.xlu0 %5268
        %5270 = vrot.lane.b32.xlu0 %v5178, 56
        %v5271 = vpop.permute.xlu0 %5270
        %5272 = vrot.lane.b32.xlu0 %v5192, 56
        %v5273 = vpop.permute.xlu0 %5272
        %5274 = vrot.lane.b32.xlu0 %v5179, 56
        %v5275 = vpop.permute.xlu0 %5274
        %5276 = vrot.lane.b32.xlu0 %v5180, 56
        %v5277 = vpop.permute.xlu0 %5276
        %5278 = vrot.lane.b32.xlu0 %v5181, 56
        %v5279 = vpop.permute.xlu0 %5278
        %5280 = vrot.lane.b32.xlu0 %v5182, 56
        %v5281 = vpop.permute.xlu0 %5280
        %5282 = vrot.lane.b32.xlu0 %v5183, 56
        %v5283 = vpop.permute.xlu0 %5282
        %5284 = vrot.lane.b32.xlu0 %v5184, 56
        %v5285 = vpop.permute.xlu0 %5284
        %5286 = vrot.lane.b32.xlu0 %v5185, 56
        %v5287 = vpop.permute.xlu0 %5286
        %5288 = vrot.lane.b32.xlu0 %v5193, 56
        %v5289 = vpop.permute.xlu0 %5288
        %vm5290 = vcmask 457728
        %v5291 = vsel %vm5290, %v5227, %v5229
        %v5292 = vsel %vm5290, %v5229, %v5231
        %v5293 = vsel %vm5290, %v5231, %v5233
        %v5294 = vsel %vm5290, %v5233, %v5235
        %v5295 = vsel %vm5290, %v5235, %v5237
        %v5296 = vsel %vm5290, %v5237, %v5239
        %v5297 = vsel %vm5290, %v5239, %v5241
        %v5298 = vsel %vm5290, %v5243, %v5245
        %v5299 = vsel %vm5290, %v5245, %v5247
        %v5300 = vsel %vm5290, %v5247, %v5249
        %v5301 = vsel %vm5290, %v5249, %v5251
        %v5302 = vsel %vm5290, %v5251, %v5253
        %v5303 = vsel %vm5290, %v5253, %v5255
        %v5304 = vsel %vm5290, %v5255, %v5257
        %v5305 = vsel %vm5290, %v5259, %v5261
        %v5306 = vsel %vm5290, %v5261, %v5263
        %v5307 = vsel %vm5290, %v5263, %v5265
        %v5308 = vsel %vm5290, %v5265, %v5267
        %v5309 = vsel %vm5290, %v5267, %v5269
        %v5310 = vsel %vm5290, %v5269, %v5271
        %v5311 = vsel %vm5290, %v5271, %v5273
        %v5312 = vsel %vm5290, %v5275, %v5277
        %v5313 = vsel %vm5290, %v5277, %v5279
        %v5314 = vsel %vm5290, %v5279, %v5281
        %v5315 = vsel %vm5290, %v5281, %v5283
        %v5316 = vsel %vm5290, %v5283, %v5285
        %v5317 = vsel %vm5290, %v5285, %v5287
        %v5318 = vsel %vm5290, %v5287, %v5289
        %v5347 = vmax.f32 %v5158, %v5291
        %v5348 = vmax.f32 %v5159, %v5292
        %v5349 = vmax.f32 %v5160, %v5293
        %v5350 = vmax.f32 %v5161, %v5294
        %v5351 = vmax.f32 %v5162, %v5295
        %v5352 = vmax.f32 %v5163, %v5296
        %v5353 = vmax.f32 %v5164, %v5297
        %v5354 = vmax.f32 %v5165, %v5298
        %v5355 = vmax.f32 %v5166, %v5299
        %v5356 = vmax.f32 %v5167, %v5300
        %v5357 = vmax.f32 %v5168, %v5301
        %v5358 = vmax.f32 %v5169, %v5302
        %v5359 = vmax.f32 %v5170, %v5303
        %v5360 = vmax.f32 %v5171, %v5304
        %v5361 = vmax.f32 %v5172, %v5305
        %v5362 = vmax.f32 %v5173, %v5306
        %v5363 = vmax.f32 %v5174, %v5307
        %v5364 = vmax.f32 %v5175, %v5308
        %v5365 = vmax.f32 %v5176, %v5309
        %v5366 = vmax.f32 %v5177, %v5310
        %v5367 = vmax.f32 %v5178, %v5311
        %v5368 = vmax.f32 %v5179, %v5312
        %v5369 = vmax.f32 %v5180, %v5313
        %v5370 = vmax.f32 %v5181, %v5314
        %v5371 = vmax.f32 %v5182, %v5315
        %v5372 = vmax.f32 %v5183, %v5316
        %v5373 = vmax.f32 %v5184, %v5317
        %v5374 = vmax.f32 %v5185, %v5318
        %v5375 = vld [vmem:[%s5] sm:$0xff]
        %v5376 = vld [vmem:[%s5 + $0x8] sm:$0xff]
        %v5377 = vld [vmem:[%s5 + $0x10] sm:$0xff]
        %v5378 = vld [vmem:[%s5 + $0x18] sm:$0xff]
        %v5379 = vld [vmem:[%s5 + $0x20] sm:$0xff]
        %v5380 = vld [vmem:[%s5 + $0x28] sm:$0xff]
        %v5381 = vld [vmem:[%s5 + $0x30] sm:$0xff]
        %v5382 = vld [vmem:[%s5 + $0x38] sm:$0xff]
        %v5383 = vld [vmem:[%s5 + $0x40] sm:$0xff]
        %v5384 = vld [vmem:[%s5 + $0x48] sm:$0xff]
        %v5385 = vld [vmem:[%s5 + $0x50] sm:$0xff]
        %v5386 = vld [vmem:[%s5 + $0x58] sm:$0xff]
        %v5387 = vld [vmem:[%s5 + $0x60] sm:$0xff]
        %v5388 = vld [vmem:[%s5 + $0x68] sm:$0xff]
        %v5389 = vld [vmem:[%s5 + $0x70] sm:$0xff]
        %v5390 = vld [vmem:[%s5 + $0x78] sm:$0xff]
        %v5391 = vld [vmem:[%s5 + $0x80] sm:$0xff]
        %v5392 = vld [vmem:[%s5 + $0x88] sm:$0xff]
        %v5393 = vld [vmem:[%s5 + $0x90] sm:$0xff]
        %v5394 = vld [vmem:[%s5 + $0x98] sm:$0xff]
        %v5395 = vld [vmem:[%s5 + $0xa0] sm:$0xff]
        %v5396 = vld [vmem:[%s5 + $0xa8] sm:$0xff]
        %v5397 = vld [vmem:[%s5 + $0xb0] sm:$0xff]
        %v5398 = vld [vmem:[%s5 + $0xb8] sm:$0xff]
        %v5399 = vld [vmem:[%s5 + $0xc0] sm:$0xff]
        %v5400 = vld [vmem:[%s5 + $0xc8] sm:$0xff]
        %v5401 = vld [vmem:[%s5 + $0xd0] sm:$0xff]
        %v5402 = vld [vmem:[%s5 + $0xd8] sm:$0xff]
        %v5403 = vld [vmem:[%s5 + $0xe0] sm:$0xff]
        %v5404 = vld [vmem:[%s5 + $0xe8] sm:$0xff]
        %v5405 = vld [vmem:[%s5 + $0xf0] sm:$0xff]
        %v5406 = vld [vmem:[%s5 + $0xf8] sm:$0xff]
        %v5407 = vld [vmem:[%s5 + $0x100] sm:$0xff]
        %v5408 = vld [vmem:[%s5 + $0x108] sm:$0xff]
        %v5409 = vld [vmem:[%s5 + $0x110] sm:$0xff]
        %v5410 = vld [vmem:[%s5 + $0x118] sm:$0xff]
        %v5411 = vld [vmem:[%s5 + $0x120] sm:$0xff]
        %v5412 = vld [vmem:[%s5 + $0x128] sm:$0xff]
        %v5413 = vld [vmem:[%s5 + $0x130] sm:$0xff]
        %v5414 = vld [vmem:[%s5 + $0x138] sm:$0xff]
        %v5415 = vld [vmem:[%s5 + $0x140] sm:$0xff]
        %v5416 = vld [vmem:[%s5 + $0x148] sm:$0xff]
        %v5417 = vld [vmem:[%s5 + $0x150] sm:$0xff]
        %v5418 = vld [vmem:[%s5 + $0x158] sm:$0xff]
        %v5419 = vld [vmem:[%s5 + $0x160] sm:$0xff]
        %v5420 = vld [vmem:[%s5 + $0x168] sm:$0xff]
        %v5421 = vld [vmem:[%s5 + $0x170] sm:$0xff]
        %v5422 = vld [vmem:[%s5 + $0x178] sm:$0xff]
        %v5423 = vld [vmem:[%s5 + $0x180] sm:$0xff]
        %v5424 = vld [vmem:[%s5 + $0x188] sm:$0xff]
        %v5425 = vld [vmem:[%s5 + $0x190] sm:$0xff]
        %v5426 = vld [vmem:[%s5 + $0x198] sm:$0xff]
        %v5427 = vld [vmem:[%s5 + $0x1a0] sm:$0xff]
        %v5428 = vld [vmem:[%s5 + $0x1a8] sm:$0xff]
        %v5429 = vld [vmem:[%s5 + $0x1b0] sm:$0xff]
        %v5430 = vld [vmem:[%s5 + $0x1b8] sm:$0xff]
        %v5431 = vld [vmem:[%s5 + $0x1c0] sm:$0xff]
        %v5432 = vld [vmem:[%s5 + $0x1c8] sm:$0xff]
        %v5433 = vld [vmem:[%s5 + $0x1d0] sm:$0xff]
        %v5434 = vld [vmem:[%s5 + $0x1d8] sm:$0xff]
        %v5435 = vld [vmem:[%s5 + $0x1e0] sm:$0xff]
        %v5436 = vld [vmem:[%s5 + $0x1e8] sm:$0xff]
        %v5437 = vld [vmem:[%s5 + $0x1f0] sm:$0xff]
        %v5438 = vld [vmem:[%s5 + $0x1f8] sm:$0xff]
        %v5439 = vld [vmem:[%s5 + $0x200] sm:$0xff]
        %v5440 = vld [vmem:[%s5 + $0x208] sm:$0xff]
        %v5441 = vld [vmem:[%s5 + $0x210] sm:$0xff]
        %v5442 = vld [vmem:[%s5 + $0x218] sm:$0xff]
        %v5443 = vld [vmem:[%s5 + $0x220] sm:$0xff]
        %v5444 = vld [vmem:[%s5 + $0x228] sm:$0xff]
        %v5445 = vld [vmem:[%s5 + $0x230] sm:$0xff]
        %v5446 = vld [vmem:[%s5 + $0x238] sm:$0xff]
        %v5447 = vld [vmem:[%s5 + $0x240] sm:$0xff]
        %v5448 = vld [vmem:[%s5 + $0x248] sm:$0xff]
        %v5449 = vld [vmem:[%s5 + $0x250] sm:$0xff]
        %v5450 = vld [vmem:[%s5 + $0x258] sm:$0xff]
        %v5451 = vld [vmem:[%s5 + $0x260] sm:$0xff]
        %v5452 = vld [vmem:[%s5 + $0x268] sm:$0xff]
        %v5453 = vld [vmem:[%s5 + $0x270] sm:$0xff]
        %v5454 = vld [vmem:[%s5 + $0x278] sm:$0xff]
        %v5455 = vld [vmem:[%s5 + $0x280] sm:$0xff]
        %v5456 = vld [vmem:[%s5 + $0x288] sm:$0xff]
        %v5457 = vld [vmem:[%s5 + $0x290] sm:$0xff]
        %v5458 = vld [vmem:[%s5 + $0x298] sm:$0xff]
        %v5459 = vld [vmem:[%s5 + $0x2a0] sm:$0xff]
        %v5460 = vld [vmem:[%s5 + $0x2a8] sm:$0xff]
        %v5461 = vld [vmem:[%s5 + $0x2b0] sm:$0xff]
        %v5462 = vld [vmem:[%s5 + $0x2b8] sm:$0xff]
        %v5463 = vld [vmem:[%s5 + $0x2c0] sm:$0xff]
        %v5464 = vld [vmem:[%s5 + $0x2c8] sm:$0xff]
        %v5465 = vld [vmem:[%s5 + $0x2d0] sm:$0xff]
        %v5466 = vld [vmem:[%s5 + $0x2d8] sm:$0xff]
        %v5467 = vld [vmem:[%s5 + $0x2e0] sm:$0xff]
        %v5468 = vld [vmem:[%s5 + $0x2e8] sm:$0xff]
        %v5469 = vld [vmem:[%s5 + $0x2f0] sm:$0xff]
        %v5470 = vld [vmem:[%s5 + $0x2f8] sm:$0xff]
        %v5471 = vld [vmem:[%s5 + $0x300] sm:$0xff]
        %v5472 = vld [vmem:[%s5 + $0x308] sm:$0xff]
        %v5473 = vld [vmem:[%s5 + $0x310] sm:$0xff]
        %v5474 = vld [vmem:[%s5 + $0x318] sm:$0xff]
        %v5475 = vld [vmem:[%s5 + $0x320] sm:$0xff]
        %v5476 = vld [vmem:[%s5 + $0x328] sm:$0xff]
        %v5477 = vld [vmem:[%s5 + $0x330] sm:$0xff]
        %v5478 = vld [vmem:[%s5 + $0x338] sm:$0xff]
        %v5479 = vld [vmem:[%s5 + $0x340] sm:$0xff]
        %v5480 = vld [vmem:[%s5 + $0x348] sm:$0xff]
        %v5481 = vld [vmem:[%s5 + $0x350] sm:$0xff]
        %v5482 = vld [vmem:[%s5 + $0x358] sm:$0xff]
        %v5483 = vld [vmem:[%s5 + $0x360] sm:$0xff]
        %v5484 = vld [vmem:[%s5 + $0x368] sm:$0xff]
        %v5485 = vld [vmem:[%s5 + $0x370] sm:$0xff]
        %v5486 = vld [vmem:[%s5 + $0x378] sm:$0xff]
        %v5487 = vld [vmem:[%s5 + $0x380] sm:$0xff]
        %v5488 = vld [vmem:[%s5 + $0x388] sm:$0xff]
        %v5489 = vld [vmem:[%s5 + $0x390] sm:$0xff]
        %v5490 = vld [vmem:[%s5 + $0x398] sm:$0xff]
        %v5491 = vld [vmem:[%s5 + $0x3a0] sm:$0xff]
        %v5492 = vld [vmem:[%s5 + $0x3a8] sm:$0xff]
        %v5493 = vld [vmem:[%s5 + $0x3b0] sm:$0xff]
        %v5494 = vld [vmem:[%s5 + $0x3b8] sm:$0xff]
        %v5495 = vld [vmem:[%s5 + $0x3c0] sm:$0xff]
        %v5496 = vld [vmem:[%s5 + $0x3c8] sm:$0xff]
        %v5497 = vld [vmem:[%s5 + $0x3d0] sm:$0xff]
        %v5498 = vld [vmem:[%s5 + $0x3d8] sm:$0xff]
        %v5499 = vld [vmem:[%s5 + $0x3e0] sm:$0xff]
        %v5500 = vld [vmem:[%s5 + $0x3e8] sm:$0xff]
        %v5501 = vld [vmem:[%s5 + $0x3f0] sm:$0xff]
        %v5502 = vld [vmem:[%s5 + $0x3f8] sm:$0xff]
        %v5503 = vld [vmem:[%s5 + $0x400] sm:$0xff]
        %v5504 = vld [vmem:[%s5 + $0x408] sm:$0xff]
        %v5505 = vld [vmem:[%s5 + $0x410] sm:$0xff]
        %v5506 = vld [vmem:[%s5 + $0x418] sm:$0xff]
        %v5507 = vld [vmem:[%s5 + $0x420] sm:$0xff]
        %v5508 = vld [vmem:[%s5 + $0x428] sm:$0xff]
        %v5509 = vld [vmem:[%s5 + $0x430] sm:$0xff]
        %v5510 = vld [vmem:[%s5 + $0x438] sm:$0xff]
        %v5511 = vld [vmem:[%s5 + $0x440] sm:$0xff]
        %v5512 = vld [vmem:[%s5 + $0x448] sm:$0xff]
        %v5513 = vld [vmem:[%s5 + $0x450] sm:$0xff]
        %v5514 = vld [vmem:[%s5 + $0x458] sm:$0xff]
        %v5515 = vld [vmem:[%s5 + $0x460] sm:$0xff]
        %v5516 = vld [vmem:[%s5 + $0x468] sm:$0xff]
        %v5517 = vld [vmem:[%s5 + $0x470] sm:$0xff]
        %v5518 = vld [vmem:[%s5 + $0x478] sm:$0xff]
        %v5519 = vld [vmem:[%s5 + $0x480] sm:$0xff]
        %v5520 = vld [vmem:[%s5 + $0x488] sm:$0xff]
        %v5521 = vld [vmem:[%s5 + $0x490] sm:$0xff]
        %v5522 = vld [vmem:[%s5 + $0x498] sm:$0xff]
        %v5523 = vld [vmem:[%s5 + $0x4a0] sm:$0xff]
        %v5524 = vld [vmem:[%s5 + $0x4a8] sm:$0xff]
        %v5525 = vld [vmem:[%s5 + $0x4b0] sm:$0xff]
        %v5526 = vld [vmem:[%s5 + $0x4b8] sm:$0xff]
        %v5527 = vld [vmem:[%s5 + $0x4c0] sm:$0xff]
        %v5528 = vld [vmem:[%s5 + $0x4c8] sm:$0xff]
        %v5529 = vld [vmem:[%s5 + $0x4d0] sm:$0xff]
        %v5530 = vld [vmem:[%s5 + $0x4d8] sm:$0xff]
        %v5531 = vld [vmem:[%s5 + $0x4e0] sm:$0xff]
        %v5532 = vld [vmem:[%s5 + $0x4e8] sm:$0xff]
        %v5533 = vld [vmem:[%s5 + $0x4f0] sm:$0xff]
        %v5534 = vld [vmem:[%s5 + $0x4f8] sm:$0xff]
        %v5535 = vld [vmem:[%s5 + $0x500] sm:$0xff]
        %v5536 = vld [vmem:[%s5 + $0x508] sm:$0xff]
        %v5537 = vld [vmem:[%s5 + $0x510] sm:$0xff]
        %v5538 = vld [vmem:[%s5 + $0x518] sm:$0xff]
        %v5539 = vld [vmem:[%s5 + $0x520] sm:$0xff]
        %v5540 = vld [vmem:[%s5 + $0x528] sm:$0xff]
        %v5541 = vld [vmem:[%s5 + $0x530] sm:$0xff]
        %v5542 = vld [vmem:[%s5 + $0x538] sm:$0xff]
        %v5543 = vld [vmem:[%s5 + $0x540] sm:$0xff]
        %v5544 = vld [vmem:[%s5 + $0x548] sm:$0xff]
        %v5545 = vld [vmem:[%s5 + $0x550] sm:$0xff]
        %v5546 = vld [vmem:[%s5 + $0x558] sm:$0xff]
        %v5547 = vld [vmem:[%s5 + $0x560] sm:$0xff]
        %v5548 = vld [vmem:[%s5 + $0x568] sm:$0xff]
        %v5549 = vld [vmem:[%s5 + $0x570] sm:$0xff]
        %v5550 = vld [vmem:[%s5 + $0x578] sm:$0xff]
        %v5551 = vld [vmem:[%s5 + $0x580] sm:$0xff]
        %v5552 = vld [vmem:[%s5 + $0x588] sm:$0xff]
        %v5553 = vld [vmem:[%s5 + $0x590] sm:$0xff]
        %v5554 = vld [vmem:[%s5 + $0x598] sm:$0xff]
        %v5555 = vld [vmem:[%s5 + $0x5a0] sm:$0xff]
        %v5556 = vld [vmem:[%s5 + $0x5a8] sm:$0xff]
        %v5557 = vld [vmem:[%s5 + $0x5b0] sm:$0xff]
        %v5558 = vld [vmem:[%s5 + $0x5b8] sm:$0xff]
        %v5559 = vld [vmem:[%s5 + $0x5c0] sm:$0xff]
        %v5560 = vld [vmem:[%s5 + $0x5c8] sm:$0xff]
        %v5561 = vld [vmem:[%s5 + $0x5d0] sm:$0xff]
        %v5562 = vld [vmem:[%s5 + $0x5d8] sm:$0xff]
        %v5563 = vld [vmem:[%s5 + $0x5e0] sm:$0xff]
        %v5564 = vld [vmem:[%s5 + $0x5e8] sm:$0xff]
        %v5565 = vld [vmem:[%s5 + $0x5f0] sm:$0xff]
        %v5566 = vld [vmem:[%s5 + $0x5f8] sm:$0xff]
        %v5567 = vld [vmem:[%s5 + $0x600] sm:$0xff]
        %v5568 = vld [vmem:[%s5 + $0x608] sm:$0xff]
        %v5569 = vld [vmem:[%s5 + $0x610] sm:$0xff]
        %v5570 = vld [vmem:[%s5 + $0x618] sm:$0xff]
        %v5571 = vld [vmem:[%s5 + $0x620] sm:$0xff]
        %v5572 = vld [vmem:[%s5 + $0x628] sm:$0xff]
        %v5573 = vld [vmem:[%s5 + $0x630] sm:$0xff]
        %v5574 = vld [vmem:[%s5 + $0x638] sm:$0xff]
        %v5575 = vld [vmem:[%s5 + $0x640] sm:$0xff]
        %v5576 = vld [vmem:[%s5 + $0x648] sm:$0xff]
        %v5577 = vld [vmem:[%s5 + $0x650] sm:$0xff]
        %v5578 = vld [vmem:[%s5 + $0x658] sm:$0xff]
        %v5579 = vld [vmem:[%s5 + $0x660] sm:$0xff]
        %v5580 = vld [vmem:[%s5 + $0x668] sm:$0xff]
        %v5581 = vld [vmem:[%s5 + $0x670] sm:$0xff]
        %v5582 = vld [vmem:[%s5 + $0x678] sm:$0xff]
        %v5583 = vld [vmem:[%s5 + $0x680] sm:$0xff]
        %v5584 = vld [vmem:[%s5 + $0x688] sm:$0xff]
        %v5585 = vld [vmem:[%s5 + $0x690] sm:$0xff]
        %v5586 = vld [vmem:[%s5 + $0x698] sm:$0xff]
        %v5587 = vld [vmem:[%s5 + $0x6a0] sm:$0xff]
        %v5588 = vld [vmem:[%s5 + $0x6a8] sm:$0xff]
        %v5589 = vld [vmem:[%s5 + $0x6b0] sm:$0xff]
        %v5590 = vld [vmem:[%s5 + $0x6b8] sm:$0xff]
        %v5591 = vld [vmem:[%s5 + $0x6c0] sm:$0xff]
        %v5592 = vld [vmem:[%s5 + $0x6c8] sm:$0xff]
        %v5593 = vld [vmem:[%s5 + $0x6d0] sm:$0xff]
        %v5594 = vld [vmem:[%s5 + $0x6d8] sm:$0xff]
        %v5595 = vld [vmem:[%s5 + $0x6e0] sm:$0xff]
        %v5596 = vld [vmem:[%s5 + $0x6e8] sm:$0xff]
        %v5597 = vld [vmem:[%s5 + $0x6f0] sm:$0xff]
        %v5598 = vld [vmem:[%s5 + $0x6f8] sm:$0xff]
        %v5599 = vld [vmem:[%s5 + $0x700] sm:$0xff]
        %v5600 = vld [vmem:[%s5 + $0x708] sm:$0xff]
        %v5601 = vld [vmem:[%s5 + $0x710] sm:$0xff]
        %v5602 = vld [vmem:[%s5 + $0x718] sm:$0xff]
        %v5603 = vld [vmem:[%s5 + $0x720] sm:$0xff]
        %v5604 = vld [vmem:[%s5 + $0x728] sm:$0xff]
        %v5605 = vld [vmem:[%s5 + $0x730] sm:$0xff]
        %v5606 = vld [vmem:[%s5 + $0x738] sm:$0xff]
        %v5607 = vld [vmem:[%s5 + $0x740] sm:$0xff]
        %v5608 = vld [vmem:[%s5 + $0x748] sm:$0xff]
        %v5609 = vld [vmem:[%s5 + $0x750] sm:$0xff]
        %v5610 = vld [vmem:[%s5 + $0x758] sm:$0xff]
        %v5611 = vld [vmem:[%s5 + $0x760] sm:$0xff]
        %v5612 = vld [vmem:[%s5 + $0x768] sm:$0xff]
        %v5613 = vld [vmem:[%s5 + $0x770] sm:$0xff]
        %v5614 = vld [vmem:[%s5 + $0x778] sm:$0xff]
        %v5615 = vld [vmem:[%s5 + $0x780] sm:$0xff]
        %v5616 = vld [vmem:[%s5 + $0x788] sm:$0xff]
        %v5617 = vld [vmem:[%s5 + $0x790] sm:$0xff]
        %v5618 = vld [vmem:[%s5 + $0x798] sm:$0xff]
        %v5619 = vld [vmem:[%s5 + $0x7a0] sm:$0xff]
        %v5620 = vld [vmem:[%s5 + $0x7a8] sm:$0xff]
        %v5621 = vld [vmem:[%s5 + $0x7b0] sm:$0xff]
        %v5622 = vld [vmem:[%s5 + $0x7b8] sm:$0xff]
        %v5623 = vld [vmem:[%s5 + $0x7c0] sm:$0xff]
        %v5624 = vld [vmem:[%s5 + $0x7c8] sm:$0xff]
        %v5625 = vld [vmem:[%s5 + $0x7d0] sm:$0xff]
        %v5626 = vld [vmem:[%s5 + $0x7d8] sm:$0xff]
        %v5627 = vld [vmem:[%s5 + $0x7e0] sm:$0xff]
        %v5628 = vld [vmem:[%s5 + $0x7e8] sm:$0xff]
        %v5629 = vld [vmem:[%s5 + $0x7f0] sm:$0xff]
        %v5630 = vld [vmem:[%s5 + $0x7f8] sm:$0xff]
        %v5631 = vld [vmem:[%s5 + $0x800] sm:$0xff]
        %v5632 = vld [vmem:[%s5 + $0x808] sm:$0xff]
        %v5633 = vld [vmem:[%s5 + $0x810] sm:$0xff]
        %v5634 = vld [vmem:[%s5 + $0x818] sm:$0xff]
        %v5635 = vld [vmem:[%s5 + $0x820] sm:$0xff]
        %v5636 = vld [vmem:[%s5 + $0x828] sm:$0xff]
        %v5637 = vld [vmem:[%s5 + $0x830] sm:$0xff]
        %v5638 = vld [vmem:[%s5 + $0x838] sm:$0xff]
        %v5639 = vld [vmem:[%s5 + $0x840] sm:$0xff]
        %v5640 = vld [vmem:[%s5 + $0x848] sm:$0xff]
        %v5641 = vld [vmem:[%s5 + $0x850] sm:$0xff]
        %v5642 = vld [vmem:[%s5 + $0x858] sm:$0xff]
        %v5643 = vld [vmem:[%s5 + $0x860] sm:$0xff]
        %v5644 = vld [vmem:[%s5 + $0x868] sm:$0xff]
        %v5645 = vld [vmem:[%s5 + $0x870] sm:$0xff]
        %v5646 = vld [vmem:[%s5 + $0x878] sm:$0xff]
        %v5647 = vld [vmem:[%s5 + $0x880] sm:$0xff]
        %v5648 = vld [vmem:[%s5 + $0x888] sm:$0xff]
        %v5649 = vld [vmem:[%s5 + $0x890] sm:$0xff]
        %v5650 = vld [vmem:[%s5 + $0x898] sm:$0xff]
        %v5651 = vld [vmem:[%s5 + $0x8a0] sm:$0xff]
        %v5652 = vld [vmem:[%s5 + $0x8a8] sm:$0xff]
        %v5653 = vld [vmem:[%s5 + $0x8b0] sm:$0xff]
        %v5654 = vld [vmem:[%s5 + $0x8b8] sm:$0xff]
        %v5655 = vld [vmem:[%s5 + $0x8c0] sm:$0xff]
        %v5656 = vld [vmem:[%s5 + $0x8c8] sm:$0xff]
        %v5657 = vld [vmem:[%s5 + $0x8d0] sm:$0xff]
        %v5658 = vld [vmem:[%s5 + $0x8d8] sm:$0xff]
        %v5659 = vld [vmem:[%s5 + $0x8e0] sm:$0xff]
        %v5660 = vld [vmem:[%s5 + $0x8e8] sm:$0xff]
        %v5661 = vld [vmem:[%s5 + $0x8f0] sm:$0xff]
        %v5662 = vld [vmem:[%s5 + $0x8f8] sm:$0xff]
        %v5663 = vld [vmem:[%s5 + $0x900] sm:$0xff]
        %v5664 = vld [vmem:[%s5 + $0x908] sm:$0xff]
        %v5665 = vld [vmem:[%s5 + $0x910] sm:$0xff]
        %v5666 = vld [vmem:[%s5 + $0x918] sm:$0xff]
        %v5667 = vld [vmem:[%s5 + $0x920] sm:$0xff]
        %v5668 = vld [vmem:[%s5 + $0x928] sm:$0xff]
        %v5669 = vld [vmem:[%s5 + $0x930] sm:$0xff]
        %v5670 = vld [vmem:[%s5 + $0x938] sm:$0xff]
        %v5671 = vld [vmem:[%s5 + $0x940] sm:$0xff]
        %v5672 = vld [vmem:[%s5 + $0x948] sm:$0xff]
        %v5673 = vld [vmem:[%s5 + $0x950] sm:$0xff]
        %v5674 = vld [vmem:[%s5 + $0x958] sm:$0xff]
        %v5675 = vld [vmem:[%s5 + $0x960] sm:$0xff]
        %v5676 = vld [vmem:[%s5 + $0x968] sm:$0xff]
        %v5677 = vld [vmem:[%s5 + $0x970] sm:$0xff]
        %v5678 = vld [vmem:[%s5 + $0x978] sm:$0xff]
        %v5679 = vld [vmem:[%s5 + $0x980] sm:$0xff]
        %v5680 = vld [vmem:[%s5 + $0x988] sm:$0xff]
        %v5681 = vld [vmem:[%s5 + $0x990] sm:$0xff]
        %v5682 = vld [vmem:[%s5 + $0x998] sm:$0xff]
        %v5683 = vld [vmem:[%s5 + $0x9a0] sm:$0xff]
        %v5684 = vld [vmem:[%s5 + $0x9a8] sm:$0xff]
        %v5685 = vld [vmem:[%s5 + $0x9b0] sm:$0xff]
        %v5686 = vld [vmem:[%s5 + $0x9b8] sm:$0xff]
        %v5687 = vld [vmem:[%s5 + $0x9c0] sm:$0xff]
        %v5688 = vld [vmem:[%s5 + $0x9c8] sm:$0xff]
        %v5689 = vld [vmem:[%s5 + $0x9d0] sm:$0xff]
        %v5690 = vld [vmem:[%s5 + $0x9d8] sm:$0xff]
        %v5691 = vld [vmem:[%s5 + $0x9e0] sm:$0xff]
        %v5692 = vld [vmem:[%s5 + $0x9e8] sm:$0xff]
        %v5693 = vld [vmem:[%s5 + $0x9f0] sm:$0xff]
        %v5694 = vld [vmem:[%s5 + $0x9f8] sm:$0xff]
        %v5695 = vld [vmem:[%s5 + $0xa00] sm:$0xff]
        %v5696 = vld [vmem:[%s5 + $0xa08] sm:$0xff]
        %v5697 = vld [vmem:[%s5 + $0xa10] sm:$0xff]
        %v5698 = vld [vmem:[%s5 + $0xa18] sm:$0xff]
        %v5699 = vld [vmem:[%s5 + $0xa20] sm:$0xff]
        %v5700 = vld [vmem:[%s5 + $0xa28] sm:$0xff]
        %v5701 = vld [vmem:[%s5 + $0xa30] sm:$0xff]
        %v5702 = vld [vmem:[%s5 + $0xa38] sm:$0xff]
        %v5703 = vld [vmem:[%s5 + $0xa40] sm:$0xff]
        %v5704 = vld [vmem:[%s5 + $0xa48] sm:$0xff]
        %v5705 = vld [vmem:[%s5 + $0xa50] sm:$0xff]
        %v5706 = vld [vmem:[%s5 + $0xa58] sm:$0xff]
        %v5707 = vld [vmem:[%s5 + $0xa60] sm:$0xff]
        %v5708 = vld [vmem:[%s5 + $0xa68] sm:$0xff]
        %v5709 = vld [vmem:[%s5 + $0xa70] sm:$0xff]
        %v5710 = vld [vmem:[%s5 + $0xa78] sm:$0xff]
        %5711 = vmatprep.subr.mxu0 %v5421
        %5712 = vmatpush1.msra.mxu0 %v5420
        %5713 = vmatprep.subr.mxu0 %v5418
        %5714 = vmatpush1.msra.mxu0 %v5417
        %5715 = vmatprep.subr.mxu0 %v5415
        %5716 = vmatpush1.msra.mxu0 %v5414
        %5717 = vmatprep.subr.mxu0 %v5412
        %5718 = vmatpush1.msra.mxu0 %v5411
        %5719 = vmatprep.subr.mxu0 %v5409
        %5720 = vmatpush1.msra.mxu0 %v5408
        %5721 = vmatprep.subr.mxu0 %v5406
        %5722 = vmatpush1.msra.mxu0 %v5405
        %5723 = vmatprep.subr.mxu0 %v5403
        %5724 = vmatpush1.msra.mxu0 %v5402
        %5725 = vmatprep.subr.mxu0 %v5400
        %5726 = vmatpush1.msra.mxu0 %v5399
        %5727 = vmatprep.subr.mxu0 %v5397
        %5728 = vmatpush1.msra.mxu0 %v5396
        %5729 = vmatprep.subr.mxu0 %v5394
        %5730 = vmatpush1.msra.mxu0 %v5393
        %5731 = vmatprep.subr.mxu0 %v5391
        %5732 = vmatpush1.msra.mxu0 %v5390
        %5733 = vmatprep.subr.mxu0 %v5388
        %5734 = vmatpush1.msra.mxu0 %v5387
        %5735 = vmatprep.subr.mxu0 %v5385
        %5736 = vmatpush1.msra.mxu0 %v5384
        %5737 = vmatprep.subr.mxu0 %v5382
        %5738 = vmatpush1.msra.mxu0 %v5381
        %5739 = vmatprep.subr.mxu0 %v5379
        %5740 = vmatpush1.msra.mxu0 %v5378
        %5741 = vmatprep.subr.mxu0 %v5376
        %5742 = vmatpush1.msra.mxu0 %v5375
        %5743 = vmatprep.subr.mxu0 %v5469
        %5744 = vmatpush2.msra.mxu0 %v5468
        %5745 = vmatprep.subr.mxu0 %v5466
        %5746 = vmatpush2.msra.mxu0 %v5465
        %5747 = vmatprep.subr.mxu0 %v5463
        %5748 = vmatpush2.msra.mxu0 %v5462
        %5749 = vmatprep.subr.mxu0 %v5460
        %5750 = vmatpush2.msra.mxu0 %v5459
        %5751 = vmatprep.subr.mxu0 %v5457
        %5752 = vmatpush2.msra.mxu0 %v5456
        %5753 = vmatprep.subr.mxu0 %v5454
        %5754 = vmatpush2.msra.mxu0 %v5453
        %5755 = vmatprep.subr.mxu0 %v5451
        %5756 = vmatpush2.msra.mxu0 %v5450
        %5757 = vmatprep.subr.mxu0 %v5448
        %5758 = vmatpush2.msra.mxu0 %v5447
        %5759 = vmatprep.subr.mxu0 %v5445
        %5760 = vmatpush2.msra.mxu0 %v5444
        %5761 = vmatprep.subr.mxu0 %v5442
        %5762 = vmatpush2.msra.mxu0 %v5441
        %5763 = vmatprep.subr.mxu0 %v5439
        %5764 = vmatpush2.msra.mxu0 %v5438
        %5765 = vmatprep.subr.mxu0 %v5436
        %5766 = vmatpush2.msra.mxu0 %v5435
        %5767 = vmatprep.subr.mxu0 %v5433
        %5768 = vmatpush2.msra.mxu0 %v5432
        %5769 = vmatprep.subr.mxu0 %v5430
        %5770 = vmatpush2.msra.mxu0 %v5429
        %5771 = vmatprep.subr.mxu0 %v5427
        %5772 = vmatpush2.msra.mxu0 %v5426
        %5773 = vmatprep.subr.mxu0 %v5424
        %5774 = vmatpush2.msra.mxu0 %v5423
        %5775 = vmatprep.mubr.f32.mxu0 %v5348
        %5776 = vmatmul.mubr.f32.gmra.mxu0 %v5347
        %v5777 = vpop.f32.mrf.mxu0
        %v5778 = vadd.f32 0.0, %v5777
        %v5779 = vpop.f32.mrf.mxu0
        %5780 = vmatprep.mubr.f32.mxu0 %v5355
        %5781 = vmatmul.mubr.f32.gmra.mxu0 %v5354
        %v5782 = vpop.f32.mrf.mxu0
        %v5783 = vadd.f32 0.0, %v5782
        %v5784 = vpop.f32.mrf.mxu0
        %v5785 = vadd.f32 0.0, %v5784
        %5786 = vmatprep.mubr.f32.mxu0 %v5362
        %5787 = vmatmul.mubr.f32.gmra.mxu0 %v5361
        %v5788 = vpop.f32.mrf.mxu0
        %v5789 = vpop.f32.mrf.mxu0
        %v5790 = vadd.f32 0.0, %v5789
        %5791 = vmatprep.mubr.f32.mxu0 %v5369
        %5792 = vmatmul.mubr.f32.gmra.mxu0 %v5368
        %v5793 = vpop.f32.mrf.mxu0
        %v5794 = vpop.f32.mrf.mxu0
        %v5795 = vadd.f32 0.0, %v5794
        %5796 = vdwg.mxu0
        %5797 = vmatprep.subr.mxu0 %v5517
        %5798 = vmatpush1.msra.mxu0 %v5516
        %5799 = vmatprep.subr.mxu0 %v5514
        %5800 = vmatpush1.msra.mxu0 %v5513
        %5801 = vmatprep.subr.mxu0 %v5511
        %5802 = vmatpush1.msra.mxu0 %v5510
        %5803 = vmatprep.subr.mxu0 %v5508
        %5804 = vmatpush1.msra.mxu0 %v5507
        %5805 = vmatprep.subr.mxu0 %v5505
        %5806 = vmatpush1.msra.mxu0 %v5504
        %5807 = vmatprep.subr.mxu0 %v5502
        %5808 = vmatpush1.msra.mxu0 %v5501
        %5809 = vmatprep.subr.mxu0 %v5499
        %5810 = vmatpush1.msra.mxu0 %v5498
        %5811 = vmatprep.subr.mxu0 %v5496
        %5812 = vmatpush1.msra.mxu0 %v5495
        %5813 = vmatprep.subr.mxu0 %v5493
        %5814 = vmatpush1.msra.mxu0 %v5492
        %5815 = vmatprep.subr.mxu0 %v5490
        %5816 = vmatpush1.msra.mxu0 %v5489
        %5817 = vmatprep.subr.mxu0 %v5487
        %5818 = vmatpush1.msra.mxu0 %v5486
        %5819 = vmatprep.subr.mxu0 %v5484
        %5820 = vmatpush1.msra.mxu0 %v5483
        %5821 = vmatprep.subr.mxu0 %v5481
        %5822 = vmatpush1.msra.mxu0 %v5480
        %5823 = vmatprep.subr.mxu0 %v5478
        %5824 = vmatpush1.msra.mxu0 %v5477
        %5825 = vmatprep.subr.mxu0 %v5475
        %5826 = vmatpush1.msra.mxu0 %v5474
        %5827 = vmatprep.subr.mxu0 %v5472
        %5828 = vmatpush1.msra.mxu0 %v5471
        %5829 = vmatprep.subr.mxu0 %v5565
        %5830 = vmatpush2.msra.mxu0 %v5564
        %5831 = vmatprep.subr.mxu0 %v5562
        %5832 = vmatpush2.msra.mxu0 %v5561
        %5833 = vmatprep.subr.mxu0 %v5559
        %5834 = vmatpush2.msra.mxu0 %v5558
        %5835 = vmatprep.subr.mxu0 %v5556
        %5836 = vmatpush2.msra.mxu0 %v5555
        %5837 = vmatprep.subr.mxu0 %v5553
        %5838 = vmatpush2.msra.mxu0 %v5552
        %5839 = vmatprep.subr.mxu0 %v5550
        %5840 = vmatpush2.msra.mxu0 %v5549
        %5841 = vmatprep.subr.mxu0 %v5547
        %5842 = vmatpush2.msra.mxu0 %v5546
        %5843 = vmatprep.subr.mxu0 %v5544
        %5844 = vmatpush2.msra.mxu0 %v5543
        %5845 = vmatprep.subr.mxu0 %v5541
        %5846 = vmatpush2.msra.mxu0 %v5540
        %5847 = vmatprep.subr.mxu0 %v5538
        %5848 = vmatpush2.msra.mxu0 %v5537
        %5849 = vmatprep.subr.mxu0 %v5535
        %5850 = vmatpush2.msra.mxu0 %v5534
        %5851 = vmatprep.subr.mxu0 %v5532
        %5852 = vmatpush2.msra.mxu0 %v5531
        %5853 = vmatprep.subr.mxu0 %v5529
        %5854 = vmatpush2.msra.mxu0 %v5528
        %5855 = vmatprep.subr.mxu0 %v5526
        %5856 = vmatpush2.msra.mxu0 %v5525
        %5857 = vmatprep.subr.mxu0 %v5523
        %5858 = vmatpush2.msra.mxu0 %v5522
        %5859 = vmatprep.subr.mxu0 %v5520
        %5860 = vmatpush2.msra.mxu0 %v5519
        %5861 = vmatprep.mubr.f32.mxu0 %v5350
        %5862 = vmatmul.mubr.f32.gmra.mxu0 %v5349
        %v5863 = vpop.f32.mrf.mxu0
        %v5864 = vadd.f32 %v5778, %v5863
        %v5865 = vpop.f32.mrf.mxu0
        %5866 = vmatprep.mubr.f32.mxu0 %v5357
        %5867 = vmatmul.mubr.f32.gmra.mxu0 %v5356
        %v5868 = vpop.f32.mrf.mxu0
        %v5869 = vadd.f32 %v5783, %v5868
        %v5870 = vpop.f32.mrf.mxu0
        %v5871 = vadd.f32 %v5785, %v5870
        %5872 = vmatprep.mubr.f32.mxu0 %v5364
        %5873 = vmatmul.mubr.f32.gmra.mxu0 %v5363
        %v5874 = vpop.f32.mrf.mxu0
        %v5875 = vpop.f32.mrf.mxu0
        %v5876 = vadd.f32 %v5790, %v5875
        %5877 = vmatprep.mubr.f32.mxu0 %v5371
        %5878 = vmatmul.mubr.f32.gmra.mxu0 %v5370
        %v5879 = vpop.f32.mrf.mxu0
        %v5880 = vpop.f32.mrf.mxu0
        %v5881 = vadd.f32 %v5795, %v5880
        %5882 = vdwg.mxu0
        %5883 = vmatprep.subr.mxu0 %v5613
        %5884 = vmatpush1.msra.mxu0 %v5612
        %5885 = vmatprep.subr.mxu0 %v5610
        %5886 = vmatpush1.msra.mxu0 %v5609
        %5887 = vmatprep.subr.mxu0 %v5607
        %5888 = vmatpush1.msra.mxu0 %v5606
        %5889 = vmatprep.subr.mxu0 %v5604
        %5890 = vmatpush1.msra.mxu0 %v5603
        %5891 = vmatprep.subr.mxu0 %v5601
        %5892 = vmatpush1.msra.mxu0 %v5600
        %5893 = vmatprep.subr.mxu0 %v5598
        %5894 = vmatpush1.msra.mxu0 %v5597
        %5895 = vmatprep.subr.mxu0 %v5595
        %5896 = vmatpush1.msra.mxu0 %v5594
        %5897 = vmatprep.subr.mxu0 %v5592
        %5898 = vmatpush1.msra.mxu0 %v5591
        %5899 = vmatprep.subr.mxu0 %v5589
        %5900 = vmatpush1.msra.mxu0 %v5588
        %5901 = vmatprep.subr.mxu0 %v5586
        %5902 = vmatpush1.msra.mxu0 %v5585
        %5903 = vmatprep.subr.mxu0 %v5583
        %5904 = vmatpush1.msra.mxu0 %v5582
        %5905 = vmatprep.subr.mxu0 %v5580
        %5906 = vmatpush1.msra.mxu0 %v5579
        %5907 = vmatprep.subr.mxu0 %v5577
        %5908 = vmatpush1.msra.mxu0 %v5576
        %5909 = vmatprep.subr.mxu0 %v5574
        %5910 = vmatpush1.msra.mxu0 %v5573
        %5911 = vmatprep.subr.mxu0 %v5571
        %5912 = vmatpush1.msra.mxu0 %v5570
        %5913 = vmatprep.subr.mxu0 %v5568
        %5914 = vmatpush1.msra.mxu0 %v5567
        %5915 = vmatprep.subr.mxu0 %v5661
        %5916 = vmatpush2.msra.mxu0 %v5660
        %5917 = vmatprep.subr.mxu0 %v5658
        %5918 = vmatpush2.msra.mxu0 %v5657
        %5919 = vmatprep.subr.mxu0 %v5655
        %5920 = vmatpush2.msra.mxu0 %v5654
        %5921 = vmatprep.subr.mxu0 %v5652
        %5922 = vmatpush2.msra.mxu0 %v5651
        %5923 = vmatprep.subr.mxu0 %v5649
        %5924 = vmatpush2.msra.mxu0 %v5648
        %5925 = vmatprep.subr.mxu0 %v5646
        %5926 = vmatpush2.msra.mxu0 %v5645
        %5927 = vmatprep.subr.mxu0 %v5643
        %5928 = vmatpush2.msra.mxu0 %v5642
        %5929 = vmatprep.subr.mxu0 %v5640
        %5930 = vmatpush2.msra.mxu0 %v5639
        %5931 = vmatprep.subr.mxu0 %v5637
        %5932 = vmatpush2.msra.mxu0 %v5636
        %5933 = vmatprep.subr.mxu0 %v5634
        %5934 = vmatpush2.msra.mxu0 %v5633
        %5935 = vmatprep.subr.mxu0 %v5631
        %5936 = vmatpush2.msra.mxu0 %v5630
        %5937 = vmatprep.subr.mxu0 %v5628
        %5938 = vmatpush2.msra.mxu0 %v5627
        %5939 = vmatprep.subr.mxu0 %v5625
        %5940 = vmatpush2.msra.mxu0 %v5624
        %5941 = vmatprep.subr.mxu0 %v5622
        %5942 = vmatpush2.msra.mxu0 %v5621
        %5943 = vmatprep.subr.mxu0 %v5619
        %5944 = vmatpush2.msra.mxu0 %v5618
        %5945 = vmatprep.subr.mxu0 %v5616
        %5946 = vmatpush2.msra.mxu0 %v5615
        %5947 = vmatprep.mubr.f32.mxu0 %v5352
        %5948 = vmatmul.mubr.f32.gmra.mxu0 %v5351
        %v5949 = vpop.f32.mrf.mxu0
        %v5950 = vadd.f32 %v5864, %v5949
        %v5951 = vpop.f32.mrf.mxu0
        %5952 = vmatprep.mubr.f32.mxu0 %v5359
        %5953 = vmatmul.mubr.f32.gmra.mxu0 %v5358
        %v5954 = vpop.f32.mrf.mxu0
        %v5955 = vadd.f32 %v5869, %v5954
        %v5956 = vpop.f32.mrf.mxu0
        %v5957 = vadd.f32 %v5871, %v5956
        %5958 = vmatprep.mubr.f32.mxu0 %v5366
        %5959 = vmatmul.mubr.f32.gmra.mxu0 %v5365
        %v5960 = vpop.f32.mrf.mxu0
        %v5961 = vpop.f32.mrf.mxu0
        %v5962 = vadd.f32 %v5876, %v5961
        %5963 = vmatprep.mubr.f32.mxu0 %v5373
        %5964 = vmatmul.mubr.f32.gmra.mxu0 %v5372
        %v5965 = vpop.f32.mrf.mxu0
        %v5966 = vpop.f32.mrf.mxu0
        %v5967 = vadd.f32 %v5881, %v5966
        %5968 = vdwg.mxu0
        %5969 = vmatprep.subr.mxu0 %v5709
        %5970 = vmatpush1.msra.mxu0 %v5708
        %5971 = vmatprep.subr.mxu0 %v5706
        %5972 = vmatpush1.msra.mxu0 %v5705
        %5973 = vmatprep.subr.mxu0 %v5703
        %5974 = vmatpush1.msra.mxu0 %v5702
        %5975 = vmatprep.subr.mxu0 %v5700
        %5976 = vmatpush1.msra.mxu0 %v5699
        %5977 = vmatprep.subr.mxu0 %v5697
        %5978 = vmatpush1.msra.mxu0 %v5696
        %5979 = vmatprep.subr.mxu0 %v5694
        %5980 = vmatpush1.msra.mxu0 %v5693
        %5981 = vmatprep.subr.mxu0 %v5691
        %5982 = vmatpush1.msra.mxu0 %v5690
        %5983 = vmatprep.subr.mxu0 %v5688
        %5984 = vmatpush1.msra.mxu0 %v5687
        %5985 = vmatprep.subr.mxu0 %v5685
        %5986 = vmatpush1.msra.mxu0 %v5684
        %5987 = vmatprep.subr.mxu0 %v5682
        %5988 = vmatpush1.msra.mxu0 %v5681
        %5989 = vmatprep.subr.mxu0 %v5679
        %5990 = vmatpush1.msra.mxu0 %v5678
        %5991 = vmatprep.subr.mxu0 %v5676
        %5992 = vmatpush1.msra.mxu0 %v5675
        %5993 = vmatprep.subr.mxu0 %v5673
        %5994 = vmatpush1.msra.mxu0 %v5672
        %5995 = vmatprep.subr.mxu0 %v5670
        %5996 = vmatpush1.msra.mxu0 %v5669
        %5997 = vmatprep.subr.mxu0 %v5667
        %5998 = vmatpush1.msra.mxu0 %v5666
        %5999 = vmatprep.subr.mxu0 %v5664
        %6000 = vmatpush1.msra.mxu0 %v5663
        %6001 = vmatprep.subr.mxu0 0.0
        %6002 = vmatpush2.msra.mxu0 0.0
        %6003 = vmatprep.subr.mxu0 0.0
        %6004 = vmatpush2.msra.mxu0 0.0
        %6005 = vmatprep.subr.mxu0 0.0
        %6006 = vmatpush2.msra.mxu0 0.0
        %6007 = vmatprep.subr.mxu0 0.0
        %6008 = vmatpush2.msra.mxu0 0.0
        %6009 = vmatprep.subr.mxu0 0.0
        %6010 = vmatpush2.msra.mxu0 0.0
        %6011 = vmatprep.subr.mxu0 0.0
        %6012 = vmatpush2.msra.mxu0 0.0
        %6013 = vmatprep.subr.mxu0 0.0
        %6014 = vmatpush2.msra.mxu0 0.0
        %6015 = vmatprep.subr.mxu0 0.0
        %6016 = vmatpush2.msra.mxu0 0.0
        %6017 = vmatprep.subr.mxu0 0.0
        %6018 = vmatpush2.msra.mxu0 0.0
        %6019 = vmatprep.subr.mxu0 0.0
        %6020 = vmatpush2.msra.mxu0 0.0
        %6021 = vmatprep.subr.mxu0 0.0
        %6022 = vmatpush2.msra.mxu0 0.0
        %6023 = vmatprep.subr.mxu0 0.0
        %6024 = vmatpush2.msra.mxu0 0.0
        %6025 = vmatprep.subr.mxu0 0.0
        %6026 = vmatpush2.msra.mxu0 0.0
        %6027 = vmatprep.subr.mxu0 0.0
        %6028 = vmatpush2.msra.mxu0 0.0
        %6029 = vmatprep.subr.mxu0 0.0
        %6030 = vmatpush2.msra.mxu0 0.0
        %6031 = vmatprep.subr.mxu0 0.0
        %6032 = vmatpush2.msra.mxu0 0.0
        %6033 = vmatprep.mubr.f32.mxu0 0.0
        %6034 = vmatmul.mubr.f32.gmra.mxu0 %v5353
        %v6035 = vpop.f32.mrf.mxu0
        %v6036 = vadd.f32 %v5950, %v6035
        %v6037 = vpop.f32.mrf.mxu0
        %6038 = vmatprep.mubr.f32.mxu0 0.0
        %6039 = vmatmul.mubr.f32.gmra.mxu0 %v5360
        %v6040 = vpop.f32.mrf.mxu0
        %v6041 = vadd.f32 %v5955, %v6040
        %v6042 = vpop.f32.mrf.mxu0
        %v6043 = vadd.f32 %v5957, %v6042
        %6044 = vmatprep.mubr.f32.mxu0 0.0
        %6045 = vmatmul.mubr.f32.gmra.mxu0 %v5367
        %v6046 = vpop.f32.mrf.mxu0
        %v6047 = vpop.f32.mrf.mxu0
        %v6048 = vadd.f32 %v5962, %v6047
        %6049 = vmatprep.mubr.f32.mxu0 0.0
        %6050 = vmatmul.mubr.f32.gmra.mxu0 %v5374
        %v6051 = vpop.f32.mrf.mxu0
        %v6052 = vpop.f32.mrf.mxu0
        %v6053 = vadd.f32 %v5967, %v6052
        %6054 = vdwg.mxu0
        %6055 = vmatprep.subr.mxu0 0.0
        %6056 = vmatpush1.msra.mxu0 %v5422
        %6057 = vmatprep.subr.mxu0 0.0
        %6058 = vmatpush1.msra.mxu0 %v5419
        %6059 = vmatprep.subr.mxu0 0.0
        %6060 = vmatpush1.msra.mxu0 %v5416
        %6061 = vmatprep.subr.mxu0 0.0
        %6062 = vmatpush1.msra.mxu0 %v5413
        %6063 = vmatprep.subr.mxu0 0.0
        %6064 = vmatpush1.msra.mxu0 %v5410
        %6065 = vmatprep.subr.mxu0 0.0
        %6066 = vmatpush1.msra.mxu0 %v5407
        %6067 = vmatprep.subr.mxu0 0.0
        %6068 = vmatpush1.msra.mxu0 %v5404
        %6069 = vmatprep.subr.mxu0 0.0
        %6070 = vmatpush1.msra.mxu0 %v5401
        %6071 = vmatprep.subr.mxu0 0.0
        %6072 = vmatpush1.msra.mxu0 %v5398
        %6073 = vmatprep.subr.mxu0 0.0
        %6074 = vmatpush1.msra.mxu0 %v5395
        %6075 = vmatprep.subr.mxu0 0.0
        %6076 = vmatpush1.msra.mxu0 %v5392
        %6077 = vmatprep.subr.mxu0 0.0
        %6078 = vmatpush1.msra.mxu0 %v5389
        %6079 = vmatprep.subr.mxu0 0.0
        %6080 = vmatpush1.msra.mxu0 %v5386
        %6081 = vmatprep.subr.mxu0 0.0
        %6082 = vmatpush1.msra.mxu0 %v5383
        %6083 = vmatprep.subr.mxu0 0.0
        %6084 = vmatpush1.msra.mxu0 %v5380
        %6085 = vmatprep.subr.mxu0 0.0
        %6086 = vmatpush1.msra.mxu0 %v5377
        %6087 = vmatprep.subr.mxu0 0.0
        %6088 = vmatpush2.msra.mxu0 %v5470
        %6089 = vmatprep.subr.mxu0 0.0
        %6090 = vmatpush2.msra.mxu0 %v5467
        %6091 = vmatprep.subr.mxu0 0.0
        %6092 = vmatpush2.msra.mxu0 %v5464
        %6093 = vmatprep.subr.mxu0 0.0
        %6094 = vmatpush2.msra.mxu0 %v5461
        %6095 = vmatprep.subr.mxu0 0.0
        %6096 = vmatpush2.msra.mxu0 %v5458
        %6097 = vmatprep.subr.mxu0 0.0
        %6098 = vmatpush2.msra.mxu0 %v5455
        %6099 = vmatprep.subr.mxu0 0.0
        %6100 = vmatpush2.msra.mxu0 %v5452
        %6101 = vmatprep.subr.mxu0 0.0
        %6102 = vmatpush2.msra.mxu0 %v5449
        %6103 = vmatprep.subr.mxu0 0.0
        %6104 = vmatpush2.msra.mxu0 %v5446
        %6105 = vmatprep.subr.mxu0 0.0
        %6106 = vmatpush2.msra.mxu0 %v5443
        %6107 = vmatprep.subr.mxu0 0.0
        %6108 = vmatpush2.msra.mxu0 %v5440
        %6109 = vmatprep.subr.mxu0 0.0
        %6110 = vmatpush2.msra.mxu0 %v5437
        %6111 = vmatprep.subr.mxu0 0.0
        %6112 = vmatpush2.msra.mxu0 %v5434
        %6113 = vmatprep.subr.mxu0 0.0
        %6114 = vmatpush2.msra.mxu0 %v5431
        %6115 = vmatprep.subr.mxu0 0.0
        %6116 = vmatpush2.msra.mxu0 %v5428
        %6117 = vmatprep.subr.mxu0 0.0
        %6118 = vmatpush2.msra.mxu0 %v5425
        %6119 = vmatprep.mubr.f32.mxu0 %v5348
        %6120 = vmatmul.mubr.f32.gmra.mxu0 %v5347
        %v6121 = vpop.f32.mrf.mxu0
        %v6122 = vpop.f32.mrf.mxu0
        %6123 = vmatprep.mubr.f32.mxu0 %v5355
        %6124 = vmatmul.mubr.f32.gmra.mxu0 %v5354
        %v6125 = vpop.f32.mrf.mxu0
        %v6126 = vpop.f32.mrf.mxu0
        %6127 = vmatprep.mubr.f32.mxu0 %v5362
        %6128 = vmatmul.mubr.f32.gmra.mxu0 %v5361
        %v6129 = vpop.f32.mrf.mxu0
        %v6130 = vpop.f32.mrf.mxu0
        %6131 = vmatprep.mubr.f32.mxu0 %v5369
        %6132 = vmatmul.mubr.f32.gmra.mxu0 %v5368
        %v6133 = vpop.f32.mrf.mxu0
        %v6134 = vadd.f32 0.0, %v6133
        %v6135 = vpop.f32.mrf.mxu0
        %6136 = vdwg.mxu0
        %6137 = vmatprep.subr.mxu0 0.0
        %6138 = vmatpush1.msra.mxu0 %v5518
        %6139 = vmatprep.subr.mxu0 0.0
        %6140 = vmatpush1.msra.mxu0 %v5515
        %6141 = vmatprep.subr.mxu0 0.0
        %6142 = vmatpush1.msra.mxu0 %v5512
        %6143 = vmatprep.subr.mxu0 0.0
        %6144 = vmatpush1.msra.mxu0 %v5509
        %6145 = vmatprep.subr.mxu0 0.0
        %6146 = vmatpush1.msra.mxu0 %v5506
        %6147 = vmatprep.subr.mxu0 0.0
        %6148 = vmatpush1.msra.mxu0 %v5503
        %6149 = vmatprep.subr.mxu0 0.0
        %6150 = vmatpush1.msra.mxu0 %v5500
        %6151 = vmatprep.subr.mxu0 0.0
        %6152 = vmatpush1.msra.mxu0 %v5497
        %6153 = vmatprep.subr.mxu0 0.0
        %6154 = vmatpush1.msra.mxu0 %v5494
        %6155 = vmatprep.subr.mxu0 0.0
        %6156 = vmatpush1.msra.mxu0 %v5491
        %6157 = vmatprep.subr.mxu0 0.0
        %6158 = vmatpush1.msra.mxu0 %v5488
        %6159 = vmatprep.subr.mxu0 0.0
        %6160 = vmatpush1.msra.mxu0 %v5485
        %6161 = vmatprep.subr.mxu0 0.0
        %6162 = vmatpush1.msra.mxu0 %v5482
        %6163 = vmatprep.subr.mxu0 0.0
        %6164 = vmatpush1.msra.mxu0 %v5479
        %6165 = vmatprep.subr.mxu0 0.0
        %6166 = vmatpush1.msra.mxu0 %v5476
        %6167 = vmatprep.subr.mxu0 0.0
        %6168 = vmatpush1.msra.mxu0 %v5473
        %6169 = vmatprep.subr.mxu0 0.0
        %6170 = vmatpush2.msra.mxu0 %v5566
        %6171 = vmatprep.subr.mxu0 0.0
        %6172 = vmatpush2.msra.mxu0 %v5563
        %6173 = vmatprep.subr.mxu0 0.0
        %6174 = vmatpush2.msra.mxu0 %v5560
        %6175 = vmatprep.subr.mxu0 0.0
        %6176 = vmatpush2.msra.mxu0 %v5557
        %6177 = vmatprep.subr.mxu0 0.0
        %6178 = vmatpush2.msra.mxu0 %v5554
        %6179 = vmatprep.subr.mxu0 0.0
        %6180 = vmatpush2.msra.mxu0 %v5551
        %6181 = vmatprep.subr.mxu0 0.0
        %6182 = vmatpush2.msra.mxu0 %v5548
        %6183 = vmatprep.subr.mxu0 0.0
        %6184 = vmatpush2.msra.mxu0 %v5545
        %6185 = vmatprep.subr.mxu0 0.0
        %6186 = vmatpush2.msra.mxu0 %v5542
        %6187 = vmatprep.subr.mxu0 0.0
        %6188 = vmatpush2.msra.mxu0 %v5539
        %6189 = vmatprep.subr.mxu0 0.0
        %6190 = vmatpush2.msra.mxu0 %v5536
        %6191 = vmatprep.subr.mxu0 0.0
        %6192 = vmatpush2.msra.mxu0 %v5533
        %6193 = vmatprep.subr.mxu0 0.0
        %6194 = vmatpush2.msra.mxu0 %v5530
        %6195 = vmatprep.subr.mxu0 0.0
        %6196 = vmatpush2.msra.mxu0 %v5527
        %6197 = vmatprep.subr.mxu0 0.0
        %6198 = vmatpush2.msra.mxu0 %v5524
        %6199 = vmatprep.subr.mxu0 0.0
        %6200 = vmatpush2.msra.mxu0 %v5521
        %6201 = vmatprep.mubr.f32.mxu0 %v5350
        %6202 = vmatmul.mubr.f32.gmra.mxu0 %v5349
        %v6203 = vpop.f32.mrf.mxu0
        %v6204 = vpop.f32.mrf.mxu0
        %6205 = vmatprep.mubr.f32.mxu0 %v5357
        %6206 = vmatmul.mubr.f32.gmra.mxu0 %v5356
        %v6207 = vpop.f32.mrf.mxu0
        %v6208 = vpop.f32.mrf.mxu0
        %6209 = vmatprep.mubr.f32.mxu0 %v5364
        %6210 = vmatmul.mubr.f32.gmra.mxu0 %v5363
        %v6211 = vpop.f32.mrf.mxu0
        %v6212 = vpop.f32.mrf.mxu0
        %6213 = vmatprep.mubr.f32.mxu0 %v5371
        %6214 = vmatmul.mubr.f32.gmra.mxu0 %v5370
        %v6215 = vpop.f32.mrf.mxu0
        %v6216 = vadd.f32 %v6134, %v6215
        %v6217 = vpop.f32.mrf.mxu0
        %6218 = vdwg.mxu0
        %6219 = vmatprep.subr.mxu0 0.0
        %6220 = vmatpush1.msra.mxu0 %v5614
        %6221 = vmatprep.subr.mxu0 0.0
        %6222 = vmatpush1.msra.mxu0 %v5611
        %6223 = vmatprep.subr.mxu0 0.0
        %6224 = vmatpush1.msra.mxu0 %v5608
        %6225 = vmatprep.subr.mxu0 0.0
        %6226 = vmatpush1.msra.mxu0 %v5605
        %6227 = vmatprep.subr.mxu0 0.0
        %6228 = vmatpush1.msra.mxu0 %v5602
        %6229 = vmatprep.subr.mxu0 0.0
        %6230 = vmatpush1.msra.mxu0 %v5599
        %6231 = vmatprep.subr.mxu0 0.0
        %6232 = vmatpush1.msra.mxu0 %v5596
        %6233 = vmatprep.subr.mxu0 0.0
        %6234 = vmatpush1.msra.mxu0 %v5593
        %6235 = vmatprep.subr.mxu0 0.0
        %6236 = vmatpush1.msra.mxu0 %v5590
        %6237 = vmatprep.subr.mxu0 0.0
        %6238 = vmatpush1.msra.mxu0 %v5587
        %6239 = vmatprep.subr.mxu0 0.0
        %6240 = vmatpush1.msra.mxu0 %v5584
        %6241 = vmatprep.subr.mxu0 0.0
        %6242 = vmatpush1.msra.mxu0 %v5581
        %6243 = vmatprep.subr.mxu0 0.0
        %6244 = vmatpush1.msra.mxu0 %v5578
        %6245 = vmatprep.subr.mxu0 0.0
        %6246 = vmatpush1.msra.mxu0 %v5575
        %6247 = vmatprep.subr.mxu0 0.0
        %6248 = vmatpush1.msra.mxu0 %v5572
        %6249 = vmatprep.subr.mxu0 0.0
        %6250 = vmatpush1.msra.mxu0 %v5569
        %6251 = vmatprep.subr.mxu0 0.0
        %6252 = vmatpush2.msra.mxu0 %v5662
        %6253 = vmatprep.subr.mxu0 0.0
        %6254 = vmatpush2.msra.mxu0 %v5659
        %6255 = vmatprep.subr.mxu0 0.0
        %6256 = vmatpush2.msra.mxu0 %v5656
        %6257 = vmatprep.subr.mxu0 0.0
        %6258 = vmatpush2.msra.mxu0 %v5653
        %6259 = vmatprep.subr.mxu0 0.0
        %6260 = vmatpush2.msra.mxu0 %v5650
        %6261 = vmatprep.subr.mxu0 0.0
        %6262 = vmatpush2.msra.mxu0 %v5647
        %6263 = vmatprep.subr.mxu0 0.0
        %6264 = vmatpush2.msra.mxu0 %v5644
        %6265 = vmatprep.subr.mxu0 0.0
        %6266 = vmatpush2.msra.mxu0 %v5641
        %6267 = vmatprep.subr.mxu0 0.0
        %6268 = vmatpush2.msra.mxu0 %v5638
        %6269 = vmatprep.subr.mxu0 0.0
        %6270 = vmatpush2.msra.mxu0 %v5635
        %6271 = vmatprep.subr.mxu0 0.0
        %6272 = vmatpush2.msra.mxu0 %v5632
        %6273 = vmatprep.subr.mxu0 0.0
        %6274 = vmatpush2.msra.mxu0 %v5629
        %6275 = vmatprep.subr.mxu0 0.0
        %6276 = vmatpush2.msra.mxu0 %v5626
        %6277 = vmatprep.subr.mxu0 0.0
        %6278 = vmatpush2.msra.mxu0 %v5623
        %6279 = vmatprep.subr.mxu0 0.0
        %6280 = vmatpush2.msra.mxu0 %v5620
        %6281 = vmatprep.subr.mxu0 0.0
        %6282 = vmatpush2.msra.mxu0 %v5617
        %6283 = vmatprep.mubr.f32.mxu0 %v5352
        %6284 = vmatmul.mubr.f32.gmra.mxu0 %v5351
        %v6285 = vpop.f32.mrf.mxu0
        %v6286 = vpop.f32.mrf.mxu0
        %6287 = vmatprep.mubr.f32.mxu0 %v5359
        %6288 = vmatmul.mubr.f32.gmra.mxu0 %v5358
        %v6289 = vpop.f32.mrf.mxu0
        %v6290 = vpop.f32.mrf.mxu0
        %6291 = vmatprep.mubr.f32.mxu0 %v5366
        %6292 = vmatmul.mubr.f32.gmra.mxu0 %v5365
        %v6293 = vpop.f32.mrf.mxu0
        %v6294 = vpop.f32.mrf.mxu0
        %6295 = vmatprep.mubr.f32.mxu0 %v5373
        %6296 = vmatmul.mubr.f32.gmra.mxu0 %v5372
        %v6297 = vpop.f32.mrf.mxu0
        %v6298 = vadd.f32 %v6216, %v6297
        %v6299 = vpop.f32.mrf.mxu0
        %6300 = vdwg.mxu0
        %6301 = vmatprep.subr.mxu0 0.0
        %6302 = vmatpush1.msra.mxu0 %v5710
        %6303 = vmatprep.subr.mxu0 0.0
        %6304 = vmatpush1.msra.mxu0 %v5707
        %6305 = vmatprep.subr.mxu0 0.0
        %6306 = vmatpush1.msra.mxu0 %v5704
        %6307 = vmatprep.subr.mxu0 0.0
        %6308 = vmatpush1.msra.mxu0 %v5701
        %6309 = vmatprep.subr.mxu0 0.0
        %6310 = vmatpush1.msra.mxu0 %v5698
        %6311 = vmatprep.subr.mxu0 0.0
        %6312 = vmatpush1.msra.mxu0 %v5695
        %6313 = vmatprep.subr.mxu0 0.0
        %6314 = vmatpush1.msra.mxu0 %v5692
        %6315 = vmatprep.subr.mxu0 0.0
        %6316 = vmatpush1.msra.mxu0 %v5689
        %6317 = vmatprep.subr.mxu0 0.0
        %6318 = vmatpush1.msra.mxu0 %v5686
        %6319 = vmatprep.subr.mxu0 0.0
        %6320 = vmatpush1.msra.mxu0 %v5683
        %6321 = vmatprep.subr.mxu0 0.0
        %6322 = vmatpush1.msra.mxu0 %v5680
        %6323 = vmatprep.subr.mxu0 0.0
        %6324 = vmatpush1.msra.mxu0 %v5677
        %6325 = vmatprep.subr.mxu0 0.0
        %6326 = vmatpush1.msra.mxu0 %v5674
        %6327 = vmatprep.subr.mxu0 0.0
        %6328 = vmatpush1.msra.mxu0 %v5671
        %6329 = vmatprep.subr.mxu0 0.0
        %6330 = vmatpush1.msra.mxu0 %v5668
        %6331 = vmatprep.subr.mxu0 0.0
        %6332 = vmatpush1.msra.mxu0 %v5665
        %6333 = vmatprep.subr.mxu0 0.0
        %6334 = vmatpush2.msra.mxu0 0.0
        %6335 = vmatprep.subr.mxu0 0.0
        %6336 = vmatpush2.msra.mxu0 0.0
        %6337 = vmatprep.subr.mxu0 0.0
        %6338 = vmatpush2.msra.mxu0 0.0
        %6339 = vmatprep.subr.mxu0 0.0
        %6340 = vmatpush2.msra.mxu0 0.0
        %6341 = vmatprep.subr.mxu0 0.0
        %6342 = vmatpush2.msra.mxu0 0.0
        %6343 = vmatprep.subr.mxu0 0.0
        %6344 = vmatpush2.msra.mxu0 0.0
        %6345 = vmatprep.subr.mxu0 0.0
        %6346 = vmatpush2.msra.mxu0 0.0
        %6347 = vmatprep.subr.mxu0 0.0
        %6348 = vmatpush2.msra.mxu0 0.0
        %6349 = vmatprep.subr.mxu0 0.0
        %6350 = vmatpush2.msra.mxu0 0.0
        %6351 = vmatprep.subr.mxu0 0.0
        %6352 = vmatpush2.msra.mxu0 0.0
        %6353 = vmatprep.subr.mxu0 0.0
        %6354 = vmatpush2.msra.mxu0 0.0
        %6355 = vmatprep.subr.mxu0 0.0
        %6356 = vmatpush2.msra.mxu0 0.0
        %6357 = vmatprep.subr.mxu0 0.0
        %6358 = vmatpush2.msra.mxu0 0.0
        %6359 = vmatprep.subr.mxu0 0.0
        %6360 = vmatpush2.msra.mxu0 0.0
        %6361 = vmatprep.subr.mxu0 0.0
        %6362 = vmatpush2.msra.mxu0 0.0
        %6363 = vmatprep.subr.mxu0 0.0
        %6364 = vmatpush2.msra.mxu0 0.0
        %6365 = vmatprep.mubr.f32.mxu0 0.0
        %6366 = vmatmul.mubr.f32.gmra.mxu0 %v5353
        %v6367 = vpop.f32.mrf.mxu0
        %v6368 = vpop.f32.mrf.mxu0
        %6369 = vmatprep.mubr.f32.mxu0 0.0
        %6370 = vmatmul.mubr.f32.gmra.mxu0 %v5360
        %v6371 = vpop.f32.mrf.mxu0
        %v6372 = vpop.f32.mrf.mxu0
        %6373 = vmatprep.mubr.f32.mxu0 0.0
        %6374 = vmatmul.mubr.f32.gmra.mxu0 %v5367
        %v6375 = vpop.f32.mrf.mxu0
        %v6376 = vpop.f32.mrf.mxu0
        %6377 = vmatprep.mubr.f32.mxu0 0.0
        %6378 = vmatmul.mubr.f32.gmra.mxu0 %v5374
        %v6379 = vpop.f32.mrf.mxu0
        %v6380 = vadd.f32 %v6298, %v6379
        %v6381 = vpop.f32.mrf.mxu0
        %6382 = vdwg.mxu0
        %v6383 = vld [vmem:[%s6] sm:$0x1]
        %v6384 = vadd.f32 %v6383, %v6036
        %v6387 = vunpack.c.l.s4 1966171168
        %v6388 = vunpack.c.0.s8 %v6387
        %v6389 = vlaneseq
        %v6390 = vshrl.u32 %v6389, 7
        %v6391 = vsub.s32 %v6388, %v6390
        %v6392 = vrot.slane %v6036, %v6391
        %v6393 = vcombine.high %v6392, %v6392
        %v6395 = vunpack.c.l.s4 1966171168
        %v6396 = vunpack.c.0.s8 %v6395
        %v6397 = vlaneseq
        %v6398 = vshrl.u32 %v6397, 7
        %v6399 = vsub.s32 %v6396, %v6398
        %v6400 = vrot.slane %v6392, %v6399
        %v6402 = vunpack.c.l.s4 1966171168
        %v6403 = vunpack.c.0.s8 %v6402
        %v6404 = vlaneseq
        %v6405 = vshrl.u32 %v6404, 7
        %v6406 = vsub.s32 %v6403, %v6405
        %v6407 = vrot.slane %v6393, %v6406
        %6408 = vrot.lane.b32.xlu0 %v6407, 118
        %v6409 = vpop.permute.xlu0 %6408
        %v6411 = vadd.f32 %v6384, %v6409
        %v6412 = vcombine.high %v6400, %v6400
        %6413 = vrot.lane.b32.xlu0 %v6412, 108
        %v6414 = vpop.permute.xlu0 %6413
        %v6416 = vadd.f32 %v6411, %v6414
        %v6417 = vcombine.high %v6407, %v6407
        %6418 = vrot.lane.b32.xlu0 %v6417, 98
        %v6419 = vpop.permute.xlu0 %6418
        %v6421 = vadd.f32 %v6416, %v6419
        %v6422 = vcombine.high %v6036, %v6036
        %v6424 = vunpack.c.l.s4 1966171168
        %v6425 = vunpack.c.0.s8 %v6424
        %v6426 = vlaneseq
        %v6427 = vshrl.u32 %v6426, 7
        %v6428 = vsub.s32 %v6425, %v6427
        %v6429 = vrot.slane %v6422, %v6428
        %v6431 = vunpack.c.l.s4 1966171168
        %v6432 = vunpack.c.0.s8 %v6431
        %v6433 = vlaneseq
        %v6434 = vshrl.u32 %v6433, 7
        %v6435 = vsub.s32 %v6432, %v6434
        %v6436 = vrot.slane %v6429, %v6435
        %6437 = vrot.lane.b32.xlu0 %v6436, 88
        %v6438 = vpop.permute.xlu0 %6437
        %v6440 = vadd.f32 %v6421, %v6438
        %v6441 = vcombine.high %v6429, %v6429
        %v6443 = vunpack.c.l.s4 1966171168
        %v6444 = vunpack.c.0.s8 %v6443
        %v6445 = vlaneseq
        %v6446 = vshrl.u32 %v6445, 7
        %v6447 = vsub.s32 %v6444, %v6446
        %v6448 = vrot.slane %v6441, %v6447
        %6449 = vrot.lane.b32.xlu0 %v6448, 78
        %v6450 = vpop.permute.xlu0 %6449
        %v6452 = vadd.f32 %v6440, %v6450
        %v6453 = vcombine.high %v6436, %v6436
        %6454 = vrot.lane.b32.xlu0 %v6453, 68
        %v6455 = vpop.permute.xlu0 %6454
        %v6457 = vadd.f32 %v6452, %v6455
        %v6458 = vcombine.high %v6448, %v6448
        %6459 = vrot.lane.b32.xlu0 %v6458, 58
        %v6460 = vpop.permute.xlu0 %6459
        %v6462 = vadd.f32 %v6457, %v6460
        %v6465 = vunpack.c.l.s4 1966171168
        %v6466 = vunpack.c.0.s8 %v6465
        %v6467 = vlaneseq
        %v6468 = vshrl.u32 %v6467, 7
        %v6469 = vsub.s32 %v6466, %v6468
        %v6470 = vrot.slane %v6041, %v6469
        %v6472 = vunpack.c.l.s4 1966171168
        %v6473 = vunpack.c.0.s8 %v6472
        %v6474 = vlaneseq
        %v6475 = vshrl.u32 %v6474, 7
        %v6476 = vsub.s32 %v6473, %v6475
        %v6477 = vrot.slane %v6470, %v6476
        %6478 = vrot.lane.b32.xlu0 %v6477, 48
        %v6479 = vpop.permute.xlu0 %6478
        %v6481 = vadd.f32 %v6462, %v6479
        %v6482 = vcombine.high %v6470, %v6470
        %v6484 = vunpack.c.l.s4 1966171168
        %v6485 = vunpack.c.0.s8 %v6484
        %v6486 = vlaneseq
        %v6487 = vshrl.u32 %v6486, 7
        %v6488 = vsub.s32 %v6485, %v6487
        %v6489 = vrot.slane %v6482, %v6488
        %6490 = vrot.lane.b32.xlu0 %v6489, 38
        %v6491 = vpop.permute.xlu0 %6490
        %v6493 = vadd.f32 %v6481, %v6491
        %v6494 = vcombine.high %v6477, %v6477
        %6495 = vrot.lane.b32.xlu0 %v6494, 28
        %v6496 = vpop.permute.xlu0 %6495
        %v6498 = vadd.f32 %v6493, %v6496
        %v6499 = vcombine.high %v6489, %v6489
        %6500 = vrot.lane.b32.xlu0 %v6499, 18
        %v6501 = vpop.permute.xlu0 %6500
        %v6503 = vadd.f32 %v6498, %v6501
        %v6505 = vcombine.high %v6041, %v6043
        %v6507 = vunpack.c.l.s4 1966171168
        %v6508 = vunpack.c.0.s8 %v6507
        %v6509 = vlaneseq
        %v6510 = vshrl.u32 %v6509, 7
        %v6511 = vsub.s32 %v6508, %v6510
        %v6512 = vrot.slane %v6505, %v6511
        %v6514 = vunpack.c.l.s4 1966171168
        %v6515 = vunpack.c.0.s8 %v6514
        %v6516 = vlaneseq
        %v6517 = vshrl.u32 %v6516, 7
        %v6518 = vsub.s32 %v6515, %v6517
        %v6519 = vrot.slane %v6512, %v6518
        %6520 = vrot.lane.b32.xlu0 %v6519, 8
        %v6521 = vpop.permute.xlu0 %6520
        %v6522 = vrot.slane %v6521, 1
        %vm6523 = vcmask 64512
        %v6524 = vsel %vm6523, %v6521, %v6522
        %v6526 = vadd.f32 %v6503, %v6524
        %v6527 = vcombine.high %v6043, %v6043
        %v6529 = vunpack.c.l.s4 1966171168
        %v6530 = vunpack.c.0.s8 %v6529
        %v6531 = vlaneseq
        %v6532 = vshrl.u32 %v6531, 7
        %v6533 = vsub.s32 %v6530, %v6532
        %v6534 = vrot.slane %v6527, %v6533
        %v6535 = vcombine.high %v6534, %v6534
        %v6537 = vunpack.c.l.s4 1966171168
        %v6538 = vunpack.c.0.s8 %v6537
        %v6539 = vlaneseq
        %v6540 = vshrl.u32 %v6539, 7
        %v6541 = vsub.s32 %v6538, %v6540
        %v6542 = vrot.slane %v6535, %v6541
        %6543 = vrot.lane.b32.xlu0 %v6542, 126
        %v6544 = vpop.permute.xlu0 %6543
        %v6546 = vadd.f32 %v6526, %v6544
        %v6548 = vunpack.c.l.s4 1966171168
        %v6549 = vunpack.c.0.s8 %v6548
        %v6550 = vlaneseq
        %v6551 = vshrl.u32 %v6550, 7
        %v6552 = vsub.s32 %v6549, %v6551
        %v6553 = vrot.slane %v6534, %v6552
        %v6554 = vcombine.high %v6553, %v6553
        %6555 = vrot.lane.b32.xlu0 %v6554, 116
        %v6556 = vpop.permute.xlu0 %6555
        %v6558 = vadd.f32 %v6546, %v6556
        %v6559 = vcombine.high %v6542, %v6542
        %6560 = vrot.lane.b32.xlu0 %v6559, 106
        %v6561 = vpop.permute.xlu0 %6560
        %v6563 = vadd.f32 %v6558, %v6561
        %v6566 = vunpack.c.l.s4 1966171168
        %v6567 = vunpack.c.0.s8 %v6566
        %v6568 = vlaneseq
        %v6569 = vshrl.u32 %v6568, 7
        %v6570 = vsub.s32 %v6567, %v6569
        %v6571 = vrot.slane %v6048, %v6570
        %v6573 = vunpack.c.l.s4 1966171168
        %v6574 = vunpack.c.0.s8 %v6573
        %v6575 = vlaneseq
        %v6576 = vshrl.u32 %v6575, 7
        %v6577 = vsub.s32 %v6574, %v6576
        %v6578 = vrot.slane %v6571, %v6577
        %6579 = vrot.lane.b32.xlu0 %v6578, 96
        %v6580 = vpop.permute.xlu0 %6579
        %v6582 = vadd.f32 %v6563, %v6580
        %v6583 = vcombine.high %v6571, %v6571
        %v6585 = vunpack.c.l.s4 1966171168
        %v6586 = vunpack.c.0.s8 %v6585
        %v6587 = vlaneseq
        %v6588 = vshrl.u32 %v6587, 7
        %v6589 = vsub.s32 %v6586, %v6588
        %v6590 = vrot.slane %v6583, %v6589
        %6591 = vrot.lane.b32.xlu0 %v6590, 86
        %v6592 = vpop.permute.xlu0 %6591
        %v6594 = vadd.f32 %v6582, %v6592
        %v6595 = vcombine.high %v6578, %v6578
        %6596 = vrot.lane.b32.xlu0 %v6595, 76
        %v6597 = vpop.permute.xlu0 %6596
        %v6599 = vadd.f32 %v6594, %v6597
        %v6600 = vcombine.high %v6590, %v6590
        %6601 = vrot.lane.b32.xlu0 %v6600, 66
        %v6602 = vpop.permute.xlu0 %6601
        %v6604 = vadd.f32 %v6599, %v6602
        %v6605 = vcombine.high %v6048, %v6048
        %v6607 = vunpack.c.l.s4 1966171168
        %v6608 = vunpack.c.0.s8 %v6607
        %v6609 = vlaneseq
        %v6610 = vshrl.u32 %v6609, 7
        %v6611 = vsub.s32 %v6608, %v6610
        %v6612 = vrot.slane %v6605, %v6611
        %v6614 = vunpack.c.l.s4 1966171168
        %v6615 = vunpack.c.0.s8 %v6614
        %v6616 = vlaneseq
        %v6617 = vshrl.u32 %v6616, 7
        %v6618 = vsub.s32 %v6615, %v6617
        %v6619 = vrot.slane %v6612, %v6618
        %6620 = vrot.lane.b32.xlu0 %v6619, 56
        %v6621 = vpop.permute.xlu0 %6620
        %v6623 = vadd.f32 %v6604, %v6621
        %v6624 = vcombine.high %v6612, %v6612
        %v6626 = vunpack.c.l.s4 1966171168
        %v6627 = vunpack.c.0.s8 %v6626
        %v6628 = vlaneseq
        %v6629 = vshrl.u32 %v6628, 7
        %v6630 = vsub.s32 %v6627, %v6629
        %v6631 = vrot.slane %v6624, %v6630
        %6632 = vrot.lane.b32.xlu0 %v6631, 46
        %v6633 = vpop.permute.xlu0 %6632
        %v6635 = vadd.f32 %v6623, %v6633
        %v6636 = vcombine.high %v6619, %v6619
        %6637 = vrot.lane.b32.xlu0 %v6636, 36
        %v6638 = vpop.permute.xlu0 %6637
        %v6640 = vadd.f32 %v6635, %v6638
        %v6641 = vcombine.high %v6631, %v6631
        %6642 = vrot.lane.b32.xlu0 %v6641, 26
        %v6643 = vpop.permute.xlu0 %6642
        %v6645 = vadd.f32 %v6640, %v6643
        %v6648 = vunpack.c.l.s4 1966171168
        %v6649 = vunpack.c.0.s8 %v6648
        %v6650 = vlaneseq
        %v6651 = vshrl.u32 %v6650, 7
        %v6652 = vsub.s32 %v6649, %v6651
        %v6653 = vrot.slane %v6053, %v6652
        %v6655 = vunpack.c.l.s4 1966171168
        %v6656 = vunpack.c.0.s8 %v6655
        %v6657 = vlaneseq
        %v6658 = vshrl.u32 %v6657, 7
        %v6659 = vsub.s32 %v6656, %v6658
        %v6660 = vrot.slane %v6653, %v6659
        %6661 = vrot.lane.b32.xlu0 %v6660, 16
        %v6662 = vpop.permute.xlu0 %6661
        %v6664 = vadd.f32 %v6645, %v6662
        %v6666 = vcombine.low %v6053, %v6380
        %v6668 = vunpack.c.l.s4 1966171168
        %v6669 = vunpack.c.0.s8 %v6668
        %v6670 = vlaneseq
        %v6671 = vshrl.u32 %v6670, 7
        %v6672 = vsub.s32 %v6669, %v6671
        %v6673 = vrot.slane %v6666, %v6672
        %v6674 = vcombine.high %v6673, %v6673
        %v6676 = vunpack.c.l.s4 1966171168
        %v6677 = vunpack.c.0.s8 %v6676
        %v6678 = vlaneseq
        %v6679 = vshrl.u32 %v6678, 7
        %v6680 = vsub.s32 %v6677, %v6679
        %v6681 = vrot.slane %v6674, %v6680
        %6682 = vrot.lane.b32.xlu0 %v6681, 6
        %v6683 = vpop.permute.xlu0 %6682
        %v6684 = vrot.slane %v6683, 1
        %vm6685 = vcmask 48128
        %v6686 = vsel %vm6685, %v6683, %v6684
        %v6688 = vadd.f32 %v6664, %v6686
        %v6690 = vunpack.c.l.s4 1966171168
        %v6691 = vunpack.c.0.s8 %v6690
        %v6692 = vlaneseq
        %v6693 = vshrl.u32 %v6692, 7
        %v6694 = vsub.s32 %v6691, %v6693
        %v6695 = vrot.slane %v6380, %v6694
        %v6697 = vunpack.c.l.s4 1966171168
        %v6698 = vunpack.c.0.s8 %v6697
        %v6699 = vlaneseq
        %v6700 = vshrl.u32 %v6699, 7
        %v6701 = vsub.s32 %v6698, %v6700
        %v6702 = vrot.slane %v6695, %v6701
        %v6703 = vcombine.high %v6702, %v6702
        %6704 = vrot.lane.b32.xlu0 %v6703, 124
        %v6705 = vpop.permute.xlu0 %6704
        %v6707 = vadd.f32 %v6688, %v6705
        %v6708 = vcombine.high %v6695, %v6695
        %v6710 = vunpack.c.l.s4 1966171168
        %v6711 = vunpack.c.0.s8 %v6710
        %v6712 = vlaneseq
        %v6713 = vshrl.u32 %v6712, 7
        %v6714 = vsub.s32 %v6711, %v6713
        %v6715 = vrot.slane %v6708, %v6714
        %v6716 = vcombine.high %v6715, %v6715
        %6717 = vrot.lane.b32.xlu0 %v6716, 114
        %v6718 = vpop.permute.xlu0 %6717
        %v6720 = vadd.f32 %v6707, %v6718
        %v6721 = vcombine.high %v6380, %v6380
        %v6723 = vunpack.c.l.s4 1966171168
        %v6724 = vunpack.c.0.s8 %v6723
        %v6725 = vlaneseq
        %v6726 = vshrl.u32 %v6725, 7
        %v6727 = vsub.s32 %v6724, %v6726
        %v6728 = vrot.slane %v6721, %v6727
        %v6730 = vunpack.c.l.s4 1966171168
        %v6731 = vunpack.c.0.s8 %v6730
        %v6732 = vlaneseq
        %v6733 = vshrl.u32 %v6732, 7
        %v6734 = vsub.s32 %v6731, %v6733
        %v6735 = vrot.slane %v6728, %v6734
        %6736 = vrot.lane.b32.xlu0 %v6735, 104
        %v6737 = vpop.permute.xlu0 %6736
        %v6739 = vadd.f32 %v6720, %v6737
        %v6740 = vcombine.high %v6728, %v6728
        %v6742 = vunpack.c.l.s4 1966171168
        %v6743 = vunpack.c.0.s8 %v6742
        %v6744 = vlaneseq
        %v6745 = vshrl.u32 %v6744, 7
        %v6746 = vsub.s32 %v6743, %v6745
        %v6747 = vrot.slane %v6740, %v6746
        %6748 = vrot.lane.b32.xlu0 %v6747, 94
        %v6749 = vpop.permute.xlu0 %6748
        %v6751 = vadd.f32 %v6739, %v6749
        %v6752 = vcombine.high %v6735, %v6735
        %6753 = vrot.lane.b32.xlu0 %v6752, 84
        %v6754 = vpop.permute.xlu0 %6753
        %v6756 = vadd.f32 %v6751, %v6754
        %v6757 = vcombine.high %v6747, %v6747
        %6758 = vrot.lane.b32.xlu0 %v6757, 74
        %v6759 = vpop.permute.xlu0 %6758
        %v6761 = vadd.f32 %v6756, %v6759
        %vm6762 = vcmask 73728
        %6763 = vst.msk [vmem:[%s268] sm:$0x1] %vm6762, %v6761
        %s6764 = sand.u32 %s181, 1
        %s6765 = scalar_lea.sflag [#allocation6], %s6764
        %s6766 = sand.u32 %s181, 1
        %s6767 = scalar_lea.vmem [#allocation5], %s6766
        // Predicated region
        $region49: #{cnn_forward.1} parent=47 // pred_check
          %p6768 = pneg %p191
        $region50: #{cnn_forward.1} parent=47 // pred_check_branch
          %6770 = sbr.rel (%p6768) target = $region52
        $region51: #{cnn_forward.1} parent=47 // pred_region
          %s6772 = ssub.s32 16, 16
          %6773 = vsyncadd %s6765, %s6772
          %s6774 = smul.addr %s21, 16
          %s6775 = scalar_lea.hbm %s7, %s6774
          %s6777 = sshll.u32 %s6767, 4
          %s6778 = int_to_ptr.vmem [resolvable:$true] %s6777
          %6780 = dma.vmem_to_hbm [thread:$0]  %s6778, 16, %s6775, %s6765
        $region52: #{cnn_forward.1} parent=47 // pred_fallthru
          _
      $region48: #{cnn_forward.1} parent=5 // pred_fallthru
        _
      %p6781 = scmp.le.s32.totalorder 2, %s16
      // Predicated region
      $region53: #{cnn_forward.1} parent=5 // pred_check
        %p6782 = pneg %p6781
      $region54: #{cnn_forward.1} parent=5 // pred_check_branch
        %6784 = sbr.rel (%p6782) target = $region56
      $region55: #{cnn_forward.1} parent=5 // pred_region
        %s6785 = ssub.s32 %s16, 2
        // Predicated region
        $region57: #{cnn_forward.1} parent=55 // pred_check
          %p6786 = pneg %p197
        $region58: #{cnn_forward.1} parent=55 // pred_check_branch
          %6788 = sbr.rel (%p6786) target = $region60
        $region59: #{cnn_forward.1} parent=55 // pred_region
          %s6789 = sand.u32 %s182, 1
          %s6790 = scalar_lea.sflag [#allocation6], %s6789
          %s6791 = sand.u32 %s182, 1
          %s6792 = scalar_lea.vmem [#allocation5], %s6791
          %6793 = dma.done %s6790, 16
        $region60: #{cnn_forward.1} parent=55 // pred_fallthru
          _
      $region56: #{cnn_forward.1} parent=5 // pred_fallthru
        _
    $region6: #{cnn_forward.1} parent=1 // loop_footer
      %s20 = sadd.s32 1, %s16
    $region7: #{cnn_forward.1} parent=1 // loop_footer_branch
      %15 = sbr.rel target = $region3
    $region8: #{cnn_forward.1} parent=1 // loop_exit
      _
    %6794 = vsyncpa [#allocation6], 1
    %s6795 = scalar_lea.sflag [#allocation6], 1
    %6796 = vsyncpa %s6795, 1

</llo_original>
